<compile_context>
chip_gen: v6e
topology: v6e:2x2x1
jax: 0.10.0
libtpu: 0.0.40
codegen_flags: <defaults>
</compile_context>

<pallas_src>
import functools

import jax
import jax.numpy as jnp
from jax.experimental import pallas as pl
from jax.experimental.pallas import tpu as pltpu


# ------------------------------ fused kernel -------------------------------

def _fused_model_kernel(x_ref, *refs, treedef, n):
    """One grid step == one graph: every RegularBlock + last_mlp, all in VMEM."""
    o_ref = refs[-1]
    params = jax.tree_util.tree_unflatten(treedef, refs[:-1])
    nn = n * n

    # (1, n*n, Cin) -> (n*n, Cin); pixels on sublanes, channels on lanes.
    x = x_ref[...].reshape(nn, x_ref.shape[-1]).astype(jnp.float32)

    def conv1x1(h, w_ref, b_ref, relu):
        # 1x1 conv == per-pixel matmul over channels. Bias is a (1, C) VMEM
        # block loaded once per grid step (broadcast over sublanes).
        h = jnp.dot(h, w_ref[...], preferred_element_type=jnp.float32) + b_ref[...]
        return jnp.maximum(h, 0.0) if relu else h

    for blk in params["reg_blocks"]:
        # --- the two MLP stacks (depth_of_mlp x [conv1x1 + ReLU]) ---
        m1 = x
        for lyr in blk["mlp1"]:
            m1 = conv1x1(m1, lyr["w"], lyr["b"], relu=True)
        m2 = x
        for lyr in blk["mlp2"]:
            m2 = conv1x1(m2, lyr["w"], lyr["b"], relu=True)

        c = m1.shape[-1]
        # Safe reshapes: last (lane) dim unchanged, sublane split is a
        # multiple of 8 -> no data movement.
        m1r = m1.reshape(n, n, c)          # (i, j, ch)
        m2r = m2.reshape(n, n, c)          # (j, k, ch)

        # Per-channel spatial matmul, channels-last, on the VPU:
        #   mult[i, k, ch] = sum_j m1[i, j, ch] * m2[j, k, ch]
        mult = jnp.zeros((n, n, c), jnp.float32)
        for j in range(n):                 # static unroll; n is small
            mult = mult + m1r[:, j:j + 1, :] * m2r[j:j + 1, :, :]
        mult = mult.reshape(nn, c)

        # Skip connection: conv1x1(cat([x, mult], channels)) without the
        # concat -- weight rows are split into the x part and the mult part.
        x = (jnp.dot(x, blk["skip_wx"][...], preferred_element_type=jnp.float32)
             + jnp.dot(mult, blk["skip_wm"][...], preferred_element_type=jnp.float32)
             + blk["skip_b"][...])

    # Final 1x1 conv (Simple_Edge_Embedding.last_mlp), no ReLU, fused here so
    # the base-model output never hits HBM.
    out = (jnp.dot(x, params["last_w"][...], preferred_element_type=jnp.float32)
           + params["last_b"][...])
    o_ref[...] = out[None].astype(o_ref.dtype)


# --------------------------------- wrapper ---------------------------------

def simple_edge_embedding_forward(x, params):
    """x: (bs, n, n, original_features_num) -> (bs, n, n, out_features)."""
    bs, n, n2, cin = x.shape
    assert n == n2
    nn = n * n
    fout = params["last_b"].shape[-1]

    leaves, treedef = jax.tree_util.tree_flatten(params)
    xf = x.reshape(bs, nn, cin)            # free row-major merge of the n dims

    in_specs = [pl.BlockSpec((1, nn, cin), lambda b: (b, 0, 0))]
    for leaf in leaves:                    # tiny weights: full-array blocks
        in_specs.append(pl.BlockSpec(leaf.shape, lambda b, nd=leaf.ndim: (0,) * nd))

    out = pl.pallas_call(
        functools.partial(_fused_model_kernel, treedef=treedef, n=n),
        out_shape=jax.ShapeDtypeStruct((bs, nn, fout), x.dtype),
        grid=(bs,),
        in_specs=in_specs,
        out_specs=pl.BlockSpec((1, nn, fout), lambda b: (b, 0, 0)),
        compiler_params=pltpu.CompilerParams(
            dimension_semantics=("parallel",)),
    )(xf, *leaves)
    return out.reshape(bs, n, n, fout)


# ---------------------------- parameter setup ------------------------------

def _init_conv(key, cin, cout):
    kw, kb = jax.random.split(key)
    scale = 1.0 / jnp.sqrt(jnp.float32(cin))
    w = jax.random.uniform(kw, (cin, cout), jnp.float32, -scale, scale)
    b = jax.random.uniform(kb, (1, cout), jnp.float32, -scale, scale)
    return w, b


def init_params(key, original_features_num, num_blocks, in_features,
                out_features, depth_of_mlp):
    def mlp_stack(k, cin, cout, depth):
        layers, c = [], cin
        for _ in range(depth):
            k, kk = jax.random.split(k)
            w, b = _init_conv(kk, c, cout)
            layers.append({"w": w, "b": b})
            c = cout
        return layers

    params = {"reg_blocks": []}
    last = original_features_num
    # Simple_Edge_Embedding builds BaseModel(..., in_features, in_features, ..)
    # so every RegularBlock outputs in_features channels.
    for _ in range(num_blocks):
        blk_out = in_features
        key, k1, k2, k3 = jax.random.split(key, 4)
        skip_w, skip_b = _init_conv(k3, last + blk_out, blk_out)
        params["reg_blocks"].append({
            "mlp1": mlp_stack(k1, last, blk_out, depth_of_mlp),
            "mlp2": mlp_stack(k2, last, blk_out, depth_of_mlp),
            "skip_wx": skip_w[:last],       # rows acting on the block input x
            "skip_wm": skip_w[last:],       # rows acting on the matmul result
            "skip_b": skip_b,
        })
        last = blk_out
    key, kl = jax.random.split(key)
    w, b = _init_conv(kl, in_features, out_features)
    params["last_w"] = w
    params["last_b"] = b
    return params


# ---------------------------- pure-JAX reference ---------------------------

def _reference_forward(x, params):
    hp = jax.lax.Precision.HIGHEST

    def conv(h, w, b, relu):
        h = jnp.einsum("bijc,cd->bijd", h, w, precision=hp) + b[0]
        return jnp.maximum(h, 0.0) if relu else h

    h = x
    for blk in params["reg_blocks"]:
        m1 = h
        for lyr in blk["mlp1"]:
            m1 = conv(m1, lyr["w"], lyr["b"], True)
        m2 = h
        for lyr in blk["mlp2"]:
            m2 = conv(m2, lyr["w"], lyr["b"], True)
        mult = jnp.einsum("bijc,bjkc->bikc", m1, m2, precision=hp)
        h = (jnp.einsum("bijc,cd->bijd", h, blk["skip_wx"], precision=hp)
             + jnp.einsum("bijc,cd->bijd", mult, blk["skip_wm"], precision=hp)
             + blk["skip_b"][0])
    return (jnp.einsum("bijc,cd->bijd", h, params["last_w"], precision=hp)
            + params["last_b"][0])


# ----------------------------------- main -----------------------------------

if __name__ == "__main__":
    original_features_num = 4
    num_blocks = 2
    in_features = 8
    out_features = 16
    depth_of_mlp = 2
    bs, n = 2, 16

    key = jax.random.PRNGKey(0)
    key, kx, kp = jax.random.split(key, 3)
    x = jax.random.normal(kx, (bs, n, n, original_features_num), jnp.float32)
    params = init_params(kp, original_features_num, num_blocks, in_features,
                         out_features, depth_of_mlp)

    fwd = jax.jit(simple_edge_embedding_forward)
    out = fwd(x, params)
    jax.block_until_ready(out)
    assert out.shape == (bs, n, n, out_features)

    ref = _reference_forward(x, params)
    max_err = float(jnp.max(jnp.abs(out - ref)))
    assert max_err < 2e-2, f"kernel/reference mismatch: max_err={max_err}"

    print("KERNEL_OK")
</pallas_src>

<mosaic_0001>
module attributes {stable_mosaic.version = 11 : i64} {
  func.func @_fused_model_kernel(%arg0: i32, %arg1: memref<1x256x4xf32, #tpu.memory_space<vmem>>, %arg2: memref<1x16xf32, #tpu.memory_space<vmem>>, %arg3: memref<8x16xf32, #tpu.memory_space<vmem>>, %arg4: memref<1x8xf32, #tpu.memory_space<vmem>>, %arg5: memref<4x8xf32, #tpu.memory_space<vmem>>, %arg6: memref<1x8xf32, #tpu.memory_space<vmem>>, %arg7: memref<8x8xf32, #tpu.memory_space<vmem>>, %arg8: memref<1x8xf32, #tpu.memory_space<vmem>>, %arg9: memref<4x8xf32, #tpu.memory_space<vmem>>, %arg10: memref<1x8xf32, #tpu.memory_space<vmem>>, %arg11: memref<8x8xf32, #tpu.memory_space<vmem>>, %arg12: memref<1x8xf32, #tpu.memory_space<vmem>>, %arg13: memref<8x8xf32, #tpu.memory_space<vmem>>, %arg14: memref<4x8xf32, #tpu.memory_space<vmem>>, %arg15: memref<1x8xf32, #tpu.memory_space<vmem>>, %arg16: memref<8x8xf32, #tpu.memory_space<vmem>>, %arg17: memref<1x8xf32, #tpu.memory_space<vmem>>, %arg18: memref<8x8xf32, #tpu.memory_space<vmem>>, %arg19: memref<1x8xf32, #tpu.memory_space<vmem>>, %arg20: memref<8x8xf32, #tpu.memory_space<vmem>>, %arg21: memref<1x8xf32, #tpu.memory_space<vmem>>, %arg22: memref<8x8xf32, #tpu.memory_space<vmem>>, %arg23: memref<1x8xf32, #tpu.memory_space<vmem>>, %arg24: memref<8x8xf32, #tpu.memory_space<vmem>>, %arg25: memref<8x8xf32, #tpu.memory_space<vmem>>, %arg26: memref<1x256x16xf32, #tpu.memory_space<vmem>>) attributes {dimension_semantics = [#tpu.dimension_semantics<parallel>], iteration_bounds = array<i64: 2>, scalar_prefetch = 0 : i64, scratch_operands = 0 : i64, tpu.core_type = #tpu.core_type<tc>, window_params = [{transform_indices = @transform_0, window_bounds = array<i64: 1, 256, 4>}, {pipeline_mode = #tpu.pipeline_mode<synchronous>, transform_indices = @transform_1, window_bounds = array<i64: 1, 16>}, {pipeline_mode = #tpu.pipeline_mode<synchronous>, transform_indices = @transform_2, window_bounds = array<i64: 8, 16>}, {pipeline_mode = #tpu.pipeline_mode<synchronous>, transform_indices = @transform_3, window_bounds = array<i64: 1, 8>}, {pipeline_mode = #tpu.pipeline_mode<synchronous>, transform_indices = @transform_4, window_bounds = array<i64: 4, 8>}, {pipeline_mode = #tpu.pipeline_mode<synchronous>, transform_indices = @transform_5, window_bounds = array<i64: 1, 8>}, {pipeline_mode = #tpu.pipeline_mode<synchronous>, transform_indices = @transform_6, window_bounds = array<i64: 8, 8>}, {pipeline_mode = #tpu.pipeline_mode<synchronous>, transform_indices = @transform_7, window_bounds = array<i64: 1, 8>}, {pipeline_mode = #tpu.pipeline_mode<synchronous>, transform_indices = @transform_8, window_bounds = array<i64: 4, 8>}, {pipeline_mode = #tpu.pipeline_mode<synchronous>, transform_indices = @transform_9, window_bounds = array<i64: 1, 8>}, {pipeline_mode = #tpu.pipeline_mode<synchronous>, transform_indices = @transform_10, window_bounds = array<i64: 8, 8>}, {pipeline_mode = #tpu.pipeline_mode<synchronous>, transform_indices = @transform_11, window_bounds = array<i64: 1, 8>}, {pipeline_mode = #tpu.pipeline_mode<synchronous>, transform_indices = @transform_12, window_bounds = array<i64: 8, 8>}, {pipeline_mode = #tpu.pipeline_mode<synchronous>, transform_indices = @transform_13, window_bounds = array<i64: 4, 8>}, {pipeline_mode = #tpu.pipeline_mode<synchronous>, transform_indices = @transform_14, window_bounds = array<i64: 1, 8>}, {pipeline_mode = #tpu.pipeline_mode<synchronous>, transform_indices = @transform_15, window_bounds = array<i64: 8, 8>}, {pipeline_mode = #tpu.pipeline_mode<synchronous>, transform_indices = @transform_16, window_bounds = array<i64: 1, 8>}, {pipeline_mode = #tpu.pipeline_mode<synchronous>, transform_indices = @transform_17, window_bounds = array<i64: 8, 8>}, {pipeline_mode = #tpu.pipeline_mode<synchronous>, transform_indices = @transform_18, window_bounds = array<i64: 1, 8>}, {pipeline_mode = #tpu.pipeline_mode<synchronous>, transform_indices = @transform_19, window_bounds = array<i64: 8, 8>}, {pipeline_mode = #tpu.pipeline_mode<synchronous>, transform_indices = @transform_20, window_bounds = array<i64: 1, 8>}, {pipeline_mode = #tpu.pipeline_mode<synchronous>, transform_indices = @transform_21, window_bounds = array<i64: 8, 8>}, {pipeline_mode = #tpu.pipeline_mode<synchronous>, transform_indices = @transform_22, window_bounds = array<i64: 1, 8>}, {pipeline_mode = #tpu.pipeline_mode<synchronous>, transform_indices = @transform_23, window_bounds = array<i64: 8, 8>}, {pipeline_mode = #tpu.pipeline_mode<synchronous>, transform_indices = @transform_24, window_bounds = array<i64: 8, 8>}, {transform_indices = @transform_25, window_bounds = array<i64: 1, 256, 16>}]} {
    %c0 = arith.constant 0 : index
    %c0_0 = arith.constant 0 : index
    %c0_1 = arith.constant 0 : index
    %0 = vector.load %arg1[%c0, %c0_0, %c0_1] : memref<1x256x4xf32, #tpu.memory_space<vmem>>, vector<1x256x4xf32>
    %1 = vector.shape_cast %0 : vector<1x256x4xf32> to vector<256x4xf32>
    %c0_2 = arith.constant 0 : index
    %c0_3 = arith.constant 0 : index
    %2 = vector.load %arg5[%c0_2, %c0_3] : memref<4x8xf32, #tpu.memory_space<vmem>>, vector<4x8xf32>
    %cst = arith.constant dense<0.000000e+00> : vector<256x8xf32>
    %3 = tpu.matmul %1, %2, %cst {dimension_numbers = #tpu.dot_dimension_numbers<[1], [0], [0], [1], [0, 0, 1, 1], [], []>} : vector<256x4xf32>, vector<4x8xf32>, vector<256x8xf32> -> vector<256x8xf32>
    %c0_4 = arith.constant 0 : index
    %c0_5 = arith.constant 0 : index
    %4 = vector.load %arg4[%c0_4, %c0_5] : memref<1x8xf32, #tpu.memory_space<vmem>>, vector<1x8xf32>
    %5 = vector.broadcast %4 : vector<1x8xf32> to vector<256x8xf32>
    %6 = arith.addf %3, %5 : vector<256x8xf32>
    %cst_6 = arith.constant 0.000000e+00 : f32
    %7 = vector.broadcast %cst_6 : f32 to vector<256x8xf32>
    %8 = arith.maximumf %6, %7 : vector<256x8xf32>
    %c0_7 = arith.constant 0 : index
    %c0_8 = arith.constant 0 : index
    %9 = vector.load %arg7[%c0_7, %c0_8] : memref<8x8xf32, #tpu.memory_space<vmem>>, vector<8x8xf32>
    %cst_9 = arith.constant dense<0.000000e+00> : vector<256x8xf32>
    %10 = tpu.matmul %8, %9, %cst_9 {dimension_numbers = #tpu.dot_dimension_numbers<[1], [0], [0], [1], [0, 0, 1, 1], [], []>} : vector<256x8xf32>, vector<8x8xf32>, vector<256x8xf32> -> vector<256x8xf32>
    %c0_10 = arith.constant 0 : index
    %c0_11 = arith.constant 0 : index
    %11 = vector.load %arg6[%c0_10, %c0_11] : memref<1x8xf32, #tpu.memory_space<vmem>>, vector<1x8xf32>
    %12 = vector.broadcast %11 : vector<1x8xf32> to vector<256x8xf32>
    %13 = arith.addf %10, %12 : vector<256x8xf32>
    %cst_12 = arith.constant 0.000000e+00 : f32
    %14 = vector.broadcast %cst_12 : f32 to vector<256x8xf32>
    %15 = arith.maximumf %13, %14 : vector<256x8xf32>
    %c0_13 = arith.constant 0 : index
    %c0_14 = arith.constant 0 : index
    %16 = vector.load %arg9[%c0_13, %c0_14] : memref<4x8xf32, #tpu.memory_space<vmem>>, vector<4x8xf32>
    %cst_15 = arith.constant dense<0.000000e+00> : vector<256x8xf32>
    %17 = tpu.matmul %1, %16, %cst_15 {dimension_numbers = #tpu.dot_dimension_numbers<[1], [0], [0], [1], [0, 0, 1, 1], [], []>} : vector<256x4xf32>, vector<4x8xf32>, vector<256x8xf32> -> vector<256x8xf32>
    %c0_16 = arith.constant 0 : index
    %c0_17 = arith.constant 0 : index
    %18 = vector.load %arg8[%c0_16, %c0_17] : memref<1x8xf32, #tpu.memory_space<vmem>>, vector<1x8xf32>
    %19 = vector.broadcast %18 : vector<1x8xf32> to vector<256x8xf32>
    %20 = arith.addf %17, %19 : vector<256x8xf32>
    %cst_18 = arith.constant 0.000000e+00 : f32
    %21 = vector.broadcast %cst_18 : f32 to vector<256x8xf32>
    %22 = arith.maximumf %20, %21 : vector<256x8xf32>
    %c0_19 = arith.constant 0 : index
    %c0_20 = arith.constant 0 : index
    %23 = vector.load %arg11[%c0_19, %c0_20] : memref<8x8xf32, #tpu.memory_space<vmem>>, vector<8x8xf32>
    %cst_21 = arith.constant dense<0.000000e+00> : vector<256x8xf32>
    %24 = tpu.matmul %22, %23, %cst_21 {dimension_numbers = #tpu.dot_dimension_numbers<[1], [0], [0], [1], [0, 0, 1, 1], [], []>} : vector<256x8xf32>, vector<8x8xf32>, vector<256x8xf32> -> vector<256x8xf32>
    %c0_22 = arith.constant 0 : index
    %c0_23 = arith.constant 0 : index
    %25 = vector.load %arg10[%c0_22, %c0_23] : memref<1x8xf32, #tpu.memory_space<vmem>>, vector<1x8xf32>
    %26 = vector.broadcast %25 : vector<1x8xf32> to vector<256x8xf32>
    %27 = arith.addf %24, %26 : vector<256x8xf32>
    %cst_24 = arith.constant 0.000000e+00 : f32
    %28 = vector.broadcast %cst_24 : f32 to vector<256x8xf32>
    %29 = arith.maximumf %27, %28 : vector<256x8xf32>
    %30 = vector.shape_cast %15 : vector<256x8xf32> to vector<16x16x8xf32>
    %31 = vector.shape_cast %29 : vector<256x8xf32> to vector<16x16x8xf32>
    %cst_25 = arith.constant 0.000000e+00 : f32
    %32 = vector.broadcast %cst_25 : f32 to vector<16x16x8xf32>
    %33 = vector.extract_strided_slice %30 {offsets = [0, 0, 0], sizes = [16, 1, 8], strides = [1, 1, 1]} : vector<16x16x8xf32> to vector<16x1x8xf32>
    %34 = vector.extract_strided_slice %31 {offsets = [0, 0, 0], sizes = [1, 16, 8], strides = [1, 1, 1]} : vector<16x16x8xf32> to vector<1x16x8xf32>
    %35 = vector.broadcast %33 : vector<16x1x8xf32> to vector<16x16x8xf32>
    %36 = vector.broadcast %34 : vector<1x16x8xf32> to vector<16x16x8xf32>
    %37 = arith.mulf %35, %36 : vector<16x16x8xf32>
    %38 = arith.addf %32, %37 : vector<16x16x8xf32>
    %39 = vector.extract_strided_slice %30 {offsets = [0, 1, 0], sizes = [16, 1, 8], strides = [1, 1, 1]} : vector<16x16x8xf32> to vector<16x1x8xf32>
    %40 = vector.extract_strided_slice %31 {offsets = [1, 0, 0], sizes = [1, 16, 8], strides = [1, 1, 1]} : vector<16x16x8xf32> to vector<1x16x8xf32>
    %41 = vector.broadcast %39 : vector<16x1x8xf32> to vector<16x16x8xf32>
    %42 = vector.broadcast %40 : vector<1x16x8xf32> to vector<16x16x8xf32>
    %43 = arith.mulf %41, %42 : vector<16x16x8xf32>
    %44 = arith.addf %38, %43 : vector<16x16x8xf32>
    %45 = vector.extract_strided_slice %30 {offsets = [0, 2, 0], sizes = [16, 1, 8], strides = [1, 1, 1]} : vector<16x16x8xf32> to vector<16x1x8xf32>
    %46 = vector.extract_strided_slice %31 {offsets = [2, 0, 0], sizes = [1, 16, 8], strides = [1, 1, 1]} : vector<16x16x8xf32> to vector<1x16x8xf32>
    %47 = vector.broadcast %45 : vector<16x1x8xf32> to vector<16x16x8xf32>
    %48 = vector.broadcast %46 : vector<1x16x8xf32> to vector<16x16x8xf32>
    %49 = arith.mulf %47, %48 : vector<16x16x8xf32>
    %50 = arith.addf %44, %49 : vector<16x16x8xf32>
    %51 = vector.extract_strided_slice %30 {offsets = [0, 3, 0], sizes = [16, 1, 8], strides = [1, 1, 1]} : vector<16x16x8xf32> to vector<16x1x8xf32>
    %52 = vector.extract_strided_slice %31 {offsets = [3, 0, 0], sizes = [1, 16, 8], strides = [1, 1, 1]} : vector<16x16x8xf32> to vector<1x16x8xf32>
    %53 = vector.broadcast %51 : vector<16x1x8xf32> to vector<16x16x8xf32>
    %54 = vector.broadcast %52 : vector<1x16x8xf32> to vector<16x16x8xf32>
    %55 = arith.mulf %53, %54 : vector<16x16x8xf32>
    %56 = arith.addf %50, %55 : vector<16x16x8xf32>
    %57 = vector.extract_strided_slice %30 {offsets = [0, 4, 0], sizes = [16, 1, 8], strides = [1, 1, 1]} : vector<16x16x8xf32> to vector<16x1x8xf32>
    %58 = vector.extract_strided_slice %31 {offsets = [4, 0, 0], sizes = [1, 16, 8], strides = [1, 1, 1]} : vector<16x16x8xf32> to vector<1x16x8xf32>
    %59 = vector.broadcast %57 : vector<16x1x8xf32> to vector<16x16x8xf32>
    %60 = vector.broadcast %58 : vector<1x16x8xf32> to vector<16x16x8xf32>
    %61 = arith.mulf %59, %60 : vector<16x16x8xf32>
    %62 = arith.addf %56, %61 : vector<16x16x8xf32>
    %63 = vector.extract_strided_slice %30 {offsets = [0, 5, 0], sizes = [16, 1, 8], strides = [1, 1, 1]} : vector<16x16x8xf32> to vector<16x1x8xf32>
    %64 = vector.extract_strided_slice %31 {offsets = [5, 0, 0], sizes = [1, 16, 8], strides = [1, 1, 1]} : vector<16x16x8xf32> to vector<1x16x8xf32>
    %65 = vector.broadcast %63 : vector<16x1x8xf32> to vector<16x16x8xf32>
    %66 = vector.broadcast %64 : vector<1x16x8xf32> to vector<16x16x8xf32>
    %67 = arith.mulf %65, %66 : vector<16x16x8xf32>
    %68 = arith.addf %62, %67 : vector<16x16x8xf32>
    %69 = vector.extract_strided_slice %30 {offsets = [0, 6, 0], sizes = [16, 1, 8], strides = [1, 1, 1]} : vector<16x16x8xf32> to vector<16x1x8xf32>
    %70 = vector.extract_strided_slice %31 {offsets = [6, 0, 0], sizes = [1, 16, 8], strides = [1, 1, 1]} : vector<16x16x8xf32> to vector<1x16x8xf32>
    %71 = vector.broadcast %69 : vector<16x1x8xf32> to vector<16x16x8xf32>
    %72 = vector.broadcast %70 : vector<1x16x8xf32> to vector<16x16x8xf32>
    %73 = arith.mulf %71, %72 : vector<16x16x8xf32>
    %74 = arith.addf %68, %73 : vector<16x16x8xf32>
    %75 = vector.extract_strided_slice %30 {offsets = [0, 7, 0], sizes = [16, 1, 8], strides = [1, 1, 1]} : vector<16x16x8xf32> to vector<16x1x8xf32>
    %76 = vector.extract_strided_slice %31 {offsets = [7, 0, 0], sizes = [1, 16, 8], strides = [1, 1, 1]} : vector<16x16x8xf32> to vector<1x16x8xf32>
    %77 = vector.broadcast %75 : vector<16x1x8xf32> to vector<16x16x8xf32>
    %78 = vector.broadcast %76 : vector<1x16x8xf32> to vector<16x16x8xf32>
    %79 = arith.mulf %77, %78 : vector<16x16x8xf32>
    %80 = arith.addf %74, %79 : vector<16x16x8xf32>
    %81 = vector.extract_strided_slice %30 {offsets = [0, 8, 0], sizes = [16, 1, 8], strides = [1, 1, 1]} : vector<16x16x8xf32> to vector<16x1x8xf32>
    %82 = vector.extract_strided_slice %31 {offsets = [8, 0, 0], sizes = [1, 16, 8], strides = [1, 1, 1]} : vector<16x16x8xf32> to vector<1x16x8xf32>
    %83 = vector.broadcast %81 : vector<16x1x8xf32> to vector<16x16x8xf32>
    %84 = vector.broadcast %82 : vector<1x16x8xf32> to vector<16x16x8xf32>
    %85 = arith.mulf %83, %84 : vector<16x16x8xf32>
    %86 = arith.addf %80, %85 : vector<16x16x8xf32>
    %87 = vector.extract_strided_slice %30 {offsets = [0, 9, 0], sizes = [16, 1, 8], strides = [1, 1, 1]} : vector<16x16x8xf32> to vector<16x1x8xf32>
    %88 = vector.extract_strided_slice %31 {offsets = [9, 0, 0], sizes = [1, 16, 8], strides = [1, 1, 1]} : vector<16x16x8xf32> to vector<1x16x8xf32>
    %89 = vector.broadcast %87 : vector<16x1x8xf32> to vector<16x16x8xf32>
    %90 = vector.broadcast %88 : vector<1x16x8xf32> to vector<16x16x8xf32>
    %91 = arith.mulf %89, %90 : vector<16x16x8xf32>
    %92 = arith.addf %86, %91 : vector<16x16x8xf32>
    %93 = vector.extract_strided_slice %30 {offsets = [0, 10, 0], sizes = [16, 1, 8], strides = [1, 1, 1]} : vector<16x16x8xf32> to vector<16x1x8xf32>
    %94 = vector.extract_strided_slice %31 {offsets = [10, 0, 0], sizes = [1, 16, 8], strides = [1, 1, 1]} : vector<16x16x8xf32> to vector<1x16x8xf32>
    %95 = vector.broadcast %93 : vector<16x1x8xf32> to vector<16x16x8xf32>
    %96 = vector.broadcast %94 : vector<1x16x8xf32> to vector<16x16x8xf32>
    %97 = arith.mulf %95, %96 : vector<16x16x8xf32>
    %98 = arith.addf %92, %97 : vector<16x16x8xf32>
    %99 = vector.extract_strided_slice %30 {offsets = [0, 11, 0], sizes = [16, 1, 8], strides = [1, 1, 1]} : vector<16x16x8xf32> to vector<16x1x8xf32>
    %100 = vector.extract_strided_slice %31 {offsets = [11, 0, 0], sizes = [1, 16, 8], strides = [1, 1, 1]} : vector<16x16x8xf32> to vector<1x16x8xf32>
    %101 = vector.broadcast %99 : vector<16x1x8xf32> to vector<16x16x8xf32>
    %102 = vector.broadcast %100 : vector<1x16x8xf32> to vector<16x16x8xf32>
    %103 = arith.mulf %101, %102 : vector<16x16x8xf32>
    %104 = arith.addf %98, %103 : vector<16x16x8xf32>
    %105 = vector.extract_strided_slice %30 {offsets = [0, 12, 0], sizes = [16, 1, 8], strides = [1, 1, 1]} : vector<16x16x8xf32> to vector<16x1x8xf32>
    %106 = vector.extract_strided_slice %31 {offsets = [12, 0, 0], sizes = [1, 16, 8], strides = [1, 1, 1]} : vector<16x16x8xf32> to vector<1x16x8xf32>
    %107 = vector.broadcast %105 : vector<16x1x8xf32> to vector<16x16x8xf32>
    %108 = vector.broadcast %106 : vector<1x16x8xf32> to vector<16x16x8xf32>
    %109 = arith.mulf %107, %108 : vector<16x16x8xf32>
    %110 = arith.addf %104, %109 : vector<16x16x8xf32>
    %111 = vector.extract_strided_slice %30 {offsets = [0, 13, 0], sizes = [16, 1, 8], strides = [1, 1, 1]} : vector<16x16x8xf32> to vector<16x1x8xf32>
    %112 = vector.extract_strided_slice %31 {offsets = [13, 0, 0], sizes = [1, 16, 8], strides = [1, 1, 1]} : vector<16x16x8xf32> to vector<1x16x8xf32>
    %113 = vector.broadcast %111 : vector<16x1x8xf32> to vector<16x16x8xf32>
    %114 = vector.broadcast %112 : vector<1x16x8xf32> to vector<16x16x8xf32>
    %115 = arith.mulf %113, %114 : vector<16x16x8xf32>
    %116 = arith.addf %110, %115 : vector<16x16x8xf32>
    %117 = vector.extract_strided_slice %30 {offsets = [0, 14, 0], sizes = [16, 1, 8], strides = [1, 1, 1]} : vector<16x16x8xf32> to vector<16x1x8xf32>
    %118 = vector.extract_strided_slice %31 {offsets = [14, 0, 0], sizes = [1, 16, 8], strides = [1, 1, 1]} : vector<16x16x8xf32> to vector<1x16x8xf32>
    %119 = vector.broadcast %117 : vector<16x1x8xf32> to vector<16x16x8xf32>
    %120 = vector.broadcast %118 : vector<1x16x8xf32> to vector<16x16x8xf32>
    %121 = arith.mulf %119, %120 : vector<16x16x8xf32>
    %122 = arith.addf %116, %121 : vector<16x16x8xf32>
    %123 = vector.extract_strided_slice %30 {offsets = [0, 15, 0], sizes = [16, 1, 8], strides = [1, 1, 1]} : vector<16x16x8xf32> to vector<16x1x8xf32>
    %124 = vector.extract_strided_slice %31 {offsets = [15, 0, 0], sizes = [1, 16, 8], strides = [1, 1, 1]} : vector<16x16x8xf32> to vector<1x16x8xf32>
    %125 = vector.broadcast %123 : vector<16x1x8xf32> to vector<16x16x8xf32>
    %126 = vector.broadcast %124 : vector<1x16x8xf32> to vector<16x16x8xf32>
    %127 = arith.mulf %125, %126 : vector<16x16x8xf32>
    %128 = arith.addf %122, %127 : vector<16x16x8xf32>
    %129 = vector.shape_cast %128 : vector<16x16x8xf32> to vector<256x8xf32>
    %c0_26 = arith.constant 0 : index
    %c0_27 = arith.constant 0 : index
    %130 = vector.load %arg14[%c0_26, %c0_27] : memref<4x8xf32, #tpu.memory_space<vmem>>, vector<4x8xf32>
    %cst_28 = arith.constant dense<0.000000e+00> : vector<256x8xf32>
    %131 = tpu.matmul %1, %130, %cst_28 {dimension_numbers = #tpu.dot_dimension_numbers<[1], [0], [0], [1], [0, 0, 1, 1], [], []>} : vector<256x4xf32>, vector<4x8xf32>, vector<256x8xf32> -> vector<256x8xf32>
    %c0_29 = arith.constant 0 : index
    %c0_30 = arith.constant 0 : index
    %132 = vector.load %arg13[%c0_29, %c0_30] : memref<8x8xf32, #tpu.memory_space<vmem>>, vector<8x8xf32>
    %cst_31 = arith.constant dense<0.000000e+00> : vector<256x8xf32>
    %133 = tpu.matmul %129, %132, %cst_31 {dimension_numbers = #tpu.dot_dimension_numbers<[1], [0], [0], [1], [0, 0, 1, 1], [], []>} : vector<256x8xf32>, vector<8x8xf32>, vector<256x8xf32> -> vector<256x8xf32>
    %134 = arith.addf %131, %133 : vector<256x8xf32>
    %c0_32 = arith.constant 0 : index
    %c0_33 = arith.constant 0 : index
    %135 = vector.load %arg12[%c0_32, %c0_33] : memref<1x8xf32, #tpu.memory_space<vmem>>, vector<1x8xf32>
    %136 = vector.broadcast %135 : vector<1x8xf32> to vector<256x8xf32>
    %137 = arith.addf %134, %136 : vector<256x8xf32>
    %c0_34 = arith.constant 0 : index
    %c0_35 = arith.constant 0 : index
    %138 = vector.load %arg16[%c0_34, %c0_35] : memref<8x8xf32, #tpu.memory_space<vmem>>, vector<8x8xf32>
    %cst_36 = arith.constant dense<0.000000e+00> : vector<256x8xf32>
    %139 = tpu.matmul %137, %138, %cst_36 {dimension_numbers = #tpu.dot_dimension_numbers<[1], [0], [0], [1], [0, 0, 1, 1], [], []>} : vector<256x8xf32>, vector<8x8xf32>, vector<256x8xf32> -> vector<256x8xf32>
    %c0_37 = arith.constant 0 : index
    %c0_38 = arith.constant 0 : index
    %140 = vector.load %arg15[%c0_37, %c0_38] : memref<1x8xf32, #tpu.memory_space<vmem>>, vector<1x8xf32>
    %141 = vector.broadcast %140 : vector<1x8xf32> to vector<256x8xf32>
    %142 = arith.addf %139, %141 : vector<256x8xf32>
    %cst_39 = arith.constant 0.000000e+00 : f32
    %143 = vector.broadcast %cst_39 : f32 to vector<256x8xf32>
    %144 = arith.maximumf %142, %143 : vector<256x8xf32>
    %c0_40 = arith.constant 0 : index
    %c0_41 = arith.constant 0 : index
    %145 = vector.load %arg18[%c0_40, %c0_41] : memref<8x8xf32, #tpu.memory_space<vmem>>, vector<8x8xf32>
    %cst_42 = arith.constant dense<0.000000e+00> : vector<256x8xf32>
    %146 = tpu.matmul %144, %145, %cst_42 {dimension_numbers = #tpu.dot_dimension_numbers<[1], [0], [0], [1], [0, 0, 1, 1], [], []>} : vector<256x8xf32>, vector<8x8xf32>, vector<256x8xf32> -> vector<256x8xf32>
    %c0_43 = arith.constant 0 : index
    %c0_44 = arith.constant 0 : index
    %147 = vector.load %arg17[%c0_43, %c0_44] : memref<1x8xf32, #tpu.memory_space<vmem>>, vector<1x8xf32>
    %148 = vector.broadcast %147 : vector<1x8xf32> to vector<256x8xf32>
    %149 = arith.addf %146, %148 : vector<256x8xf32>
    %cst_45 = arith.constant 0.000000e+00 : f32
    %150 = vector.broadcast %cst_45 : f32 to vector<256x8xf32>
    %151 = arith.maximumf %149, %150 : vector<256x8xf32>
    %c0_46 = arith.constant 0 : index
    %c0_47 = arith.constant 0 : index
    %152 = vector.load %arg20[%c0_46, %c0_47] : memref<8x8xf32, #tpu.memory_space<vmem>>, vector<8x8xf32>
    %cst_48 = arith.constant dense<0.000000e+00> : vector<256x8xf32>
    %153 = tpu.matmul %137, %152, %cst_48 {dimension_numbers = #tpu.dot_dimension_numbers<[1], [0], [0], [1], [0, 0, 1, 1], [], []>} : vector<256x8xf32>, vector<8x8xf32>, vector<256x8xf32> -> vector<256x8xf32>
    %c0_49 = arith.constant 0 : index
    %c0_50 = arith.constant 0 : index
    %154 = vector.load %arg19[%c0_49, %c0_50] : memref<1x8xf32, #tpu.memory_space<vmem>>, vector<1x8xf32>
    %155 = vector.broadcast %154 : vector<1x8xf32> to vector<256x8xf32>
    %156 = arith.addf %153, %155 : vector<256x8xf32>
    %cst_51 = arith.constant 0.000000e+00 : f32
    %157 = vector.broadcast %cst_51 : f32 to vector<256x8xf32>
    %158 = arith.maximumf %156, %157 : vector<256x8xf32>
    %c0_52 = arith.constant 0 : index
    %c0_53 = arith.constant 0 : index
    %159 = vector.load %arg22[%c0_52, %c0_53] : memref<8x8xf32, #tpu.memory_space<vmem>>, vector<8x8xf32>
    %cst_54 = arith.constant dense<0.000000e+00> : vector<256x8xf32>
    %160 = tpu.matmul %158, %159, %cst_54 {dimension_numbers = #tpu.dot_dimension_numbers<[1], [0], [0], [1], [0, 0, 1, 1], [], []>} : vector<256x8xf32>, vector<8x8xf32>, vector<256x8xf32> -> vector<256x8xf32>
    %c0_55 = arith.constant 0 : index
    %c0_56 = arith.constant 0 : index
    %161 = vector.load %arg21[%c0_55, %c0_56] : memref<1x8xf32, #tpu.memory_space<vmem>>, vector<1x8xf32>
    %162 = vector.broadcast %161 : vector<1x8xf32> to vector<256x8xf32>
    %163 = arith.addf %160, %162 : vector<256x8xf32>
    %cst_57 = arith.constant 0.000000e+00 : f32
    %164 = vector.broadcast %cst_57 : f32 to vector<256x8xf32>
    %165 = arith.maximumf %163, %164 : vector<256x8xf32>
    %166 = vector.shape_cast %151 : vector<256x8xf32> to vector<16x16x8xf32>
    %167 = vector.shape_cast %165 : vector<256x8xf32> to vector<16x16x8xf32>
    %cst_58 = arith.constant 0.000000e+00 : f32
    %168 = vector.broadcast %cst_58 : f32 to vector<16x16x8xf32>
    %169 = vector.extract_strided_slice %166 {offsets = [0, 0, 0], sizes = [16, 1, 8], strides = [1, 1, 1]} : vector<16x16x8xf32> to vector<16x1x8xf32>
    %170 = vector.extract_strided_slice %167 {offsets = [0, 0, 0], sizes = [1, 16, 8], strides = [1, 1, 1]} : vector<16x16x8xf32> to vector<1x16x8xf32>
    %171 = vector.broadcast %169 : vector<16x1x8xf32> to vector<16x16x8xf32>
    %172 = vector.broadcast %170 : vector<1x16x8xf32> to vector<16x16x8xf32>
    %173 = arith.mulf %171, %172 : vector<16x16x8xf32>
    %174 = arith.addf %168, %173 : vector<16x16x8xf32>
    %175 = vector.extract_strided_slice %166 {offsets = [0, 1, 0], sizes = [16, 1, 8], strides = [1, 1, 1]} : vector<16x16x8xf32> to vector<16x1x8xf32>
    %176 = vector.extract_strided_slice %167 {offsets = [1, 0, 0], sizes = [1, 16, 8], strides = [1, 1, 1]} : vector<16x16x8xf32> to vector<1x16x8xf32>
    %177 = vector.broadcast %175 : vector<16x1x8xf32> to vector<16x16x8xf32>
    %178 = vector.broadcast %176 : vector<1x16x8xf32> to vector<16x16x8xf32>
    %179 = arith.mulf %177, %178 : vector<16x16x8xf32>
    %180 = arith.addf %174, %179 : vector<16x16x8xf32>
    %181 = vector.extract_strided_slice %166 {offsets = [0, 2, 0], sizes = [16, 1, 8], strides = [1, 1, 1]} : vector<16x16x8xf32> to vector<16x1x8xf32>
    %182 = vector.extract_strided_slice %167 {offsets = [2, 0, 0], sizes = [1, 16, 8], strides = [1, 1, 1]} : vector<16x16x8xf32> to vector<1x16x8xf32>
    %183 = vector.broadcast %181 : vector<16x1x8xf32> to vector<16x16x8xf32>
    %184 = vector.broadcast %182 : vector<1x16x8xf32> to vector<16x16x8xf32>
    %185 = arith.mulf %183, %184 : vector<16x16x8xf32>
    %186 = arith.addf %180, %185 : vector<16x16x8xf32>
    %187 = vector.extract_strided_slice %166 {offsets = [0, 3, 0], sizes = [16, 1, 8], strides = [1, 1, 1]} : vector<16x16x8xf32> to vector<16x1x8xf32>
    %188 = vector.extract_strided_slice %167 {offsets = [3, 0, 0], sizes = [1, 16, 8], strides = [1, 1, 1]} : vector<16x16x8xf32> to vector<1x16x8xf32>
    %189 = vector.broadcast %187 : vector<16x1x8xf32> to vector<16x16x8xf32>
    %190 = vector.broadcast %188 : vector<1x16x8xf32> to vector<16x16x8xf32>
    %191 = arith.mulf %189, %190 : vector<16x16x8xf32>
    %192 = arith.addf %186, %191 : vector<16x16x8xf32>
    %193 = vector.extract_strided_slice %166 {offsets = [0, 4, 0], sizes = [16, 1, 8], strides = [1, 1, 1]} : vector<16x16x8xf32> to vector<16x1x8xf32>
    %194 = vector.extract_strided_slice %167 {offsets = [4, 0, 0], sizes = [1, 16, 8], strides = [1, 1, 1]} : vector<16x16x8xf32> to vector<1x16x8xf32>
    %195 = vector.broadcast %193 : vector<16x1x8xf32> to vector<16x16x8xf32>
    %196 = vector.broadcast %194 : vector<1x16x8xf32> to vector<16x16x8xf32>
    %197 = arith.mulf %195, %196 : vector<16x16x8xf32>
    %198 = arith.addf %192, %197 : vector<16x16x8xf32>
    %199 = vector.extract_strided_slice %166 {offsets = [0, 5, 0], sizes = [16, 1, 8], strides = [1, 1, 1]} : vector<16x16x8xf32> to vector<16x1x8xf32>
    %200 = vector.extract_strided_slice %167 {offsets = [5, 0, 0], sizes = [1, 16, 8], strides = [1, 1, 1]} : vector<16x16x8xf32> to vector<1x16x8xf32>
    %201 = vector.broadcast %199 : vector<16x1x8xf32> to vector<16x16x8xf32>
    %202 = vector.broadcast %200 : vector<1x16x8xf32> to vector<16x16x8xf32>
    %203 = arith.mulf %201, %202 : vector<16x16x8xf32>
    %204 = arith.addf %198, %203 : vector<16x16x8xf32>
    %205 = vector.extract_strided_slice %166 {offsets = [0, 6, 0], sizes = [16, 1, 8], strides = [1, 1, 1]} : vector<16x16x8xf32> to vector<16x1x8xf32>
    %206 = vector.extract_strided_slice %167 {offsets = [6, 0, 0], sizes = [1, 16, 8], strides = [1, 1, 1]} : vector<16x16x8xf32> to vector<1x16x8xf32>
    %207 = vector.broadcast %205 : vector<16x1x8xf32> to vector<16x16x8xf32>
    %208 = vector.broadcast %206 : vector<1x16x8xf32> to vector<16x16x8xf32>
    %209 = arith.mulf %207, %208 : vector<16x16x8xf32>
    %210 = arith.addf %204, %209 : vector<16x16x8xf32>
    %211 = vector.extract_strided_slice %166 {offsets = [0, 7, 0], sizes = [16, 1, 8], strides = [1, 1, 1]} : vector<16x16x8xf32> to vector<16x1x8xf32>
    %212 = vector.extract_strided_slice %167 {offsets = [7, 0, 0], sizes = [1, 16, 8], strides = [1, 1, 1]} : vector<16x16x8xf32> to vector<1x16x8xf32>
    %213 = vector.broadcast %211 : vector<16x1x8xf32> to vector<16x16x8xf32>
    %214 = vector.broadcast %212 : vector<1x16x8xf32> to vector<16x16x8xf32>
    %215 = arith.mulf %213, %214 : vector<16x16x8xf32>
    %216 = arith.addf %210, %215 : vector<16x16x8xf32>
    %217 = vector.extract_strided_slice %166 {offsets = [0, 8, 0], sizes = [16, 1, 8], strides = [1, 1, 1]} : vector<16x16x8xf32> to vector<16x1x8xf32>
    %218 = vector.extract_strided_slice %167 {offsets = [8, 0, 0], sizes = [1, 16, 8], strides = [1, 1, 1]} : vector<16x16x8xf32> to vector<1x16x8xf32>
    %219 = vector.broadcast %217 : vector<16x1x8xf32> to vector<16x16x8xf32>
    %220 = vector.broadcast %218 : vector<1x16x8xf32> to vector<16x16x8xf32>
    %221 = arith.mulf %219, %220 : vector<16x16x8xf32>
    %222 = arith.addf %216, %221 : vector<16x16x8xf32>
    %223 = vector.extract_strided_slice %166 {offsets = [0, 9, 0], sizes = [16, 1, 8], strides = [1, 1, 1]} : vector<16x16x8xf32> to vector<16x1x8xf32>
    %224 = vector.extract_strided_slice %167 {offsets = [9, 0, 0], sizes = [1, 16, 8], strides = [1, 1, 1]} : vector<16x16x8xf32> to vector<1x16x8xf32>
    %225 = vector.broadcast %223 : vector<16x1x8xf32> to vector<16x16x8xf32>
    %226 = vector.broadcast %224 : vector<1x16x8xf32> to vector<16x16x8xf32>
    %227 = arith.mulf %225, %226 : vector<16x16x8xf32>
    %228 = arith.addf %222, %227 : vector<16x16x8xf32>
    %229 = vector.extract_strided_slice %166 {offsets = [0, 10, 0], sizes = [16, 1, 8], strides = [1, 1, 1]} : vector<16x16x8xf32> to vector<16x1x8xf32>
    %230 = vector.extract_strided_slice %167 {offsets = [10, 0, 0], sizes = [1, 16, 8], strides = [1, 1, 1]} : vector<16x16x8xf32> to vector<1x16x8xf32>
    %231 = vector.broadcast %229 : vector<16x1x8xf32> to vector<16x16x8xf32>
    %232 = vector.broadcast %230 : vector<1x16x8xf32> to vector<16x16x8xf32>
    %233 = arith.mulf %231, %232 : vector<16x16x8xf32>
    %234 = arith.addf %228, %233 : vector<16x16x8xf32>
    %235 = vector.extract_strided_slice %166 {offsets = [0, 11, 0], sizes = [16, 1, 8], strides = [1, 1, 1]} : vector<16x16x8xf32> to vector<16x1x8xf32>
    %236 = vector.extract_strided_slice %167 {offsets = [11, 0, 0], sizes = [1, 16, 8], strides = [1, 1, 1]} : vector<16x16x8xf32> to vector<1x16x8xf32>
    %237 = vector.broadcast %235 : vector<16x1x8xf32> to vector<16x16x8xf32>
    %238 = vector.broadcast %236 : vector<1x16x8xf32> to vector<16x16x8xf32>
    %239 = arith.mulf %237, %238 : vector<16x16x8xf32>
    %240 = arith.addf %234, %239 : vector<16x16x8xf32>
    %241 = vector.extract_strided_slice %166 {offsets = [0, 12, 0], sizes = [16, 1, 8], strides = [1, 1, 1]} : vector<16x16x8xf32> to vector<16x1x8xf32>
    %242 = vector.extract_strided_slice %167 {offsets = [12, 0, 0], sizes = [1, 16, 8], strides = [1, 1, 1]} : vector<16x16x8xf32> to vector<1x16x8xf32>
    %243 = vector.broadcast %241 : vector<16x1x8xf32> to vector<16x16x8xf32>
    %244 = vector.broadcast %242 : vector<1x16x8xf32> to vector<16x16x8xf32>
    %245 = arith.mulf %243, %244 : vector<16x16x8xf32>
    %246 = arith.addf %240, %245 : vector<16x16x8xf32>
    %247 = vector.extract_strided_slice %166 {offsets = [0, 13, 0], sizes = [16, 1, 8], strides = [1, 1, 1]} : vector<16x16x8xf32> to vector<16x1x8xf32>
    %248 = vector.extract_strided_slice %167 {offsets = [13, 0, 0], sizes = [1, 16, 8], strides = [1, 1, 1]} : vector<16x16x8xf32> to vector<1x16x8xf32>
    %249 = vector.broadcast %247 : vector<16x1x8xf32> to vector<16x16x8xf32>
    %250 = vector.broadcast %248 : vector<1x16x8xf32> to vector<16x16x8xf32>
    %251 = arith.mulf %249, %250 : vector<16x16x8xf32>
    %252 = arith.addf %246, %251 : vector<16x16x8xf32>
    %253 = vector.extract_strided_slice %166 {offsets = [0, 14, 0], sizes = [16, 1, 8], strides = [1, 1, 1]} : vector<16x16x8xf32> to vector<16x1x8xf32>
    %254 = vector.extract_strided_slice %167 {offsets = [14, 0, 0], sizes = [1, 16, 8], strides = [1, 1, 1]} : vector<16x16x8xf32> to vector<1x16x8xf32>
    %255 = vector.broadcast %253 : vector<16x1x8xf32> to vector<16x16x8xf32>
    %256 = vector.broadcast %254 : vector<1x16x8xf32> to vector<16x16x8xf32>
    %257 = arith.mulf %255, %256 : vector<16x16x8xf32>
    %258 = arith.addf %252, %257 : vector<16x16x8xf32>
    %259 = vector.extract_strided_slice %166 {offsets = [0, 15, 0], sizes = [16, 1, 8], strides = [1, 1, 1]} : vector<16x16x8xf32> to vector<16x1x8xf32>
    %260 = vector.extract_strided_slice %167 {offsets = [15, 0, 0], sizes = [1, 16, 8], strides = [1, 1, 1]} : vector<16x16x8xf32> to vector<1x16x8xf32>
    %261 = vector.broadcast %259 : vector<16x1x8xf32> to vector<16x16x8xf32>
    %262 = vector.broadcast %260 : vector<1x16x8xf32> to vector<16x16x8xf32>
    %263 = arith.mulf %261, %262 : vector<16x16x8xf32>
    %264 = arith.addf %258, %263 : vector<16x16x8xf32>
    %265 = vector.shape_cast %264 : vector<16x16x8xf32> to vector<256x8xf32>
    %c0_59 = arith.constant 0 : index
    %c0_60 = arith.constant 0 : index
    %266 = vector.load %arg25[%c0_59, %c0_60] : memref<8x8xf32, #tpu.memory_space<vmem>>, vector<8x8xf32>
    %cst_61 = arith.constant dense<0.000000e+00> : vector<256x8xf32>
    %267 = tpu.matmul %137, %266, %cst_61 {dimension_numbers = #tpu.dot_dimension_numbers<[1], [0], [0], [1], [0, 0, 1, 1], [], []>} : vector<256x8xf32>, vector<8x8xf32>, vector<256x8xf32> -> vector<256x8xf32>
    %c0_62 = arith.constant 0 : index
    %c0_63 = arith.constant 0 : index
    %268 = vector.load %arg24[%c0_62, %c0_63] : memref<8x8xf32, #tpu.memory_space<vmem>>, vector<8x8xf32>
    %cst_64 = arith.constant dense<0.000000e+00> : vector<256x8xf32>
    %269 = tpu.matmul %265, %268, %cst_64 {dimension_numbers = #tpu.dot_dimension_numbers<[1], [0], [0], [1], [0, 0, 1, 1], [], []>} : vector<256x8xf32>, vector<8x8xf32>, vector<256x8xf32> -> vector<256x8xf32>
    %270 = arith.addf %267, %269 : vector<256x8xf32>
    %c0_65 = arith.constant 0 : index
    %c0_66 = arith.constant 0 : index
    %271 = vector.load %arg23[%c0_65, %c0_66] : memref<1x8xf32, #tpu.memory_space<vmem>>, vector<1x8xf32>
    %272 = vector.broadcast %271 : vector<1x8xf32> to vector<256x8xf32>
    %273 = arith.addf %270, %272 : vector<256x8xf32>
    %c0_67 = arith.constant 0 : index
    %c0_68 = arith.constant 0 : index
    %274 = vector.load %arg3[%c0_67, %c0_68] : memref<8x16xf32, #tpu.memory_space<vmem>>, vector<8x16xf32>
    %cst_69 = arith.constant dense<0.000000e+00> : vector<256x16xf32>
    %275 = tpu.matmul %273, %274, %cst_69 {dimension_numbers = #tpu.dot_dimension_numbers<[1], [0], [0], [1], [0, 0, 1, 1], [], []>} : vector<256x8xf32>, vector<8x16xf32>, vector<256x16xf32> -> vector<256x16xf32>
    %c0_70 = arith.constant 0 : index
    %c0_71 = arith.constant 0 : index
    %276 = vector.load %arg2[%c0_70, %c0_71] : memref<1x16xf32, #tpu.memory_space<vmem>>, vector<1x16xf32>
    %277 = vector.broadcast %276 : vector<1x16xf32> to vector<256x16xf32>
    %278 = arith.addf %275, %277 : vector<256x16xf32>
    %279 = vector.shape_cast %278 : vector<256x16xf32> to vector<1x256x16xf32>
    %c0_72 = arith.constant 0 : index
    %c0_73 = arith.constant 0 : index
    %c0_74 = arith.constant 0 : index
    %280 = vector.load %arg26[%c0_72, %c0_73, %c0_74] : memref<1x256x16xf32, #tpu.memory_space<vmem>>, vector<1x256x16xf32>
    tpu.vector_store %arg26[%c0_72, %c0_73, %c0_74], %279 {strides = array<i32>} : memref<1x256x16xf32, #tpu.memory_space<vmem>>, vector<1x256x16xf32>,
    return
  }
  func.func @transform_0(%arg0: i32) -> (i32, i32, i32) {
    %c0_i32 = arith.constant 0 : i32
    %c0_i32_0 = arith.constant 0 : i32
    %c0_i32_1 = arith.constant 0 : i32
    return %arg0, %c0_i32, %c0_i32_0 : i32, i32, i32
  }
  func.func @transform_1(%arg0: i32) -> (i32, i32) {
    %c0_i32 = arith.constant 0 : i32
    %c0_i32_0 = arith.constant 0 : i32
    %c0_i32_1 = arith.constant 0 : i32
    return %c0_i32, %c0_i32_0 : i32, i32
  }
  func.func @transform_2(%arg0: i32) -> (i32, i32) {
    %c0_i32 = arith.constant 0 : i32
    %c0_i32_0 = arith.constant 0 : i32
    %c0_i32_1 = arith.constant 0 : i32
    return %c0_i32, %c0_i32_0 : i32, i32
  }
  func.func @transform_3(%arg0: i32) -> (i32, i32) {
    %c0_i32 = arith.constant 0 : i32
    %c0_i32_0 = arith.constant 0 : i32
    %c0_i32_1 = arith.constant 0 : i32
    return %c0_i32, %c0_i32_0 : i32, i32
  }
  func.func @transform_4(%arg0: i32) -> (i32, i32) {
    %c0_i32 = arith.constant 0 : i32
    %c0_i32_0 = arith.constant 0 : i32
    %c0_i32_1 = arith.constant 0 : i32
    return %c0_i32, %c0_i32_0 : i32, i32
  }
  func.func @transform_5(%arg0: i32) -> (i32, i32) {
    %c0_i32 = arith.constant 0 : i32
    %c0_i32_0 = arith.constant 0 : i32
    %c0_i32_1 = arith.constant 0 : i32
    return %c0_i32, %c0_i32_0 : i32, i32
  }
  func.func @transform_6(%arg0: i32) -> (i32, i32) {
    %c0_i32 = arith.constant 0 : i32
    %c0_i32_0 = arith.constant 0 : i32
    %c0_i32_1 = arith.constant 0 : i32
    return %c0_i32, %c0_i32_0 : i32, i32
  }
  func.func @transform_7(%arg0: i32) -> (i32, i32) {
    %c0_i32 = arith.constant 0 : i32
    %c0_i32_0 = arith.constant 0 : i32
    %c0_i32_1 = arith.constant 0 : i32
    return %c0_i32, %c0_i32_0 : i32, i32
  }
  func.func @transform_8(%arg0: i32) -> (i32, i32) {
    %c0_i32 = arith.constant 0 : i32
    %c0_i32_0 = arith.constant 0 : i32
    %c0_i32_1 = arith.constant 0 : i32
    return %c0_i32, %c0_i32_0 : i32, i32
  }
  func.func @transform_9(%arg0: i32) -> (i32, i32) {
    %c0_i32 = arith.constant 0 : i32
    %c0_i32_0 = arith.constant 0 : i32
    %c0_i32_1 = arith.constant 0 : i32
    return %c0_i32, %c0_i32_0 : i32, i32
  }
  func.func @transform_10(%arg0: i32) -> (i32, i32) {
    %c0_i32 = arith.constant 0 : i32
    %c0_i32_0 = arith.constant 0 : i32
    %c0_i32_1 = arith.constant 0 : i32
    return %c0_i32, %c0_i32_0 : i32, i32
  }
  func.func @transform_11(%arg0: i32) -> (i32, i32) {
    %c0_i32 = arith.constant 0 : i32
    %c0_i32_0 = arith.constant 0 : i32
    %c0_i32_1 = arith.constant 0 : i32
    return %c0_i32, %c0_i32_0 : i32, i32
  }
  func.func @transform_12(%arg0: i32) -> (i32, i32) {
    %c0_i32 = arith.constant 0 : i32
    %c0_i32_0 = arith.constant 0 : i32
    %c0_i32_1 = arith.constant 0 : i32
    return %c0_i32, %c0_i32_0 : i32, i32
  }
  func.func @transform_13(%arg0: i32) -> (i32, i32) {
    %c0_i32 = arith.constant 0 : i32
    %c0_i32_0 = arith.constant 0 : i32
    %c0_i32_1 = arith.constant 0 : i32
    return %c0_i32, %c0_i32_0 : i32, i32
  }
  func.func @transform_14(%arg0: i32) -> (i32, i32) {
    %c0_i32 = arith.constant 0 : i32
    %c0_i32_0 = arith.constant 0 : i32
    %c0_i32_1 = arith.constant 0 : i32
    return %c0_i32, %c0_i32_0 : i32, i32
  }
  func.func @transform_15(%arg0: i32) -> (i32, i32) {
    %c0_i32 = arith.constant 0 : i32
    %c0_i32_0 = arith.constant 0 : i32
    %c0_i32_1 = arith.constant 0 : i32
    return %c0_i32, %c0_i32_0 : i32, i32
  }
  func.func @transform_16(%arg0: i32) -> (i32, i32) {
    %c0_i32 = arith.constant 0 : i32
    %c0_i32_0 = arith.constant 0 : i32
    %c0_i32_1 = arith.constant 0 : i32
    return %c0_i32, %c0_i32_0 : i32, i32
  }
  func.func @transform_17(%arg0: i32) -> (i32, i32) {
    %c0_i32 = arith.constant 0 : i32
    %c0_i32_0 = arith.constant 0 : i32
    %c0_i32_1 = arith.constant 0 : i32
    return %c0_i32, %c0_i32_0 : i32, i32
  }
  func.func @transform_18(%arg0: i32) -> (i32, i32) {
    %c0_i32 = arith.constant 0 : i32
    %c0_i32_0 = arith.constant 0 : i32
    %c0_i32_1 = arith.constant 0 : i32
    return %c0_i32, %c0_i32_0 : i32, i32
  }
  func.func @transform_19(%arg0: i32) -> (i32, i32) {
    %c0_i32 = arith.constant 0 : i32
    %c0_i32_0 = arith.constant 0 : i32
    %c0_i32_1 = arith.constant 0 : i32
    return %c0_i32, %c0_i32_0 : i32, i32
  }
  func.func @transform_20(%arg0: i32) -> (i32, i32) {
    %c0_i32 = arith.constant 0 : i32
    %c0_i32_0 = arith.constant 0 : i32
    %c0_i32_1 = arith.constant 0 : i32
    return %c0_i32, %c0_i32_0 : i32, i32
  }
  func.func @transform_21(%arg0: i32) -> (i32, i32) {
    %c0_i32 = arith.constant 0 : i32
    %c0_i32_0 = arith.constant 0 : i32
    %c0_i32_1 = arith.constant 0 : i32
    return %c0_i32, %c0_i32_0 : i32, i32
  }
  func.func @transform_22(%arg0: i32) -> (i32, i32) {
    %c0_i32 = arith.constant 0 : i32
    %c0_i32_0 = arith.constant 0 : i32
    %c0_i32_1 = arith.constant 0 : i32
    return %c0_i32, %c0_i32_0 : i32, i32
  }
  func.func @transform_23(%arg0: i32) -> (i32, i32) {
    %c0_i32 = arith.constant 0 : i32
    %c0_i32_0 = arith.constant 0 : i32
    %c0_i32_1 = arith.constant 0 : i32
    return %c0_i32, %c0_i32_0 : i32, i32
  }
  func.func @transform_24(%arg0: i32) -> (i32, i32) {
    %c0_i32 = arith.constant 0 : i32
    %c0_i32_0 = arith.constant 0 : i32
    %c0_i32_1 = arith.constant 0 : i32
    return %c0_i32, %c0_i32_0 : i32, i32
  }
  func.func @transform_25(%arg0: i32) -> (i32, i32, i32) {
    %c0_i32 = arith.constant 0 : i32
    %c0_i32_0 = arith.constant 0 : i32
    %c0_i32_1 = arith.constant 0 : i32
    return %arg0, %c0_i32, %c0_i32_0 : i32, i32, i32
  }
}

</mosaic_0001>

<llo_original>
// kernel: simple_edge_embedding_forward.1
$region0: #{simple_edge_embedding_forward.1}
  #allocation0 [shape = 'u32[]', space=smem, size = 0x4, offset = 0x4, fixed_abs, tag = 'smem constant byte address 0x4 - core index']
  #allocation1 [shape = 'u32[144,128]{1,0:T(1,128)}', space=vmem, size = 0x12000, scoped, tag = 'internal scratch']
  %s0 = inlined_call_operand.vmem [shape: f32[2,256,4], index: 0, kind: input, shape index: {}]
  %s1 = inlined_call_operand.vmem [shape: f32[1,16], index: 1, kind: input, shape index: {}]
  %s2 = inlined_call_operand.vmem [shape: f32[8,16], index: 2, kind: input, shape index: {}]
  %s3 = inlined_call_operand.vmem [shape: f32[1,8], index: 3, kind: input, shape index: {}]
  %s4 = inlined_call_operand.vmem [shape: f32[4,8], index: 4, kind: input, shape index: {}]
  %s5 = inlined_call_operand.vmem [shape: f32[1,8], index: 5, kind: input, shape index: {}]
  %s6 = inlined_call_operand.vmem [shape: f32[8,8], index: 6, kind: input, shape index: {}]
  %s7 = inlined_call_operand.vmem [shape: f32[1,8], index: 7, kind: input, shape index: {}]
  %s8 = inlined_call_operand.vmem [shape: f32[4,8], index: 8, kind: input, shape index: {}]
  %s9 = inlined_call_operand.vmem [shape: f32[1,8], index: 9, kind: input, shape index: {}]
  %s10 = inlined_call_operand.vmem [shape: f32[8,8], index: 10, kind: input, shape index: {}]
  %s11 = inlined_call_operand.vmem [shape: f32[1,8], index: 11, kind: input, shape index: {}]
  %s12 = inlined_call_operand.vmem [shape: f32[8,8], index: 12, kind: input, shape index: {}]
  %s13 = inlined_call_operand.vmem [shape: f32[4,8], index: 13, kind: input, shape index: {}]
  %s14 = inlined_call_operand.vmem [shape: f32[1,8], index: 14, kind: input, shape index: {}]
  %s15 = inlined_call_operand.vmem [shape: f32[8,8], index: 15, kind: input, shape index: {}]
  %s16 = inlined_call_operand.vmem [shape: f32[1,8], index: 16, kind: input, shape index: {}]
  %s17 = inlined_call_operand.vmem [shape: f32[8,8], index: 17, kind: input, shape index: {}]
  %s18 = inlined_call_operand.vmem [shape: f32[1,8], index: 18, kind: input, shape index: {}]
  %s19 = inlined_call_operand.vmem [shape: f32[8,8], index: 19, kind: input, shape index: {}]
  %s20 = inlined_call_operand.vmem [shape: f32[1,8], index: 20, kind: input, shape index: {}]
  %s21 = inlined_call_operand.vmem [shape: f32[8,8], index: 21, kind: input, shape index: {}]
  %s22 = inlined_call_operand.vmem [shape: f32[1,8], index: 22, kind: input, shape index: {}]
  %s23 = inlined_call_operand.vmem [shape: f32[8,8], index: 23, kind: input, shape index: {}]
  %s24 = inlined_call_operand.vmem [shape: f32[8,8], index: 24, kind: input, shape index: {}]
  %s25 = inlined_call_operand.hbm [shape: f32[2,256,16], index: 25, kind: output, shape index: {}]
  %s26 = sld [smem:[#allocation0]]
  $region133: #{simple_edge_embedding_forward.1} parent=0
    _
  %s28 = ssub.s32 1, %s26
  %s29 = scalar_select 0, %s28, %s26
  $region1: #{simple_edge_embedding_forward.1} parent=0
    #allocation2 [shape = 'u8[262144]{0}', space=vmem, size = 0x40000, scoped, tag = 'output window, operand 0']
    #allocation3 [shape = 's32[2]{0}', space=sflag, size = 0x8, scoped, tag = 'scoped memory for simple_edge_embedding_forward.1']
    %30 = vsyncpa [#allocation3], 0
    %s31 = scalar_lea.sflag [#allocation3], 1
    %32 = vsyncpa %s31, 0
    loop: start=0, step=1, limit=4
    $region2: #{simple_edge_embedding_forward.1} parent=1 // loop_pre_header
      _
    $region3: #{simple_edge_embedding_forward.1} parent=1 // loop_header
      %s34 = sphi 0, %s38
      %p35 = scmp.ge.s32.totalorder %s34, 4
      %s44 = sphi 0, %s46
      %s47 = sphi 0, %s44
      %s48 = sphi 0, %s47
      %s64 = sphi 0, %s48
      %s68 = sphi 0, %s68
      %s70 = sphi 0, %s68
      %s71 = sphi 0, %s70
      %s85 = sphi 0, %s71
      %s89 = sphi 0, %s89
      %s91 = sphi 0, %s89
      %s92 = sphi 0, %s91
      %s106 = sphi 0, %s92
      %s110 = sphi 0, %s110
      %s112 = sphi 0, %s110
      %s113 = sphi 0, %s112
      %s127 = sphi 0, %s113
      %s131 = sphi 0, %s131
      %s133 = sphi 0, %s131
      %s134 = sphi 0, %s133
      %s148 = sphi 0, %s134
      %s152 = sphi 0, %s152
      %s154 = sphi 0, %s152
      %s155 = sphi 0, %s154
      %s169 = sphi 0, %s155
      %s173 = sphi 0, %s173
      %s175 = sphi 0, %s173
      %s176 = sphi 0, %s175
      %s190 = sphi 0, %s176
      %s194 = sphi 0, %s194
      %s196 = sphi 0, %s194
      %s197 = sphi 0, %s196
      %s211 = sphi 0, %s197
      %s215 = sphi 0, %s215
      %s217 = sphi 0, %s215
      %s218 = sphi 0, %s217
      %s232 = sphi 0, %s218
      %s236 = sphi 0, %s236
      %s238 = sphi 0, %s236
      %s239 = sphi 0, %s238
      %s253 = sphi 0, %s239
      %s257 = sphi 0, %s257
      %s259 = sphi 0, %s257
      %s260 = sphi 0, %s259
      %s274 = sphi 0, %s260
      %s278 = sphi 0, %s278
      %s280 = sphi 0, %s278
      %s281 = sphi 0, %s280
      %s295 = sphi 0, %s281
      %s299 = sphi 0, %s299
      %s301 = sphi 0, %s299
      %s302 = sphi 0, %s301
      %s316 = sphi 0, %s302
      %s320 = sphi 0, %s320
      %s322 = sphi 0, %s320
      %s323 = sphi 0, %s322
      %s337 = sphi 0, %s323
      %s341 = sphi 0, %s341
      %s343 = sphi 0, %s341
      %s344 = sphi 0, %s343
      %s358 = sphi 0, %s344
      %s362 = sphi 0, %s362
      %s364 = sphi 0, %s362
      %s365 = sphi 0, %s364
      %s379 = sphi 0, %s365
      %s383 = sphi 0, %s383
      %s385 = sphi 0, %s383
      %s386 = sphi 0, %s385
      %s400 = sphi 0, %s386
      %s404 = sphi 0, %s404
      %s406 = sphi 0, %s404
      %s407 = sphi 0, %s406
      %s421 = sphi 0, %s407
      %s425 = sphi 0, %s425
      %s427 = sphi 0, %s425
      %s428 = sphi 0, %s427
      %s442 = sphi 0, %s428
      %s446 = sphi 0, %s446
      %s448 = sphi 0, %s446
      %s449 = sphi 0, %s448
      %s463 = sphi 0, %s449
      %s467 = sphi 0, %s467
      %s469 = sphi 0, %s467
      %s470 = sphi 0, %s469
      %s484 = sphi 0, %s470
      %s488 = sphi 0, %s488
      %s490 = sphi 0, %s488
      %s491 = sphi 0, %s490
      %s505 = sphi 0, %s491
      %s509 = sphi 0, %s509
      %s511 = sphi 0, %s509
      %s512 = sphi 0, %s511
      %s526 = sphi 0, %s512
      %s530 = sphi 0, %s530
      %s532 = sphi 0, %s530
      %s533 = sphi 0, %s532
      %s547 = sphi 0, %s533
      %s551 = sphi 0, %s551
      %s553 = sphi 0, %s551
      %s554 = sphi 0, %s553
      %s568 = sphi 0, %s554
      %s574 = sphi 0, %s576
      %s577 = sphi 0, %s574
      %s578 = sphi 0, %s577
      %s594 = sphi 0, %s578
    $region4: #{simple_edge_embedding_forward.1} parent=1 // loop_header_branch
      %37 = sbr.rel (%p35) target = $region8
    $region5: #{simple_edge_embedding_forward.1} parent=1 // loop_body
      %s39 = ssub.s32 %s34, 1
      %s40 = ssub.s32 %s34, 2
      %s41 = sadd.s32 %s34, 1
      %s42 = ssub.s32 %s34, %s41
      %p43 = scmp.eq.s32.totalorder %s42, 0
      %s45 = sadd.s32 %s44, 1
      %s46 = scalar_select %p43, %s44, %s45
      %p49 = pneg %p43
      %p50 = scmp.eq.s32.totalorder %s34, 1
      %p51 = por %p49, %p50
      %p52 = scmp.ne.s32.totalorder %s44, %s47
      %p53 = scmp.eq.s32.totalorder %s34, 0
      %p54 = por %p52, %p53
      %p55 = scmp.ne.s32.totalorder %s44, %s47
      %p56 = scmp.eq.s32.totalorder %s39, 1
      %p57 = por %p55, %p56
      %p58 = scmp.ne.s32.totalorder %s47, %s48
      %p59 = scmp.eq.s32.totalorder %s39, 0
      %p60 = por %p58, %p59
      %p61 = scmp.ne.s32.totalorder %s47, %s48
      %p62 = scmp.eq.s32.totalorder %s40, 1
      %p63 = por %p61, %p62
      %p65 = scmp.ne.s32.totalorder %s48, %s64
      %p66 = scmp.eq.s32.totalorder %s40, 0
      %p67 = por %p65, %p66
      %s69 = sadd.s32 %s68, 1
      %p72 = scmp.eq.s32.totalorder %s34, 1
      %p73 = scmp.ne.s32.totalorder %s68, %s70
      %p74 = scmp.eq.s32.totalorder %s34, 0
      %p75 = por %p73, %p74
      %p76 = scmp.ne.s32.totalorder %s68, %s70
      %p77 = scmp.eq.s32.totalorder %s39, 1
      %p78 = por %p76, %p77
      %p79 = scmp.ne.s32.totalorder %s70, %s71
      %p80 = scmp.eq.s32.totalorder %s39, 0
      %p81 = por %p79, %p80
      %p82 = scmp.ne.s32.totalorder %s70, %s71
      %p83 = scmp.eq.s32.totalorder %s40, 1
      %p84 = por %p82, %p83
      %p86 = scmp.ne.s32.totalorder %s71, %s85
      %p87 = scmp.eq.s32.totalorder %s40, 0
      %p88 = por %p86, %p87
      %s90 = sadd.s32 %s89, 1
      %p93 = scmp.eq.s32.totalorder %s34, 1
      %p94 = scmp.ne.s32.totalorder %s89, %s91
      %p95 = scmp.eq.s32.totalorder %s34, 0
      %p96 = por %p94, %p95
      %p97 = scmp.ne.s32.totalorder %s89, %s91
      %p98 = scmp.eq.s32.totalorder %s39, 1
      %p99 = por %p97, %p98
      %p100 = scmp.ne.s32.totalorder %s91, %s92
      %p101 = scmp.eq.s32.totalorder %s39, 0
      %p102 = por %p100, %p101
      %p103 = scmp.ne.s32.totalorder %s91, %s92
      %p104 = scmp.eq.s32.totalorder %s40, 1
      %p105 = por %p103, %p104
      %p107 = scmp.ne.s32.totalorder %s92, %s106
      %p108 = scmp.eq.s32.totalorder %s40, 0
      %p109 = por %p107, %p108
      %s111 = sadd.s32 %s110, 1
      %p114 = scmp.eq.s32.totalorder %s34, 1
      %p115 = scmp.ne.s32.totalorder %s110, %s112
      %p116 = scmp.eq.s32.totalorder %s34, 0
      %p117 = por %p115, %p116
      %p118 = scmp.ne.s32.totalorder %s110, %s112
      %p119 = scmp.eq.s32.totalorder %s39, 1
      %p120 = por %p118, %p119
      %p121 = scmp.ne.s32.totalorder %s112, %s113
      %p122 = scmp.eq.s32.totalorder %s39, 0
      %p123 = por %p121, %p122
      %p124 = scmp.ne.s32.totalorder %s112, %s113
      %p125 = scmp.eq.s32.totalorder %s40, 1
      %p126 = por %p124, %p125
      %p128 = scmp.ne.s32.totalorder %s113, %s127
      %p129 = scmp.eq.s32.totalorder %s40, 0
      %p130 = por %p128, %p129
      %s132 = sadd.s32 %s131, 1
      %p135 = scmp.eq.s32.totalorder %s34, 1
      %p136 = scmp.ne.s32.totalorder %s131, %s133
      %p137 = scmp.eq.s32.totalorder %s34, 0
      %p138 = por %p136, %p137
      %p139 = scmp.ne.s32.totalorder %s131, %s133
      %p140 = scmp.eq.s32.totalorder %s39, 1
      %p141 = por %p139, %p140
      %p142 = scmp.ne.s32.totalorder %s133, %s134
      %p143 = scmp.eq.s32.totalorder %s39, 0
      %p144 = por %p142, %p143
      %p145 = scmp.ne.s32.totalorder %s133, %s134
      %p146 = scmp.eq.s32.totalorder %s40, 1
      %p147 = por %p145, %p146
      %p149 = scmp.ne.s32.totalorder %s134, %s148
      %p150 = scmp.eq.s32.totalorder %s40, 0
      %p151 = por %p149, %p150
      %s153 = sadd.s32 %s152, 1
      %p156 = scmp.eq.s32.totalorder %s34, 1
      %p157 = scmp.ne.s32.totalorder %s152, %s154
      %p158 = scmp.eq.s32.totalorder %s34, 0
      %p159 = por %p157, %p158
      %p160 = scmp.ne.s32.totalorder %s152, %s154
      %p161 = scmp.eq.s32.totalorder %s39, 1
      %p162 = por %p160, %p161
      %p163 = scmp.ne.s32.totalorder %s154, %s155
      %p164 = scmp.eq.s32.totalorder %s39, 0
      %p165 = por %p163, %p164
      %p166 = scmp.ne.s32.totalorder %s154, %s155
      %p167 = scmp.eq.s32.totalorder %s40, 1
      %p168 = por %p166, %p167
      %p170 = scmp.ne.s32.totalorder %s155, %s169
      %p171 = scmp.eq.s32.totalorder %s40, 0
      %p172 = por %p170, %p171
      %s174 = sadd.s32 %s173, 1
      %p177 = scmp.eq.s32.totalorder %s34, 1
      %p178 = scmp.ne.s32.totalorder %s173, %s175
      %p179 = scmp.eq.s32.totalorder %s34, 0
      %p180 = por %p178, %p179
      %p181 = scmp.ne.s32.totalorder %s173, %s175
      %p182 = scmp.eq.s32.totalorder %s39, 1
      %p183 = por %p181, %p182
      %p184 = scmp.ne.s32.totalorder %s175, %s176
      %p185 = scmp.eq.s32.totalorder %s39, 0
      %p186 = por %p184, %p185
      %p187 = scmp.ne.s32.totalorder %s175, %s176
      %p188 = scmp.eq.s32.totalorder %s40, 1
      %p189 = por %p187, %p188
      %p191 = scmp.ne.s32.totalorder %s176, %s190
      %p192 = scmp.eq.s32.totalorder %s40, 0
      %p193 = por %p191, %p192
      %s195 = sadd.s32 %s194, 1
      %p198 = scmp.eq.s32.totalorder %s34, 1
      %p199 = scmp.ne.s32.totalorder %s194, %s196
      %p200 = scmp.eq.s32.totalorder %s34, 0
      %p201 = por %p199, %p200
      %p202 = scmp.ne.s32.totalorder %s194, %s196
      %p203 = scmp.eq.s32.totalorder %s39, 1
      %p204 = por %p202, %p203
      %p205 = scmp.ne.s32.totalorder %s196, %s197
      %p206 = scmp.eq.s32.totalorder %s39, 0
      %p207 = por %p205, %p206
      %p208 = scmp.ne.s32.totalorder %s196, %s197
      %p209 = scmp.eq.s32.totalorder %s40, 1
      %p210 = por %p208, %p209
      %p212 = scmp.ne.s32.totalorder %s197, %s211
      %p213 = scmp.eq.s32.totalorder %s40, 0
      %p214 = por %p212, %p213
      %s216 = sadd.s32 %s215, 1
      %p219 = scmp.eq.s32.totalorder %s34, 1
      %p220 = scmp.ne.s32.totalorder %s215, %s217
      %p221 = scmp.eq.s32.totalorder %s34, 0
      %p222 = por %p220, %p221
      %p223 = scmp.ne.s32.totalorder %s215, %s217
      %p224 = scmp.eq.s32.totalorder %s39, 1
      %p225 = por %p223, %p224
      %p226 = scmp.ne.s32.totalorder %s217, %s218
      %p227 = scmp.eq.s32.totalorder %s39, 0
      %p228 = por %p226, %p227
      %p229 = scmp.ne.s32.totalorder %s217, %s218
      %p230 = scmp.eq.s32.totalorder %s40, 1
      %p231 = por %p229, %p230
      %p233 = scmp.ne.s32.totalorder %s218, %s232
      %p234 = scmp.eq.s32.totalorder %s40, 0
      %p235 = por %p233, %p234
      %s237 = sadd.s32 %s236, 1
      %p240 = scmp.eq.s32.totalorder %s34, 1
      %p241 = scmp.ne.s32.totalorder %s236, %s238
      %p242 = scmp.eq.s32.totalorder %s34, 0
      %p243 = por %p241, %p242
      %p244 = scmp.ne.s32.totalorder %s236, %s238
      %p245 = scmp.eq.s32.totalorder %s39, 1
      %p246 = por %p244, %p245
      %p247 = scmp.ne.s32.totalorder %s238, %s239
      %p248 = scmp.eq.s32.totalorder %s39, 0
      %p249 = por %p247, %p248
      %p250 = scmp.ne.s32.totalorder %s238, %s239
      %p251 = scmp.eq.s32.totalorder %s40, 1
      %p252 = por %p250, %p251
      %p254 = scmp.ne.s32.totalorder %s239, %s253
      %p255 = scmp.eq.s32.totalorder %s40, 0
      %p256 = por %p254, %p255
      %s258 = sadd.s32 %s257, 1
      %p261 = scmp.eq.s32.totalorder %s34, 1
      %p262 = scmp.ne.s32.totalorder %s257, %s259
      %p263 = scmp.eq.s32.totalorder %s34, 0
      %p264 = por %p262, %p263
      %p265 = scmp.ne.s32.totalorder %s257, %s259
      %p266 = scmp.eq.s32.totalorder %s39, 1
      %p267 = por %p265, %p266
      %p268 = scmp.ne.s32.totalorder %s259, %s260
      %p269 = scmp.eq.s32.totalorder %s39, 0
      %p270 = por %p268, %p269
      %p271 = scmp.ne.s32.totalorder %s259, %s260
      %p272 = scmp.eq.s32.totalorder %s40, 1
      %p273 = por %p271, %p272
      %p275 = scmp.ne.s32.totalorder %s260, %s274
      %p276 = scmp.eq.s32.totalorder %s40, 0
      %p277 = por %p275, %p276
      %s279 = sadd.s32 %s278, 1
      %p282 = scmp.eq.s32.totalorder %s34, 1
      %p283 = scmp.ne.s32.totalorder %s278, %s280
      %p284 = scmp.eq.s32.totalorder %s34, 0
      %p285 = por %p283, %p284
      %p286 = scmp.ne.s32.totalorder %s278, %s280
      %p287 = scmp.eq.s32.totalorder %s39, 1
      %p288 = por %p286, %p287
      %p289 = scmp.ne.s32.totalorder %s280, %s281
      %p290 = scmp.eq.s32.totalorder %s39, 0
      %p291 = por %p289, %p290
      %p292 = scmp.ne.s32.totalorder %s280, %s281
      %p293 = scmp.eq.s32.totalorder %s40, 1
      %p294 = por %p292, %p293
      %p296 = scmp.ne.s32.totalorder %s281, %s295
      %p297 = scmp.eq.s32.totalorder %s40, 0
      %p298 = por %p296, %p297
      %s300 = sadd.s32 %s299, 1
      %p303 = scmp.eq.s32.totalorder %s34, 1
      %p304 = scmp.ne.s32.totalorder %s299, %s301
      %p305 = scmp.eq.s32.totalorder %s34, 0
      %p306 = por %p304, %p305
      %p307 = scmp.ne.s32.totalorder %s299, %s301
      %p308 = scmp.eq.s32.totalorder %s39, 1
      %p309 = por %p307, %p308
      %p310 = scmp.ne.s32.totalorder %s301, %s302
      %p311 = scmp.eq.s32.totalorder %s39, 0
      %p312 = por %p310, %p311
      %p313 = scmp.ne.s32.totalorder %s301, %s302
      %p314 = scmp.eq.s32.totalorder %s40, 1
      %p315 = por %p313, %p314
      %p317 = scmp.ne.s32.totalorder %s302, %s316
      %p318 = scmp.eq.s32.totalorder %s40, 0
      %p319 = por %p317, %p318
      %s321 = sadd.s32 %s320, 1
      %p324 = scmp.eq.s32.totalorder %s34, 1
      %p325 = scmp.ne.s32.totalorder %s320, %s322
      %p326 = scmp.eq.s32.totalorder %s34, 0
      %p327 = por %p325, %p326
      %p328 = scmp.ne.s32.totalorder %s320, %s322
      %p329 = scmp.eq.s32.totalorder %s39, 1
      %p330 = por %p328, %p329
      %p331 = scmp.ne.s32.totalorder %s322, %s323
      %p332 = scmp.eq.s32.totalorder %s39, 0
      %p333 = por %p331, %p332
      %p334 = scmp.ne.s32.totalorder %s322, %s323
      %p335 = scmp.eq.s32.totalorder %s40, 1
      %p336 = por %p334, %p335
      %p338 = scmp.ne.s32.totalorder %s323, %s337
      %p339 = scmp.eq.s32.totalorder %s40, 0
      %p340 = por %p338, %p339
      %s342 = sadd.s32 %s341, 1
      %p345 = scmp.eq.s32.totalorder %s34, 1
      %p346 = scmp.ne.s32.totalorder %s341, %s343
      %p347 = scmp.eq.s32.totalorder %s34, 0
      %p348 = por %p346, %p347
      %p349 = scmp.ne.s32.totalorder %s341, %s343
      %p350 = scmp.eq.s32.totalorder %s39, 1
      %p351 = por %p349, %p350
      %p352 = scmp.ne.s32.totalorder %s343, %s344
      %p353 = scmp.eq.s32.totalorder %s39, 0
      %p354 = por %p352, %p353
      %p355 = scmp.ne.s32.totalorder %s343, %s344
      %p356 = scmp.eq.s32.totalorder %s40, 1
      %p357 = por %p355, %p356
      %p359 = scmp.ne.s32.totalorder %s344, %s358
      %p360 = scmp.eq.s32.totalorder %s40, 0
      %p361 = por %p359, %p360
      %s363 = sadd.s32 %s362, 1
      %p366 = scmp.eq.s32.totalorder %s34, 1
      %p367 = scmp.ne.s32.totalorder %s362, %s364
      %p368 = scmp.eq.s32.totalorder %s34, 0
      %p369 = por %p367, %p368
      %p370 = scmp.ne.s32.totalorder %s362, %s364
      %p371 = scmp.eq.s32.totalorder %s39, 1
      %p372 = por %p370, %p371
      %p373 = scmp.ne.s32.totalorder %s364, %s365
      %p374 = scmp.eq.s32.totalorder %s39, 0
      %p375 = por %p373, %p374
      %p376 = scmp.ne.s32.totalorder %s364, %s365
      %p377 = scmp.eq.s32.totalorder %s40, 1
      %p378 = por %p376, %p377
      %p380 = scmp.ne.s32.totalorder %s365, %s379
      %p381 = scmp.eq.s32.totalorder %s40, 0
      %p382 = por %p380, %p381
      %s384 = sadd.s32 %s383, 1
      %p387 = scmp.eq.s32.totalorder %s34, 1
      %p388 = scmp.ne.s32.totalorder %s383, %s385
      %p389 = scmp.eq.s32.totalorder %s34, 0
      %p390 = por %p388, %p389
      %p391 = scmp.ne.s32.totalorder %s383, %s385
      %p392 = scmp.eq.s32.totalorder %s39, 1
      %p393 = por %p391, %p392
      %p394 = scmp.ne.s32.totalorder %s385, %s386
      %p395 = scmp.eq.s32.totalorder %s39, 0
      %p396 = por %p394, %p395
      %p397 = scmp.ne.s32.totalorder %s385, %s386
      %p398 = scmp.eq.s32.totalorder %s40, 1
      %p399 = por %p397, %p398
      %p401 = scmp.ne.s32.totalorder %s386, %s400
      %p402 = scmp.eq.s32.totalorder %s40, 0
      %p403 = por %p401, %p402
      %s405 = sadd.s32 %s404, 1
      %p408 = scmp.eq.s32.totalorder %s34, 1
      %p409 = scmp.ne.s32.totalorder %s404, %s406
      %p410 = scmp.eq.s32.totalorder %s34, 0
      %p411 = por %p409, %p410
      %p412 = scmp.ne.s32.totalorder %s404, %s406
      %p413 = scmp.eq.s32.totalorder %s39, 1
      %p414 = por %p412, %p413
      %p415 = scmp.ne.s32.totalorder %s406, %s407
      %p416 = scmp.eq.s32.totalorder %s39, 0
      %p417 = por %p415, %p416
      %p418 = scmp.ne.s32.totalorder %s406, %s407
      %p419 = scmp.eq.s32.totalorder %s40, 1
      %p420 = por %p418, %p419
      %p422 = scmp.ne.s32.totalorder %s407, %s421
      %p423 = scmp.eq.s32.totalorder %s40, 0
      %p424 = por %p422, %p423
      %s426 = sadd.s32 %s425, 1
      %p429 = scmp.eq.s32.totalorder %s34, 1
      %p430 = scmp.ne.s32.totalorder %s425, %s427
      %p431 = scmp.eq.s32.totalorder %s34, 0
      %p432 = por %p430, %p431
      %p433 = scmp.ne.s32.totalorder %s425, %s427
      %p434 = scmp.eq.s32.totalorder %s39, 1
      %p435 = por %p433, %p434
      %p436 = scmp.ne.s32.totalorder %s427, %s428
      %p437 = scmp.eq.s32.totalorder %s39, 0
      %p438 = por %p436, %p437
      %p439 = scmp.ne.s32.totalorder %s427, %s428
      %p440 = scmp.eq.s32.totalorder %s40, 1
      %p441 = por %p439, %p440
      %p443 = scmp.ne.s32.totalorder %s428, %s442
      %p444 = scmp.eq.s32.totalorder %s40, 0
      %p445 = por %p443, %p444
      %s447 = sadd.s32 %s446, 1
      %p450 = scmp.eq.s32.totalorder %s34, 1
      %p451 = scmp.ne.s32.totalorder %s446, %s448
      %p452 = scmp.eq.s32.totalorder %s34, 0
      %p453 = por %p451, %p452
      %p454 = scmp.ne.s32.totalorder %s446, %s448
      %p455 = scmp.eq.s32.totalorder %s39, 1
      %p456 = por %p454, %p455
      %p457 = scmp.ne.s32.totalorder %s448, %s449
      %p458 = scmp.eq.s32.totalorder %s39, 0
      %p459 = por %p457, %p458
      %p460 = scmp.ne.s32.totalorder %s448, %s449
      %p461 = scmp.eq.s32.totalorder %s40, 1
      %p462 = por %p460, %p461
      %p464 = scmp.ne.s32.totalorder %s449, %s463
      %p465 = scmp.eq.s32.totalorder %s40, 0
      %p466 = por %p464, %p465
      %s468 = sadd.s32 %s467, 1
      %p471 = scmp.eq.s32.totalorder %s34, 1
      %p472 = scmp.ne.s32.totalorder %s467, %s469
      %p473 = scmp.eq.s32.totalorder %s34, 0
      %p474 = por %p472, %p473
      %p475 = scmp.ne.s32.totalorder %s467, %s469
      %p476 = scmp.eq.s32.totalorder %s39, 1
      %p477 = por %p475, %p476
      %p478 = scmp.ne.s32.totalorder %s469, %s470
      %p479 = scmp.eq.s32.totalorder %s39, 0
      %p480 = por %p478, %p479
      %p481 = scmp.ne.s32.totalorder %s469, %s470
      %p482 = scmp.eq.s32.totalorder %s40, 1
      %p483 = por %p481, %p482
      %p485 = scmp.ne.s32.totalorder %s470, %s484
      %p486 = scmp.eq.s32.totalorder %s40, 0
      %p487 = por %p485, %p486
      %s489 = sadd.s32 %s488, 1
      %p492 = scmp.eq.s32.totalorder %s34, 1
      %p493 = scmp.ne.s32.totalorder %s488, %s490
      %p494 = scmp.eq.s32.totalorder %s34, 0
      %p495 = por %p493, %p494
      %p496 = scmp.ne.s32.totalorder %s488, %s490
      %p497 = scmp.eq.s32.totalorder %s39, 1
      %p498 = por %p496, %p497
      %p499 = scmp.ne.s32.totalorder %s490, %s491
      %p500 = scmp.eq.s32.totalorder %s39, 0
      %p501 = por %p499, %p500
      %p502 = scmp.ne.s32.totalorder %s490, %s491
      %p503 = scmp.eq.s32.totalorder %s40, 1
      %p504 = por %p502, %p503
      %p506 = scmp.ne.s32.totalorder %s491, %s505
      %p507 = scmp.eq.s32.totalorder %s40, 0
      %p508 = por %p506, %p507
      %s510 = sadd.s32 %s509, 1
      %p513 = scmp.eq.s32.totalorder %s34, 1
      %p514 = scmp.ne.s32.totalorder %s509, %s511
      %p515 = scmp.eq.s32.totalorder %s34, 0
      %p516 = por %p514, %p515
      %p517 = scmp.ne.s32.totalorder %s509, %s511
      %p518 = scmp.eq.s32.totalorder %s39, 1
      %p519 = por %p517, %p518
      %p520 = scmp.ne.s32.totalorder %s511, %s512
      %p521 = scmp.eq.s32.totalorder %s39, 0
      %p522 = por %p520, %p521
      %p523 = scmp.ne.s32.totalorder %s511, %s512
      %p524 = scmp.eq.s32.totalorder %s40, 1
      %p525 = por %p523, %p524
      %p527 = scmp.ne.s32.totalorder %s512, %s526
      %p528 = scmp.eq.s32.totalorder %s40, 0
      %p529 = por %p527, %p528
      %s531 = sadd.s32 %s530, 1
      %p534 = scmp.eq.s32.totalorder %s34, 1
      %p535 = scmp.ne.s32.totalorder %s530, %s532
      %p536 = scmp.eq.s32.totalorder %s34, 0
      %p537 = por %p535, %p536
      %p538 = scmp.ne.s32.totalorder %s530, %s532
      %p539 = scmp.eq.s32.totalorder %s39, 1
      %p540 = por %p538, %p539
      %p541 = scmp.ne.s32.totalorder %s532, %s533
      %p542 = scmp.eq.s32.totalorder %s39, 0
      %p543 = por %p541, %p542
      %p544 = scmp.ne.s32.totalorder %s532, %s533
      %p545 = scmp.eq.s32.totalorder %s40, 1
      %p546 = por %p544, %p545
      %p548 = scmp.ne.s32.totalorder %s533, %s547
      %p549 = scmp.eq.s32.totalorder %s40, 0
      %p550 = por %p548, %p549
      %s552 = sadd.s32 %s551, 1
      %p555 = scmp.eq.s32.totalorder %s34, 1
      %p556 = scmp.ne.s32.totalorder %s551, %s553
      %p557 = scmp.eq.s32.totalorder %s34, 0
      %p558 = por %p556, %p557
      %p559 = scmp.ne.s32.totalorder %s551, %s553
      %p560 = scmp.eq.s32.totalorder %s39, 1
      %p561 = por %p559, %p560
      %p562 = scmp.ne.s32.totalorder %s553, %s554
      %p563 = scmp.eq.s32.totalorder %s39, 0
      %p564 = por %p562, %p563
      %p565 = scmp.ne.s32.totalorder %s553, %s554
      %p566 = scmp.eq.s32.totalorder %s40, 1
      %p567 = por %p565, %p566
      %p569 = scmp.ne.s32.totalorder %s554, %s568
      %p570 = scmp.eq.s32.totalorder %s40, 0
      %p571 = por %p569, %p570
      %s572 = ssub.s32 %s34, %s41
      %p573 = scmp.eq.s32.totalorder %s572, 0
      %s575 = sadd.s32 %s574, 1
      %s576 = scalar_select %p573, %s574, %s575
      %p579 = pneg %p573
      %p580 = scmp.eq.s32.totalorder %s34, 1
      %p581 = por %p579, %p580
      %p582 = scmp.ne.s32.totalorder %s574, %s577
      %p583 = scmp.eq.s32.totalorder %s34, 0
      %p584 = por %p582, %p583
      %p585 = scmp.ne.s32.totalorder %s574, %s577
      %p586 = scmp.eq.s32.totalorder %s39, 1
      %p587 = por %p585, %p586
      %p588 = scmp.ne.s32.totalorder %s577, %s578
      %p589 = scmp.eq.s32.totalorder %s39, 0
      %p590 = por %p588, %p589
      %p591 = scmp.ne.s32.totalorder %s577, %s578
      %p592 = scmp.eq.s32.totalorder %s40, 1
      %p593 = por %p591, %p592
      %p595 = scmp.ne.s32.totalorder %s578, %s594
      %p596 = scmp.eq.s32.totalorder %s40, 0
      %p597 = por %p595, %p596
      %p598 = scmp.le.s32.totalorder 1, %s34
      %p599 = scmp.lt.s32.totalorder %s34, 3
      %p600 = pnand %p598, %p599
      %p601 = pneg %p600
      // Predicated region
      $region9: #{simple_edge_embedding_forward.1} parent=5 // pred_check
        _
      $region10: #{simple_edge_embedding_forward.1} parent=5 // pred_check_branch
        %603 = sbr.rel (%p600) target = $region12
      $region11: #{simple_edge_embedding_forward.1} parent=5 // pred_region
        %s604 = ssub.s32 %s34, 1
        // Predicated region
        $region13: #{simple_edge_embedding_forward.1} parent=11 // pred_check
          %p605 = pneg %p81
        $region14: #{simple_edge_embedding_forward.1} parent=11 // pred_check_branch
          %607 = sbr.rel (%p605) target = $region16
        $region15: #{simple_edge_embedding_forward.1} parent=11 // pred_region
          _
        $region16: #{simple_edge_embedding_forward.1} parent=11 // pred_fallthru
          _
        // Predicated region
        $region17: #{simple_edge_embedding_forward.1} parent=11 // pred_check
          %p608 = pneg %p102
        $region18: #{simple_edge_embedding_forward.1} parent=11 // pred_check_branch
          %610 = sbr.rel (%p608) target = $region20
        $region19: #{simple_edge_embedding_forward.1} parent=11 // pred_region
          _
        $region20: #{simple_edge_embedding_forward.1} parent=11 // pred_fallthru
          _
        // Predicated region
        $region21: #{simple_edge_embedding_forward.1} parent=11 // pred_check
          %p611 = pneg %p123
        $region22: #{simple_edge_embedding_forward.1} parent=11 // pred_check_branch
          %613 = sbr.rel (%p611) target = $region24
        $region23: #{simple_edge_embedding_forward.1} parent=11 // pred_region
          _
        $region24: #{simple_edge_embedding_forward.1} parent=11 // pred_fallthru
          _
        // Predicated region
        $region25: #{simple_edge_embedding_forward.1} parent=11 // pred_check
          %p614 = pneg %p144
        $region26: #{simple_edge_embedding_forward.1} parent=11 // pred_check_branch
          %616 = sbr.rel (%p614) target = $region28
        $region27: #{simple_edge_embedding_forward.1} parent=11 // pred_region
          _
        $region28: #{simple_edge_embedding_forward.1} parent=11 // pred_fallthru
          _
        // Predicated region
        $region29: #{simple_edge_embedding_forward.1} parent=11 // pred_check
          %p617 = pneg %p165
        $region30: #{simple_edge_embedding_forward.1} parent=11 // pred_check_branch
          %619 = sbr.rel (%p617) target = $region32
        $region31: #{simple_edge_embedding_forward.1} parent=11 // pred_region
          _
        $region32: #{simple_edge_embedding_forward.1} parent=11 // pred_fallthru
          _
        // Predicated region
        $region33: #{simple_edge_embedding_forward.1} parent=11 // pred_check
          %p620 = pneg %p186
        $region34: #{simple_edge_embedding_forward.1} parent=11 // pred_check_branch
          %622 = sbr.rel (%p620) target = $region36
        $region35: #{simple_edge_embedding_forward.1} parent=11 // pred_region
          _
        $region36: #{simple_edge_embedding_forward.1} parent=11 // pred_fallthru
          _
        // Predicated region
        $region37: #{simple_edge_embedding_forward.1} parent=11 // pred_check
          %p623 = pneg %p207
        $region38: #{simple_edge_embedding_forward.1} parent=11 // pred_check_branch
          %625 = sbr.rel (%p623) target = $region40
        $region39: #{simple_edge_embedding_forward.1} parent=11 // pred_region
          _
        $region40: #{simple_edge_embedding_forward.1} parent=11 // pred_fallthru
          _
        // Predicated region
        $region41: #{simple_edge_embedding_forward.1} parent=11 // pred_check
          %p626 = pneg %p228
        $region42: #{simple_edge_embedding_forward.1} parent=11 // pred_check_branch
          %628 = sbr.rel (%p626) target = $region44
        $region43: #{simple_edge_embedding_forward.1} parent=11 // pred_region
          _
        $region44: #{simple_edge_embedding_forward.1} parent=11 // pred_fallthru
          _
        // Predicated region
        $region45: #{simple_edge_embedding_forward.1} parent=11 // pred_check
          %p629 = pneg %p249
        $region46: #{simple_edge_embedding_forward.1} parent=11 // pred_check_branch
          %631 = sbr.rel (%p629) target = $region48
        $region47: #{simple_edge_embedding_forward.1} parent=11 // pred_region
          _
        $region48: #{simple_edge_embedding_forward.1} parent=11 // pred_fallthru
          _
        // Predicated region
        $region49: #{simple_edge_embedding_forward.1} parent=11 // pred_check
          %p632 = pneg %p270
        $region50: #{simple_edge_embedding_forward.1} parent=11 // pred_check_branch
          %634 = sbr.rel (%p632) target = $region52
        $region51: #{simple_edge_embedding_forward.1} parent=11 // pred_region
          _
        $region52: #{simple_edge_embedding_forward.1} parent=11 // pred_fallthru
          _
        // Predicated region
        $region53: #{simple_edge_embedding_forward.1} parent=11 // pred_check
          %p635 = pneg %p291
        $region54: #{simple_edge_embedding_forward.1} parent=11 // pred_check_branch
          %637 = sbr.rel (%p635) target = $region56
        $region55: #{simple_edge_embedding_forward.1} parent=11 // pred_region
          _
        $region56: #{simple_edge_embedding_forward.1} parent=11 // pred_fallthru
          _
        // Predicated region
        $region57: #{simple_edge_embedding_forward.1} parent=11 // pred_check
          %p638 = pneg %p312
        $region58: #{simple_edge_embedding_forward.1} parent=11 // pred_check_branch
          %640 = sbr.rel (%p638) target = $region60
        $region59: #{simple_edge_embedding_forward.1} parent=11 // pred_region
          _
        $region60: #{simple_edge_embedding_forward.1} parent=11 // pred_fallthru
          _
        // Predicated region
        $region61: #{simple_edge_embedding_forward.1} parent=11 // pred_check
          %p641 = pneg %p333
        $region62: #{simple_edge_embedding_forward.1} parent=11 // pred_check_branch
          %643 = sbr.rel (%p641) target = $region64
        $region63: #{simple_edge_embedding_forward.1} parent=11 // pred_region
          _
        $region64: #{simple_edge_embedding_forward.1} parent=11 // pred_fallthru
          _
        // Predicated region
        $region65: #{simple_edge_embedding_forward.1} parent=11 // pred_check
          %p644 = pneg %p354
        $region66: #{simple_edge_embedding_forward.1} parent=11 // pred_check_branch
          %646 = sbr.rel (%p644) target = $region68
        $region67: #{simple_edge_embedding_forward.1} parent=11 // pred_region
          _
        $region68: #{simple_edge_embedding_forward.1} parent=11 // pred_fallthru
          _
        // Predicated region
        $region69: #{simple_edge_embedding_forward.1} parent=11 // pred_check
          %p647 = pneg %p375
        $region70: #{simple_edge_embedding_forward.1} parent=11 // pred_check_branch
          %649 = sbr.rel (%p647) target = $region72
        $region71: #{simple_edge_embedding_forward.1} parent=11 // pred_region
          _
        $region72: #{simple_edge_embedding_forward.1} parent=11 // pred_fallthru
          _
        // Predicated region
        $region73: #{simple_edge_embedding_forward.1} parent=11 // pred_check
          %p650 = pneg %p396
        $region74: #{simple_edge_embedding_forward.1} parent=11 // pred_check_branch
          %652 = sbr.rel (%p650) target = $region76
        $region75: #{simple_edge_embedding_forward.1} parent=11 // pred_region
          _
        $region76: #{simple_edge_embedding_forward.1} parent=11 // pred_fallthru
          _
        // Predicated region
        $region77: #{simple_edge_embedding_forward.1} parent=11 // pred_check
          %p653 = pneg %p417
        $region78: #{simple_edge_embedding_forward.1} parent=11 // pred_check_branch
          %655 = sbr.rel (%p653) target = $region80
        $region79: #{simple_edge_embedding_forward.1} parent=11 // pred_region
          _
        $region80: #{simple_edge_embedding_forward.1} parent=11 // pred_fallthru
          _
        // Predicated region
        $region81: #{simple_edge_embedding_forward.1} parent=11 // pred_check
          %p656 = pneg %p438
        $region82: #{simple_edge_embedding_forward.1} parent=11 // pred_check_branch
          %658 = sbr.rel (%p656) target = $region84
        $region83: #{simple_edge_embedding_forward.1} parent=11 // pred_region
          _
        $region84: #{simple_edge_embedding_forward.1} parent=11 // pred_fallthru
          _
        // Predicated region
        $region85: #{simple_edge_embedding_forward.1} parent=11 // pred_check
          %p659 = pneg %p459
        $region86: #{simple_edge_embedding_forward.1} parent=11 // pred_check_branch
          %661 = sbr.rel (%p659) target = $region88
        $region87: #{simple_edge_embedding_forward.1} parent=11 // pred_region
          _
        $region88: #{simple_edge_embedding_forward.1} parent=11 // pred_fallthru
          _
        // Predicated region
        $region89: #{simple_edge_embedding_forward.1} parent=11 // pred_check
          %p662 = pneg %p480
        $region90: #{simple_edge_embedding_forward.1} parent=11 // pred_check_branch
          %664 = sbr.rel (%p662) target = $region92
        $region91: #{simple_edge_embedding_forward.1} parent=11 // pred_region
          _
        $region92: #{simple_edge_embedding_forward.1} parent=11 // pred_fallthru
          _
        // Predicated region
        $region93: #{simple_edge_embedding_forward.1} parent=11 // pred_check
          %p665 = pneg %p501
        $region94: #{simple_edge_embedding_forward.1} parent=11 // pred_check_branch
          %667 = sbr.rel (%p665) target = $region96
        $region95: #{simple_edge_embedding_forward.1} parent=11 // pred_region
          _
        $region96: #{simple_edge_embedding_forward.1} parent=11 // pred_fallthru
          _
        // Predicated region
        $region97: #{simple_edge_embedding_forward.1} parent=11 // pred_check
          %p668 = pneg %p522
        $region98: #{simple_edge_embedding_forward.1} parent=11 // pred_check_branch
          %670 = sbr.rel (%p668) target = $region100
        $region99: #{simple_edge_embedding_forward.1} parent=11 // pred_region
          _
        $region100: #{simple_edge_embedding_forward.1} parent=11 // pred_fallthru
          _
        // Predicated region
        $region101: #{simple_edge_embedding_forward.1} parent=11 // pred_check
          %p671 = pneg %p543
        $region102: #{simple_edge_embedding_forward.1} parent=11 // pred_check_branch
          %673 = sbr.rel (%p671) target = $region104
        $region103: #{simple_edge_embedding_forward.1} parent=11 // pred_region
          _
        $region104: #{simple_edge_embedding_forward.1} parent=11 // pred_fallthru
          _
        // Predicated region
        $region105: #{simple_edge_embedding_forward.1} parent=11 // pred_check
          %p674 = pneg %p564
        $region106: #{simple_edge_embedding_forward.1} parent=11 // pred_check_branch
          %676 = sbr.rel (%p674) target = $region108
        $region107: #{simple_edge_embedding_forward.1} parent=11 // pred_region
          _
        $region108: #{simple_edge_embedding_forward.1} parent=11 // pred_fallthru
          _
      $region12: #{simple_edge_embedding_forward.1} parent=5 // pred_fallthru
        _
      %p677 = scmp.lt.s32.totalorder %s34, 2
      // Predicated region
      $region109: #{simple_edge_embedding_forward.1} parent=5 // pred_check
        %p678 = pneg %p677
      $region110: #{simple_edge_embedding_forward.1} parent=5 // pred_check_branch
        %680 = sbr.rel (%p678) target = $region112
      $region111: #{simple_edge_embedding_forward.1} parent=5 // pred_region
        // Predicated region
        $region113: #{simple_edge_embedding_forward.1} parent=111 // pred_check
          %p681 = pneg %p54
        $region114: #{simple_edge_embedding_forward.1} parent=111 // pred_check_branch
          %683 = sbr.rel (%p681) target = $region116
        $region115: #{simple_edge_embedding_forward.1} parent=111 // pred_region
          %p684 = scmp.lt.s32.totalorder %s34, 1
          %s685 = scalar_select %p684, %s34, 1
          %s686 = smul.addr %s685, 32
          %s687 = smul.addr %s686, 8
          %s688 = scalar_lea.vmem %s0, %s687
        $region116: #{simple_edge_embedding_forward.1} parent=111 // pred_fallthru
          _
      $region112: #{simple_edge_embedding_forward.1} parent=5 // pred_fallthru
        _
      %p689 = scmp.le.s32.totalorder 1, %s34
      %p690 = scmp.lt.s32.totalorder %s34, 3
      %p691 = pnand %p689, %p690
      %p692 = pneg %p691
      // Predicated region
      $region117: #{simple_edge_embedding_forward.1} parent=5 // pred_check
        _
      $region118: #{simple_edge_embedding_forward.1} parent=5 // pred_check_branch
        %694 = sbr.rel (%p691) target = $region120
      $region119: #{simple_edge_embedding_forward.1} parent=5 // pred_region
        %s695 = ssub.s32 %s34, 1
        %p696 = scmp.lt.s32.totalorder %s39, 1
        %s697 = scalar_select %p696, %s39, 1
        %s698 = smul.addr %s697, 32
        %s699 = smul.addr %s698, 8
        %s700 = scalar_lea.vmem %s0, %s699
        %p701 = pneg %p60
        %p702 = pneg %p57
        %p703 = pneg %p81
        %p704 = pneg %p78
        %p705 = pneg %p102
        %p706 = pneg %p99
        %p707 = pneg %p123
        %p708 = pneg %p120
        %p709 = pneg %p144
        %p710 = pneg %p141
        %p711 = pneg %p165
        %p712 = pneg %p162
        %p713 = pneg %p186
        %p714 = pneg %p183
        %p715 = pneg %p207
        %p716 = pneg %p204
        %p717 = pneg %p228
        %p718 = pneg %p225
        %p719 = pneg %p249
        %p720 = pneg %p246
        %p721 = pneg %p270
        %p722 = pneg %p267
        %p723 = pneg %p291
        %p724 = pneg %p288
        %p725 = pneg %p312
        %p726 = pneg %p309
        %p727 = pneg %p333
        %p728 = pneg %p330
        %p729 = pneg %p354
        %p730 = pneg %p351
        %p731 = pneg %p375
        %p732 = pneg %p372
        %p733 = pneg %p396
        %p734 = pneg %p393
        %p735 = pneg %p417
        %p736 = pneg %p414
        %p737 = pneg %p438
        %p738 = pneg %p435
        %p739 = pneg %p459
        %p740 = pneg %p456
        %p741 = pneg %p480
        %p742 = pneg %p477
        %p743 = pneg %p501
        %p744 = pneg %p498
        %p745 = pneg %p522
        %p746 = pneg %p519
        %p747 = pneg %p543
        %p748 = pneg %p540
        %p749 = pneg %p564
        %p750 = pneg %p561
        %p751 = pneg %p590
        %p752 = pneg %p587
        %s753 = sand.u32 %s577, 1
        %s754 = scalar_lea.sflag [#allocation3], %s753
        %s755 = sand.u32 %s577, 1
        %s756 = smul.addr %s755, 256
        %s757 = scalar_lea.vmem [#allocation2], %s756
        %p758 = scmp.lt.s32.totalorder %s39, 1
        %s759 = scalar_select %p758, %s39, 1
        %s760 = smul.addr %s759, 32
        %s761 = smul.addr %s760, 8
        %s762 = scalar_lea.vmem %s0, %s761
        %v763 = vld [vmem:[%s762] sm:$0xff]
        %v764 = vld [vmem:[%s762 + $0x8] sm:$0xff]
        %v765 = vld [vmem:[%s762 + $0x10] sm:$0xff]
        %v766 = vld [vmem:[%s762 + $0x18] sm:$0xff]
        %v767 = vld [vmem:[%s762 + $0x20] sm:$0xff]
        %v768 = vld [vmem:[%s762 + $0x28] sm:$0xff]
        %v769 = vld [vmem:[%s762 + $0x30] sm:$0xff]
        %v770 = vld [vmem:[%s762 + $0x38] sm:$0xff]
        %v771 = vld [vmem:[%s762 + $0x40] sm:$0xff]
        %v772 = vld [vmem:[%s762 + $0x48] sm:$0xff]
        %v773 = vld [vmem:[%s762 + $0x50] sm:$0xff]
        %v774 = vld [vmem:[%s762 + $0x58] sm:$0xff]
        %v775 = vld [vmem:[%s762 + $0x60] sm:$0xff]
        %v776 = vld [vmem:[%s762 + $0x68] sm:$0xff]
        %v777 = vld [vmem:[%s762 + $0x70] sm:$0xff]
        %v778 = vld [vmem:[%s762 + $0x78] sm:$0xff]
        %v779 = vld [vmem:[%s762 + $0x80] sm:$0xff]
        %v780 = vld [vmem:[%s762 + $0x88] sm:$0xff]
        %v781 = vld [vmem:[%s762 + $0x90] sm:$0xff]
        %v782 = vld [vmem:[%s762 + $0x98] sm:$0xff]
        %v783 = vld [vmem:[%s762 + $0xa0] sm:$0xff]
        %v784 = vld [vmem:[%s762 + $0xa8] sm:$0xff]
        %v785 = vld [vmem:[%s762 + $0xb0] sm:$0xff]
        %v786 = vld [vmem:[%s762 + $0xb8] sm:$0xff]
        %v787 = vld [vmem:[%s762 + $0xc0] sm:$0xff]
        %v788 = vld [vmem:[%s762 + $0xc8] sm:$0xff]
        %v789 = vld [vmem:[%s762 + $0xd0] sm:$0xff]
        %v790 = vld [vmem:[%s762 + $0xd8] sm:$0xff]
        %v791 = vld [vmem:[%s762 + $0xe0] sm:$0xff]
        %v792 = vld [vmem:[%s762 + $0xe8] sm:$0xff]
        %v793 = vld [vmem:[%s762 + $0xf0] sm:$0xff]
        %v794 = vld [vmem:[%s762 + $0xf8] sm:$0xff]
        %v795 = vld [vmem:[%s4] sm:$0xf]
        %v796 = vld [vmem:[%s3] sm:$0x1]
        %v798 = vlaneseq
        %v799 = vshrl.u32 %v798, 7
        %v800 = vsub.s32 0, %v799
        %v801 = vrot.slane %v796, %v800
        %vm803 = vcmask 31744
        %v805 = vsel %vm803, %v763, 0
        %v808 = vsel %vm803, %v764, 0
        %v811 = vsel %vm803, %v765, 0
        %v814 = vsel %vm803, %v766, 0
        %v817 = vsel %vm803, %v767, 0
        %v820 = vsel %vm803, %v768, 0
        %v823 = vsel %vm803, %v769, 0
        %v826 = vsel %vm803, %v770, 0
        %v829 = vsel %vm803, %v771, 0
        %v832 = vsel %vm803, %v772, 0
        %v835 = vsel %vm803, %v773, 0
        %v838 = vsel %vm803, %v774, 0
        %v841 = vsel %vm803, %v775, 0
        %v844 = vsel %vm803, %v776, 0
        %v847 = vsel %vm803, %v777, 0
        %v850 = vsel %vm803, %v778, 0
        %v853 = vsel %vm803, %v779, 0
        %v856 = vsel %vm803, %v780, 0
        %v859 = vsel %vm803, %v781, 0
        %v862 = vsel %vm803, %v782, 0
        %v865 = vsel %vm803, %v783, 0
        %v868 = vsel %vm803, %v784, 0
        %v871 = vsel %vm803, %v785, 0
        %v874 = vsel %vm803, %v786, 0
        %v877 = vsel %vm803, %v787, 0
        %v880 = vsel %vm803, %v788, 0
        %v883 = vsel %vm803, %v789, 0
        %v886 = vsel %vm803, %v790, 0
        %v889 = vsel %vm803, %v791, 0
        %v892 = vsel %vm803, %v792, 0
        %v895 = vsel %vm803, %v793, 0
        %v898 = vsel %vm803, %v794, 0
        %vm900 = vcmask 1043456
        %v902 = vsel %vm900, %v795, 0
        %904 = vmatprep.subr.mxu0 0.0
        %905 = vmatpush1.msra.mxu0 0.0
        %906 = vmatprep.subr.mxu0 0.0
        %907 = vmatpush1.msra.mxu0 0.0
        %908 = vmatprep.subr.mxu0 0.0
        %909 = vmatpush1.msra.mxu0 0.0
        %910 = vmatprep.subr.mxu0 0.0
        %911 = vmatpush1.msra.mxu0 0.0
        %912 = vmatprep.subr.mxu0 0.0
        %913 = vmatpush1.msra.mxu0 0.0
        %914 = vmatprep.subr.mxu0 0.0
        %915 = vmatpush1.msra.mxu0 0.0
        %916 = vmatprep.subr.mxu0 0.0
        %917 = vmatpush1.msra.mxu0 0.0
        %918 = vmatprep.subr.mxu0 0.0
        %919 = vmatpush1.msra.mxu0 0.0
        %920 = vmatprep.subr.mxu0 0.0
        %921 = vmatpush1.msra.mxu0 0.0
        %922 = vmatprep.subr.mxu0 0.0
        %923 = vmatpush1.msra.mxu0 0.0
        %924 = vmatprep.subr.mxu0 0.0
        %925 = vmatpush1.msra.mxu0 0.0
        %926 = vmatprep.subr.mxu0 0.0
        %927 = vmatpush1.msra.mxu0 0.0
        %928 = vmatprep.subr.mxu0 0.0
        %929 = vmatpush1.msra.mxu0 0.0
        %930 = vmatprep.subr.mxu0 0.0
        %931 = vmatpush1.msra.mxu0 0.0
        %932 = vmatprep.subr.mxu0 0.0
        %933 = vmatpush1.msra.mxu0 0.0
        %934 = vmatprep.subr.mxu0 0.0
        %935 = vmatpush1.msra.mxu0 %v902
        %936 = vmatprep.subr.mxu0 0.0
        %937 = vmatpush2.msra.mxu0 0.0
        %938 = vmatprep.subr.mxu0 0.0
        %939 = vmatpush2.msra.mxu0 0.0
        %940 = vmatprep.subr.mxu0 0.0
        %941 = vmatpush2.msra.mxu0 0.0
        %942 = vmatprep.subr.mxu0 0.0
        %943 = vmatpush2.msra.mxu0 0.0
        %944 = vmatprep.subr.mxu0 0.0
        %945 = vmatpush2.msra.mxu0 0.0
        %946 = vmatprep.subr.mxu0 0.0
        %947 = vmatpush2.msra.mxu0 0.0
        %948 = vmatprep.subr.mxu0 0.0
        %949 = vmatpush2.msra.mxu0 0.0
        %950 = vmatprep.subr.mxu0 0.0
        %951 = vmatpush2.msra.mxu0 0.0
        %952 = vmatprep.subr.mxu0 0.0
        %953 = vmatpush2.msra.mxu0 0.0
        %954 = vmatprep.subr.mxu0 0.0
        %955 = vmatpush2.msra.mxu0 0.0
        %956 = vmatprep.subr.mxu0 0.0
        %957 = vmatpush2.msra.mxu0 0.0
        %958 = vmatprep.subr.mxu0 0.0
        %959 = vmatpush2.msra.mxu0 0.0
        %960 = vmatprep.subr.mxu0 0.0
        %961 = vmatpush2.msra.mxu0 0.0
        %962 = vmatprep.subr.mxu0 0.0
        %963 = vmatpush2.msra.mxu0 0.0
        %964 = vmatprep.subr.mxu0 0.0
        %965 = vmatpush2.msra.mxu0 0.0
        %966 = vmatprep.subr.mxu0 0.0
        %967 = vmatpush2.msra.mxu0 0.0
        %968 = vmatprep.mubr.f32.mxu0 0.0
        %969 = vmatmul.mubr.f32.gmra.mxu0 %v805
        %v970 = vpop.f32.mrf.mxu0
        %v971 = vadd.f32 %v801, %v970
        %v972 = vpop.f32.mrf.mxu0
        %973 = vmatprep.mubr.f32.mxu0 0.0
        %974 = vmatmul.mubr.f32.gmra.mxu0 %v808
        %v975 = vpop.f32.mrf.mxu0
        %v976 = vadd.f32 %v801, %v975
        %v977 = vpop.f32.mrf.mxu0
        %978 = vmatprep.mubr.f32.mxu0 0.0
        %979 = vmatmul.mubr.f32.gmra.mxu0 %v811
        %v980 = vpop.f32.mrf.mxu0
        %v981 = vadd.f32 %v801, %v980
        %v982 = vpop.f32.mrf.mxu0
        %983 = vmatprep.mubr.f32.mxu0 0.0
        %984 = vmatmul.mubr.f32.gmra.mxu0 %v814
        %v985 = vpop.f32.mrf.mxu0
        %v986 = vadd.f32 %v801, %v985
        %v987 = vpop.f32.mrf.mxu0
        %988 = vmatprep.mubr.f32.mxu0 0.0
        %989 = vmatmul.mubr.f32.gmra.mxu0 %v817
        %v990 = vpop.f32.mrf.mxu0
        %v991 = vadd.f32 %v801, %v990
        %v992 = vpop.f32.mrf.mxu0
        %993 = vmatprep.mubr.f32.mxu0 0.0
        %994 = vmatmul.mubr.f32.gmra.mxu0 %v820
        %v995 = vpop.f32.mrf.mxu0
        %v996 = vadd.f32 %v801, %v995
        %v997 = vpop.f32.mrf.mxu0
        %998 = vmatprep.mubr.f32.mxu0 0.0
        %999 = vmatmul.mubr.f32.gmra.mxu0 %v823
        %v1000 = vpop.f32.mrf.mxu0
        %v1001 = vadd.f32 %v801, %v1000
        %v1002 = vpop.f32.mrf.mxu0
        %1003 = vmatprep.mubr.f32.mxu0 0.0
        %1004 = vmatmul.mubr.f32.gmra.mxu0 %v826
        %v1005 = vpop.f32.mrf.mxu0
        %v1006 = vadd.f32 %v801, %v1005
        %v1007 = vpop.f32.mrf.mxu0
        %1008 = vmatprep.mubr.f32.mxu0 0.0
        %1009 = vmatmul.mubr.f32.gmra.mxu0 %v829
        %v1010 = vpop.f32.mrf.mxu0
        %v1011 = vadd.f32 %v801, %v1010
        %v1012 = vpop.f32.mrf.mxu0
        %1013 = vmatprep.mubr.f32.mxu0 0.0
        %1014 = vmatmul.mubr.f32.gmra.mxu0 %v832
        %v1015 = vpop.f32.mrf.mxu0
        %v1016 = vadd.f32 %v801, %v1015
        %v1017 = vpop.f32.mrf.mxu0
        %1018 = vmatprep.mubr.f32.mxu0 0.0
        %1019 = vmatmul.mubr.f32.gmra.mxu0 %v835
        %v1020 = vpop.f32.mrf.mxu0
        %v1021 = vadd.f32 %v801, %v1020
        %v1022 = vpop.f32.mrf.mxu0
        %1023 = vmatprep.mubr.f32.mxu0 0.0
        %1024 = vmatmul.mubr.f32.gmra.mxu0 %v838
        %v1025 = vpop.f32.mrf.mxu0
        %v1026 = vadd.f32 %v801, %v1025
        %v1027 = vpop.f32.mrf.mxu0
        %1028 = vmatprep.mubr.f32.mxu0 0.0
        %1029 = vmatmul.mubr.f32.gmra.mxu0 %v841
        %v1030 = vpop.f32.mrf.mxu0
        %v1031 = vadd.f32 %v801, %v1030
        %v1032 = vpop.f32.mrf.mxu0
        %1033 = vmatprep.mubr.f32.mxu0 0.0
        %1034 = vmatmul.mubr.f32.gmra.mxu0 %v844
        %v1035 = vpop.f32.mrf.mxu0
        %v1036 = vadd.f32 %v801, %v1035
        %v1037 = vpop.f32.mrf.mxu0
        %1038 = vmatprep.mubr.f32.mxu0 0.0
        %1039 = vmatmul.mubr.f32.gmra.mxu0 %v847
        %v1040 = vpop.f32.mrf.mxu0
        %v1041 = vadd.f32 %v801, %v1040
        %v1042 = vpop.f32.mrf.mxu0
        %1043 = vmatprep.mubr.f32.mxu0 0.0
        %1044 = vmatmul.mubr.f32.gmra.mxu0 %v850
        %v1045 = vpop.f32.mrf.mxu0
        %v1046 = vadd.f32 %v801, %v1045
        %v1047 = vpop.f32.mrf.mxu0
        %1048 = vmatprep.mubr.f32.mxu0 0.0
        %1049 = vmatmul.mubr.f32.gmra.mxu0 %v853
        %v1050 = vpop.f32.mrf.mxu0
        %v1051 = vadd.f32 %v801, %v1050
        %v1052 = vpop.f32.mrf.mxu0
        %1053 = vmatprep.mubr.f32.mxu0 0.0
        %1054 = vmatmul.mubr.f32.gmra.mxu0 %v856
        %v1055 = vpop.f32.mrf.mxu0
        %v1056 = vadd.f32 %v801, %v1055
        %v1057 = vpop.f32.mrf.mxu0
        %1058 = vmatprep.mubr.f32.mxu0 0.0
        %1059 = vmatmul.mubr.f32.gmra.mxu0 %v859
        %v1060 = vpop.f32.mrf.mxu0
        %v1061 = vadd.f32 %v801, %v1060
        %v1062 = vpop.f32.mrf.mxu0
        %1063 = vmatprep.mubr.f32.mxu0 0.0
        %1064 = vmatmul.mubr.f32.gmra.mxu0 %v862
        %v1065 = vpop.f32.mrf.mxu0
        %v1066 = vadd.f32 %v801, %v1065
        %v1067 = vpop.f32.mrf.mxu0
        %1068 = vmatprep.mubr.f32.mxu0 0.0
        %1069 = vmatmul.mubr.f32.gmra.mxu0 %v865
        %v1070 = vpop.f32.mrf.mxu0
        %v1071 = vadd.f32 %v801, %v1070
        %v1072 = vpop.f32.mrf.mxu0
        %1073 = vmatprep.mubr.f32.mxu0 0.0
        %1074 = vmatmul.mubr.f32.gmra.mxu0 %v868
        %v1075 = vpop.f32.mrf.mxu0
        %v1076 = vadd.f32 %v801, %v1075
        %v1077 = vpop.f32.mrf.mxu0
        %1078 = vmatprep.mubr.f32.mxu0 0.0
        %1079 = vmatmul.mubr.f32.gmra.mxu0 %v871
        %v1080 = vpop.f32.mrf.mxu0
        %v1081 = vadd.f32 %v801, %v1080
        %v1082 = vpop.f32.mrf.mxu0
        %1083 = vmatprep.mubr.f32.mxu0 0.0
        %1084 = vmatmul.mubr.f32.gmra.mxu0 %v874
        %v1085 = vpop.f32.mrf.mxu0
        %v1086 = vadd.f32 %v801, %v1085
        %v1087 = vpop.f32.mrf.mxu0
        %1088 = vmatprep.mubr.f32.mxu0 0.0
        %1089 = vmatmul.mubr.f32.gmra.mxu0 %v877
        %v1090 = vpop.f32.mrf.mxu0
        %v1091 = vadd.f32 %v801, %v1090
        %v1092 = vpop.f32.mrf.mxu0
        %1093 = vmatprep.mubr.f32.mxu0 0.0
        %1094 = vmatmul.mubr.f32.gmra.mxu0 %v880
        %v1095 = vpop.f32.mrf.mxu0
        %v1096 = vadd.f32 %v801, %v1095
        %v1097 = vpop.f32.mrf.mxu0
        %1098 = vmatprep.mubr.f32.mxu0 0.0
        %1099 = vmatmul.mubr.f32.gmra.mxu0 %v883
        %v1100 = vpop.f32.mrf.mxu0
        %v1101 = vadd.f32 %v801, %v1100
        %v1102 = vpop.f32.mrf.mxu0
        %1103 = vmatprep.mubr.f32.mxu0 0.0
        %1104 = vmatmul.mubr.f32.gmra.mxu0 %v886
        %v1105 = vpop.f32.mrf.mxu0
        %v1106 = vadd.f32 %v801, %v1105
        %v1107 = vpop.f32.mrf.mxu0
        %1108 = vmatprep.mubr.f32.mxu0 0.0
        %1109 = vmatmul.mubr.f32.gmra.mxu0 %v889
        %v1110 = vpop.f32.mrf.mxu0
        %v1111 = vadd.f32 %v801, %v1110
        %v1112 = vpop.f32.mrf.mxu0
        %1113 = vmatprep.mubr.f32.mxu0 0.0
        %1114 = vmatmul.mubr.f32.gmra.mxu0 %v892
        %v1115 = vpop.f32.mrf.mxu0
        %v1116 = vadd.f32 %v801, %v1115
        %v1117 = vpop.f32.mrf.mxu0
        %1118 = vmatprep.mubr.f32.mxu0 0.0
        %1119 = vmatmul.mubr.f32.gmra.mxu0 %v895
        %v1120 = vpop.f32.mrf.mxu0
        %v1121 = vadd.f32 %v801, %v1120
        %v1122 = vpop.f32.mrf.mxu0
        %1123 = vmatprep.mubr.f32.mxu0 0.0
        %1124 = vmatmul.mubr.f32.gmra.mxu0 %v898
        %v1125 = vpop.f32.mrf.mxu0
        %v1126 = vadd.f32 %v801, %v1125
        %v1127 = vpop.f32.mrf.mxu0
        %1128 = vdwg.mxu0
        %v1129 = vmax.f32 %v971, 0.0
        %v1130 = vmax.f32 %v976, 0.0
        %v1131 = vmax.f32 %v981, 0.0
        %v1132 = vmax.f32 %v986, 0.0
        %v1133 = vmax.f32 %v991, 0.0
        %v1134 = vmax.f32 %v996, 0.0
        %v1135 = vmax.f32 %v1001, 0.0
        %v1136 = vmax.f32 %v1006, 0.0
        %v1137 = vmax.f32 %v1011, 0.0
        %v1138 = vmax.f32 %v1016, 0.0
        %v1139 = vmax.f32 %v1021, 0.0
        %v1140 = vmax.f32 %v1026, 0.0
        %v1141 = vmax.f32 %v1031, 0.0
        %v1142 = vmax.f32 %v1036, 0.0
        %v1143 = vmax.f32 %v1041, 0.0
        %v1144 = vmax.f32 %v1046, 0.0
        %v1145 = vmax.f32 %v1051, 0.0
        %v1146 = vmax.f32 %v1056, 0.0
        %v1147 = vmax.f32 %v1061, 0.0
        %v1148 = vmax.f32 %v1066, 0.0
        %v1149 = vmax.f32 %v1071, 0.0
        %v1150 = vmax.f32 %v1076, 0.0
        %v1151 = vmax.f32 %v1081, 0.0
        %v1152 = vmax.f32 %v1086, 0.0
        %v1153 = vmax.f32 %v1091, 0.0
        %v1154 = vmax.f32 %v1096, 0.0
        %v1155 = vmax.f32 %v1101, 0.0
        %v1156 = vmax.f32 %v1106, 0.0
        %v1157 = vmax.f32 %v1111, 0.0
        %v1158 = vmax.f32 %v1116, 0.0
        %v1159 = vmax.f32 %v1121, 0.0
        %v1160 = vmax.f32 %v1126, 0.0
        %v1161 = vld [vmem:[%s6] sm:$0xff]
        %v1162 = vld [vmem:[%s5] sm:$0x1]
        %v1164 = vlaneseq
        %v1165 = vshrl.u32 %v1164, 7
        %v1166 = vsub.s32 0, %v1165
        %v1167 = vrot.slane %v1162, %v1166
        %vm1169 = vcmask 64512
        %v1171 = vsel %vm1169, %v1129, 0
        %v1174 = vsel %vm1169, %v1130, 0
        %v1177 = vsel %vm1169, %v1131, 0
        %v1180 = vsel %vm1169, %v1132, 0
        %v1183 = vsel %vm1169, %v1133, 0
        %v1186 = vsel %vm1169, %v1134, 0
        %v1189 = vsel %vm1169, %v1135, 0
        %v1192 = vsel %vm1169, %v1136, 0
        %v1195 = vsel %vm1169, %v1137, 0
        %v1198 = vsel %vm1169, %v1138, 0
        %v1201 = vsel %vm1169, %v1139, 0
        %v1204 = vsel %vm1169, %v1140, 0
        %v1207 = vsel %vm1169, %v1141, 0
        %v1210 = vsel %vm1169, %v1142, 0
        %v1213 = vsel %vm1169, %v1143, 0
        %v1216 = vsel %vm1169, %v1144, 0
        %v1219 = vsel %vm1169, %v1145, 0
        %v1222 = vsel %vm1169, %v1146, 0
        %v1225 = vsel %vm1169, %v1147, 0
        %v1228 = vsel %vm1169, %v1148, 0
        %v1231 = vsel %vm1169, %v1149, 0
        %v1234 = vsel %vm1169, %v1150, 0
        %v1237 = vsel %vm1169, %v1151, 0
        %v1240 = vsel %vm1169, %v1152, 0
        %v1243 = vsel %vm1169, %v1153, 0
        %v1246 = vsel %vm1169, %v1154, 0
        %v1249 = vsel %vm1169, %v1155, 0
        %v1252 = vsel %vm1169, %v1156, 0
        %v1255 = vsel %vm1169, %v1157, 0
        %v1258 = vsel %vm1169, %v1158, 0
        %v1261 = vsel %vm1169, %v1159, 0
        %v1264 = vsel %vm1169, %v1160, 0
        %1266 = vmatprep.subr.mxu0 0.0
        %1267 = vmatpush1.msra.mxu0 0.0
        %1268 = vmatprep.subr.mxu0 0.0
        %1269 = vmatpush1.msra.mxu0 0.0
        %1270 = vmatprep.subr.mxu0 0.0
        %1271 = vmatpush1.msra.mxu0 0.0
        %1272 = vmatprep.subr.mxu0 0.0
        %1273 = vmatpush1.msra.mxu0 0.0
        %1274 = vmatprep.subr.mxu0 0.0
        %1275 = vmatpush1.msra.mxu0 0.0
        %1276 = vmatprep.subr.mxu0 0.0
        %1277 = vmatpush1.msra.mxu0 0.0
        %1278 = vmatprep.subr.mxu0 0.0
        %1279 = vmatpush1.msra.mxu0 0.0
        %1280 = vmatprep.subr.mxu0 0.0
        %1281 = vmatpush1.msra.mxu0 0.0
        %1282 = vmatprep.subr.mxu0 0.0
        %1283 = vmatpush1.msra.mxu0 0.0
        %1284 = vmatprep.subr.mxu0 0.0
        %1285 = vmatpush1.msra.mxu0 0.0
        %1286 = vmatprep.subr.mxu0 0.0
        %1287 = vmatpush1.msra.mxu0 0.0
        %1288 = vmatprep.subr.mxu0 0.0
        %1289 = vmatpush1.msra.mxu0 0.0
        %1290 = vmatprep.subr.mxu0 0.0
        %1291 = vmatpush1.msra.mxu0 0.0
        %1292 = vmatprep.subr.mxu0 0.0
        %1293 = vmatpush1.msra.mxu0 0.0
        %1294 = vmatprep.subr.mxu0 0.0
        %1295 = vmatpush1.msra.mxu0 0.0
        %1296 = vmatprep.subr.mxu0 0.0
        %1297 = vmatpush1.msra.mxu0 %v1161
        %1298 = vmatprep.subr.mxu0 0.0
        %1299 = vmatpush2.msra.mxu0 0.0
        %1300 = vmatprep.subr.mxu0 0.0
        %1301 = vmatpush2.msra.mxu0 0.0
        %1302 = vmatprep.subr.mxu0 0.0
        %1303 = vmatpush2.msra.mxu0 0.0
        %1304 = vmatprep.subr.mxu0 0.0
        %1305 = vmatpush2.msra.mxu0 0.0
        %1306 = vmatprep.subr.mxu0 0.0
        %1307 = vmatpush2.msra.mxu0 0.0
        %1308 = vmatprep.subr.mxu0 0.0
        %1309 = vmatpush2.msra.mxu0 0.0
        %1310 = vmatprep.subr.mxu0 0.0
        %1311 = vmatpush2.msra.mxu0 0.0
        %1312 = vmatprep.subr.mxu0 0.0
        %1313 = vmatpush2.msra.mxu0 0.0
        %1314 = vmatprep.subr.mxu0 0.0
        %1315 = vmatpush2.msra.mxu0 0.0
        %1316 = vmatprep.subr.mxu0 0.0
        %1317 = vmatpush2.msra.mxu0 0.0
        %1318 = vmatprep.subr.mxu0 0.0
        %1319 = vmatpush2.msra.mxu0 0.0
        %1320 = vmatprep.subr.mxu0 0.0
        %1321 = vmatpush2.msra.mxu0 0.0
        %1322 = vmatprep.subr.mxu0 0.0
        %1323 = vmatpush2.msra.mxu0 0.0
        %1324 = vmatprep.subr.mxu0 0.0
        %1325 = vmatpush2.msra.mxu0 0.0
        %1326 = vmatprep.subr.mxu0 0.0
        %1327 = vmatpush2.msra.mxu0 0.0
        %1328 = vmatprep.subr.mxu0 0.0
        %1329 = vmatpush2.msra.mxu0 0.0
        %1330 = vmatprep.mubr.f32.mxu0 0.0
        %1331 = vmatmul.mubr.f32.gmra.mxu0 %v1171
        %v1332 = vpop.f32.mrf.mxu0
        %v1333 = vadd.f32 %v1167, %v1332
        %v1334 = vpop.f32.mrf.mxu0
        %1335 = vmatprep.mubr.f32.mxu0 0.0
        %1336 = vmatmul.mubr.f32.gmra.mxu0 %v1174
        %v1337 = vpop.f32.mrf.mxu0
        %v1338 = vadd.f32 %v1167, %v1337
        %v1339 = vpop.f32.mrf.mxu0
        %1340 = vmatprep.mubr.f32.mxu0 0.0
        %1341 = vmatmul.mubr.f32.gmra.mxu0 %v1177
        %v1342 = vpop.f32.mrf.mxu0
        %v1343 = vadd.f32 %v1167, %v1342
        %v1344 = vpop.f32.mrf.mxu0
        %1345 = vmatprep.mubr.f32.mxu0 0.0
        %1346 = vmatmul.mubr.f32.gmra.mxu0 %v1180
        %v1347 = vpop.f32.mrf.mxu0
        %v1348 = vadd.f32 %v1167, %v1347
        %v1349 = vpop.f32.mrf.mxu0
        %1350 = vmatprep.mubr.f32.mxu0 0.0
        %1351 = vmatmul.mubr.f32.gmra.mxu0 %v1183
        %v1352 = vpop.f32.mrf.mxu0
        %v1353 = vadd.f32 %v1167, %v1352
        %v1354 = vpop.f32.mrf.mxu0
        %1355 = vmatprep.mubr.f32.mxu0 0.0
        %1356 = vmatmul.mubr.f32.gmra.mxu0 %v1186
        %v1357 = vpop.f32.mrf.mxu0
        %v1358 = vadd.f32 %v1167, %v1357
        %v1359 = vpop.f32.mrf.mxu0
        %1360 = vmatprep.mubr.f32.mxu0 0.0
        %1361 = vmatmul.mubr.f32.gmra.mxu0 %v1189
        %v1362 = vpop.f32.mrf.mxu0
        %v1363 = vadd.f32 %v1167, %v1362
        %v1364 = vpop.f32.mrf.mxu0
        %1365 = vmatprep.mubr.f32.mxu0 0.0
        %1366 = vmatmul.mubr.f32.gmra.mxu0 %v1192
        %v1367 = vpop.f32.mrf.mxu0
        %v1368 = vadd.f32 %v1167, %v1367
        %v1369 = vpop.f32.mrf.mxu0
        %1370 = vmatprep.mubr.f32.mxu0 0.0
        %1371 = vmatmul.mubr.f32.gmra.mxu0 %v1195
        %v1372 = vpop.f32.mrf.mxu0
        %v1373 = vadd.f32 %v1167, %v1372
        %v1374 = vpop.f32.mrf.mxu0
        %1375 = vmatprep.mubr.f32.mxu0 0.0
        %1376 = vmatmul.mubr.f32.gmra.mxu0 %v1198
        %v1377 = vpop.f32.mrf.mxu0
        %v1378 = vadd.f32 %v1167, %v1377
        %v1379 = vpop.f32.mrf.mxu0
        %1380 = vmatprep.mubr.f32.mxu0 0.0
        %1381 = vmatmul.mubr.f32.gmra.mxu0 %v1201
        %v1382 = vpop.f32.mrf.mxu0
        %v1383 = vadd.f32 %v1167, %v1382
        %v1384 = vpop.f32.mrf.mxu0
        %1385 = vmatprep.mubr.f32.mxu0 0.0
        %1386 = vmatmul.mubr.f32.gmra.mxu0 %v1204
        %v1387 = vpop.f32.mrf.mxu0
        %v1388 = vadd.f32 %v1167, %v1387
        %v1389 = vpop.f32.mrf.mxu0
        %1390 = vmatprep.mubr.f32.mxu0 0.0
        %1391 = vmatmul.mubr.f32.gmra.mxu0 %v1207
        %v1392 = vpop.f32.mrf.mxu0
        %v1393 = vadd.f32 %v1167, %v1392
        %v1394 = vpop.f32.mrf.mxu0
        %1395 = vmatprep.mubr.f32.mxu0 0.0
        %1396 = vmatmul.mubr.f32.gmra.mxu0 %v1210
        %v1397 = vpop.f32.mrf.mxu0
        %v1398 = vadd.f32 %v1167, %v1397
        %v1399 = vpop.f32.mrf.mxu0
        %1400 = vmatprep.mubr.f32.mxu0 0.0
        %1401 = vmatmul.mubr.f32.gmra.mxu0 %v1213
        %v1402 = vpop.f32.mrf.mxu0
        %v1403 = vadd.f32 %v1167, %v1402
        %v1404 = vpop.f32.mrf.mxu0
        %1405 = vmatprep.mubr.f32.mxu0 0.0
        %1406 = vmatmul.mubr.f32.gmra.mxu0 %v1216
        %v1407 = vpop.f32.mrf.mxu0
        %v1408 = vadd.f32 %v1167, %v1407
        %v1409 = vpop.f32.mrf.mxu0
        %1410 = vmatprep.mubr.f32.mxu0 0.0
        %1411 = vmatmul.mubr.f32.gmra.mxu0 %v1219
        %v1412 = vpop.f32.mrf.mxu0
        %v1413 = vadd.f32 %v1167, %v1412
        %v1414 = vpop.f32.mrf.mxu0
        %1415 = vmatprep.mubr.f32.mxu0 0.0
        %1416 = vmatmul.mubr.f32.gmra.mxu0 %v1222
        %v1417 = vpop.f32.mrf.mxu0
        %v1418 = vadd.f32 %v1167, %v1417
        %v1419 = vpop.f32.mrf.mxu0
        %1420 = vmatprep.mubr.f32.mxu0 0.0
        %1421 = vmatmul.mubr.f32.gmra.mxu0 %v1225
        %v1422 = vpop.f32.mrf.mxu0
        %v1423 = vadd.f32 %v1167, %v1422
        %v1424 = vpop.f32.mrf.mxu0
        %1425 = vmatprep.mubr.f32.mxu0 0.0
        %1426 = vmatmul.mubr.f32.gmra.mxu0 %v1228
        %v1427 = vpop.f32.mrf.mxu0
        %v1428 = vadd.f32 %v1167, %v1427
        %v1429 = vpop.f32.mrf.mxu0
        %1430 = vmatprep.mubr.f32.mxu0 0.0
        %1431 = vmatmul.mubr.f32.gmra.mxu0 %v1231
        %v1432 = vpop.f32.mrf.mxu0
        %v1433 = vadd.f32 %v1167, %v1432
        %v1434 = vpop.f32.mrf.mxu0
        %1435 = vmatprep.mubr.f32.mxu0 0.0
        %1436 = vmatmul.mubr.f32.gmra.mxu0 %v1234
        %v1437 = vpop.f32.mrf.mxu0
        %v1438 = vadd.f32 %v1167, %v1437
        %v1439 = vpop.f32.mrf.mxu0
        %1440 = vmatprep.mubr.f32.mxu0 0.0
        %1441 = vmatmul.mubr.f32.gmra.mxu0 %v1237
        %v1442 = vpop.f32.mrf.mxu0
        %v1443 = vadd.f32 %v1167, %v1442
        %v1444 = vpop.f32.mrf.mxu0
        %1445 = vmatprep.mubr.f32.mxu0 0.0
        %1446 = vmatmul.mubr.f32.gmra.mxu0 %v1240
        %v1447 = vpop.f32.mrf.mxu0
        %v1448 = vadd.f32 %v1167, %v1447
        %v1449 = vpop.f32.mrf.mxu0
        %1450 = vmatprep.mubr.f32.mxu0 0.0
        %1451 = vmatmul.mubr.f32.gmra.mxu0 %v1243
        %v1452 = vpop.f32.mrf.mxu0
        %v1453 = vadd.f32 %v1167, %v1452
        %v1454 = vpop.f32.mrf.mxu0
        %1455 = vmatprep.mubr.f32.mxu0 0.0
        %1456 = vmatmul.mubr.f32.gmra.mxu0 %v1246
        %v1457 = vpop.f32.mrf.mxu0
        %v1458 = vadd.f32 %v1167, %v1457
        %v1459 = vpop.f32.mrf.mxu0
        %1460 = vmatprep.mubr.f32.mxu0 0.0
        %1461 = vmatmul.mubr.f32.gmra.mxu0 %v1249
        %v1462 = vpop.f32.mrf.mxu0
        %v1463 = vadd.f32 %v1167, %v1462
        %v1464 = vpop.f32.mrf.mxu0
        %1465 = vmatprep.mubr.f32.mxu0 0.0
        %1466 = vmatmul.mubr.f32.gmra.mxu0 %v1252
        %v1467 = vpop.f32.mrf.mxu0
        %v1468 = vadd.f32 %v1167, %v1467
        %v1469 = vpop.f32.mrf.mxu0
        %1470 = vmatprep.mubr.f32.mxu0 0.0
        %1471 = vmatmul.mubr.f32.gmra.mxu0 %v1255
        %v1472 = vpop.f32.mrf.mxu0
        %v1473 = vadd.f32 %v1167, %v1472
        %v1474 = vpop.f32.mrf.mxu0
        %1475 = vmatprep.mubr.f32.mxu0 0.0
        %1476 = vmatmul.mubr.f32.gmra.mxu0 %v1258
        %v1477 = vpop.f32.mrf.mxu0
        %v1478 = vadd.f32 %v1167, %v1477
        %v1479 = vpop.f32.mrf.mxu0
        %1480 = vmatprep.mubr.f32.mxu0 0.0
        %1481 = vmatmul.mubr.f32.gmra.mxu0 %v1261
        %v1482 = vpop.f32.mrf.mxu0
        %v1483 = vadd.f32 %v1167, %v1482
        %v1484 = vpop.f32.mrf.mxu0
        %1485 = vmatprep.mubr.f32.mxu0 0.0
        %1486 = vmatmul.mubr.f32.gmra.mxu0 %v1264
        %v1487 = vpop.f32.mrf.mxu0
        %v1488 = vadd.f32 %v1167, %v1487
        %v1489 = vpop.f32.mrf.mxu0
        %1490 = vdwg.mxu0
        %v1491 = vmax.f32 %v1333, 0.0
        %v1492 = vmax.f32 %v1338, 0.0
        %v1493 = vmax.f32 %v1343, 0.0
        %v1494 = vmax.f32 %v1348, 0.0
        %v1495 = vmax.f32 %v1353, 0.0
        %v1496 = vmax.f32 %v1358, 0.0
        %v1497 = vmax.f32 %v1363, 0.0
        %v1498 = vmax.f32 %v1368, 0.0
        %v1499 = vmax.f32 %v1373, 0.0
        %v1500 = vmax.f32 %v1378, 0.0
        %v1501 = vmax.f32 %v1383, 0.0
        %v1502 = vmax.f32 %v1388, 0.0
        %v1503 = vmax.f32 %v1393, 0.0
        %v1504 = vmax.f32 %v1398, 0.0
        %v1505 = vmax.f32 %v1403, 0.0
        %v1506 = vmax.f32 %v1408, 0.0
        %v1507 = vmax.f32 %v1413, 0.0
        %v1508 = vmax.f32 %v1418, 0.0
        %v1509 = vmax.f32 %v1423, 0.0
        %v1510 = vmax.f32 %v1428, 0.0
        %v1511 = vmax.f32 %v1433, 0.0
        %v1512 = vmax.f32 %v1438, 0.0
        %v1513 = vmax.f32 %v1443, 0.0
        %v1514 = vmax.f32 %v1448, 0.0
        %v1515 = vmax.f32 %v1453, 0.0
        %v1516 = vmax.f32 %v1458, 0.0
        %v1517 = vmax.f32 %v1463, 0.0
        %v1518 = vmax.f32 %v1468, 0.0
        %v1519 = vmax.f32 %v1473, 0.0
        %v1520 = vmax.f32 %v1478, 0.0
        %v1521 = vmax.f32 %v1483, 0.0
        %v1522 = vmax.f32 %v1488, 0.0
        %v1523 = vld [vmem:[%s8] sm:$0xf]
        %v1524 = vld [vmem:[%s7] sm:$0x1]
        %v1526 = vlaneseq
        %v1527 = vshrl.u32 %v1526, 7
        %v1528 = vsub.s32 0, %v1527
        %v1529 = vrot.slane %v1524, %v1528
        %v1532 = vsel %vm900, %v1523, 0
        %1534 = vmatprep.subr.mxu0 0.0
        %1535 = vmatpush1.msra.mxu0 0.0
        %1536 = vmatprep.subr.mxu0 0.0
        %1537 = vmatpush1.msra.mxu0 0.0
        %1538 = vmatprep.subr.mxu0 0.0
        %1539 = vmatpush1.msra.mxu0 0.0
        %1540 = vmatprep.subr.mxu0 0.0
        %1541 = vmatpush1.msra.mxu0 0.0
        %1542 = vmatprep.subr.mxu0 0.0
        %1543 = vmatpush1.msra.mxu0 0.0
        %1544 = vmatprep.subr.mxu0 0.0
        %1545 = vmatpush1.msra.mxu0 0.0
        %1546 = vmatprep.subr.mxu0 0.0
        %1547 = vmatpush1.msra.mxu0 0.0
        %1548 = vmatprep.subr.mxu0 0.0
        %1549 = vmatpush1.msra.mxu0 0.0
        %1550 = vmatprep.subr.mxu0 0.0
        %1551 = vmatpush1.msra.mxu0 0.0
        %1552 = vmatprep.subr.mxu0 0.0
        %1553 = vmatpush1.msra.mxu0 0.0
        %1554 = vmatprep.subr.mxu0 0.0
        %1555 = vmatpush1.msra.mxu0 0.0
        %1556 = vmatprep.subr.mxu0 0.0
        %1557 = vmatpush1.msra.mxu0 0.0
        %1558 = vmatprep.subr.mxu0 0.0
        %1559 = vmatpush1.msra.mxu0 0.0
        %1560 = vmatprep.subr.mxu0 0.0
        %1561 = vmatpush1.msra.mxu0 0.0
        %1562 = vmatprep.subr.mxu0 0.0
        %1563 = vmatpush1.msra.mxu0 0.0
        %1564 = vmatprep.subr.mxu0 0.0
        %1565 = vmatpush1.msra.mxu0 %v1532
        %1566 = vmatprep.subr.mxu0 0.0
        %1567 = vmatpush2.msra.mxu0 0.0
        %1568 = vmatprep.subr.mxu0 0.0
        %1569 = vmatpush2.msra.mxu0 0.0
        %1570 = vmatprep.subr.mxu0 0.0
        %1571 = vmatpush2.msra.mxu0 0.0
        %1572 = vmatprep.subr.mxu0 0.0
        %1573 = vmatpush2.msra.mxu0 0.0
        %1574 = vmatprep.subr.mxu0 0.0
        %1575 = vmatpush2.msra.mxu0 0.0
        %1576 = vmatprep.subr.mxu0 0.0
        %1577 = vmatpush2.msra.mxu0 0.0
        %1578 = vmatprep.subr.mxu0 0.0
        %1579 = vmatpush2.msra.mxu0 0.0
        %1580 = vmatprep.subr.mxu0 0.0
        %1581 = vmatpush2.msra.mxu0 0.0
        %1582 = vmatprep.subr.mxu0 0.0
        %1583 = vmatpush2.msra.mxu0 0.0
        %1584 = vmatprep.subr.mxu0 0.0
        %1585 = vmatpush2.msra.mxu0 0.0
        %1586 = vmatprep.subr.mxu0 0.0
        %1587 = vmatpush2.msra.mxu0 0.0
        %1588 = vmatprep.subr.mxu0 0.0
        %1589 = vmatpush2.msra.mxu0 0.0
        %1590 = vmatprep.subr.mxu0 0.0
        %1591 = vmatpush2.msra.mxu0 0.0
        %1592 = vmatprep.subr.mxu0 0.0
        %1593 = vmatpush2.msra.mxu0 0.0
        %1594 = vmatprep.subr.mxu0 0.0
        %1595 = vmatpush2.msra.mxu0 0.0
        %1596 = vmatprep.subr.mxu0 0.0
        %1597 = vmatpush2.msra.mxu0 0.0
        %1598 = vmatprep.mubr.f32.mxu0 0.0
        %1599 = vmatmul.mubr.f32.gmra.mxu0 %v805
        %v1600 = vpop.f32.mrf.mxu0
        %v1601 = vadd.f32 %v1529, %v1600
        %v1602 = vpop.f32.mrf.mxu0
        %1603 = vmatprep.mubr.f32.mxu0 0.0
        %1604 = vmatmul.mubr.f32.gmra.mxu0 %v808
        %v1605 = vpop.f32.mrf.mxu0
        %v1606 = vadd.f32 %v1529, %v1605
        %v1607 = vpop.f32.mrf.mxu0
        %1608 = vmatprep.mubr.f32.mxu0 0.0
        %1609 = vmatmul.mubr.f32.gmra.mxu0 %v811
        %v1610 = vpop.f32.mrf.mxu0
        %v1611 = vadd.f32 %v1529, %v1610
        %v1612 = vpop.f32.mrf.mxu0
        %1613 = vmatprep.mubr.f32.mxu0 0.0
        %1614 = vmatmul.mubr.f32.gmra.mxu0 %v814
        %v1615 = vpop.f32.mrf.mxu0
        %v1616 = vadd.f32 %v1529, %v1615
        %v1617 = vpop.f32.mrf.mxu0
        %1618 = vmatprep.mubr.f32.mxu0 0.0
        %1619 = vmatmul.mubr.f32.gmra.mxu0 %v817
        %v1620 = vpop.f32.mrf.mxu0
        %v1621 = vadd.f32 %v1529, %v1620
        %v1622 = vpop.f32.mrf.mxu0
        %1623 = vmatprep.mubr.f32.mxu0 0.0
        %1624 = vmatmul.mubr.f32.gmra.mxu0 %v820
        %v1625 = vpop.f32.mrf.mxu0
        %v1626 = vadd.f32 %v1529, %v1625
        %v1627 = vpop.f32.mrf.mxu0
        %1628 = vmatprep.mubr.f32.mxu0 0.0
        %1629 = vmatmul.mubr.f32.gmra.mxu0 %v823
        %v1630 = vpop.f32.mrf.mxu0
        %v1631 = vadd.f32 %v1529, %v1630
        %v1632 = vpop.f32.mrf.mxu0
        %1633 = vmatprep.mubr.f32.mxu0 0.0
        %1634 = vmatmul.mubr.f32.gmra.mxu0 %v826
        %v1635 = vpop.f32.mrf.mxu0
        %v1636 = vadd.f32 %v1529, %v1635
        %v1637 = vpop.f32.mrf.mxu0
        %1638 = vmatprep.mubr.f32.mxu0 0.0
        %1639 = vmatmul.mubr.f32.gmra.mxu0 %v829
        %v1640 = vpop.f32.mrf.mxu0
        %v1641 = vadd.f32 %v1529, %v1640
        %v1642 = vpop.f32.mrf.mxu0
        %1643 = vmatprep.mubr.f32.mxu0 0.0
        %1644 = vmatmul.mubr.f32.gmra.mxu0 %v832
        %v1645 = vpop.f32.mrf.mxu0
        %v1646 = vadd.f32 %v1529, %v1645
        %v1647 = vpop.f32.mrf.mxu0
        %1648 = vmatprep.mubr.f32.mxu0 0.0
        %1649 = vmatmul.mubr.f32.gmra.mxu0 %v835
        %v1650 = vpop.f32.mrf.mxu0
        %v1651 = vadd.f32 %v1529, %v1650
        %v1652 = vpop.f32.mrf.mxu0
        %1653 = vmatprep.mubr.f32.mxu0 0.0
        %1654 = vmatmul.mubr.f32.gmra.mxu0 %v838
        %v1655 = vpop.f32.mrf.mxu0
        %v1656 = vadd.f32 %v1529, %v1655
        %v1657 = vpop.f32.mrf.mxu0
        %1658 = vmatprep.mubr.f32.mxu0 0.0
        %1659 = vmatmul.mubr.f32.gmra.mxu0 %v841
        %v1660 = vpop.f32.mrf.mxu0
        %v1661 = vadd.f32 %v1529, %v1660
        %v1662 = vpop.f32.mrf.mxu0
        %1663 = vmatprep.mubr.f32.mxu0 0.0
        %1664 = vmatmul.mubr.f32.gmra.mxu0 %v844
        %v1665 = vpop.f32.mrf.mxu0
        %v1666 = vadd.f32 %v1529, %v1665
        %v1667 = vpop.f32.mrf.mxu0
        %1668 = vmatprep.mubr.f32.mxu0 0.0
        %1669 = vmatmul.mubr.f32.gmra.mxu0 %v847
        %v1670 = vpop.f32.mrf.mxu0
        %v1671 = vadd.f32 %v1529, %v1670
        %v1672 = vpop.f32.mrf.mxu0
        %1673 = vmatprep.mubr.f32.mxu0 0.0
        %1674 = vmatmul.mubr.f32.gmra.mxu0 %v850
        %v1675 = vpop.f32.mrf.mxu0
        %v1676 = vadd.f32 %v1529, %v1675
        %v1677 = vpop.f32.mrf.mxu0
        %1678 = vmatprep.mubr.f32.mxu0 0.0
        %1679 = vmatmul.mubr.f32.gmra.mxu0 %v853
        %v1680 = vpop.f32.mrf.mxu0
        %v1681 = vadd.f32 %v1529, %v1680
        %v1682 = vpop.f32.mrf.mxu0
        %1683 = vmatprep.mubr.f32.mxu0 0.0
        %1684 = vmatmul.mubr.f32.gmra.mxu0 %v856
        %v1685 = vpop.f32.mrf.mxu0
        %v1686 = vadd.f32 %v1529, %v1685
        %v1687 = vpop.f32.mrf.mxu0
        %1688 = vmatprep.mubr.f32.mxu0 0.0
        %1689 = vmatmul.mubr.f32.gmra.mxu0 %v859
        %v1690 = vpop.f32.mrf.mxu0
        %v1691 = vadd.f32 %v1529, %v1690
        %v1692 = vpop.f32.mrf.mxu0
        %1693 = vmatprep.mubr.f32.mxu0 0.0
        %1694 = vmatmul.mubr.f32.gmra.mxu0 %v862
        %v1695 = vpop.f32.mrf.mxu0
        %v1696 = vadd.f32 %v1529, %v1695
        %v1697 = vpop.f32.mrf.mxu0
        %1698 = vmatprep.mubr.f32.mxu0 0.0
        %1699 = vmatmul.mubr.f32.gmra.mxu0 %v865
        %v1700 = vpop.f32.mrf.mxu0
        %v1701 = vadd.f32 %v1529, %v1700
        %v1702 = vpop.f32.mrf.mxu0
        %1703 = vmatprep.mubr.f32.mxu0 0.0
        %1704 = vmatmul.mubr.f32.gmra.mxu0 %v868
        %v1705 = vpop.f32.mrf.mxu0
        %v1706 = vadd.f32 %v1529, %v1705
        %v1707 = vpop.f32.mrf.mxu0
        %1708 = vmatprep.mubr.f32.mxu0 0.0
        %1709 = vmatmul.mubr.f32.gmra.mxu0 %v871
        %v1710 = vpop.f32.mrf.mxu0
        %v1711 = vadd.f32 %v1529, %v1710
        %v1712 = vpop.f32.mrf.mxu0
        %1713 = vmatprep.mubr.f32.mxu0 0.0
        %1714 = vmatmul.mubr.f32.gmra.mxu0 %v874
        %v1715 = vpop.f32.mrf.mxu0
        %v1716 = vadd.f32 %v1529, %v1715
        %v1717 = vpop.f32.mrf.mxu0
        %1718 = vmatprep.mubr.f32.mxu0 0.0
        %1719 = vmatmul.mubr.f32.gmra.mxu0 %v877
        %v1720 = vpop.f32.mrf.mxu0
        %v1721 = vadd.f32 %v1529, %v1720
        %v1722 = vpop.f32.mrf.mxu0
        %1723 = vmatprep.mubr.f32.mxu0 0.0
        %1724 = vmatmul.mubr.f32.gmra.mxu0 %v880
        %v1725 = vpop.f32.mrf.mxu0
        %v1726 = vadd.f32 %v1529, %v1725
        %v1727 = vpop.f32.mrf.mxu0
        %1728 = vmatprep.mubr.f32.mxu0 0.0
        %1729 = vmatmul.mubr.f32.gmra.mxu0 %v883
        %v1730 = vpop.f32.mrf.mxu0
        %v1731 = vadd.f32 %v1529, %v1730
        %v1732 = vpop.f32.mrf.mxu0
        %1733 = vmatprep.mubr.f32.mxu0 0.0
        %1734 = vmatmul.mubr.f32.gmra.mxu0 %v886
        %v1735 = vpop.f32.mrf.mxu0
        %v1736 = vadd.f32 %v1529, %v1735
        %v1737 = vpop.f32.mrf.mxu0
        %1738 = vmatprep.mubr.f32.mxu0 0.0
        %1739 = vmatmul.mubr.f32.gmra.mxu0 %v889
        %v1740 = vpop.f32.mrf.mxu0
        %v1741 = vadd.f32 %v1529, %v1740
        %v1742 = vpop.f32.mrf.mxu0
        %1743 = vmatprep.mubr.f32.mxu0 0.0
        %1744 = vmatmul.mubr.f32.gmra.mxu0 %v892
        %v1745 = vpop.f32.mrf.mxu0
        %v1746 = vadd.f32 %v1529, %v1745
        %v1747 = vpop.f32.mrf.mxu0
        %1748 = vmatprep.mubr.f32.mxu0 0.0
        %1749 = vmatmul.mubr.f32.gmra.mxu0 %v895
        %v1750 = vpop.f32.mrf.mxu0
        %v1751 = vadd.f32 %v1529, %v1750
        %v1752 = vpop.f32.mrf.mxu0
        %1753 = vmatprep.mubr.f32.mxu0 0.0
        %1754 = vmatmul.mubr.f32.gmra.mxu0 %v898
        %v1755 = vpop.f32.mrf.mxu0
        %v1756 = vadd.f32 %v1529, %v1755
        %v1757 = vpop.f32.mrf.mxu0
        %1758 = vdwg.mxu0
        %v1759 = vmax.f32 %v1601, 0.0
        %v1760 = vmax.f32 %v1606, 0.0
        %v1761 = vmax.f32 %v1611, 0.0
        %v1762 = vmax.f32 %v1616, 0.0
        %v1763 = vmax.f32 %v1621, 0.0
        %v1764 = vmax.f32 %v1626, 0.0
        %v1765 = vmax.f32 %v1631, 0.0
        %v1766 = vmax.f32 %v1636, 0.0
        %v1767 = vmax.f32 %v1641, 0.0
        %v1768 = vmax.f32 %v1646, 0.0
        %v1769 = vmax.f32 %v1651, 0.0
        %v1770 = vmax.f32 %v1656, 0.0
        %v1771 = vmax.f32 %v1661, 0.0
        %v1772 = vmax.f32 %v1666, 0.0
        %v1773 = vmax.f32 %v1671, 0.0
        %v1774 = vmax.f32 %v1676, 0.0
        %v1775 = vmax.f32 %v1681, 0.0
        %v1776 = vmax.f32 %v1686, 0.0
        %v1777 = vmax.f32 %v1691, 0.0
        %v1778 = vmax.f32 %v1696, 0.0
        %v1779 = vmax.f32 %v1701, 0.0
        %v1780 = vmax.f32 %v1706, 0.0
        %v1781 = vmax.f32 %v1711, 0.0
        %v1782 = vmax.f32 %v1716, 0.0
        %v1783 = vmax.f32 %v1721, 0.0
        %v1784 = vmax.f32 %v1726, 0.0
        %v1785 = vmax.f32 %v1731, 0.0
        %v1786 = vmax.f32 %v1736, 0.0
        %v1787 = vmax.f32 %v1741, 0.0
        %v1788 = vmax.f32 %v1746, 0.0
        %v1789 = vmax.f32 %v1751, 0.0
        %v1790 = vmax.f32 %v1756, 0.0
        %v1791 = vld [vmem:[%s10] sm:$0xff]
        %v1792 = vld [vmem:[%s9] sm:$0x1]
        %v1794 = vlaneseq
        %v1795 = vshrl.u32 %v1794, 7
        %v1796 = vsub.s32 0, %v1795
        %v1797 = vrot.slane %v1792, %v1796
        %v1800 = vsel %vm1169, %v1759, 0
        %v1803 = vsel %vm1169, %v1760, 0
        %v1806 = vsel %vm1169, %v1761, 0
        %v1809 = vsel %vm1169, %v1762, 0
        %v1812 = vsel %vm1169, %v1763, 0
        %v1815 = vsel %vm1169, %v1764, 0
        %v1818 = vsel %vm1169, %v1765, 0
        %v1821 = vsel %vm1169, %v1766, 0
        %v1824 = vsel %vm1169, %v1767, 0
        %v1827 = vsel %vm1169, %v1768, 0
        %v1830 = vsel %vm1169, %v1769, 0
        %v1833 = vsel %vm1169, %v1770, 0
        %v1836 = vsel %vm1169, %v1771, 0
        %v1839 = vsel %vm1169, %v1772, 0
        %v1842 = vsel %vm1169, %v1773, 0
        %v1845 = vsel %vm1169, %v1774, 0
        %v1848 = vsel %vm1169, %v1775, 0
        %v1851 = vsel %vm1169, %v1776, 0
        %v1854 = vsel %vm1169, %v1777, 0
        %v1857 = vsel %vm1169, %v1778, 0
        %v1860 = vsel %vm1169, %v1779, 0
        %v1863 = vsel %vm1169, %v1780, 0
        %v1866 = vsel %vm1169, %v1781, 0
        %v1869 = vsel %vm1169, %v1782, 0
        %v1872 = vsel %vm1169, %v1783, 0
        %v1875 = vsel %vm1169, %v1784, 0
        %v1878 = vsel %vm1169, %v1785, 0
        %v1881 = vsel %vm1169, %v1786, 0
        %v1884 = vsel %vm1169, %v1787, 0
        %v1887 = vsel %vm1169, %v1788, 0
        %v1890 = vsel %vm1169, %v1789, 0
        %v1893 = vsel %vm1169, %v1790, 0
        %1895 = vmatprep.subr.mxu0 0.0
        %1896 = vmatpush1.msra.mxu0 0.0
        %1897 = vmatprep.subr.mxu0 0.0
        %1898 = vmatpush1.msra.mxu0 0.0
        %1899 = vmatprep.subr.mxu0 0.0
        %1900 = vmatpush1.msra.mxu0 0.0
        %1901 = vmatprep.subr.mxu0 0.0
        %1902 = vmatpush1.msra.mxu0 0.0
        %1903 = vmatprep.subr.mxu0 0.0
        %1904 = vmatpush1.msra.mxu0 0.0
        %1905 = vmatprep.subr.mxu0 0.0
        %1906 = vmatpush1.msra.mxu0 0.0
        %1907 = vmatprep.subr.mxu0 0.0
        %1908 = vmatpush1.msra.mxu0 0.0
        %1909 = vmatprep.subr.mxu0 0.0
        %1910 = vmatpush1.msra.mxu0 0.0
        %1911 = vmatprep.subr.mxu0 0.0
        %1912 = vmatpush1.msra.mxu0 0.0
        %1913 = vmatprep.subr.mxu0 0.0
        %1914 = vmatpush1.msra.mxu0 0.0
        %1915 = vmatprep.subr.mxu0 0.0
        %1916 = vmatpush1.msra.mxu0 0.0
        %1917 = vmatprep.subr.mxu0 0.0
        %1918 = vmatpush1.msra.mxu0 0.0
        %1919 = vmatprep.subr.mxu0 0.0
        %1920 = vmatpush1.msra.mxu0 0.0
        %1921 = vmatprep.subr.mxu0 0.0
        %1922 = vmatpush1.msra.mxu0 0.0
        %1923 = vmatprep.subr.mxu0 0.0
        %1924 = vmatpush1.msra.mxu0 0.0
        %1925 = vmatprep.subr.mxu0 0.0
        %1926 = vmatpush1.msra.mxu0 %v1791
        %1927 = vmatprep.subr.mxu0 0.0
        %1928 = vmatpush2.msra.mxu0 0.0
        %1929 = vmatprep.subr.mxu0 0.0
        %1930 = vmatpush2.msra.mxu0 0.0
        %1931 = vmatprep.subr.mxu0 0.0
        %1932 = vmatpush2.msra.mxu0 0.0
        %1933 = vmatprep.subr.mxu0 0.0
        %1934 = vmatpush2.msra.mxu0 0.0
        %1935 = vmatprep.subr.mxu0 0.0
        %1936 = vmatpush2.msra.mxu0 0.0
        %1937 = vmatprep.subr.mxu0 0.0
        %1938 = vmatpush2.msra.mxu0 0.0
        %1939 = vmatprep.subr.mxu0 0.0
        %1940 = vmatpush2.msra.mxu0 0.0
        %1941 = vmatprep.subr.mxu0 0.0
        %1942 = vmatpush2.msra.mxu0 0.0
        %1943 = vmatprep.subr.mxu0 0.0
        %1944 = vmatpush2.msra.mxu0 0.0
        %1945 = vmatprep.subr.mxu0 0.0
        %1946 = vmatpush2.msra.mxu0 0.0
        %1947 = vmatprep.subr.mxu0 0.0
        %1948 = vmatpush2.msra.mxu0 0.0
        %1949 = vmatprep.subr.mxu0 0.0
        %1950 = vmatpush2.msra.mxu0 0.0
        %1951 = vmatprep.subr.mxu0 0.0
        %1952 = vmatpush2.msra.mxu0 0.0
        %1953 = vmatprep.subr.mxu0 0.0
        %1954 = vmatpush2.msra.mxu0 0.0
        %1955 = vmatprep.subr.mxu0 0.0
        %1956 = vmatpush2.msra.mxu0 0.0
        %1957 = vmatprep.subr.mxu0 0.0
        %1958 = vmatpush2.msra.mxu0 0.0
        %1959 = vmatprep.mubr.f32.mxu0 0.0
        %1960 = vmatmul.mubr.f32.gmra.mxu0 %v1800
        %v1961 = vpop.f32.mrf.mxu0
        %v1962 = vadd.f32 %v1797, %v1961
        %v1963 = vpop.f32.mrf.mxu0
        %1964 = vmatprep.mubr.f32.mxu0 0.0
        %1965 = vmatmul.mubr.f32.gmra.mxu0 %v1803
        %v1966 = vpop.f32.mrf.mxu0
        %v1967 = vadd.f32 %v1797, %v1966
        %v1968 = vpop.f32.mrf.mxu0
        %1969 = vmatprep.mubr.f32.mxu0 0.0
        %1970 = vmatmul.mubr.f32.gmra.mxu0 %v1806
        %v1971 = vpop.f32.mrf.mxu0
        %v1972 = vadd.f32 %v1797, %v1971
        %v1973 = vpop.f32.mrf.mxu0
        %1974 = vmatprep.mubr.f32.mxu0 0.0
        %1975 = vmatmul.mubr.f32.gmra.mxu0 %v1809
        %v1976 = vpop.f32.mrf.mxu0
        %v1977 = vadd.f32 %v1797, %v1976
        %v1978 = vpop.f32.mrf.mxu0
        %1979 = vmatprep.mubr.f32.mxu0 0.0
        %1980 = vmatmul.mubr.f32.gmra.mxu0 %v1812
        %v1981 = vpop.f32.mrf.mxu0
        %v1982 = vadd.f32 %v1797, %v1981
        %v1983 = vpop.f32.mrf.mxu0
        %1984 = vmatprep.mubr.f32.mxu0 0.0
        %1985 = vmatmul.mubr.f32.gmra.mxu0 %v1815
        %v1986 = vpop.f32.mrf.mxu0
        %v1987 = vadd.f32 %v1797, %v1986
        %v1988 = vpop.f32.mrf.mxu0
        %1989 = vmatprep.mubr.f32.mxu0 0.0
        %1990 = vmatmul.mubr.f32.gmra.mxu0 %v1818
        %v1991 = vpop.f32.mrf.mxu0
        %v1992 = vadd.f32 %v1797, %v1991
        %v1993 = vpop.f32.mrf.mxu0
        %1994 = vmatprep.mubr.f32.mxu0 0.0
        %1995 = vmatmul.mubr.f32.gmra.mxu0 %v1821
        %v1996 = vpop.f32.mrf.mxu0
        %v1997 = vadd.f32 %v1797, %v1996
        %v1998 = vpop.f32.mrf.mxu0
        %1999 = vmatprep.mubr.f32.mxu0 0.0
        %2000 = vmatmul.mubr.f32.gmra.mxu0 %v1824
        %v2001 = vpop.f32.mrf.mxu0
        %v2002 = vadd.f32 %v1797, %v2001
        %v2003 = vpop.f32.mrf.mxu0
        %2004 = vmatprep.mubr.f32.mxu0 0.0
        %2005 = vmatmul.mubr.f32.gmra.mxu0 %v1827
        %v2006 = vpop.f32.mrf.mxu0
        %v2007 = vadd.f32 %v1797, %v2006
        %v2008 = vpop.f32.mrf.mxu0
        %2009 = vmatprep.mubr.f32.mxu0 0.0
        %2010 = vmatmul.mubr.f32.gmra.mxu0 %v1830
        %v2011 = vpop.f32.mrf.mxu0
        %v2012 = vadd.f32 %v1797, %v2011
        %v2013 = vpop.f32.mrf.mxu0
        %2014 = vmatprep.mubr.f32.mxu0 0.0
        %2015 = vmatmul.mubr.f32.gmra.mxu0 %v1833
        %v2016 = vpop.f32.mrf.mxu0
        %v2017 = vadd.f32 %v1797, %v2016
        %v2018 = vpop.f32.mrf.mxu0
        %2019 = vmatprep.mubr.f32.mxu0 0.0
        %2020 = vmatmul.mubr.f32.gmra.mxu0 %v1836
        %v2021 = vpop.f32.mrf.mxu0
        %v2022 = vadd.f32 %v1797, %v2021
        %v2023 = vpop.f32.mrf.mxu0
        %2024 = vmatprep.mubr.f32.mxu0 0.0
        %2025 = vmatmul.mubr.f32.gmra.mxu0 %v1839
        %v2026 = vpop.f32.mrf.mxu0
        %v2027 = vadd.f32 %v1797, %v2026
        %v2028 = vpop.f32.mrf.mxu0
        %2029 = vmatprep.mubr.f32.mxu0 0.0
        %2030 = vmatmul.mubr.f32.gmra.mxu0 %v1842
        %v2031 = vpop.f32.mrf.mxu0
        %v2032 = vadd.f32 %v1797, %v2031
        %v2033 = vpop.f32.mrf.mxu0
        %2034 = vmatprep.mubr.f32.mxu0 0.0
        %2035 = vmatmul.mubr.f32.gmra.mxu0 %v1845
        %v2036 = vpop.f32.mrf.mxu0
        %v2037 = vadd.f32 %v1797, %v2036
        %v2038 = vpop.f32.mrf.mxu0
        %2039 = vmatprep.mubr.f32.mxu0 0.0
        %2040 = vmatmul.mubr.f32.gmra.mxu0 %v1848
        %v2041 = vpop.f32.mrf.mxu0
        %v2042 = vadd.f32 %v1797, %v2041
        %v2043 = vpop.f32.mrf.mxu0
        %2044 = vmatprep.mubr.f32.mxu0 0.0
        %2045 = vmatmul.mubr.f32.gmra.mxu0 %v1851
        %v2046 = vpop.f32.mrf.mxu0
        %v2047 = vadd.f32 %v1797, %v2046
        %v2048 = vpop.f32.mrf.mxu0
        %2049 = vmatprep.mubr.f32.mxu0 0.0
        %2050 = vmatmul.mubr.f32.gmra.mxu0 %v1854
        %v2051 = vpop.f32.mrf.mxu0
        %v2052 = vadd.f32 %v1797, %v2051
        %v2053 = vpop.f32.mrf.mxu0
        %2054 = vmatprep.mubr.f32.mxu0 0.0
        %2055 = vmatmul.mubr.f32.gmra.mxu0 %v1857
        %v2056 = vpop.f32.mrf.mxu0
        %v2057 = vadd.f32 %v1797, %v2056
        %v2058 = vpop.f32.mrf.mxu0
        %2059 = vmatprep.mubr.f32.mxu0 0.0
        %2060 = vmatmul.mubr.f32.gmra.mxu0 %v1860
        %v2061 = vpop.f32.mrf.mxu0
        %v2062 = vadd.f32 %v1797, %v2061
        %v2063 = vpop.f32.mrf.mxu0
        %2064 = vmatprep.mubr.f32.mxu0 0.0
        %2065 = vmatmul.mubr.f32.gmra.mxu0 %v1863
        %v2066 = vpop.f32.mrf.mxu0
        %v2067 = vadd.f32 %v1797, %v2066
        %v2068 = vpop.f32.mrf.mxu0
        %2069 = vmatprep.mubr.f32.mxu0 0.0
        %2070 = vmatmul.mubr.f32.gmra.mxu0 %v1866
        %v2071 = vpop.f32.mrf.mxu0
        %v2072 = vadd.f32 %v1797, %v2071
        %v2073 = vpop.f32.mrf.mxu0
        %2074 = vmatprep.mubr.f32.mxu0 0.0
        %2075 = vmatmul.mubr.f32.gmra.mxu0 %v1869
        %v2076 = vpop.f32.mrf.mxu0
        %v2077 = vadd.f32 %v1797, %v2076
        %v2078 = vpop.f32.mrf.mxu0
        %2079 = vmatprep.mubr.f32.mxu0 0.0
        %2080 = vmatmul.mubr.f32.gmra.mxu0 %v1872
        %v2081 = vpop.f32.mrf.mxu0
        %v2082 = vadd.f32 %v1797, %v2081
        %v2083 = vpop.f32.mrf.mxu0
        %2084 = vmatprep.mubr.f32.mxu0 0.0
        %2085 = vmatmul.mubr.f32.gmra.mxu0 %v1875
        %v2086 = vpop.f32.mrf.mxu0
        %v2087 = vadd.f32 %v1797, %v2086
        %v2088 = vpop.f32.mrf.mxu0
        %2089 = vmatprep.mubr.f32.mxu0 0.0
        %2090 = vmatmul.mubr.f32.gmra.mxu0 %v1878
        %v2091 = vpop.f32.mrf.mxu0
        %v2092 = vadd.f32 %v1797, %v2091
        %v2093 = vpop.f32.mrf.mxu0
        %2094 = vmatprep.mubr.f32.mxu0 0.0
        %2095 = vmatmul.mubr.f32.gmra.mxu0 %v1881
        %v2096 = vpop.f32.mrf.mxu0
        %v2097 = vadd.f32 %v1797, %v2096
        %v2098 = vpop.f32.mrf.mxu0
        %2099 = vmatprep.mubr.f32.mxu0 0.0
        %2100 = vmatmul.mubr.f32.gmra.mxu0 %v1884
        %v2101 = vpop.f32.mrf.mxu0
        %v2102 = vadd.f32 %v1797, %v2101
        %v2103 = vpop.f32.mrf.mxu0
        %2104 = vmatprep.mubr.f32.mxu0 0.0
        %2105 = vmatmul.mubr.f32.gmra.mxu0 %v1887
        %v2106 = vpop.f32.mrf.mxu0
        %v2107 = vadd.f32 %v1797, %v2106
        %v2108 = vpop.f32.mrf.mxu0
        %2109 = vmatprep.mubr.f32.mxu0 0.0
        %2110 = vmatmul.mubr.f32.gmra.mxu0 %v1890
        %v2111 = vpop.f32.mrf.mxu0
        %v2112 = vadd.f32 %v1797, %v2111
        %v2113 = vpop.f32.mrf.mxu0
        %2114 = vmatprep.mubr.f32.mxu0 0.0
        %2115 = vmatmul.mubr.f32.gmra.mxu0 %v1893
        %v2116 = vpop.f32.mrf.mxu0
        %v2117 = vadd.f32 %v1797, %v2116
        %v2118 = vpop.f32.mrf.mxu0
        %2119 = vdwg.mxu0
        %v2120 = vmax.f32 %v1962, 0.0
        %v2121 = vmax.f32 %v1967, 0.0
        %v2122 = vmax.f32 %v1972, 0.0
        %v2123 = vmax.f32 %v1977, 0.0
        %v2124 = vmax.f32 %v1982, 0.0
        %v2125 = vmax.f32 %v1987, 0.0
        %v2126 = vmax.f32 %v1992, 0.0
        %v2127 = vmax.f32 %v1997, 0.0
        %v2128 = vmax.f32 %v2002, 0.0
        %v2129 = vmax.f32 %v2007, 0.0
        %v2130 = vmax.f32 %v2012, 0.0
        %v2131 = vmax.f32 %v2017, 0.0
        %v2132 = vmax.f32 %v2022, 0.0
        %v2133 = vmax.f32 %v2027, 0.0
        %v2134 = vmax.f32 %v2032, 0.0
        %v2135 = vmax.f32 %v2037, 0.0
        %v2136 = vmax.f32 %v2042, 0.0
        %v2137 = vmax.f32 %v2047, 0.0
        %v2138 = vmax.f32 %v2052, 0.0
        %v2139 = vmax.f32 %v2057, 0.0
        %v2140 = vmax.f32 %v2062, 0.0
        %v2141 = vmax.f32 %v2067, 0.0
        %v2142 = vmax.f32 %v2072, 0.0
        %v2143 = vmax.f32 %v2077, 0.0
        %v2144 = vmax.f32 %v2082, 0.0
        %v2145 = vmax.f32 %v2087, 0.0
        %v2146 = vmax.f32 %v2092, 0.0
        %v2147 = vmax.f32 %v2097, 0.0
        %v2148 = vmax.f32 %v2102, 0.0
        %v2149 = vmax.f32 %v2107, 0.0
        %v2150 = vmax.f32 %v2112, 0.0
        %v2151 = vmax.f32 %v2117, 0.0
        %v2152 = vlaneseq
        %v2153 = vshrl.u32 %v2152, 7
        %v2154 = vsub.s32 0, %v2153
        %v2155 = vrot.slane %v1491, %v2154
        %v2156 = vlaneseq
        %v2157 = vshrl.u32 %v2156, 7
        %v2158 = vsub.s32 0, %v2157
        %v2159 = vrot.slane %v1493, %v2158
        %v2160 = vlaneseq
        %v2161 = vshrl.u32 %v2160, 7
        %v2162 = vsub.s32 0, %v2161
        %v2163 = vrot.slane %v1495, %v2162
        %v2164 = vlaneseq
        %v2165 = vshrl.u32 %v2164, 7
        %v2166 = vsub.s32 0, %v2165
        %v2167 = vrot.slane %v1497, %v2166
        %v2168 = vlaneseq
        %v2169 = vshrl.u32 %v2168, 7
        %v2170 = vsub.s32 0, %v2169
        %v2171 = vrot.slane %v1499, %v2170
        %v2172 = vlaneseq
        %v2173 = vshrl.u32 %v2172, 7
        %v2174 = vsub.s32 0, %v2173
        %v2175 = vrot.slane %v1501, %v2174
        %v2176 = vlaneseq
        %v2177 = vshrl.u32 %v2176, 7
        %v2178 = vsub.s32 0, %v2177
        %v2179 = vrot.slane %v1503, %v2178
        %v2180 = vlaneseq
        %v2181 = vshrl.u32 %v2180, 7
        %v2182 = vsub.s32 0, %v2181
        %v2183 = vrot.slane %v1505, %v2182
        %v2184 = vlaneseq
        %v2185 = vshrl.u32 %v2184, 7
        %v2186 = vsub.s32 0, %v2185
        %v2187 = vrot.slane %v1507, %v2186
        %v2188 = vlaneseq
        %v2189 = vshrl.u32 %v2188, 7
        %v2190 = vsub.s32 0, %v2189
        %v2191 = vrot.slane %v1509, %v2190
        %v2192 = vlaneseq
        %v2193 = vshrl.u32 %v2192, 7
        %v2194 = vsub.s32 0, %v2193
        %v2195 = vrot.slane %v1511, %v2194
        %v2196 = vlaneseq
        %v2197 = vshrl.u32 %v2196, 7
        %v2198 = vsub.s32 0, %v2197
        %v2199 = vrot.slane %v1513, %v2198
        %v2200 = vlaneseq
        %v2201 = vshrl.u32 %v2200, 7
        %v2202 = vsub.s32 0, %v2201
        %v2203 = vrot.slane %v1515, %v2202
        %v2204 = vlaneseq
        %v2205 = vshrl.u32 %v2204, 7
        %v2206 = vsub.s32 0, %v2205
        %v2207 = vrot.slane %v1517, %v2206
        %v2208 = vlaneseq
        %v2209 = vshrl.u32 %v2208, 7
        %v2210 = vsub.s32 0, %v2209
        %v2211 = vrot.slane %v1519, %v2210
        %v2212 = vlaneseq
        %v2213 = vshrl.u32 %v2212, 7
        %v2214 = vsub.s32 0, %v2213
        %v2215 = vrot.slane %v1521, %v2214
        %v2216 = vmul.f32 %v2155, %v2120
        %v2217 = vmul.f32 %v2155, %v2121
        %v2218 = vmul.f32 %v2159, %v2120
        %v2219 = vmul.f32 %v2159, %v2121
        %v2220 = vmul.f32 %v2163, %v2120
        %v2221 = vmul.f32 %v2163, %v2121
        %v2222 = vmul.f32 %v2167, %v2120
        %v2223 = vmul.f32 %v2167, %v2121
        %v2224 = vmul.f32 %v2171, %v2120
        %v2225 = vmul.f32 %v2171, %v2121
        %v2226 = vmul.f32 %v2175, %v2120
        %v2227 = vmul.f32 %v2175, %v2121
        %v2228 = vmul.f32 %v2179, %v2120
        %v2229 = vmul.f32 %v2179, %v2121
        %v2230 = vmul.f32 %v2183, %v2120
        %v2231 = vmul.f32 %v2183, %v2121
        %v2232 = vmul.f32 %v2187, %v2120
        %v2233 = vmul.f32 %v2187, %v2121
        %v2234 = vmul.f32 %v2191, %v2120
        %v2235 = vmul.f32 %v2191, %v2121
        %v2236 = vmul.f32 %v2195, %v2120
        %v2237 = vmul.f32 %v2195, %v2121
        %v2238 = vmul.f32 %v2199, %v2120
        %v2239 = vmul.f32 %v2199, %v2121
        %v2240 = vmul.f32 %v2203, %v2120
        %v2241 = vmul.f32 %v2203, %v2121
        %v2242 = vmul.f32 %v2207, %v2120
        %v2243 = vmul.f32 %v2207, %v2121
        %v2244 = vmul.f32 %v2211, %v2120
        %v2245 = vmul.f32 %v2211, %v2121
        %v2246 = vmul.f32 %v2215, %v2120
        %v2247 = vmul.f32 %v2215, %v2121
        %v2248 = vadd.f32 %v2216, 0.0
        %v2249 = vadd.f32 %v2217, 0.0
        %v2250 = vadd.f32 %v2218, 0.0
        %v2251 = vadd.f32 %v2219, 0.0
        %v2252 = vadd.f32 %v2220, 0.0
        %v2253 = vadd.f32 %v2221, 0.0
        %v2254 = vadd.f32 %v2222, 0.0
        %v2255 = vadd.f32 %v2223, 0.0
        %v2256 = vadd.f32 %v2224, 0.0
        %v2257 = vadd.f32 %v2225, 0.0
        %v2258 = vadd.f32 %v2226, 0.0
        %v2259 = vadd.f32 %v2227, 0.0
        %v2260 = vadd.f32 %v2228, 0.0
        %v2261 = vadd.f32 %v2229, 0.0
        %v2262 = vadd.f32 %v2230, 0.0
        %v2263 = vadd.f32 %v2231, 0.0
        %v2264 = vadd.f32 %v2232, 0.0
        %v2265 = vadd.f32 %v2233, 0.0
        %v2266 = vadd.f32 %v2234, 0.0
        %v2267 = vadd.f32 %v2235, 0.0
        %v2268 = vadd.f32 %v2236, 0.0
        %v2269 = vadd.f32 %v2237, 0.0
        %v2270 = vadd.f32 %v2238, 0.0
        %v2271 = vadd.f32 %v2239, 0.0
        %v2272 = vadd.f32 %v2240, 0.0
        %v2273 = vadd.f32 %v2241, 0.0
        %v2274 = vadd.f32 %v2242, 0.0
        %v2275 = vadd.f32 %v2243, 0.0
        %v2276 = vadd.f32 %v2244, 0.0
        %v2277 = vadd.f32 %v2245, 0.0
        %v2278 = vadd.f32 %v2246, 0.0
        %v2279 = vadd.f32 %v2247, 0.0
        %v2280 = vlaneseq
        %v2281 = vshrl.u32 %v2280, 7
        %v2282 = vsub.s32 1, %v2281
        %v2283 = vrot.slane %v1491, %v2282
        %v2284 = vlaneseq
        %v2285 = vshrl.u32 %v2284, 7
        %v2286 = vsub.s32 1, %v2285
        %v2287 = vrot.slane %v1493, %v2286
        %v2288 = vlaneseq
        %v2289 = vshrl.u32 %v2288, 7
        %v2290 = vsub.s32 1, %v2289
        %v2291 = vrot.slane %v1495, %v2290
        %v2292 = vlaneseq
        %v2293 = vshrl.u32 %v2292, 7
        %v2294 = vsub.s32 1, %v2293
        %v2295 = vrot.slane %v1497, %v2294
        %v2296 = vlaneseq
        %v2297 = vshrl.u32 %v2296, 7
        %v2298 = vsub.s32 1, %v2297
        %v2299 = vrot.slane %v1499, %v2298
        %v2300 = vlaneseq
        %v2301 = vshrl.u32 %v2300, 7
        %v2302 = vsub.s32 1, %v2301
        %v2303 = vrot.slane %v1501, %v2302
        %v2304 = vlaneseq
        %v2305 = vshrl.u32 %v2304, 7
        %v2306 = vsub.s32 1, %v2305
        %v2307 = vrot.slane %v1503, %v2306
        %v2308 = vlaneseq
        %v2309 = vshrl.u32 %v2308, 7
        %v2310 = vsub.s32 1, %v2309
        %v2311 = vrot.slane %v1505, %v2310
        %v2312 = vlaneseq
        %v2313 = vshrl.u32 %v2312, 7
        %v2314 = vsub.s32 1, %v2313
        %v2315 = vrot.slane %v1507, %v2314
        %v2316 = vlaneseq
        %v2317 = vshrl.u32 %v2316, 7
        %v2318 = vsub.s32 1, %v2317
        %v2319 = vrot.slane %v1509, %v2318
        %v2320 = vlaneseq
        %v2321 = vshrl.u32 %v2320, 7
        %v2322 = vsub.s32 1, %v2321
        %v2323 = vrot.slane %v1511, %v2322
        %v2324 = vlaneseq
        %v2325 = vshrl.u32 %v2324, 7
        %v2326 = vsub.s32 1, %v2325
        %v2327 = vrot.slane %v1513, %v2326
        %v2328 = vlaneseq
        %v2329 = vshrl.u32 %v2328, 7
        %v2330 = vsub.s32 1, %v2329
        %v2331 = vrot.slane %v1515, %v2330
        %v2332 = vlaneseq
        %v2333 = vshrl.u32 %v2332, 7
        %v2334 = vsub.s32 1, %v2333
        %v2335 = vrot.slane %v1517, %v2334
        %v2336 = vlaneseq
        %v2337 = vshrl.u32 %v2336, 7
        %v2338 = vsub.s32 1, %v2337
        %v2339 = vrot.slane %v1519, %v2338
        %v2340 = vlaneseq
        %v2341 = vshrl.u32 %v2340, 7
        %v2342 = vsub.s32 1, %v2341
        %v2343 = vrot.slane %v1521, %v2342
        %v2344 = vmul.f32 %v2283, %v2122
        %v2345 = vmul.f32 %v2283, %v2123
        %v2346 = vmul.f32 %v2287, %v2122
        %v2347 = vmul.f32 %v2287, %v2123
        %v2348 = vmul.f32 %v2291, %v2122
        %v2349 = vmul.f32 %v2291, %v2123
        %v2350 = vmul.f32 %v2295, %v2122
        %v2351 = vmul.f32 %v2295, %v2123
        %v2352 = vmul.f32 %v2299, %v2122
        %v2353 = vmul.f32 %v2299, %v2123
        %v2354 = vmul.f32 %v2303, %v2122
        %v2355 = vmul.f32 %v2303, %v2123
        %v2356 = vmul.f32 %v2307, %v2122
        %v2357 = vmul.f32 %v2307, %v2123
        %v2358 = vmul.f32 %v2311, %v2122
        %v2359 = vmul.f32 %v2311, %v2123
        %v2360 = vmul.f32 %v2315, %v2122
        %v2361 = vmul.f32 %v2315, %v2123
        %v2362 = vmul.f32 %v2319, %v2122
        %v2363 = vmul.f32 %v2319, %v2123
        %v2364 = vmul.f32 %v2323, %v2122
        %v2365 = vmul.f32 %v2323, %v2123
        %v2366 = vmul.f32 %v2327, %v2122
        %v2367 = vmul.f32 %v2327, %v2123
        %v2368 = vmul.f32 %v2331, %v2122
        %v2369 = vmul.f32 %v2331, %v2123
        %v2370 = vmul.f32 %v2335, %v2122
        %v2371 = vmul.f32 %v2335, %v2123
        %v2372 = vmul.f32 %v2339, %v2122
        %v2373 = vmul.f32 %v2339, %v2123
        %v2374 = vmul.f32 %v2343, %v2122
        %v2375 = vmul.f32 %v2343, %v2123
        %v2376 = vadd.f32 %v2248, %v2344
        %v2377 = vadd.f32 %v2249, %v2345
        %v2378 = vadd.f32 %v2250, %v2346
        %v2379 = vadd.f32 %v2251, %v2347
        %v2380 = vadd.f32 %v2252, %v2348
        %v2381 = vadd.f32 %v2253, %v2349
        %v2382 = vadd.f32 %v2254, %v2350
        %v2383 = vadd.f32 %v2255, %v2351
        %v2384 = vadd.f32 %v2256, %v2352
        %v2385 = vadd.f32 %v2257, %v2353
        %v2386 = vadd.f32 %v2258, %v2354
        %v2387 = vadd.f32 %v2259, %v2355
        %v2388 = vadd.f32 %v2260, %v2356
        %v2389 = vadd.f32 %v2261, %v2357
        %v2390 = vadd.f32 %v2262, %v2358
        %v2391 = vadd.f32 %v2263, %v2359
        %v2392 = vadd.f32 %v2264, %v2360
        %v2393 = vadd.f32 %v2265, %v2361
        %v2394 = vadd.f32 %v2266, %v2362
        %v2395 = vadd.f32 %v2267, %v2363
        %v2396 = vadd.f32 %v2268, %v2364
        %v2397 = vadd.f32 %v2269, %v2365
        %v2398 = vadd.f32 %v2270, %v2366
        %v2399 = vadd.f32 %v2271, %v2367
        %v2400 = vadd.f32 %v2272, %v2368
        %v2401 = vadd.f32 %v2273, %v2369
        %v2402 = vadd.f32 %v2274, %v2370
        %v2403 = vadd.f32 %v2275, %v2371
        %v2404 = vadd.f32 %v2276, %v2372
        %v2405 = vadd.f32 %v2277, %v2373
        %v2406 = vadd.f32 %v2278, %v2374
        %v2407 = vadd.f32 %v2279, %v2375
        %v2408 = vlaneseq
        %v2409 = vshrl.u32 %v2408, 7
        %v2410 = vsub.s32 2, %v2409
        %v2411 = vrot.slane %v1491, %v2410
        %v2412 = vlaneseq
        %v2413 = vshrl.u32 %v2412, 7
        %v2414 = vsub.s32 2, %v2413
        %v2415 = vrot.slane %v1493, %v2414
        %v2416 = vlaneseq
        %v2417 = vshrl.u32 %v2416, 7
        %v2418 = vsub.s32 2, %v2417
        %v2419 = vrot.slane %v1495, %v2418
        %v2420 = vlaneseq
        %v2421 = vshrl.u32 %v2420, 7
        %v2422 = vsub.s32 2, %v2421
        %v2423 = vrot.slane %v1497, %v2422
        %v2424 = vlaneseq
        %v2425 = vshrl.u32 %v2424, 7
        %v2426 = vsub.s32 2, %v2425
        %v2427 = vrot.slane %v1499, %v2426
        %v2428 = vlaneseq
        %v2429 = vshrl.u32 %v2428, 7
        %v2430 = vsub.s32 2, %v2429
        %v2431 = vrot.slane %v1501, %v2430
        %v2432 = vlaneseq
        %v2433 = vshrl.u32 %v2432, 7
        %v2434 = vsub.s32 2, %v2433
        %v2435 = vrot.slane %v1503, %v2434
        %v2436 = vlaneseq
        %v2437 = vshrl.u32 %v2436, 7
        %v2438 = vsub.s32 2, %v2437
        %v2439 = vrot.slane %v1505, %v2438
        %v2440 = vlaneseq
        %v2441 = vshrl.u32 %v2440, 7
        %v2442 = vsub.s32 2, %v2441
        %v2443 = vrot.slane %v1507, %v2442
        %v2444 = vlaneseq
        %v2445 = vshrl.u32 %v2444, 7
        %v2446 = vsub.s32 2, %v2445
        %v2447 = vrot.slane %v1509, %v2446
        %v2448 = vlaneseq
        %v2449 = vshrl.u32 %v2448, 7
        %v2450 = vsub.s32 2, %v2449
        %v2451 = vrot.slane %v1511, %v2450
        %v2452 = vlaneseq
        %v2453 = vshrl.u32 %v2452, 7
        %v2454 = vsub.s32 2, %v2453
        %v2455 = vrot.slane %v1513, %v2454
        %v2456 = vlaneseq
        %v2457 = vshrl.u32 %v2456, 7
        %v2458 = vsub.s32 2, %v2457
        %v2459 = vrot.slane %v1515, %v2458
        %v2460 = vlaneseq
        %v2461 = vshrl.u32 %v2460, 7
        %v2462 = vsub.s32 2, %v2461
        %v2463 = vrot.slane %v1517, %v2462
        %v2464 = vlaneseq
        %v2465 = vshrl.u32 %v2464, 7
        %v2466 = vsub.s32 2, %v2465
        %v2467 = vrot.slane %v1519, %v2466
        %v2468 = vlaneseq
        %v2469 = vshrl.u32 %v2468, 7
        %v2470 = vsub.s32 2, %v2469
        %v2471 = vrot.slane %v1521, %v2470
        %v2472 = vmul.f32 %v2411, %v2124
        %v2473 = vmul.f32 %v2411, %v2125
        %v2474 = vmul.f32 %v2415, %v2124
        %v2475 = vmul.f32 %v2415, %v2125
        %v2476 = vmul.f32 %v2419, %v2124
        %v2477 = vmul.f32 %v2419, %v2125
        %v2478 = vmul.f32 %v2423, %v2124
        %v2479 = vmul.f32 %v2423, %v2125
        %v2480 = vmul.f32 %v2427, %v2124
        %v2481 = vmul.f32 %v2427, %v2125
        %v2482 = vmul.f32 %v2431, %v2124
        %v2483 = vmul.f32 %v2431, %v2125
        %v2484 = vmul.f32 %v2435, %v2124
        %v2485 = vmul.f32 %v2435, %v2125
        %v2486 = vmul.f32 %v2439, %v2124
        %v2487 = vmul.f32 %v2439, %v2125
        %v2488 = vmul.f32 %v2443, %v2124
        %v2489 = vmul.f32 %v2443, %v2125
        %v2490 = vmul.f32 %v2447, %v2124
        %v2491 = vmul.f32 %v2447, %v2125
        %v2492 = vmul.f32 %v2451, %v2124
        %v2493 = vmul.f32 %v2451, %v2125
        %v2494 = vmul.f32 %v2455, %v2124
        %v2495 = vmul.f32 %v2455, %v2125
        %v2496 = vmul.f32 %v2459, %v2124
        %v2497 = vmul.f32 %v2459, %v2125
        %v2498 = vmul.f32 %v2463, %v2124
        %v2499 = vmul.f32 %v2463, %v2125
        %v2500 = vmul.f32 %v2467, %v2124
        %v2501 = vmul.f32 %v2467, %v2125
        %v2502 = vmul.f32 %v2471, %v2124
        %v2503 = vmul.f32 %v2471, %v2125
        %v2504 = vadd.f32 %v2376, %v2472
        %v2505 = vadd.f32 %v2377, %v2473
        %v2506 = vadd.f32 %v2378, %v2474
        %v2507 = vadd.f32 %v2379, %v2475
        %v2508 = vadd.f32 %v2380, %v2476
        %v2509 = vadd.f32 %v2381, %v2477
        %v2510 = vadd.f32 %v2382, %v2478
        %v2511 = vadd.f32 %v2383, %v2479
        %v2512 = vadd.f32 %v2384, %v2480
        %v2513 = vadd.f32 %v2385, %v2481
        %v2514 = vadd.f32 %v2386, %v2482
        %v2515 = vadd.f32 %v2387, %v2483
        %v2516 = vadd.f32 %v2388, %v2484
        %v2517 = vadd.f32 %v2389, %v2485
        %v2518 = vadd.f32 %v2390, %v2486
        %v2519 = vadd.f32 %v2391, %v2487
        %v2520 = vadd.f32 %v2392, %v2488
        %v2521 = vadd.f32 %v2393, %v2489
        %v2522 = vadd.f32 %v2394, %v2490
        %v2523 = vadd.f32 %v2395, %v2491
        %v2524 = vadd.f32 %v2396, %v2492
        %v2525 = vadd.f32 %v2397, %v2493
        %v2526 = vadd.f32 %v2398, %v2494
        %v2527 = vadd.f32 %v2399, %v2495
        %v2528 = vadd.f32 %v2400, %v2496
        %v2529 = vadd.f32 %v2401, %v2497
        %v2530 = vadd.f32 %v2402, %v2498
        %v2531 = vadd.f32 %v2403, %v2499
        %v2532 = vadd.f32 %v2404, %v2500
        %v2533 = vadd.f32 %v2405, %v2501
        %v2534 = vadd.f32 %v2406, %v2502
        %v2535 = vadd.f32 %v2407, %v2503
        %v2536 = vlaneseq
        %v2537 = vshrl.u32 %v2536, 7
        %v2538 = vsub.s32 3, %v2537
        %v2539 = vrot.slane %v1491, %v2538
        %v2540 = vlaneseq
        %v2541 = vshrl.u32 %v2540, 7
        %v2542 = vsub.s32 3, %v2541
        %v2543 = vrot.slane %v1493, %v2542
        %v2544 = vlaneseq
        %v2545 = vshrl.u32 %v2544, 7
        %v2546 = vsub.s32 3, %v2545
        %v2547 = vrot.slane %v1495, %v2546
        %v2548 = vlaneseq
        %v2549 = vshrl.u32 %v2548, 7
        %v2550 = vsub.s32 3, %v2549
        %v2551 = vrot.slane %v1497, %v2550
        %v2552 = vlaneseq
        %v2553 = vshrl.u32 %v2552, 7
        %v2554 = vsub.s32 3, %v2553
        %v2555 = vrot.slane %v1499, %v2554
        %v2556 = vlaneseq
        %v2557 = vshrl.u32 %v2556, 7
        %v2558 = vsub.s32 3, %v2557
        %v2559 = vrot.slane %v1501, %v2558
        %v2560 = vlaneseq
        %v2561 = vshrl.u32 %v2560, 7
        %v2562 = vsub.s32 3, %v2561
        %v2563 = vrot.slane %v1503, %v2562
        %v2564 = vlaneseq
        %v2565 = vshrl.u32 %v2564, 7
        %v2566 = vsub.s32 3, %v2565
        %v2567 = vrot.slane %v1505, %v2566
        %v2568 = vlaneseq
        %v2569 = vshrl.u32 %v2568, 7
        %v2570 = vsub.s32 3, %v2569
        %v2571 = vrot.slane %v1507, %v2570
        %v2572 = vlaneseq
        %v2573 = vshrl.u32 %v2572, 7
        %v2574 = vsub.s32 3, %v2573
        %v2575 = vrot.slane %v1509, %v2574
        %v2576 = vlaneseq
        %v2577 = vshrl.u32 %v2576, 7
        %v2578 = vsub.s32 3, %v2577
        %v2579 = vrot.slane %v1511, %v2578
        %v2580 = vlaneseq
        %v2581 = vshrl.u32 %v2580, 7
        %v2582 = vsub.s32 3, %v2581
        %v2583 = vrot.slane %v1513, %v2582
        %v2584 = vlaneseq
        %v2585 = vshrl.u32 %v2584, 7
        %v2586 = vsub.s32 3, %v2585
        %v2587 = vrot.slane %v1515, %v2586
        %v2588 = vlaneseq
        %v2589 = vshrl.u32 %v2588, 7
        %v2590 = vsub.s32 3, %v2589
        %v2591 = vrot.slane %v1517, %v2590
        %v2592 = vlaneseq
        %v2593 = vshrl.u32 %v2592, 7
        %v2594 = vsub.s32 3, %v2593
        %v2595 = vrot.slane %v1519, %v2594
        %v2596 = vlaneseq
        %v2597 = vshrl.u32 %v2596, 7
        %v2598 = vsub.s32 3, %v2597
        %v2599 = vrot.slane %v1521, %v2598
        %v2600 = vmul.f32 %v2539, %v2126
        %v2601 = vmul.f32 %v2539, %v2127
        %v2602 = vmul.f32 %v2543, %v2126
        %v2603 = vmul.f32 %v2543, %v2127
        %v2604 = vmul.f32 %v2547, %v2126
        %v2605 = vmul.f32 %v2547, %v2127
        %v2606 = vmul.f32 %v2551, %v2126
        %v2607 = vmul.f32 %v2551, %v2127
        %v2608 = vmul.f32 %v2555, %v2126
        %v2609 = vmul.f32 %v2555, %v2127
        %v2610 = vmul.f32 %v2559, %v2126
        %v2611 = vmul.f32 %v2559, %v2127
        %v2612 = vmul.f32 %v2563, %v2126
        %v2613 = vmul.f32 %v2563, %v2127
        %v2614 = vmul.f32 %v2567, %v2126
        %v2615 = vmul.f32 %v2567, %v2127
        %v2616 = vmul.f32 %v2571, %v2126
        %v2617 = vmul.f32 %v2571, %v2127
        %v2618 = vmul.f32 %v2575, %v2126
        %v2619 = vmul.f32 %v2575, %v2127
        %v2620 = vmul.f32 %v2579, %v2126
        %v2621 = vmul.f32 %v2579, %v2127
        %v2622 = vmul.f32 %v2583, %v2126
        %v2623 = vmul.f32 %v2583, %v2127
        %v2624 = vmul.f32 %v2587, %v2126
        %v2625 = vmul.f32 %v2587, %v2127
        %v2626 = vmul.f32 %v2591, %v2126
        %v2627 = vmul.f32 %v2591, %v2127
        %v2628 = vmul.f32 %v2595, %v2126
        %v2629 = vmul.f32 %v2595, %v2127
        %v2630 = vmul.f32 %v2599, %v2126
        %v2631 = vmul.f32 %v2599, %v2127
        %v2632 = vadd.f32 %v2504, %v2600
        %v2633 = vadd.f32 %v2505, %v2601
        %v2634 = vadd.f32 %v2506, %v2602
        %v2635 = vadd.f32 %v2507, %v2603
        %v2636 = vadd.f32 %v2508, %v2604
        %v2637 = vadd.f32 %v2509, %v2605
        %v2638 = vadd.f32 %v2510, %v2606
        %v2639 = vadd.f32 %v2511, %v2607
        %v2640 = vadd.f32 %v2512, %v2608
        %v2641 = vadd.f32 %v2513, %v2609
        %v2642 = vadd.f32 %v2514, %v2610
        %v2643 = vadd.f32 %v2515, %v2611
        %v2644 = vadd.f32 %v2516, %v2612
        %v2645 = vadd.f32 %v2517, %v2613
        %v2646 = vadd.f32 %v2518, %v2614
        %v2647 = vadd.f32 %v2519, %v2615
        %v2648 = vadd.f32 %v2520, %v2616
        %v2649 = vadd.f32 %v2521, %v2617
        %v2650 = vadd.f32 %v2522, %v2618
        %v2651 = vadd.f32 %v2523, %v2619
        %v2652 = vadd.f32 %v2524, %v2620
        %v2653 = vadd.f32 %v2525, %v2621
        %v2654 = vadd.f32 %v2526, %v2622
        %v2655 = vadd.f32 %v2527, %v2623
        %v2656 = vadd.f32 %v2528, %v2624
        %v2657 = vadd.f32 %v2529, %v2625
        %v2658 = vadd.f32 %v2530, %v2626
        %v2659 = vadd.f32 %v2531, %v2627
        %v2660 = vadd.f32 %v2532, %v2628
        %v2661 = vadd.f32 %v2533, %v2629
        %v2662 = vadd.f32 %v2534, %v2630
        %v2663 = vadd.f32 %v2535, %v2631
        %v2664 = vlaneseq
        %v2665 = vshrl.u32 %v2664, 7
        %v2666 = vsub.s32 4, %v2665
        %v2667 = vrot.slane %v1491, %v2666
        %v2668 = vlaneseq
        %v2669 = vshrl.u32 %v2668, 7
        %v2670 = vsub.s32 4, %v2669
        %v2671 = vrot.slane %v1493, %v2670
        %v2672 = vlaneseq
        %v2673 = vshrl.u32 %v2672, 7
        %v2674 = vsub.s32 4, %v2673
        %v2675 = vrot.slane %v1495, %v2674
        %v2676 = vlaneseq
        %v2677 = vshrl.u32 %v2676, 7
        %v2678 = vsub.s32 4, %v2677
        %v2679 = vrot.slane %v1497, %v2678
        %v2680 = vlaneseq
        %v2681 = vshrl.u32 %v2680, 7
        %v2682 = vsub.s32 4, %v2681
        %v2683 = vrot.slane %v1499, %v2682
        %v2684 = vlaneseq
        %v2685 = vshrl.u32 %v2684, 7
        %v2686 = vsub.s32 4, %v2685
        %v2687 = vrot.slane %v1501, %v2686
        %v2688 = vlaneseq
        %v2689 = vshrl.u32 %v2688, 7
        %v2690 = vsub.s32 4, %v2689
        %v2691 = vrot.slane %v1503, %v2690
        %v2692 = vlaneseq
        %v2693 = vshrl.u32 %v2692, 7
        %v2694 = vsub.s32 4, %v2693
        %v2695 = vrot.slane %v1505, %v2694
        %v2696 = vlaneseq
        %v2697 = vshrl.u32 %v2696, 7
        %v2698 = vsub.s32 4, %v2697
        %v2699 = vrot.slane %v1507, %v2698
        %v2700 = vlaneseq
        %v2701 = vshrl.u32 %v2700, 7
        %v2702 = vsub.s32 4, %v2701
        %v2703 = vrot.slane %v1509, %v2702
        %v2704 = vlaneseq
        %v2705 = vshrl.u32 %v2704, 7
        %v2706 = vsub.s32 4, %v2705
        %v2707 = vrot.slane %v1511, %v2706
        %v2708 = vlaneseq
        %v2709 = vshrl.u32 %v2708, 7
        %v2710 = vsub.s32 4, %v2709
        %v2711 = vrot.slane %v1513, %v2710
        %v2712 = vlaneseq
        %v2713 = vshrl.u32 %v2712, 7
        %v2714 = vsub.s32 4, %v2713
        %v2715 = vrot.slane %v1515, %v2714
        %v2716 = vlaneseq
        %v2717 = vshrl.u32 %v2716, 7
        %v2718 = vsub.s32 4, %v2717
        %v2719 = vrot.slane %v1517, %v2718
        %v2720 = vlaneseq
        %v2721 = vshrl.u32 %v2720, 7
        %v2722 = vsub.s32 4, %v2721
        %v2723 = vrot.slane %v1519, %v2722
        %v2724 = vlaneseq
        %v2725 = vshrl.u32 %v2724, 7
        %v2726 = vsub.s32 4, %v2725
        %v2727 = vrot.slane %v1521, %v2726
        %v2728 = vmul.f32 %v2667, %v2128
        %v2729 = vmul.f32 %v2667, %v2129
        %v2730 = vmul.f32 %v2671, %v2128
        %v2731 = vmul.f32 %v2671, %v2129
        %v2732 = vmul.f32 %v2675, %v2128
        %v2733 = vmul.f32 %v2675, %v2129
        %v2734 = vmul.f32 %v2679, %v2128
        %v2735 = vmul.f32 %v2679, %v2129
        %v2736 = vmul.f32 %v2683, %v2128
        %v2737 = vmul.f32 %v2683, %v2129
        %v2738 = vmul.f32 %v2687, %v2128
        %v2739 = vmul.f32 %v2687, %v2129
        %v2740 = vmul.f32 %v2691, %v2128
        %v2741 = vmul.f32 %v2691, %v2129
        %v2742 = vmul.f32 %v2695, %v2128
        %v2743 = vmul.f32 %v2695, %v2129
        %v2744 = vmul.f32 %v2699, %v2128
        %v2745 = vmul.f32 %v2699, %v2129
        %v2746 = vmul.f32 %v2703, %v2128
        %v2747 = vmul.f32 %v2703, %v2129
        %v2748 = vmul.f32 %v2707, %v2128
        %v2749 = vmul.f32 %v2707, %v2129
        %v2750 = vmul.f32 %v2711, %v2128
        %v2751 = vmul.f32 %v2711, %v2129
        %v2752 = vmul.f32 %v2715, %v2128
        %v2753 = vmul.f32 %v2715, %v2129
        %v2754 = vmul.f32 %v2719, %v2128
        %v2755 = vmul.f32 %v2719, %v2129
        %v2756 = vmul.f32 %v2723, %v2128
        %v2757 = vmul.f32 %v2723, %v2129
        %v2758 = vmul.f32 %v2727, %v2128
        %v2759 = vmul.f32 %v2727, %v2129
        %v2760 = vadd.f32 %v2632, %v2728
        %v2761 = vadd.f32 %v2633, %v2729
        %v2762 = vadd.f32 %v2634, %v2730
        %v2763 = vadd.f32 %v2635, %v2731
        %v2764 = vadd.f32 %v2636, %v2732
        %v2765 = vadd.f32 %v2637, %v2733
        %v2766 = vadd.f32 %v2638, %v2734
        %v2767 = vadd.f32 %v2639, %v2735
        %v2768 = vadd.f32 %v2640, %v2736
        %v2769 = vadd.f32 %v2641, %v2737
        %v2770 = vadd.f32 %v2642, %v2738
        %v2771 = vadd.f32 %v2643, %v2739
        %v2772 = vadd.f32 %v2644, %v2740
        %v2773 = vadd.f32 %v2645, %v2741
        %v2774 = vadd.f32 %v2646, %v2742
        %v2775 = vadd.f32 %v2647, %v2743
        %v2776 = vadd.f32 %v2648, %v2744
        %v2777 = vadd.f32 %v2649, %v2745
        %v2778 = vadd.f32 %v2650, %v2746
        %v2779 = vadd.f32 %v2651, %v2747
        %v2780 = vadd.f32 %v2652, %v2748
        %v2781 = vadd.f32 %v2653, %v2749
        %v2782 = vadd.f32 %v2654, %v2750
        %v2783 = vadd.f32 %v2655, %v2751
        %v2784 = vadd.f32 %v2656, %v2752
        %v2785 = vadd.f32 %v2657, %v2753
        %v2786 = vadd.f32 %v2658, %v2754
        %v2787 = vadd.f32 %v2659, %v2755
        %v2788 = vadd.f32 %v2660, %v2756
        %v2789 = vadd.f32 %v2661, %v2757
        %v2790 = vadd.f32 %v2662, %v2758
        %v2791 = vadd.f32 %v2663, %v2759
        %v2792 = vlaneseq
        %v2793 = vshrl.u32 %v2792, 7
        %v2794 = vsub.s32 5, %v2793
        %v2795 = vrot.slane %v1491, %v2794
        %v2796 = vlaneseq
        %v2797 = vshrl.u32 %v2796, 7
        %v2798 = vsub.s32 5, %v2797
        %v2799 = vrot.slane %v1493, %v2798
        %v2800 = vlaneseq
        %v2801 = vshrl.u32 %v2800, 7
        %v2802 = vsub.s32 5, %v2801
        %v2803 = vrot.slane %v1495, %v2802
        %v2804 = vlaneseq
        %v2805 = vshrl.u32 %v2804, 7
        %v2806 = vsub.s32 5, %v2805
        %v2807 = vrot.slane %v1497, %v2806
        %v2808 = vlaneseq
        %v2809 = vshrl.u32 %v2808, 7
        %v2810 = vsub.s32 5, %v2809
        %v2811 = vrot.slane %v1499, %v2810
        %v2812 = vlaneseq
        %v2813 = vshrl.u32 %v2812, 7
        %v2814 = vsub.s32 5, %v2813
        %v2815 = vrot.slane %v1501, %v2814
        %v2816 = vlaneseq
        %v2817 = vshrl.u32 %v2816, 7
        %v2818 = vsub.s32 5, %v2817
        %v2819 = vrot.slane %v1503, %v2818
        %v2820 = vlaneseq
        %v2821 = vshrl.u32 %v2820, 7
        %v2822 = vsub.s32 5, %v2821
        %v2823 = vrot.slane %v1505, %v2822
        %v2824 = vlaneseq
        %v2825 = vshrl.u32 %v2824, 7
        %v2826 = vsub.s32 5, %v2825
        %v2827 = vrot.slane %v1507, %v2826
        %v2828 = vlaneseq
        %v2829 = vshrl.u32 %v2828, 7
        %v2830 = vsub.s32 5, %v2829
        %v2831 = vrot.slane %v1509, %v2830
        %v2832 = vlaneseq
        %v2833 = vshrl.u32 %v2832, 7
        %v2834 = vsub.s32 5, %v2833
        %v2835 = vrot.slane %v1511, %v2834
        %v2836 = vlaneseq
        %v2837 = vshrl.u32 %v2836, 7
        %v2838 = vsub.s32 5, %v2837
        %v2839 = vrot.slane %v1513, %v2838
        %v2840 = vlaneseq
        %v2841 = vshrl.u32 %v2840, 7
        %v2842 = vsub.s32 5, %v2841
        %v2843 = vrot.slane %v1515, %v2842
        %v2844 = vlaneseq
        %v2845 = vshrl.u32 %v2844, 7
        %v2846 = vsub.s32 5, %v2845
        %v2847 = vrot.slane %v1517, %v2846
        %v2848 = vlaneseq
        %v2849 = vshrl.u32 %v2848, 7
        %v2850 = vsub.s32 5, %v2849
        %v2851 = vrot.slane %v1519, %v2850
        %v2852 = vlaneseq
        %v2853 = vshrl.u32 %v2852, 7
        %v2854 = vsub.s32 5, %v2853
        %v2855 = vrot.slane %v1521, %v2854
        %v2856 = vmul.f32 %v2795, %v2130
        %v2857 = vmul.f32 %v2795, %v2131
        %v2858 = vmul.f32 %v2799, %v2130
        %v2859 = vmul.f32 %v2799, %v2131
        %v2860 = vmul.f32 %v2803, %v2130
        %v2861 = vmul.f32 %v2803, %v2131
        %v2862 = vmul.f32 %v2807, %v2130
        %v2863 = vmul.f32 %v2807, %v2131
        %v2864 = vmul.f32 %v2811, %v2130
        %v2865 = vmul.f32 %v2811, %v2131
        %v2866 = vmul.f32 %v2815, %v2130
        %v2867 = vmul.f32 %v2815, %v2131
        %v2868 = vmul.f32 %v2819, %v2130
        %v2869 = vmul.f32 %v2819, %v2131
        %v2870 = vmul.f32 %v2823, %v2130
        %v2871 = vmul.f32 %v2823, %v2131
        %v2872 = vmul.f32 %v2827, %v2130
        %v2873 = vmul.f32 %v2827, %v2131
        %v2874 = vmul.f32 %v2831, %v2130
        %v2875 = vmul.f32 %v2831, %v2131
        %v2876 = vmul.f32 %v2835, %v2130
        %v2877 = vmul.f32 %v2835, %v2131
        %v2878 = vmul.f32 %v2839, %v2130
        %v2879 = vmul.f32 %v2839, %v2131
        %v2880 = vmul.f32 %v2843, %v2130
        %v2881 = vmul.f32 %v2843, %v2131
        %v2882 = vmul.f32 %v2847, %v2130
        %v2883 = vmul.f32 %v2847, %v2131
        %v2884 = vmul.f32 %v2851, %v2130
        %v2885 = vmul.f32 %v2851, %v2131
        %v2886 = vmul.f32 %v2855, %v2130
        %v2887 = vmul.f32 %v2855, %v2131
        %v2888 = vadd.f32 %v2760, %v2856
        %v2889 = vadd.f32 %v2761, %v2857
        %v2890 = vadd.f32 %v2762, %v2858
        %v2891 = vadd.f32 %v2763, %v2859
        %v2892 = vadd.f32 %v2764, %v2860
        %v2893 = vadd.f32 %v2765, %v2861
        %v2894 = vadd.f32 %v2766, %v2862
        %v2895 = vadd.f32 %v2767, %v2863
        %v2896 = vadd.f32 %v2768, %v2864
        %v2897 = vadd.f32 %v2769, %v2865
        %v2898 = vadd.f32 %v2770, %v2866
        %v2899 = vadd.f32 %v2771, %v2867
        %v2900 = vadd.f32 %v2772, %v2868
        %v2901 = vadd.f32 %v2773, %v2869
        %v2902 = vadd.f32 %v2774, %v2870
        %v2903 = vadd.f32 %v2775, %v2871
        %v2904 = vadd.f32 %v2776, %v2872
        %v2905 = vadd.f32 %v2777, %v2873
        %v2906 = vadd.f32 %v2778, %v2874
        %v2907 = vadd.f32 %v2779, %v2875
        %v2908 = vadd.f32 %v2780, %v2876
        %v2909 = vadd.f32 %v2781, %v2877
        %v2910 = vadd.f32 %v2782, %v2878
        %v2911 = vadd.f32 %v2783, %v2879
        %v2912 = vadd.f32 %v2784, %v2880
        %v2913 = vadd.f32 %v2785, %v2881
        %v2914 = vadd.f32 %v2786, %v2882
        %v2915 = vadd.f32 %v2787, %v2883
        %v2916 = vadd.f32 %v2788, %v2884
        %v2917 = vadd.f32 %v2789, %v2885
        %v2918 = vadd.f32 %v2790, %v2886
        %v2919 = vadd.f32 %v2791, %v2887
        %v2920 = vlaneseq
        %v2921 = vshrl.u32 %v2920, 7
        %v2922 = vsub.s32 6, %v2921
        %v2923 = vrot.slane %v1491, %v2922
        %v2924 = vlaneseq
        %v2925 = vshrl.u32 %v2924, 7
        %v2926 = vsub.s32 6, %v2925
        %v2927 = vrot.slane %v1493, %v2926
        %v2928 = vlaneseq
        %v2929 = vshrl.u32 %v2928, 7
        %v2930 = vsub.s32 6, %v2929
        %v2931 = vrot.slane %v1495, %v2930
        %v2932 = vlaneseq
        %v2933 = vshrl.u32 %v2932, 7
        %v2934 = vsub.s32 6, %v2933
        %v2935 = vrot.slane %v1497, %v2934
        %v2936 = vlaneseq
        %v2937 = vshrl.u32 %v2936, 7
        %v2938 = vsub.s32 6, %v2937
        %v2939 = vrot.slane %v1499, %v2938
        %v2940 = vlaneseq
        %v2941 = vshrl.u32 %v2940, 7
        %v2942 = vsub.s32 6, %v2941
        %v2943 = vrot.slane %v1501, %v2942
        %v2944 = vlaneseq
        %v2945 = vshrl.u32 %v2944, 7
        %v2946 = vsub.s32 6, %v2945
        %v2947 = vrot.slane %v1503, %v2946
        %v2948 = vlaneseq
        %v2949 = vshrl.u32 %v2948, 7
        %v2950 = vsub.s32 6, %v2949
        %v2951 = vrot.slane %v1505, %v2950
        %v2952 = vlaneseq
        %v2953 = vshrl.u32 %v2952, 7
        %v2954 = vsub.s32 6, %v2953
        %v2955 = vrot.slane %v1507, %v2954
        %v2956 = vlaneseq
        %v2957 = vshrl.u32 %v2956, 7
        %v2958 = vsub.s32 6, %v2957
        %v2959 = vrot.slane %v1509, %v2958
        %v2960 = vlaneseq
        %v2961 = vshrl.u32 %v2960, 7
        %v2962 = vsub.s32 6, %v2961
        %v2963 = vrot.slane %v1511, %v2962
        %v2964 = vlaneseq
        %v2965 = vshrl.u32 %v2964, 7
        %v2966 = vsub.s32 6, %v2965
        %v2967 = vrot.slane %v1513, %v2966
        %v2968 = vlaneseq
        %v2969 = vshrl.u32 %v2968, 7
        %v2970 = vsub.s32 6, %v2969
        %v2971 = vrot.slane %v1515, %v2970
        %v2972 = vlaneseq
        %v2973 = vshrl.u32 %v2972, 7
        %v2974 = vsub.s32 6, %v2973
        %v2975 = vrot.slane %v1517, %v2974
        %v2976 = vlaneseq
        %v2977 = vshrl.u32 %v2976, 7
        %v2978 = vsub.s32 6, %v2977
        %v2979 = vrot.slane %v1519, %v2978
        %v2980 = vlaneseq
        %v2981 = vshrl.u32 %v2980, 7
        %v2982 = vsub.s32 6, %v2981
        %v2983 = vrot.slane %v1521, %v2982
        %v2984 = vmul.f32 %v2923, %v2132
        %v2985 = vmul.f32 %v2923, %v2133
        %v2986 = vmul.f32 %v2927, %v2132
        %v2987 = vmul.f32 %v2927, %v2133
        %v2988 = vmul.f32 %v2931, %v2132
        %v2989 = vmul.f32 %v2931, %v2133
        %v2990 = vmul.f32 %v2935, %v2132
        %v2991 = vmul.f32 %v2935, %v2133
        %v2992 = vmul.f32 %v2939, %v2132
        %v2993 = vmul.f32 %v2939, %v2133
        %v2994 = vmul.f32 %v2943, %v2132
        %v2995 = vmul.f32 %v2943, %v2133
        %v2996 = vmul.f32 %v2947, %v2132
        %v2997 = vmul.f32 %v2947, %v2133
        %v2998 = vmul.f32 %v2951, %v2132
        %v2999 = vmul.f32 %v2951, %v2133
        %v3000 = vmul.f32 %v2955, %v2132
        %v3001 = vmul.f32 %v2955, %v2133
        %v3002 = vmul.f32 %v2959, %v2132
        %v3003 = vmul.f32 %v2959, %v2133
        %v3004 = vmul.f32 %v2963, %v2132
        %v3005 = vmul.f32 %v2963, %v2133
        %v3006 = vmul.f32 %v2967, %v2132
        %v3007 = vmul.f32 %v2967, %v2133
        %v3008 = vmul.f32 %v2971, %v2132
        %v3009 = vmul.f32 %v2971, %v2133
        %v3010 = vmul.f32 %v2975, %v2132
        %v3011 = vmul.f32 %v2975, %v2133
        %v3012 = vmul.f32 %v2979, %v2132
        %v3013 = vmul.f32 %v2979, %v2133
        %v3014 = vmul.f32 %v2983, %v2132
        %v3015 = vmul.f32 %v2983, %v2133
        %v3016 = vadd.f32 %v2888, %v2984
        %v3017 = vadd.f32 %v2889, %v2985
        %v3018 = vadd.f32 %v2890, %v2986
        %v3019 = vadd.f32 %v2891, %v2987
        %v3020 = vadd.f32 %v2892, %v2988
        %v3021 = vadd.f32 %v2893, %v2989
        %v3022 = vadd.f32 %v2894, %v2990
        %v3023 = vadd.f32 %v2895, %v2991
        %v3024 = vadd.f32 %v2896, %v2992
        %v3025 = vadd.f32 %v2897, %v2993
        %v3026 = vadd.f32 %v2898, %v2994
        %v3027 = vadd.f32 %v2899, %v2995
        %v3028 = vadd.f32 %v2900, %v2996
        %v3029 = vadd.f32 %v2901, %v2997
        %v3030 = vadd.f32 %v2902, %v2998
        %v3031 = vadd.f32 %v2903, %v2999
        %v3032 = vadd.f32 %v2904, %v3000
        %v3033 = vadd.f32 %v2905, %v3001
        %v3034 = vadd.f32 %v2906, %v3002
        %v3035 = vadd.f32 %v2907, %v3003
        %v3036 = vadd.f32 %v2908, %v3004
        %v3037 = vadd.f32 %v2909, %v3005
        %v3038 = vadd.f32 %v2910, %v3006
        %v3039 = vadd.f32 %v2911, %v3007
        %v3040 = vadd.f32 %v2912, %v3008
        %v3041 = vadd.f32 %v2913, %v3009
        %v3042 = vadd.f32 %v2914, %v3010
        %v3043 = vadd.f32 %v2915, %v3011
        %v3044 = vadd.f32 %v2916, %v3012
        %v3045 = vadd.f32 %v2917, %v3013
        %v3046 = vadd.f32 %v2918, %v3014
        %v3047 = vadd.f32 %v2919, %v3015
        %v3048 = vlaneseq
        %v3049 = vshrl.u32 %v3048, 7
        %v3050 = vsub.s32 7, %v3049
        %v3051 = vrot.slane %v1491, %v3050
        %v3052 = vlaneseq
        %v3053 = vshrl.u32 %v3052, 7
        %v3054 = vsub.s32 7, %v3053
        %v3055 = vrot.slane %v1493, %v3054
        %v3056 = vlaneseq
        %v3057 = vshrl.u32 %v3056, 7
        %v3058 = vsub.s32 7, %v3057
        %v3059 = vrot.slane %v1495, %v3058
        %v3060 = vlaneseq
        %v3061 = vshrl.u32 %v3060, 7
        %v3062 = vsub.s32 7, %v3061
        %v3063 = vrot.slane %v1497, %v3062
        %v3064 = vlaneseq
        %v3065 = vshrl.u32 %v3064, 7
        %v3066 = vsub.s32 7, %v3065
        %v3067 = vrot.slane %v1499, %v3066
        %v3068 = vlaneseq
        %v3069 = vshrl.u32 %v3068, 7
        %v3070 = vsub.s32 7, %v3069
        %v3071 = vrot.slane %v1501, %v3070
        %v3072 = vlaneseq
        %v3073 = vshrl.u32 %v3072, 7
        %v3074 = vsub.s32 7, %v3073
        %v3075 = vrot.slane %v1503, %v3074
        %v3076 = vlaneseq
        %v3077 = vshrl.u32 %v3076, 7
        %v3078 = vsub.s32 7, %v3077
        %v3079 = vrot.slane %v1505, %v3078
        %v3080 = vlaneseq
        %v3081 = vshrl.u32 %v3080, 7
        %v3082 = vsub.s32 7, %v3081
        %v3083 = vrot.slane %v1507, %v3082
        %v3084 = vlaneseq
        %v3085 = vshrl.u32 %v3084, 7
        %v3086 = vsub.s32 7, %v3085
        %v3087 = vrot.slane %v1509, %v3086
        %v3088 = vlaneseq
        %v3089 = vshrl.u32 %v3088, 7
        %v3090 = vsub.s32 7, %v3089
        %v3091 = vrot.slane %v1511, %v3090
        %v3092 = vlaneseq
        %v3093 = vshrl.u32 %v3092, 7
        %v3094 = vsub.s32 7, %v3093
        %v3095 = vrot.slane %v1513, %v3094
        %v3096 = vlaneseq
        %v3097 = vshrl.u32 %v3096, 7
        %v3098 = vsub.s32 7, %v3097
        %v3099 = vrot.slane %v1515, %v3098
        %v3100 = vlaneseq
        %v3101 = vshrl.u32 %v3100, 7
        %v3102 = vsub.s32 7, %v3101
        %v3103 = vrot.slane %v1517, %v3102
        %v3104 = vlaneseq
        %v3105 = vshrl.u32 %v3104, 7
        %v3106 = vsub.s32 7, %v3105
        %v3107 = vrot.slane %v1519, %v3106
        %v3108 = vlaneseq
        %v3109 = vshrl.u32 %v3108, 7
        %v3110 = vsub.s32 7, %v3109
        %v3111 = vrot.slane %v1521, %v3110
        %v3112 = vmul.f32 %v3051, %v2134
        %v3113 = vmul.f32 %v3051, %v2135
        %v3114 = vmul.f32 %v3055, %v2134
        %v3115 = vmul.f32 %v3055, %v2135
        %v3116 = vmul.f32 %v3059, %v2134
        %v3117 = vmul.f32 %v3059, %v2135
        %v3118 = vmul.f32 %v3063, %v2134
        %v3119 = vmul.f32 %v3063, %v2135
        %v3120 = vmul.f32 %v3067, %v2134
        %v3121 = vmul.f32 %v3067, %v2135
        %v3122 = vmul.f32 %v3071, %v2134
        %v3123 = vmul.f32 %v3071, %v2135
        %v3124 = vmul.f32 %v3075, %v2134
        %v3125 = vmul.f32 %v3075, %v2135
        %v3126 = vmul.f32 %v3079, %v2134
        %v3127 = vmul.f32 %v3079, %v2135
        %v3128 = vmul.f32 %v3083, %v2134
        %v3129 = vmul.f32 %v3083, %v2135
        %v3130 = vmul.f32 %v3087, %v2134
        %v3131 = vmul.f32 %v3087, %v2135
        %v3132 = vmul.f32 %v3091, %v2134
        %v3133 = vmul.f32 %v3091, %v2135
        %v3134 = vmul.f32 %v3095, %v2134
        %v3135 = vmul.f32 %v3095, %v2135
        %v3136 = vmul.f32 %v3099, %v2134
        %v3137 = vmul.f32 %v3099, %v2135
        %v3138 = vmul.f32 %v3103, %v2134
        %v3139 = vmul.f32 %v3103, %v2135
        %v3140 = vmul.f32 %v3107, %v2134
        %v3141 = vmul.f32 %v3107, %v2135
        %v3142 = vmul.f32 %v3111, %v2134
        %v3143 = vmul.f32 %v3111, %v2135
        %v3144 = vadd.f32 %v3016, %v3112
        %v3145 = vadd.f32 %v3017, %v3113
        %v3146 = vadd.f32 %v3018, %v3114
        %v3147 = vadd.f32 %v3019, %v3115
        %v3148 = vadd.f32 %v3020, %v3116
        %v3149 = vadd.f32 %v3021, %v3117
        %v3150 = vadd.f32 %v3022, %v3118
        %v3151 = vadd.f32 %v3023, %v3119
        %v3152 = vadd.f32 %v3024, %v3120
        %v3153 = vadd.f32 %v3025, %v3121
        %v3154 = vadd.f32 %v3026, %v3122
        %v3155 = vadd.f32 %v3027, %v3123
        %v3156 = vadd.f32 %v3028, %v3124
        %v3157 = vadd.f32 %v3029, %v3125
        %v3158 = vadd.f32 %v3030, %v3126
        %v3159 = vadd.f32 %v3031, %v3127
        %v3160 = vadd.f32 %v3032, %v3128
        %v3161 = vadd.f32 %v3033, %v3129
        %v3162 = vadd.f32 %v3034, %v3130
        %v3163 = vadd.f32 %v3035, %v3131
        %v3164 = vadd.f32 %v3036, %v3132
        %v3165 = vadd.f32 %v3037, %v3133
        %v3166 = vadd.f32 %v3038, %v3134
        %v3167 = vadd.f32 %v3039, %v3135
        %v3168 = vadd.f32 %v3040, %v3136
        %v3169 = vadd.f32 %v3041, %v3137
        %v3170 = vadd.f32 %v3042, %v3138
        %v3171 = vadd.f32 %v3043, %v3139
        %v3172 = vadd.f32 %v3044, %v3140
        %v3173 = vadd.f32 %v3045, %v3141
        %v3174 = vadd.f32 %v3046, %v3142
        %v3175 = vadd.f32 %v3047, %v3143
        %v3176 = vlaneseq
        %v3177 = vshrl.u32 %v3176, 7
        %v3178 = vsub.s32 0, %v3177
        %v3179 = vrot.slane %v1492, %v3178
        %v3180 = vlaneseq
        %v3181 = vshrl.u32 %v3180, 7
        %v3182 = vsub.s32 0, %v3181
        %v3183 = vrot.slane %v1494, %v3182
        %v3184 = vlaneseq
        %v3185 = vshrl.u32 %v3184, 7
        %v3186 = vsub.s32 0, %v3185
        %v3187 = vrot.slane %v1496, %v3186
        %v3188 = vlaneseq
        %v3189 = vshrl.u32 %v3188, 7
        %v3190 = vsub.s32 0, %v3189
        %v3191 = vrot.slane %v1498, %v3190
        %v3192 = vlaneseq
        %v3193 = vshrl.u32 %v3192, 7
        %v3194 = vsub.s32 0, %v3193
        %v3195 = vrot.slane %v1500, %v3194
        %v3196 = vlaneseq
        %v3197 = vshrl.u32 %v3196, 7
        %v3198 = vsub.s32 0, %v3197
        %v3199 = vrot.slane %v1502, %v3198
        %v3200 = vlaneseq
        %v3201 = vshrl.u32 %v3200, 7
        %v3202 = vsub.s32 0, %v3201
        %v3203 = vrot.slane %v1504, %v3202
        %v3204 = vlaneseq
        %v3205 = vshrl.u32 %v3204, 7
        %v3206 = vsub.s32 0, %v3205
        %v3207 = vrot.slane %v1506, %v3206
        %v3208 = vlaneseq
        %v3209 = vshrl.u32 %v3208, 7
        %v3210 = vsub.s32 0, %v3209
        %v3211 = vrot.slane %v1508, %v3210
        %v3212 = vlaneseq
        %v3213 = vshrl.u32 %v3212, 7
        %v3214 = vsub.s32 0, %v3213
        %v3215 = vrot.slane %v1510, %v3214
        %v3216 = vlaneseq
        %v3217 = vshrl.u32 %v3216, 7
        %v3218 = vsub.s32 0, %v3217
        %v3219 = vrot.slane %v1512, %v3218
        %v3220 = vlaneseq
        %v3221 = vshrl.u32 %v3220, 7
        %v3222 = vsub.s32 0, %v3221
        %v3223 = vrot.slane %v1514, %v3222
        %v3224 = vlaneseq
        %v3225 = vshrl.u32 %v3224, 7
        %v3226 = vsub.s32 0, %v3225
        %v3227 = vrot.slane %v1516, %v3226
        %v3228 = vlaneseq
        %v3229 = vshrl.u32 %v3228, 7
        %v3230 = vsub.s32 0, %v3229
        %v3231 = vrot.slane %v1518, %v3230
        %v3232 = vlaneseq
        %v3233 = vshrl.u32 %v3232, 7
        %v3234 = vsub.s32 0, %v3233
        %v3235 = vrot.slane %v1520, %v3234
        %v3236 = vlaneseq
        %v3237 = vshrl.u32 %v3236, 7
        %v3238 = vsub.s32 0, %v3237
        %v3239 = vrot.slane %v1522, %v3238
        %v3240 = vmul.f32 %v3179, %v2136
        %v3241 = vmul.f32 %v3179, %v2137
        %v3242 = vmul.f32 %v3183, %v2136
        %v3243 = vmul.f32 %v3183, %v2137
        %v3244 = vmul.f32 %v3187, %v2136
        %v3245 = vmul.f32 %v3187, %v2137
        %v3246 = vmul.f32 %v3191, %v2136
        %v3247 = vmul.f32 %v3191, %v2137
        %v3248 = vmul.f32 %v3195, %v2136
        %v3249 = vmul.f32 %v3195, %v2137
        %v3250 = vmul.f32 %v3199, %v2136
        %v3251 = vmul.f32 %v3199, %v2137
        %v3252 = vmul.f32 %v3203, %v2136
        %v3253 = vmul.f32 %v3203, %v2137
        %v3254 = vmul.f32 %v3207, %v2136
        %v3255 = vmul.f32 %v3207, %v2137
        %v3256 = vmul.f32 %v3211, %v2136
        %v3257 = vmul.f32 %v3211, %v2137
        %v3258 = vmul.f32 %v3215, %v2136
        %v3259 = vmul.f32 %v3215, %v2137
        %v3260 = vmul.f32 %v3219, %v2136
        %v3261 = vmul.f32 %v3219, %v2137
        %v3262 = vmul.f32 %v3223, %v2136
        %v3263 = vmul.f32 %v3223, %v2137
        %v3264 = vmul.f32 %v3227, %v2136
        %v3265 = vmul.f32 %v3227, %v2137
        %v3266 = vmul.f32 %v3231, %v2136
        %v3267 = vmul.f32 %v3231, %v2137
        %v3268 = vmul.f32 %v3235, %v2136
        %v3269 = vmul.f32 %v3235, %v2137
        %v3270 = vmul.f32 %v3239, %v2136
        %v3271 = vmul.f32 %v3239, %v2137
        %v3272 = vadd.f32 %v3144, %v3240
        %v3273 = vadd.f32 %v3145, %v3241
        %v3274 = vadd.f32 %v3146, %v3242
        %v3275 = vadd.f32 %v3147, %v3243
        %v3276 = vadd.f32 %v3148, %v3244
        %v3277 = vadd.f32 %v3149, %v3245
        %v3278 = vadd.f32 %v3150, %v3246
        %v3279 = vadd.f32 %v3151, %v3247
        %v3280 = vadd.f32 %v3152, %v3248
        %v3281 = vadd.f32 %v3153, %v3249
        %v3282 = vadd.f32 %v3154, %v3250
        %v3283 = vadd.f32 %v3155, %v3251
        %v3284 = vadd.f32 %v3156, %v3252
        %v3285 = vadd.f32 %v3157, %v3253
        %v3286 = vadd.f32 %v3158, %v3254
        %v3287 = vadd.f32 %v3159, %v3255
        %v3288 = vadd.f32 %v3160, %v3256
        %v3289 = vadd.f32 %v3161, %v3257
        %v3290 = vadd.f32 %v3162, %v3258
        %v3291 = vadd.f32 %v3163, %v3259
        %v3292 = vadd.f32 %v3164, %v3260
        %v3293 = vadd.f32 %v3165, %v3261
        %v3294 = vadd.f32 %v3166, %v3262
        %v3295 = vadd.f32 %v3167, %v3263
        %v3296 = vadd.f32 %v3168, %v3264
        %v3297 = vadd.f32 %v3169, %v3265
        %v3298 = vadd.f32 %v3170, %v3266
        %v3299 = vadd.f32 %v3171, %v3267
        %v3300 = vadd.f32 %v3172, %v3268
        %v3301 = vadd.f32 %v3173, %v3269
        %v3302 = vadd.f32 %v3174, %v3270
        %v3303 = vadd.f32 %v3175, %v3271
        %v3304 = vlaneseq
        %v3305 = vshrl.u32 %v3304, 7
        %v3306 = vsub.s32 1, %v3305
        %v3307 = vrot.slane %v1492, %v3306
        %v3308 = vlaneseq
        %v3309 = vshrl.u32 %v3308, 7
        %v3310 = vsub.s32 1, %v3309
        %v3311 = vrot.slane %v1494, %v3310
        %v3312 = vlaneseq
        %v3313 = vshrl.u32 %v3312, 7
        %v3314 = vsub.s32 1, %v3313
        %v3315 = vrot.slane %v1496, %v3314
        %v3316 = vlaneseq
        %v3317 = vshrl.u32 %v3316, 7
        %v3318 = vsub.s32 1, %v3317
        %v3319 = vrot.slane %v1498, %v3318
        %v3320 = vlaneseq
        %v3321 = vshrl.u32 %v3320, 7
        %v3322 = vsub.s32 1, %v3321
        %v3323 = vrot.slane %v1500, %v3322
        %v3324 = vlaneseq
        %v3325 = vshrl.u32 %v3324, 7
        %v3326 = vsub.s32 1, %v3325
        %v3327 = vrot.slane %v1502, %v3326
        %v3328 = vlaneseq
        %v3329 = vshrl.u32 %v3328, 7
        %v3330 = vsub.s32 1, %v3329
        %v3331 = vrot.slane %v1504, %v3330
        %v3332 = vlaneseq
        %v3333 = vshrl.u32 %v3332, 7
        %v3334 = vsub.s32 1, %v3333
        %v3335 = vrot.slane %v1506, %v3334
        %v3336 = vlaneseq
        %v3337 = vshrl.u32 %v3336, 7
        %v3338 = vsub.s32 1, %v3337
        %v3339 = vrot.slane %v1508, %v3338
        %v3340 = vlaneseq
        %v3341 = vshrl.u32 %v3340, 7
        %v3342 = vsub.s32 1, %v3341
        %v3343 = vrot.slane %v1510, %v3342
        %v3344 = vlaneseq
        %v3345 = vshrl.u32 %v3344, 7
        %v3346 = vsub.s32 1, %v3345
        %v3347 = vrot.slane %v1512, %v3346
        %v3348 = vlaneseq
        %v3349 = vshrl.u32 %v3348, 7
        %v3350 = vsub.s32 1, %v3349
        %v3351 = vrot.slane %v1514, %v3350
        %v3352 = vlaneseq
        %v3353 = vshrl.u32 %v3352, 7
        %v3354 = vsub.s32 1, %v3353
        %v3355 = vrot.slane %v1516, %v3354
        %v3356 = vlaneseq
        %v3357 = vshrl.u32 %v3356, 7
        %v3358 = vsub.s32 1, %v3357
        %v3359 = vrot.slane %v1518, %v3358
        %v3360 = vlaneseq
        %v3361 = vshrl.u32 %v3360, 7
        %v3362 = vsub.s32 1, %v3361
        %v3363 = vrot.slane %v1520, %v3362
        %v3364 = vlaneseq
        %v3365 = vshrl.u32 %v3364, 7
        %v3366 = vsub.s32 1, %v3365
        %v3367 = vrot.slane %v1522, %v3366
        %v3368 = vmul.f32 %v3307, %v2138
        %v3369 = vmul.f32 %v3307, %v2139
        %v3370 = vmul.f32 %v3311, %v2138
        %v3371 = vmul.f32 %v3311, %v2139
        %v3372 = vmul.f32 %v3315, %v2138
        %v3373 = vmul.f32 %v3315, %v2139
        %v3374 = vmul.f32 %v3319, %v2138
        %v3375 = vmul.f32 %v3319, %v2139
        %v3376 = vmul.f32 %v3323, %v2138
        %v3377 = vmul.f32 %v3323, %v2139
        %v3378 = vmul.f32 %v3327, %v2138
        %v3379 = vmul.f32 %v3327, %v2139
        %v3380 = vmul.f32 %v3331, %v2138
        %v3381 = vmul.f32 %v3331, %v2139
        %v3382 = vmul.f32 %v3335, %v2138
        %v3383 = vmul.f32 %v3335, %v2139
        %v3384 = vmul.f32 %v3339, %v2138
        %v3385 = vmul.f32 %v3339, %v2139
        %v3386 = vmul.f32 %v3343, %v2138
        %v3387 = vmul.f32 %v3343, %v2139
        %v3388 = vmul.f32 %v3347, %v2138
        %v3389 = vmul.f32 %v3347, %v2139
        %v3390 = vmul.f32 %v3351, %v2138
        %v3391 = vmul.f32 %v3351, %v2139
        %v3392 = vmul.f32 %v3355, %v2138
        %v3393 = vmul.f32 %v3355, %v2139
        %v3394 = vmul.f32 %v3359, %v2138
        %v3395 = vmul.f32 %v3359, %v2139
        %v3396 = vmul.f32 %v3363, %v2138
        %v3397 = vmul.f32 %v3363, %v2139
        %v3398 = vmul.f32 %v3367, %v2138
        %v3399 = vmul.f32 %v3367, %v2139
        %v3400 = vadd.f32 %v3272, %v3368
        %v3401 = vadd.f32 %v3273, %v3369
        %v3402 = vadd.f32 %v3274, %v3370
        %v3403 = vadd.f32 %v3275, %v3371
        %v3404 = vadd.f32 %v3276, %v3372
        %v3405 = vadd.f32 %v3277, %v3373
        %v3406 = vadd.f32 %v3278, %v3374
        %v3407 = vadd.f32 %v3279, %v3375
        %v3408 = vadd.f32 %v3280, %v3376
        %v3409 = vadd.f32 %v3281, %v3377
        %v3410 = vadd.f32 %v3282, %v3378
        %v3411 = vadd.f32 %v3283, %v3379
        %v3412 = vadd.f32 %v3284, %v3380
        %v3413 = vadd.f32 %v3285, %v3381
        %v3414 = vadd.f32 %v3286, %v3382
        %v3415 = vadd.f32 %v3287, %v3383
        %v3416 = vadd.f32 %v3288, %v3384
        %v3417 = vadd.f32 %v3289, %v3385
        %v3418 = vadd.f32 %v3290, %v3386
        %v3419 = vadd.f32 %v3291, %v3387
        %v3420 = vadd.f32 %v3292, %v3388
        %v3421 = vadd.f32 %v3293, %v3389
        %v3422 = vadd.f32 %v3294, %v3390
        %v3423 = vadd.f32 %v3295, %v3391
        %v3424 = vadd.f32 %v3296, %v3392
        %v3425 = vadd.f32 %v3297, %v3393
        %v3426 = vadd.f32 %v3298, %v3394
        %v3427 = vadd.f32 %v3299, %v3395
        %v3428 = vadd.f32 %v3300, %v3396
        %v3429 = vadd.f32 %v3301, %v3397
        %v3430 = vadd.f32 %v3302, %v3398
        %v3431 = vadd.f32 %v3303, %v3399
        %v3432 = vlaneseq
        %v3433 = vshrl.u32 %v3432, 7
        %v3434 = vsub.s32 2, %v3433
        %v3435 = vrot.slane %v1492, %v3434
        %v3436 = vlaneseq
        %v3437 = vshrl.u32 %v3436, 7
        %v3438 = vsub.s32 2, %v3437
        %v3439 = vrot.slane %v1494, %v3438
        %v3440 = vlaneseq
        %v3441 = vshrl.u32 %v3440, 7
        %v3442 = vsub.s32 2, %v3441
        %v3443 = vrot.slane %v1496, %v3442
        %v3444 = vlaneseq
        %v3445 = vshrl.u32 %v3444, 7
        %v3446 = vsub.s32 2, %v3445
        %v3447 = vrot.slane %v1498, %v3446
        %v3448 = vlaneseq
        %v3449 = vshrl.u32 %v3448, 7
        %v3450 = vsub.s32 2, %v3449
        %v3451 = vrot.slane %v1500, %v3450
        %v3452 = vlaneseq
        %v3453 = vshrl.u32 %v3452, 7
        %v3454 = vsub.s32 2, %v3453
        %v3455 = vrot.slane %v1502, %v3454
        %v3456 = vlaneseq
        %v3457 = vshrl.u32 %v3456, 7
        %v3458 = vsub.s32 2, %v3457
        %v3459 = vrot.slane %v1504, %v3458
        %v3460 = vlaneseq
        %v3461 = vshrl.u32 %v3460, 7
        %v3462 = vsub.s32 2, %v3461
        %v3463 = vrot.slane %v1506, %v3462
        %v3464 = vlaneseq
        %v3465 = vshrl.u32 %v3464, 7
        %v3466 = vsub.s32 2, %v3465
        %v3467 = vrot.slane %v1508, %v3466
        %v3468 = vlaneseq
        %v3469 = vshrl.u32 %v3468, 7
        %v3470 = vsub.s32 2, %v3469
        %v3471 = vrot.slane %v1510, %v3470
        %v3472 = vlaneseq
        %v3473 = vshrl.u32 %v3472, 7
        %v3474 = vsub.s32 2, %v3473
        %v3475 = vrot.slane %v1512, %v3474
        %v3476 = vlaneseq
        %v3477 = vshrl.u32 %v3476, 7
        %v3478 = vsub.s32 2, %v3477
        %v3479 = vrot.slane %v1514, %v3478
        %v3480 = vlaneseq
        %v3481 = vshrl.u32 %v3480, 7
        %v3482 = vsub.s32 2, %v3481
        %v3483 = vrot.slane %v1516, %v3482
        %v3484 = vlaneseq
        %v3485 = vshrl.u32 %v3484, 7
        %v3486 = vsub.s32 2, %v3485
        %v3487 = vrot.slane %v1518, %v3486
        %v3488 = vlaneseq
        %v3489 = vshrl.u32 %v3488, 7
        %v3490 = vsub.s32 2, %v3489
        %v3491 = vrot.slane %v1520, %v3490
        %v3492 = vlaneseq
        %v3493 = vshrl.u32 %v3492, 7
        %v3494 = vsub.s32 2, %v3493
        %v3495 = vrot.slane %v1522, %v3494
        %v3496 = vmul.f32 %v3435, %v2140
        %v3497 = vmul.f32 %v3435, %v2141
        %v3498 = vmul.f32 %v3439, %v2140
        %v3499 = vmul.f32 %v3439, %v2141
        %v3500 = vmul.f32 %v3443, %v2140
        %v3501 = vmul.f32 %v3443, %v2141
        %v3502 = vmul.f32 %v3447, %v2140
        %v3503 = vmul.f32 %v3447, %v2141
        %v3504 = vmul.f32 %v3451, %v2140
        %v3505 = vmul.f32 %v3451, %v2141
        %v3506 = vmul.f32 %v3455, %v2140
        %v3507 = vmul.f32 %v3455, %v2141
        %v3508 = vmul.f32 %v3459, %v2140
        %v3509 = vmul.f32 %v3459, %v2141
        %v3510 = vmul.f32 %v3463, %v2140
        %v3511 = vmul.f32 %v3463, %v2141
        %v3512 = vmul.f32 %v3467, %v2140
        %v3513 = vmul.f32 %v3467, %v2141
        %v3514 = vmul.f32 %v3471, %v2140
        %v3515 = vmul.f32 %v3471, %v2141
        %v3516 = vmul.f32 %v3475, %v2140
        %v3517 = vmul.f32 %v3475, %v2141
        %v3518 = vmul.f32 %v3479, %v2140
        %v3519 = vmul.f32 %v3479, %v2141
        %v3520 = vmul.f32 %v3483, %v2140
        %v3521 = vmul.f32 %v3483, %v2141
        %v3522 = vmul.f32 %v3487, %v2140
        %v3523 = vmul.f32 %v3487, %v2141
        %v3524 = vmul.f32 %v3491, %v2140
        %v3525 = vmul.f32 %v3491, %v2141
        %v3526 = vmul.f32 %v3495, %v2140
        %v3527 = vmul.f32 %v3495, %v2141
        %v3528 = vadd.f32 %v3400, %v3496
        %v3529 = vadd.f32 %v3401, %v3497
        %v3530 = vadd.f32 %v3402, %v3498
        %v3531 = vadd.f32 %v3403, %v3499
        %v3532 = vadd.f32 %v3404, %v3500
        %v3533 = vadd.f32 %v3405, %v3501
        %v3534 = vadd.f32 %v3406, %v3502
        %v3535 = vadd.f32 %v3407, %v3503
        %v3536 = vadd.f32 %v3408, %v3504
        %v3537 = vadd.f32 %v3409, %v3505
        %v3538 = vadd.f32 %v3410, %v3506
        %v3539 = vadd.f32 %v3411, %v3507
        %v3540 = vadd.f32 %v3412, %v3508
        %v3541 = vadd.f32 %v3413, %v3509
        %v3542 = vadd.f32 %v3414, %v3510
        %v3543 = vadd.f32 %v3415, %v3511
        %v3544 = vadd.f32 %v3416, %v3512
        %v3545 = vadd.f32 %v3417, %v3513
        %v3546 = vadd.f32 %v3418, %v3514
        %v3547 = vadd.f32 %v3419, %v3515
        %v3548 = vadd.f32 %v3420, %v3516
        %v3549 = vadd.f32 %v3421, %v3517
        %v3550 = vadd.f32 %v3422, %v3518
        %v3551 = vadd.f32 %v3423, %v3519
        %v3552 = vadd.f32 %v3424, %v3520
        %v3553 = vadd.f32 %v3425, %v3521
        %v3554 = vadd.f32 %v3426, %v3522
        %v3555 = vadd.f32 %v3427, %v3523
        %v3556 = vadd.f32 %v3428, %v3524
        %v3557 = vadd.f32 %v3429, %v3525
        %v3558 = vadd.f32 %v3430, %v3526
        %v3559 = vadd.f32 %v3431, %v3527
        %v3560 = vlaneseq
        %v3561 = vshrl.u32 %v3560, 7
        %v3562 = vsub.s32 3, %v3561
        %v3563 = vrot.slane %v1492, %v3562
        %v3564 = vlaneseq
        %v3565 = vshrl.u32 %v3564, 7
        %v3566 = vsub.s32 3, %v3565
        %v3567 = vrot.slane %v1494, %v3566
        %v3568 = vlaneseq
        %v3569 = vshrl.u32 %v3568, 7
        %v3570 = vsub.s32 3, %v3569
        %v3571 = vrot.slane %v1496, %v3570
        %v3572 = vlaneseq
        %v3573 = vshrl.u32 %v3572, 7
        %v3574 = vsub.s32 3, %v3573
        %v3575 = vrot.slane %v1498, %v3574
        %v3576 = vlaneseq
        %v3577 = vshrl.u32 %v3576, 7
        %v3578 = vsub.s32 3, %v3577
        %v3579 = vrot.slane %v1500, %v3578
        %v3580 = vlaneseq
        %v3581 = vshrl.u32 %v3580, 7
        %v3582 = vsub.s32 3, %v3581
        %v3583 = vrot.slane %v1502, %v3582
        %v3584 = vlaneseq
        %v3585 = vshrl.u32 %v3584, 7
        %v3586 = vsub.s32 3, %v3585
        %v3587 = vrot.slane %v1504, %v3586
        %v3588 = vlaneseq
        %v3589 = vshrl.u32 %v3588, 7
        %v3590 = vsub.s32 3, %v3589
        %v3591 = vrot.slane %v1506, %v3590
        %v3592 = vlaneseq
        %v3593 = vshrl.u32 %v3592, 7
        %v3594 = vsub.s32 3, %v3593
        %v3595 = vrot.slane %v1508, %v3594
        %v3596 = vlaneseq
        %v3597 = vshrl.u32 %v3596, 7
        %v3598 = vsub.s32 3, %v3597
        %v3599 = vrot.slane %v1510, %v3598
        %v3600 = vlaneseq
        %v3601 = vshrl.u32 %v3600, 7
        %v3602 = vsub.s32 3, %v3601
        %v3603 = vrot.slane %v1512, %v3602
        %v3604 = vlaneseq
        %v3605 = vshrl.u32 %v3604, 7
        %v3606 = vsub.s32 3, %v3605
        %v3607 = vrot.slane %v1514, %v3606
        %v3608 = vlaneseq
        %v3609 = vshrl.u32 %v3608, 7
        %v3610 = vsub.s32 3, %v3609
        %v3611 = vrot.slane %v1516, %v3610
        %v3612 = vlaneseq
        %v3613 = vshrl.u32 %v3612, 7
        %v3614 = vsub.s32 3, %v3613
        %v3615 = vrot.slane %v1518, %v3614
        %v3616 = vlaneseq
        %v3617 = vshrl.u32 %v3616, 7
        %v3618 = vsub.s32 3, %v3617
        %v3619 = vrot.slane %v1520, %v3618
        %v3620 = vlaneseq
        %v3621 = vshrl.u32 %v3620, 7
        %v3622 = vsub.s32 3, %v3621
        %v3623 = vrot.slane %v1522, %v3622
        %v3624 = vmul.f32 %v3563, %v2142
        %v3625 = vmul.f32 %v3563, %v2143
        %v3626 = vmul.f32 %v3567, %v2142
        %v3627 = vmul.f32 %v3567, %v2143
        %v3628 = vmul.f32 %v3571, %v2142
        %v3629 = vmul.f32 %v3571, %v2143
        %v3630 = vmul.f32 %v3575, %v2142
        %v3631 = vmul.f32 %v3575, %v2143
        %v3632 = vmul.f32 %v3579, %v2142
        %v3633 = vmul.f32 %v3579, %v2143
        %v3634 = vmul.f32 %v3583, %v2142
        %v3635 = vmul.f32 %v3583, %v2143
        %v3636 = vmul.f32 %v3587, %v2142
        %v3637 = vmul.f32 %v3587, %v2143
        %v3638 = vmul.f32 %v3591, %v2142
        %v3639 = vmul.f32 %v3591, %v2143
        %v3640 = vmul.f32 %v3595, %v2142
        %v3641 = vmul.f32 %v3595, %v2143
        %v3642 = vmul.f32 %v3599, %v2142
        %v3643 = vmul.f32 %v3599, %v2143
        %v3644 = vmul.f32 %v3603, %v2142
        %v3645 = vmul.f32 %v3603, %v2143
        %v3646 = vmul.f32 %v3607, %v2142
        %v3647 = vmul.f32 %v3607, %v2143
        %v3648 = vmul.f32 %v3611, %v2142
        %v3649 = vmul.f32 %v3611, %v2143
        %v3650 = vmul.f32 %v3615, %v2142
        %v3651 = vmul.f32 %v3615, %v2143
        %v3652 = vmul.f32 %v3619, %v2142
        %v3653 = vmul.f32 %v3619, %v2143
        %v3654 = vmul.f32 %v3623, %v2142
        %v3655 = vmul.f32 %v3623, %v2143
        %v3656 = vadd.f32 %v3528, %v3624
        %v3657 = vadd.f32 %v3529, %v3625
        %v3658 = vadd.f32 %v3530, %v3626
        %v3659 = vadd.f32 %v3531, %v3627
        %v3660 = vadd.f32 %v3532, %v3628
        %v3661 = vadd.f32 %v3533, %v3629
        %v3662 = vadd.f32 %v3534, %v3630
        %v3663 = vadd.f32 %v3535, %v3631
        %v3664 = vadd.f32 %v3536, %v3632
        %v3665 = vadd.f32 %v3537, %v3633
        %v3666 = vadd.f32 %v3538, %v3634
        %v3667 = vadd.f32 %v3539, %v3635
        %v3668 = vadd.f32 %v3540, %v3636
        %v3669 = vadd.f32 %v3541, %v3637
        %v3670 = vadd.f32 %v3542, %v3638
        %v3671 = vadd.f32 %v3543, %v3639
        %v3672 = vadd.f32 %v3544, %v3640
        %v3673 = vadd.f32 %v3545, %v3641
        %v3674 = vadd.f32 %v3546, %v3642
        %v3675 = vadd.f32 %v3547, %v3643
        %v3676 = vadd.f32 %v3548, %v3644
        %v3677 = vadd.f32 %v3549, %v3645
        %v3678 = vadd.f32 %v3550, %v3646
        %v3679 = vadd.f32 %v3551, %v3647
        %v3680 = vadd.f32 %v3552, %v3648
        %v3681 = vadd.f32 %v3553, %v3649
        %v3682 = vadd.f32 %v3554, %v3650
        %v3683 = vadd.f32 %v3555, %v3651
        %v3684 = vadd.f32 %v3556, %v3652
        %v3685 = vadd.f32 %v3557, %v3653
        %v3686 = vadd.f32 %v3558, %v3654
        %v3687 = vadd.f32 %v3559, %v3655
        %v3688 = vlaneseq
        %v3689 = vshrl.u32 %v3688, 7
        %v3690 = vsub.s32 4, %v3689
        %v3691 = vrot.slane %v1492, %v3690
        %v3692 = vlaneseq
        %v3693 = vshrl.u32 %v3692, 7
        %v3694 = vsub.s32 4, %v3693
        %v3695 = vrot.slane %v1494, %v3694
        %v3696 = vlaneseq
        %v3697 = vshrl.u32 %v3696, 7
        %v3698 = vsub.s32 4, %v3697
        %v3699 = vrot.slane %v1496, %v3698
        %v3700 = vlaneseq
        %v3701 = vshrl.u32 %v3700, 7
        %v3702 = vsub.s32 4, %v3701
        %v3703 = vrot.slane %v1498, %v3702
        %v3704 = vlaneseq
        %v3705 = vshrl.u32 %v3704, 7
        %v3706 = vsub.s32 4, %v3705
        %v3707 = vrot.slane %v1500, %v3706
        %v3708 = vlaneseq
        %v3709 = vshrl.u32 %v3708, 7
        %v3710 = vsub.s32 4, %v3709
        %v3711 = vrot.slane %v1502, %v3710
        %v3712 = vlaneseq
        %v3713 = vshrl.u32 %v3712, 7
        %v3714 = vsub.s32 4, %v3713
        %v3715 = vrot.slane %v1504, %v3714
        %v3716 = vlaneseq
        %v3717 = vshrl.u32 %v3716, 7
        %v3718 = vsub.s32 4, %v3717
        %v3719 = vrot.slane %v1506, %v3718
        %v3720 = vlaneseq
        %v3721 = vshrl.u32 %v3720, 7
        %v3722 = vsub.s32 4, %v3721
        %v3723 = vrot.slane %v1508, %v3722
        %v3724 = vlaneseq
        %v3725 = vshrl.u32 %v3724, 7
        %v3726 = vsub.s32 4, %v3725
        %v3727 = vrot.slane %v1510, %v3726
        %v3728 = vlaneseq
        %v3729 = vshrl.u32 %v3728, 7
        %v3730 = vsub.s32 4, %v3729
        %v3731 = vrot.slane %v1512, %v3730
        %v3732 = vlaneseq
        %v3733 = vshrl.u32 %v3732, 7
        %v3734 = vsub.s32 4, %v3733
        %v3735 = vrot.slane %v1514, %v3734
        %v3736 = vlaneseq
        %v3737 = vshrl.u32 %v3736, 7
        %v3738 = vsub.s32 4, %v3737
        %v3739 = vrot.slane %v1516, %v3738
        %v3740 = vlaneseq
        %v3741 = vshrl.u32 %v3740, 7
        %v3742 = vsub.s32 4, %v3741
        %v3743 = vrot.slane %v1518, %v3742
        %v3744 = vlaneseq
        %v3745 = vshrl.u32 %v3744, 7
        %v3746 = vsub.s32 4, %v3745
        %v3747 = vrot.slane %v1520, %v3746
        %v3748 = vlaneseq
        %v3749 = vshrl.u32 %v3748, 7
        %v3750 = vsub.s32 4, %v3749
        %v3751 = vrot.slane %v1522, %v3750
        %v3752 = vmul.f32 %v3691, %v2144
        %v3753 = vmul.f32 %v3691, %v2145
        %v3754 = vmul.f32 %v3695, %v2144
        %v3755 = vmul.f32 %v3695, %v2145
        %v3756 = vmul.f32 %v3699, %v2144
        %v3757 = vmul.f32 %v3699, %v2145
        %v3758 = vmul.f32 %v3703, %v2144
        %v3759 = vmul.f32 %v3703, %v2145
        %v3760 = vmul.f32 %v3707, %v2144
        %v3761 = vmul.f32 %v3707, %v2145
        %v3762 = vmul.f32 %v3711, %v2144
        %v3763 = vmul.f32 %v3711, %v2145
        %v3764 = vmul.f32 %v3715, %v2144
        %v3765 = vmul.f32 %v3715, %v2145
        %v3766 = vmul.f32 %v3719, %v2144
        %v3767 = vmul.f32 %v3719, %v2145
        %v3768 = vmul.f32 %v3723, %v2144
        %v3769 = vmul.f32 %v3723, %v2145
        %v3770 = vmul.f32 %v3727, %v2144
        %v3771 = vmul.f32 %v3727, %v2145
        %v3772 = vmul.f32 %v3731, %v2144
        %v3773 = vmul.f32 %v3731, %v2145
        %v3774 = vmul.f32 %v3735, %v2144
        %v3775 = vmul.f32 %v3735, %v2145
        %v3776 = vmul.f32 %v3739, %v2144
        %v3777 = vmul.f32 %v3739, %v2145
        %v3778 = vmul.f32 %v3743, %v2144
        %v3779 = vmul.f32 %v3743, %v2145
        %v3780 = vmul.f32 %v3747, %v2144
        %v3781 = vmul.f32 %v3747, %v2145
        %v3782 = vmul.f32 %v3751, %v2144
        %v3783 = vmul.f32 %v3751, %v2145
        %v3784 = vadd.f32 %v3656, %v3752
        %v3785 = vadd.f32 %v3657, %v3753
        %v3786 = vadd.f32 %v3658, %v3754
        %v3787 = vadd.f32 %v3659, %v3755
        %v3788 = vadd.f32 %v3660, %v3756
        %v3789 = vadd.f32 %v3661, %v3757
        %v3790 = vadd.f32 %v3662, %v3758
        %v3791 = vadd.f32 %v3663, %v3759
        %v3792 = vadd.f32 %v3664, %v3760
        %v3793 = vadd.f32 %v3665, %v3761
        %v3794 = vadd.f32 %v3666, %v3762
        %v3795 = vadd.f32 %v3667, %v3763
        %v3796 = vadd.f32 %v3668, %v3764
        %v3797 = vadd.f32 %v3669, %v3765
        %v3798 = vadd.f32 %v3670, %v3766
        %v3799 = vadd.f32 %v3671, %v3767
        %v3800 = vadd.f32 %v3672, %v3768
        %v3801 = vadd.f32 %v3673, %v3769
        %v3802 = vadd.f32 %v3674, %v3770
        %v3803 = vadd.f32 %v3675, %v3771
        %v3804 = vadd.f32 %v3676, %v3772
        %v3805 = vadd.f32 %v3677, %v3773
        %v3806 = vadd.f32 %v3678, %v3774
        %v3807 = vadd.f32 %v3679, %v3775
        %v3808 = vadd.f32 %v3680, %v3776
        %v3809 = vadd.f32 %v3681, %v3777
        %v3810 = vadd.f32 %v3682, %v3778
        %v3811 = vadd.f32 %v3683, %v3779
        %v3812 = vadd.f32 %v3684, %v3780
        %v3813 = vadd.f32 %v3685, %v3781
        %v3814 = vadd.f32 %v3686, %v3782
        %v3815 = vadd.f32 %v3687, %v3783
        %v3816 = vlaneseq
        %v3817 = vshrl.u32 %v3816, 7
        %v3818 = vsub.s32 5, %v3817
        %v3819 = vrot.slane %v1492, %v3818
        %v3820 = vlaneseq
        %v3821 = vshrl.u32 %v3820, 7
        %v3822 = vsub.s32 5, %v3821
        %v3823 = vrot.slane %v1494, %v3822
        %v3824 = vlaneseq
        %v3825 = vshrl.u32 %v3824, 7
        %v3826 = vsub.s32 5, %v3825
        %v3827 = vrot.slane %v1496, %v3826
        %v3828 = vlaneseq
        %v3829 = vshrl.u32 %v3828, 7
        %v3830 = vsub.s32 5, %v3829
        %v3831 = vrot.slane %v1498, %v3830
        %v3832 = vlaneseq
        %v3833 = vshrl.u32 %v3832, 7
        %v3834 = vsub.s32 5, %v3833
        %v3835 = vrot.slane %v1500, %v3834
        %v3836 = vlaneseq
        %v3837 = vshrl.u32 %v3836, 7
        %v3838 = vsub.s32 5, %v3837
        %v3839 = vrot.slane %v1502, %v3838
        %v3840 = vlaneseq
        %v3841 = vshrl.u32 %v3840, 7
        %v3842 = vsub.s32 5, %v3841
        %v3843 = vrot.slane %v1504, %v3842
        %v3844 = vlaneseq
        %v3845 = vshrl.u32 %v3844, 7
        %v3846 = vsub.s32 5, %v3845
        %v3847 = vrot.slane %v1506, %v3846
        %v3848 = vlaneseq
        %v3849 = vshrl.u32 %v3848, 7
        %v3850 = vsub.s32 5, %v3849
        %v3851 = vrot.slane %v1508, %v3850
        %v3852 = vlaneseq
        %v3853 = vshrl.u32 %v3852, 7
        %v3854 = vsub.s32 5, %v3853
        %v3855 = vrot.slane %v1510, %v3854
        %v3856 = vlaneseq
        %v3857 = vshrl.u32 %v3856, 7
        %v3858 = vsub.s32 5, %v3857
        %v3859 = vrot.slane %v1512, %v3858
        %v3860 = vlaneseq
        %v3861 = vshrl.u32 %v3860, 7
        %v3862 = vsub.s32 5, %v3861
        %v3863 = vrot.slane %v1514, %v3862
        %v3864 = vlaneseq
        %v3865 = vshrl.u32 %v3864, 7
        %v3866 = vsub.s32 5, %v3865
        %v3867 = vrot.slane %v1516, %v3866
        %v3868 = vlaneseq
        %v3869 = vshrl.u32 %v3868, 7
        %v3870 = vsub.s32 5, %v3869
        %v3871 = vrot.slane %v1518, %v3870
        %v3872 = vlaneseq
        %v3873 = vshrl.u32 %v3872, 7
        %v3874 = vsub.s32 5, %v3873
        %v3875 = vrot.slane %v1520, %v3874
        %v3876 = vlaneseq
        %v3877 = vshrl.u32 %v3876, 7
        %v3878 = vsub.s32 5, %v3877
        %v3879 = vrot.slane %v1522, %v3878
        %v3880 = vmul.f32 %v3819, %v2146
        %v3881 = vmul.f32 %v3819, %v2147
        %v3882 = vmul.f32 %v3823, %v2146
        %v3883 = vmul.f32 %v3823, %v2147
        %v3884 = vmul.f32 %v3827, %v2146
        %v3885 = vmul.f32 %v3827, %v2147
        %v3886 = vmul.f32 %v3831, %v2146
        %v3887 = vmul.f32 %v3831, %v2147
        %v3888 = vmul.f32 %v3835, %v2146
        %v3889 = vmul.f32 %v3835, %v2147
        %v3890 = vmul.f32 %v3839, %v2146
        %v3891 = vmul.f32 %v3839, %v2147
        %v3892 = vmul.f32 %v3843, %v2146
        %v3893 = vmul.f32 %v3843, %v2147
        %v3894 = vmul.f32 %v3847, %v2146
        %v3895 = vmul.f32 %v3847, %v2147
        %v3896 = vmul.f32 %v3851, %v2146
        %v3897 = vmul.f32 %v3851, %v2147
        %v3898 = vmul.f32 %v3855, %v2146
        %v3899 = vmul.f32 %v3855, %v2147
        %v3900 = vmul.f32 %v3859, %v2146
        %v3901 = vmul.f32 %v3859, %v2147
        %v3902 = vmul.f32 %v3863, %v2146
        %v3903 = vmul.f32 %v3863, %v2147
        %v3904 = vmul.f32 %v3867, %v2146
        %v3905 = vmul.f32 %v3867, %v2147
        %v3906 = vmul.f32 %v3871, %v2146
        %v3907 = vmul.f32 %v3871, %v2147
        %v3908 = vmul.f32 %v3875, %v2146
        %v3909 = vmul.f32 %v3875, %v2147
        %v3910 = vmul.f32 %v3879, %v2146
        %v3911 = vmul.f32 %v3879, %v2147
        %v3912 = vadd.f32 %v3784, %v3880
        %v3913 = vadd.f32 %v3785, %v3881
        %v3914 = vadd.f32 %v3786, %v3882
        %v3915 = vadd.f32 %v3787, %v3883
        %v3916 = vadd.f32 %v3788, %v3884
        %v3917 = vadd.f32 %v3789, %v3885
        %v3918 = vadd.f32 %v3790, %v3886
        %v3919 = vadd.f32 %v3791, %v3887
        %v3920 = vadd.f32 %v3792, %v3888
        %v3921 = vadd.f32 %v3793, %v3889
        %v3922 = vadd.f32 %v3794, %v3890
        %v3923 = vadd.f32 %v3795, %v3891
        %v3924 = vadd.f32 %v3796, %v3892
        %v3925 = vadd.f32 %v3797, %v3893
        %v3926 = vadd.f32 %v3798, %v3894
        %v3927 = vadd.f32 %v3799, %v3895
        %v3928 = vadd.f32 %v3800, %v3896
        %v3929 = vadd.f32 %v3801, %v3897
        %v3930 = vadd.f32 %v3802, %v3898
        %v3931 = vadd.f32 %v3803, %v3899
        %v3932 = vadd.f32 %v3804, %v3900
        %v3933 = vadd.f32 %v3805, %v3901
        %v3934 = vadd.f32 %v3806, %v3902
        %v3935 = vadd.f32 %v3807, %v3903
        %v3936 = vadd.f32 %v3808, %v3904
        %v3937 = vadd.f32 %v3809, %v3905
        %v3938 = vadd.f32 %v3810, %v3906
        %v3939 = vadd.f32 %v3811, %v3907
        %v3940 = vadd.f32 %v3812, %v3908
        %v3941 = vadd.f32 %v3813, %v3909
        %v3942 = vadd.f32 %v3814, %v3910
        %v3943 = vadd.f32 %v3815, %v3911
        %v3944 = vlaneseq
        %v3945 = vshrl.u32 %v3944, 7
        %v3946 = vsub.s32 6, %v3945
        %v3947 = vrot.slane %v1492, %v3946
        %v3948 = vlaneseq
        %v3949 = vshrl.u32 %v3948, 7
        %v3950 = vsub.s32 6, %v3949
        %v3951 = vrot.slane %v1494, %v3950
        %v3952 = vlaneseq
        %v3953 = vshrl.u32 %v3952, 7
        %v3954 = vsub.s32 6, %v3953
        %v3955 = vrot.slane %v1496, %v3954
        %v3956 = vlaneseq
        %v3957 = vshrl.u32 %v3956, 7
        %v3958 = vsub.s32 6, %v3957
        %v3959 = vrot.slane %v1498, %v3958
        %v3960 = vlaneseq
        %v3961 = vshrl.u32 %v3960, 7
        %v3962 = vsub.s32 6, %v3961
        %v3963 = vrot.slane %v1500, %v3962
        %v3964 = vlaneseq
        %v3965 = vshrl.u32 %v3964, 7
        %v3966 = vsub.s32 6, %v3965
        %v3967 = vrot.slane %v1502, %v3966
        %v3968 = vlaneseq
        %v3969 = vshrl.u32 %v3968, 7
        %v3970 = vsub.s32 6, %v3969
        %v3971 = vrot.slane %v1504, %v3970
        %v3972 = vlaneseq
        %v3973 = vshrl.u32 %v3972, 7
        %v3974 = vsub.s32 6, %v3973
        %v3975 = vrot.slane %v1506, %v3974
        %v3976 = vlaneseq
        %v3977 = vshrl.u32 %v3976, 7
        %v3978 = vsub.s32 6, %v3977
        %v3979 = vrot.slane %v1508, %v3978
        %v3980 = vlaneseq
        %v3981 = vshrl.u32 %v3980, 7
        %v3982 = vsub.s32 6, %v3981
        %v3983 = vrot.slane %v1510, %v3982
        %v3984 = vlaneseq
        %v3985 = vshrl.u32 %v3984, 7
        %v3986 = vsub.s32 6, %v3985
        %v3987 = vrot.slane %v1512, %v3986
        %v3988 = vlaneseq
        %v3989 = vshrl.u32 %v3988, 7
        %v3990 = vsub.s32 6, %v3989
        %v3991 = vrot.slane %v1514, %v3990
        %v3992 = vlaneseq
        %v3993 = vshrl.u32 %v3992, 7
        %v3994 = vsub.s32 6, %v3993
        %v3995 = vrot.slane %v1516, %v3994
        %v3996 = vlaneseq
        %v3997 = vshrl.u32 %v3996, 7
        %v3998 = vsub.s32 6, %v3997
        %v3999 = vrot.slane %v1518, %v3998
        %v4000 = vlaneseq
        %v4001 = vshrl.u32 %v4000, 7
        %v4002 = vsub.s32 6, %v4001
        %v4003 = vrot.slane %v1520, %v4002
        %v4004 = vlaneseq
        %v4005 = vshrl.u32 %v4004, 7
        %v4006 = vsub.s32 6, %v4005
        %v4007 = vrot.slane %v1522, %v4006
        %v4008 = vmul.f32 %v3947, %v2148
        %v4009 = vmul.f32 %v3947, %v2149
        %v4010 = vmul.f32 %v3951, %v2148
        %v4011 = vmul.f32 %v3951, %v2149
        %v4012 = vmul.f32 %v3955, %v2148
        %v4013 = vmul.f32 %v3955, %v2149
        %v4014 = vmul.f32 %v3959, %v2148
        %v4015 = vmul.f32 %v3959, %v2149
        %v4016 = vmul.f32 %v3963, %v2148
        %v4017 = vmul.f32 %v3963, %v2149
        %v4018 = vmul.f32 %v3967, %v2148
        %v4019 = vmul.f32 %v3967, %v2149
        %v4020 = vmul.f32 %v3971, %v2148
        %v4021 = vmul.f32 %v3971, %v2149
        %v4022 = vmul.f32 %v3975, %v2148
        %v4023 = vmul.f32 %v3975, %v2149
        %v4024 = vmul.f32 %v3979, %v2148
        %v4025 = vmul.f32 %v3979, %v2149
        %v4026 = vmul.f32 %v3983, %v2148
        %v4027 = vmul.f32 %v3983, %v2149
        %v4028 = vmul.f32 %v3987, %v2148
        %v4029 = vmul.f32 %v3987, %v2149
        %v4030 = vmul.f32 %v3991, %v2148
        %v4031 = vmul.f32 %v3991, %v2149
        %v4032 = vmul.f32 %v3995, %v2148
        %v4033 = vmul.f32 %v3995, %v2149
        %v4034 = vmul.f32 %v3999, %v2148
        %v4035 = vmul.f32 %v3999, %v2149
        %v4036 = vmul.f32 %v4003, %v2148
        %v4037 = vmul.f32 %v4003, %v2149
        %v4038 = vmul.f32 %v4007, %v2148
        %v4039 = vmul.f32 %v4007, %v2149
        %v4040 = vadd.f32 %v3912, %v4008
        %v4041 = vadd.f32 %v3913, %v4009
        %v4042 = vadd.f32 %v3914, %v4010
        %v4043 = vadd.f32 %v3915, %v4011
        %v4044 = vadd.f32 %v3916, %v4012
        %v4045 = vadd.f32 %v3917, %v4013
        %v4046 = vadd.f32 %v3918, %v4014
        %v4047 = vadd.f32 %v3919, %v4015
        %v4048 = vadd.f32 %v3920, %v4016
        %v4049 = vadd.f32 %v3921, %v4017
        %v4050 = vadd.f32 %v3922, %v4018
        %v4051 = vadd.f32 %v3923, %v4019
        %v4052 = vadd.f32 %v3924, %v4020
        %v4053 = vadd.f32 %v3925, %v4021
        %v4054 = vadd.f32 %v3926, %v4022
        %v4055 = vadd.f32 %v3927, %v4023
        %v4056 = vadd.f32 %v3928, %v4024
        %v4057 = vadd.f32 %v3929, %v4025
        %v4058 = vadd.f32 %v3930, %v4026
        %v4059 = vadd.f32 %v3931, %v4027
        %v4060 = vadd.f32 %v3932, %v4028
        %v4061 = vadd.f32 %v3933, %v4029
        %v4062 = vadd.f32 %v3934, %v4030
        %v4063 = vadd.f32 %v3935, %v4031
        %v4064 = vadd.f32 %v3936, %v4032
        %v4065 = vadd.f32 %v3937, %v4033
        %v4066 = vadd.f32 %v3938, %v4034
        %v4067 = vadd.f32 %v3939, %v4035
        %v4068 = vadd.f32 %v3940, %v4036
        %v4069 = vadd.f32 %v3941, %v4037
        %v4070 = vadd.f32 %v3942, %v4038
        %v4071 = vadd.f32 %v3943, %v4039
        %v4072 = vlaneseq
        %v4073 = vshrl.u32 %v4072, 7
        %v4074 = vsub.s32 7, %v4073
        %v4075 = vrot.slane %v1492, %v4074
        %v4076 = vlaneseq
        %v4077 = vshrl.u32 %v4076, 7
        %v4078 = vsub.s32 7, %v4077
        %v4079 = vrot.slane %v1494, %v4078
        %v4080 = vlaneseq
        %v4081 = vshrl.u32 %v4080, 7
        %v4082 = vsub.s32 7, %v4081
        %v4083 = vrot.slane %v1496, %v4082
        %v4084 = vlaneseq
        %v4085 = vshrl.u32 %v4084, 7
        %v4086 = vsub.s32 7, %v4085
        %v4087 = vrot.slane %v1498, %v4086
        %v4088 = vlaneseq
        %v4089 = vshrl.u32 %v4088, 7
        %v4090 = vsub.s32 7, %v4089
        %v4091 = vrot.slane %v1500, %v4090
        %v4092 = vlaneseq
        %v4093 = vshrl.u32 %v4092, 7
        %v4094 = vsub.s32 7, %v4093
        %v4095 = vrot.slane %v1502, %v4094
        %v4096 = vlaneseq
        %v4097 = vshrl.u32 %v4096, 7
        %v4098 = vsub.s32 7, %v4097
        %v4099 = vrot.slane %v1504, %v4098
        %v4100 = vlaneseq
        %v4101 = vshrl.u32 %v4100, 7
        %v4102 = vsub.s32 7, %v4101
        %v4103 = vrot.slane %v1506, %v4102
        %v4104 = vlaneseq
        %v4105 = vshrl.u32 %v4104, 7
        %v4106 = vsub.s32 7, %v4105
        %v4107 = vrot.slane %v1508, %v4106
        %v4108 = vlaneseq
        %v4109 = vshrl.u32 %v4108, 7
        %v4110 = vsub.s32 7, %v4109
        %v4111 = vrot.slane %v1510, %v4110
        %v4112 = vlaneseq
        %v4113 = vshrl.u32 %v4112, 7
        %v4114 = vsub.s32 7, %v4113
        %v4115 = vrot.slane %v1512, %v4114
        %v4116 = vlaneseq
        %v4117 = vshrl.u32 %v4116, 7
        %v4118 = vsub.s32 7, %v4117
        %v4119 = vrot.slane %v1514, %v4118
        %v4120 = vlaneseq
        %v4121 = vshrl.u32 %v4120, 7
        %v4122 = vsub.s32 7, %v4121
        %v4123 = vrot.slane %v1516, %v4122
        %v4124 = vlaneseq
        %v4125 = vshrl.u32 %v4124, 7
        %v4126 = vsub.s32 7, %v4125
        %v4127 = vrot.slane %v1518, %v4126
        %v4128 = vlaneseq
        %v4129 = vshrl.u32 %v4128, 7
        %v4130 = vsub.s32 7, %v4129
        %v4131 = vrot.slane %v1520, %v4130
        %v4132 = vlaneseq
        %v4133 = vshrl.u32 %v4132, 7
        %v4134 = vsub.s32 7, %v4133
        %v4135 = vrot.slane %v1522, %v4134
        %v4136 = vmul.f32 %v4075, %v2150
        %v4137 = vmul.f32 %v4075, %v2151
        %v4138 = vmul.f32 %v4079, %v2150
        %v4139 = vmul.f32 %v4079, %v2151
        %v4140 = vmul.f32 %v4083, %v2150
        %v4141 = vmul.f32 %v4083, %v2151
        %v4142 = vmul.f32 %v4087, %v2150
        %v4143 = vmul.f32 %v4087, %v2151
        %v4144 = vmul.f32 %v4091, %v2150
        %v4145 = vmul.f32 %v4091, %v2151
        %v4146 = vmul.f32 %v4095, %v2150
        %v4147 = vmul.f32 %v4095, %v2151
        %v4148 = vmul.f32 %v4099, %v2150
        %v4149 = vmul.f32 %v4099, %v2151
        %v4150 = vmul.f32 %v4103, %v2150
        %v4151 = vmul.f32 %v4103, %v2151
        %v4152 = vmul.f32 %v4107, %v2150
        %v4153 = vmul.f32 %v4107, %v2151
        %v4154 = vmul.f32 %v4111, %v2150
        %v4155 = vmul.f32 %v4111, %v2151
        %v4156 = vmul.f32 %v4115, %v2150
        %v4157 = vmul.f32 %v4115, %v2151
        %v4158 = vmul.f32 %v4119, %v2150
        %v4159 = vmul.f32 %v4119, %v2151
        %v4160 = vmul.f32 %v4123, %v2150
        %v4161 = vmul.f32 %v4123, %v2151
        %v4162 = vmul.f32 %v4127, %v2150
        %v4163 = vmul.f32 %v4127, %v2151
        %v4164 = vmul.f32 %v4131, %v2150
        %v4165 = vmul.f32 %v4131, %v2151
        %v4166 = vmul.f32 %v4135, %v2150
        %v4167 = vmul.f32 %v4135, %v2151
        %v4168 = vadd.f32 %v4040, %v4136
        %v4169 = vadd.f32 %v4041, %v4137
        %v4170 = vadd.f32 %v4042, %v4138
        %v4171 = vadd.f32 %v4043, %v4139
        %v4172 = vadd.f32 %v4044, %v4140
        %v4173 = vadd.f32 %v4045, %v4141
        %v4174 = vadd.f32 %v4046, %v4142
        %v4175 = vadd.f32 %v4047, %v4143
        %v4176 = vadd.f32 %v4048, %v4144
        %v4177 = vadd.f32 %v4049, %v4145
        %v4178 = vadd.f32 %v4050, %v4146
        %v4179 = vadd.f32 %v4051, %v4147
        %v4180 = vadd.f32 %v4052, %v4148
        %v4181 = vadd.f32 %v4053, %v4149
        %v4182 = vadd.f32 %v4054, %v4150
        %v4183 = vadd.f32 %v4055, %v4151
        %v4184 = vadd.f32 %v4056, %v4152
        %v4185 = vadd.f32 %v4057, %v4153
        %v4186 = vadd.f32 %v4058, %v4154
        %v4187 = vadd.f32 %v4059, %v4155
        %v4188 = vadd.f32 %v4060, %v4156
        %v4189 = vadd.f32 %v4061, %v4157
        %v4190 = vadd.f32 %v4062, %v4158
        %v4191 = vadd.f32 %v4063, %v4159
        %v4192 = vadd.f32 %v4064, %v4160
        %v4193 = vadd.f32 %v4065, %v4161
        %v4194 = vadd.f32 %v4066, %v4162
        %v4195 = vadd.f32 %v4067, %v4163
        %v4196 = vadd.f32 %v4068, %v4164
        %v4197 = vadd.f32 %v4069, %v4165
        %v4198 = vadd.f32 %v4070, %v4166
        %v4199 = vadd.f32 %v4071, %v4167
        %v4200 = vld [vmem:[%s13] sm:$0xf]
        %v4201 = vld [vmem:[%s12] sm:$0xff]
        %v4203 = vsel %vm1169, %v4168, 0
        %v4206 = vsel %vm1169, %v4169, 0
        %v4209 = vsel %vm1169, %v4170, 0
        %v4212 = vsel %vm1169, %v4171, 0
        %v4215 = vsel %vm1169, %v4172, 0
        %v4218 = vsel %vm1169, %v4173, 0
        %v4221 = vsel %vm1169, %v4174, 0
        %v4224 = vsel %vm1169, %v4175, 0
        %v4227 = vsel %vm1169, %v4176, 0
        %v4230 = vsel %vm1169, %v4177, 0
        %v4233 = vsel %vm1169, %v4178, 0
        %v4236 = vsel %vm1169, %v4179, 0
        %v4239 = vsel %vm1169, %v4180, 0
        %v4242 = vsel %vm1169, %v4181, 0
        %v4245 = vsel %vm1169, %v4182, 0
        %v4248 = vsel %vm1169, %v4183, 0
        %v4251 = vsel %vm1169, %v4184, 0
        %v4254 = vsel %vm1169, %v4185, 0
        %v4257 = vsel %vm1169, %v4186, 0
        %v4260 = vsel %vm1169, %v4187, 0
        %v4263 = vsel %vm1169, %v4188, 0
        %v4266 = vsel %vm1169, %v4189, 0
        %v4269 = vsel %vm1169, %v4190, 0
        %v4272 = vsel %vm1169, %v4191, 0
        %v4275 = vsel %vm1169, %v4192, 0
        %v4278 = vsel %vm1169, %v4193, 0
        %v4281 = vsel %vm1169, %v4194, 0
        %v4284 = vsel %vm1169, %v4195, 0
        %v4287 = vsel %vm1169, %v4196, 0
        %v4290 = vsel %vm1169, %v4197, 0
        %v4293 = vsel %vm1169, %v4198, 0
        %v4296 = vsel %vm1169, %v4199, 0
        %4298 = vmatprep.subr.mxu0 0.0
        %4299 = vmatpush1.msra.mxu0 0.0
        %4300 = vmatprep.subr.mxu0 0.0
        %4301 = vmatpush1.msra.mxu0 0.0
        %4302 = vmatprep.subr.mxu0 0.0
        %4303 = vmatpush1.msra.mxu0 0.0
        %4304 = vmatprep.subr.mxu0 0.0
        %4305 = vmatpush1.msra.mxu0 0.0
        %4306 = vmatprep.subr.mxu0 0.0
        %4307 = vmatpush1.msra.mxu0 0.0
        %4308 = vmatprep.subr.mxu0 0.0
        %4309 = vmatpush1.msra.mxu0 0.0
        %4310 = vmatprep.subr.mxu0 0.0
        %4311 = vmatpush1.msra.mxu0 0.0
        %4312 = vmatprep.subr.mxu0 0.0
        %4313 = vmatpush1.msra.mxu0 0.0
        %4314 = vmatprep.subr.mxu0 0.0
        %4315 = vmatpush1.msra.mxu0 0.0
        %4316 = vmatprep.subr.mxu0 0.0
        %4317 = vmatpush1.msra.mxu0 0.0
        %4318 = vmatprep.subr.mxu0 0.0
        %4319 = vmatpush1.msra.mxu0 0.0
        %4320 = vmatprep.subr.mxu0 0.0
        %4321 = vmatpush1.msra.mxu0 0.0
        %4322 = vmatprep.subr.mxu0 0.0
        %4323 = vmatpush1.msra.mxu0 0.0
        %4324 = vmatprep.subr.mxu0 0.0
        %4325 = vmatpush1.msra.mxu0 0.0
        %4326 = vmatprep.subr.mxu0 0.0
        %4327 = vmatpush1.msra.mxu0 0.0
        %4328 = vmatprep.subr.mxu0 0.0
        %4329 = vmatpush1.msra.mxu0 %v4201
        %4330 = vmatprep.subr.mxu0 0.0
        %4331 = vmatpush2.msra.mxu0 0.0
        %4332 = vmatprep.subr.mxu0 0.0
        %4333 = vmatpush2.msra.mxu0 0.0
        %4334 = vmatprep.subr.mxu0 0.0
        %4335 = vmatpush2.msra.mxu0 0.0
        %4336 = vmatprep.subr.mxu0 0.0
        %4337 = vmatpush2.msra.mxu0 0.0
        %4338 = vmatprep.subr.mxu0 0.0
        %4339 = vmatpush2.msra.mxu0 0.0
        %4340 = vmatprep.subr.mxu0 0.0
        %4341 = vmatpush2.msra.mxu0 0.0
        %4342 = vmatprep.subr.mxu0 0.0
        %4343 = vmatpush2.msra.mxu0 0.0
        %4344 = vmatprep.subr.mxu0 0.0
        %4345 = vmatpush2.msra.mxu0 0.0
        %4346 = vmatprep.subr.mxu0 0.0
        %4347 = vmatpush2.msra.mxu0 0.0
        %4348 = vmatprep.subr.mxu0 0.0
        %4349 = vmatpush2.msra.mxu0 0.0
        %4350 = vmatprep.subr.mxu0 0.0
        %4351 = vmatpush2.msra.mxu0 0.0
        %4352 = vmatprep.subr.mxu0 0.0
        %4353 = vmatpush2.msra.mxu0 0.0
        %4354 = vmatprep.subr.mxu0 0.0
        %4355 = vmatpush2.msra.mxu0 0.0
        %4356 = vmatprep.subr.mxu0 0.0
        %4357 = vmatpush2.msra.mxu0 0.0
        %4358 = vmatprep.subr.mxu0 0.0
        %4359 = vmatpush2.msra.mxu0 0.0
        %4360 = vmatprep.subr.mxu0 0.0
        %4361 = vmatpush2.msra.mxu0 0.0
        %4362 = vmatprep.mubr.f32.mxu0 0.0
        %4363 = vmatmul.mubr.f32.gmra.mxu0 %v4203
        %v4364 = vpop.f32.mrf.mxu0
        %v4365 = vadd.f32 0.0, %v4364
        %v4366 = vpop.f32.mrf.mxu0
        %4367 = vmatprep.mubr.f32.mxu0 0.0
        %4368 = vmatmul.mubr.f32.gmra.mxu0 %v4206
        %v4369 = vpop.f32.mrf.mxu0
        %v4370 = vadd.f32 0.0, %v4369
        %v4371 = vpop.f32.mrf.mxu0
        %4372 = vmatprep.mubr.f32.mxu0 0.0
        %4373 = vmatmul.mubr.f32.gmra.mxu0 %v4209
        %v4374 = vpop.f32.mrf.mxu0
        %v4375 = vadd.f32 0.0, %v4374
        %v4376 = vpop.f32.mrf.mxu0
        %4377 = vmatprep.mubr.f32.mxu0 0.0
        %4378 = vmatmul.mubr.f32.gmra.mxu0 %v4212
        %v4379 = vpop.f32.mrf.mxu0
        %v4380 = vadd.f32 0.0, %v4379
        %v4381 = vpop.f32.mrf.mxu0
        %4382 = vmatprep.mubr.f32.mxu0 0.0
        %4383 = vmatmul.mubr.f32.gmra.mxu0 %v4215
        %v4384 = vpop.f32.mrf.mxu0
        %v4385 = vadd.f32 0.0, %v4384
        %v4386 = vpop.f32.mrf.mxu0
        %4387 = vmatprep.mubr.f32.mxu0 0.0
        %4388 = vmatmul.mubr.f32.gmra.mxu0 %v4218
        %v4389 = vpop.f32.mrf.mxu0
        %v4390 = vadd.f32 0.0, %v4389
        %v4391 = vpop.f32.mrf.mxu0
        %4392 = vmatprep.mubr.f32.mxu0 0.0
        %4393 = vmatmul.mubr.f32.gmra.mxu0 %v4221
        %v4394 = vpop.f32.mrf.mxu0
        %v4395 = vadd.f32 0.0, %v4394
        %v4396 = vpop.f32.mrf.mxu0
        %4397 = vmatprep.mubr.f32.mxu0 0.0
        %4398 = vmatmul.mubr.f32.gmra.mxu0 %v4224
        %v4399 = vpop.f32.mrf.mxu0
        %v4400 = vadd.f32 0.0, %v4399
        %v4401 = vpop.f32.mrf.mxu0
        %4402 = vmatprep.mubr.f32.mxu0 0.0
        %4403 = vmatmul.mubr.f32.gmra.mxu0 %v4227
        %v4404 = vpop.f32.mrf.mxu0
        %v4405 = vadd.f32 0.0, %v4404
        %v4406 = vpop.f32.mrf.mxu0
        %4407 = vmatprep.mubr.f32.mxu0 0.0
        %4408 = vmatmul.mubr.f32.gmra.mxu0 %v4230
        %v4409 = vpop.f32.mrf.mxu0
        %v4410 = vadd.f32 0.0, %v4409
        %v4411 = vpop.f32.mrf.mxu0
        %4412 = vmatprep.mubr.f32.mxu0 0.0
        %4413 = vmatmul.mubr.f32.gmra.mxu0 %v4233
        %v4414 = vpop.f32.mrf.mxu0
        %v4415 = vadd.f32 0.0, %v4414
        %v4416 = vpop.f32.mrf.mxu0
        %4417 = vmatprep.mubr.f32.mxu0 0.0
        %4418 = vmatmul.mubr.f32.gmra.mxu0 %v4236
        %v4419 = vpop.f32.mrf.mxu0
        %v4420 = vadd.f32 0.0, %v4419
        %v4421 = vpop.f32.mrf.mxu0
        %4422 = vmatprep.mubr.f32.mxu0 0.0
        %4423 = vmatmul.mubr.f32.gmra.mxu0 %v4239
        %v4424 = vpop.f32.mrf.mxu0
        %v4425 = vadd.f32 0.0, %v4424
        %v4426 = vpop.f32.mrf.mxu0
        %4427 = vmatprep.mubr.f32.mxu0 0.0
        %4428 = vmatmul.mubr.f32.gmra.mxu0 %v4242
        %v4429 = vpop.f32.mrf.mxu0
        %v4430 = vadd.f32 0.0, %v4429
        %v4431 = vpop.f32.mrf.mxu0
        %4432 = vmatprep.mubr.f32.mxu0 0.0
        %4433 = vmatmul.mubr.f32.gmra.mxu0 %v4245
        %v4434 = vpop.f32.mrf.mxu0
        %v4435 = vadd.f32 0.0, %v4434
        %v4436 = vpop.f32.mrf.mxu0
        %4437 = vmatprep.mubr.f32.mxu0 0.0
        %4438 = vmatmul.mubr.f32.gmra.mxu0 %v4248
        %v4439 = vpop.f32.mrf.mxu0
        %v4440 = vadd.f32 0.0, %v4439
        %v4441 = vpop.f32.mrf.mxu0
        %4442 = vmatprep.mubr.f32.mxu0 0.0
        %4443 = vmatmul.mubr.f32.gmra.mxu0 %v4251
        %v4444 = vpop.f32.mrf.mxu0
        %v4445 = vadd.f32 0.0, %v4444
        %v4446 = vpop.f32.mrf.mxu0
        %4447 = vmatprep.mubr.f32.mxu0 0.0
        %4448 = vmatmul.mubr.f32.gmra.mxu0 %v4254
        %v4449 = vpop.f32.mrf.mxu0
        %v4450 = vadd.f32 0.0, %v4449
        %v4451 = vpop.f32.mrf.mxu0
        %4452 = vmatprep.mubr.f32.mxu0 0.0
        %4453 = vmatmul.mubr.f32.gmra.mxu0 %v4257
        %v4454 = vpop.f32.mrf.mxu0
        %v4455 = vadd.f32 0.0, %v4454
        %v4456 = vpop.f32.mrf.mxu0
        %4457 = vmatprep.mubr.f32.mxu0 0.0
        %4458 = vmatmul.mubr.f32.gmra.mxu0 %v4260
        %v4459 = vpop.f32.mrf.mxu0
        %v4460 = vadd.f32 0.0, %v4459
        %v4461 = vpop.f32.mrf.mxu0
        %4462 = vmatprep.mubr.f32.mxu0 0.0
        %4463 = vmatmul.mubr.f32.gmra.mxu0 %v4263
        %v4464 = vpop.f32.mrf.mxu0
        %v4465 = vadd.f32 0.0, %v4464
        %v4466 = vpop.f32.mrf.mxu0
        %4467 = vmatprep.mubr.f32.mxu0 0.0
        %4468 = vmatmul.mubr.f32.gmra.mxu0 %v4266
        %v4469 = vpop.f32.mrf.mxu0
        %v4470 = vadd.f32 0.0, %v4469
        %v4471 = vpop.f32.mrf.mxu0
        %4472 = vmatprep.mubr.f32.mxu0 0.0
        %4473 = vmatmul.mubr.f32.gmra.mxu0 %v4269
        %v4474 = vpop.f32.mrf.mxu0
        %v4475 = vadd.f32 0.0, %v4474
        %v4476 = vpop.f32.mrf.mxu0
        %4477 = vmatprep.mubr.f32.mxu0 0.0
        %4478 = vmatmul.mubr.f32.gmra.mxu0 %v4272
        %v4479 = vpop.f32.mrf.mxu0
        %v4480 = vadd.f32 0.0, %v4479
        %v4481 = vpop.f32.mrf.mxu0
        %4482 = vmatprep.mubr.f32.mxu0 0.0
        %4483 = vmatmul.mubr.f32.gmra.mxu0 %v4275
        %v4484 = vpop.f32.mrf.mxu0
        %v4485 = vadd.f32 0.0, %v4484
        %v4486 = vpop.f32.mrf.mxu0
        %4487 = vmatprep.mubr.f32.mxu0 0.0
        %4488 = vmatmul.mubr.f32.gmra.mxu0 %v4278
        %v4489 = vpop.f32.mrf.mxu0
        %v4490 = vadd.f32 0.0, %v4489
        %v4491 = vpop.f32.mrf.mxu0
        %4492 = vmatprep.mubr.f32.mxu0 0.0
        %4493 = vmatmul.mubr.f32.gmra.mxu0 %v4281
        %v4494 = vpop.f32.mrf.mxu0
        %v4495 = vadd.f32 0.0, %v4494
        %v4496 = vpop.f32.mrf.mxu0
        %4497 = vmatprep.mubr.f32.mxu0 0.0
        %4498 = vmatmul.mubr.f32.gmra.mxu0 %v4284
        %v4499 = vpop.f32.mrf.mxu0
        %v4500 = vadd.f32 0.0, %v4499
        %v4501 = vpop.f32.mrf.mxu0
        %4502 = vmatprep.mubr.f32.mxu0 0.0
        %4503 = vmatmul.mubr.f32.gmra.mxu0 %v4287
        %v4504 = vpop.f32.mrf.mxu0
        %v4505 = vadd.f32 0.0, %v4504
        %v4506 = vpop.f32.mrf.mxu0
        %4507 = vmatprep.mubr.f32.mxu0 0.0
        %4508 = vmatmul.mubr.f32.gmra.mxu0 %v4290
        %v4509 = vpop.f32.mrf.mxu0
        %v4510 = vadd.f32 0.0, %v4509
        %v4511 = vpop.f32.mrf.mxu0
        %4512 = vmatprep.mubr.f32.mxu0 0.0
        %4513 = vmatmul.mubr.f32.gmra.mxu0 %v4293
        %v4514 = vpop.f32.mrf.mxu0
        %v4515 = vadd.f32 0.0, %v4514
        %v4516 = vpop.f32.mrf.mxu0
        %4517 = vmatprep.mubr.f32.mxu0 0.0
        %4518 = vmatmul.mubr.f32.gmra.mxu0 %v4296
        %v4519 = vpop.f32.mrf.mxu0
        %v4520 = vadd.f32 0.0, %v4519
        %v4521 = vpop.f32.mrf.mxu0
        %4522 = vdwg.mxu0
        %v4524 = vsel %vm900, %v4200, 0
        %4526 = vmatprep.subr.mxu0 0.0
        %4527 = vmatpush1.msra.mxu0 0.0
        %4528 = vmatprep.subr.mxu0 0.0
        %4529 = vmatpush1.msra.mxu0 0.0
        %4530 = vmatprep.subr.mxu0 0.0
        %4531 = vmatpush1.msra.mxu0 0.0
        %4532 = vmatprep.subr.mxu0 0.0
        %4533 = vmatpush1.msra.mxu0 0.0
        %4534 = vmatprep.subr.mxu0 0.0
        %4535 = vmatpush1.msra.mxu0 0.0
        %4536 = vmatprep.subr.mxu0 0.0
        %4537 = vmatpush1.msra.mxu0 0.0
        %4538 = vmatprep.subr.mxu0 0.0
        %4539 = vmatpush1.msra.mxu0 0.0
        %4540 = vmatprep.subr.mxu0 0.0
        %4541 = vmatpush1.msra.mxu0 0.0
        %4542 = vmatprep.subr.mxu0 0.0
        %4543 = vmatpush1.msra.mxu0 0.0
        %4544 = vmatprep.subr.mxu0 0.0
        %4545 = vmatpush1.msra.mxu0 0.0
        %4546 = vmatprep.subr.mxu0 0.0
        %4547 = vmatpush1.msra.mxu0 0.0
        %4548 = vmatprep.subr.mxu0 0.0
        %4549 = vmatpush1.msra.mxu0 0.0
        %4550 = vmatprep.subr.mxu0 0.0
        %4551 = vmatpush1.msra.mxu0 0.0
        %4552 = vmatprep.subr.mxu0 0.0
        %4553 = vmatpush1.msra.mxu0 0.0
        %4554 = vmatprep.subr.mxu0 0.0
        %4555 = vmatpush1.msra.mxu0 0.0
        %4556 = vmatprep.subr.mxu0 0.0
        %4557 = vmatpush1.msra.mxu0 %v4524
        %4558 = vmatprep.subr.mxu0 0.0
        %4559 = vmatpush2.msra.mxu0 0.0
        %4560 = vmatprep.subr.mxu0 0.0
        %4561 = vmatpush2.msra.mxu0 0.0
        %4562 = vmatprep.subr.mxu0 0.0
        %4563 = vmatpush2.msra.mxu0 0.0
        %4564 = vmatprep.subr.mxu0 0.0
        %4565 = vmatpush2.msra.mxu0 0.0
        %4566 = vmatprep.subr.mxu0 0.0
        %4567 = vmatpush2.msra.mxu0 0.0
        %4568 = vmatprep.subr.mxu0 0.0
        %4569 = vmatpush2.msra.mxu0 0.0
        %4570 = vmatprep.subr.mxu0 0.0
        %4571 = vmatpush2.msra.mxu0 0.0
        %4572 = vmatprep.subr.mxu0 0.0
        %4573 = vmatpush2.msra.mxu0 0.0
        %4574 = vmatprep.subr.mxu0 0.0
        %4575 = vmatpush2.msra.mxu0 0.0
        %4576 = vmatprep.subr.mxu0 0.0
        %4577 = vmatpush2.msra.mxu0 0.0
        %4578 = vmatprep.subr.mxu0 0.0
        %4579 = vmatpush2.msra.mxu0 0.0
        %4580 = vmatprep.subr.mxu0 0.0
        %4581 = vmatpush2.msra.mxu0 0.0
        %4582 = vmatprep.subr.mxu0 0.0
        %4583 = vmatpush2.msra.mxu0 0.0
        %4584 = vmatprep.subr.mxu0 0.0
        %4585 = vmatpush2.msra.mxu0 0.0
        %4586 = vmatprep.subr.mxu0 0.0
        %4587 = vmatpush2.msra.mxu0 0.0
        %4588 = vmatprep.subr.mxu0 0.0
        %4589 = vmatpush2.msra.mxu0 0.0
        %4590 = vmatprep.mubr.f32.mxu0 0.0
        %4591 = vmatmul.mubr.f32.gmra.mxu0 %v805
        %v4592 = vpop.f32.mrf.mxu0
        %v4593 = vadd.f32 %v4365, %v4592
        %v4594 = vpop.f32.mrf.mxu0
        %4595 = vmatprep.mubr.f32.mxu0 0.0
        %4596 = vmatmul.mubr.f32.gmra.mxu0 %v808
        %v4597 = vpop.f32.mrf.mxu0
        %v4598 = vadd.f32 %v4370, %v4597
        %v4599 = vpop.f32.mrf.mxu0
        %4600 = vmatprep.mubr.f32.mxu0 0.0
        %4601 = vmatmul.mubr.f32.gmra.mxu0 %v811
        %v4602 = vpop.f32.mrf.mxu0
        %v4603 = vadd.f32 %v4375, %v4602
        %v4604 = vpop.f32.mrf.mxu0
        %4605 = vmatprep.mubr.f32.mxu0 0.0
        %4606 = vmatmul.mubr.f32.gmra.mxu0 %v814
        %v4607 = vpop.f32.mrf.mxu0
        %v4608 = vadd.f32 %v4380, %v4607
        %v4609 = vpop.f32.mrf.mxu0
        %4610 = vmatprep.mubr.f32.mxu0 0.0
        %4611 = vmatmul.mubr.f32.gmra.mxu0 %v817
        %v4612 = vpop.f32.mrf.mxu0
        %v4613 = vadd.f32 %v4385, %v4612
        %v4614 = vpop.f32.mrf.mxu0
        %4615 = vmatprep.mubr.f32.mxu0 0.0
        %4616 = vmatmul.mubr.f32.gmra.mxu0 %v820
        %v4617 = vpop.f32.mrf.mxu0
        %v4618 = vadd.f32 %v4390, %v4617
        %v4619 = vpop.f32.mrf.mxu0
        %4620 = vmatprep.mubr.f32.mxu0 0.0
        %4621 = vmatmul.mubr.f32.gmra.mxu0 %v823
        %v4622 = vpop.f32.mrf.mxu0
        %v4623 = vadd.f32 %v4395, %v4622
        %v4624 = vpop.f32.mrf.mxu0
        %4625 = vmatprep.mubr.f32.mxu0 0.0
        %4626 = vmatmul.mubr.f32.gmra.mxu0 %v826
        %v4627 = vpop.f32.mrf.mxu0
        %v4628 = vadd.f32 %v4400, %v4627
        %v4629 = vpop.f32.mrf.mxu0
        %4630 = vmatprep.mubr.f32.mxu0 0.0
        %4631 = vmatmul.mubr.f32.gmra.mxu0 %v829
        %v4632 = vpop.f32.mrf.mxu0
        %v4633 = vadd.f32 %v4405, %v4632
        %v4634 = vpop.f32.mrf.mxu0
        %4635 = vmatprep.mubr.f32.mxu0 0.0
        %4636 = vmatmul.mubr.f32.gmra.mxu0 %v832
        %v4637 = vpop.f32.mrf.mxu0
        %v4638 = vadd.f32 %v4410, %v4637
        %v4639 = vpop.f32.mrf.mxu0
        %4640 = vmatprep.mubr.f32.mxu0 0.0
        %4641 = vmatmul.mubr.f32.gmra.mxu0 %v835
        %v4642 = vpop.f32.mrf.mxu0
        %v4643 = vadd.f32 %v4415, %v4642
        %v4644 = vpop.f32.mrf.mxu0
        %4645 = vmatprep.mubr.f32.mxu0 0.0
        %4646 = vmatmul.mubr.f32.gmra.mxu0 %v838
        %v4647 = vpop.f32.mrf.mxu0
        %v4648 = vadd.f32 %v4420, %v4647
        %v4649 = vpop.f32.mrf.mxu0
        %4650 = vmatprep.mubr.f32.mxu0 0.0
        %4651 = vmatmul.mubr.f32.gmra.mxu0 %v841
        %v4652 = vpop.f32.mrf.mxu0
        %v4653 = vadd.f32 %v4425, %v4652
        %v4654 = vpop.f32.mrf.mxu0
        %4655 = vmatprep.mubr.f32.mxu0 0.0
        %4656 = vmatmul.mubr.f32.gmra.mxu0 %v844
        %v4657 = vpop.f32.mrf.mxu0
        %v4658 = vadd.f32 %v4430, %v4657
        %v4659 = vpop.f32.mrf.mxu0
        %4660 = vmatprep.mubr.f32.mxu0 0.0
        %4661 = vmatmul.mubr.f32.gmra.mxu0 %v847
        %v4662 = vpop.f32.mrf.mxu0
        %v4663 = vadd.f32 %v4435, %v4662
        %v4664 = vpop.f32.mrf.mxu0
        %4665 = vmatprep.mubr.f32.mxu0 0.0
        %4666 = vmatmul.mubr.f32.gmra.mxu0 %v850
        %v4667 = vpop.f32.mrf.mxu0
        %v4668 = vadd.f32 %v4440, %v4667
        %v4669 = vpop.f32.mrf.mxu0
        %4670 = vmatprep.mubr.f32.mxu0 0.0
        %4671 = vmatmul.mubr.f32.gmra.mxu0 %v853
        %v4672 = vpop.f32.mrf.mxu0
        %v4673 = vadd.f32 %v4445, %v4672
        %v4674 = vpop.f32.mrf.mxu0
        %4675 = vmatprep.mubr.f32.mxu0 0.0
        %4676 = vmatmul.mubr.f32.gmra.mxu0 %v856
        %v4677 = vpop.f32.mrf.mxu0
        %v4678 = vadd.f32 %v4450, %v4677
        %v4679 = vpop.f32.mrf.mxu0
        %4680 = vmatprep.mubr.f32.mxu0 0.0
        %4681 = vmatmul.mubr.f32.gmra.mxu0 %v859
        %v4682 = vpop.f32.mrf.mxu0
        %v4683 = vadd.f32 %v4455, %v4682
        %v4684 = vpop.f32.mrf.mxu0
        %4685 = vmatprep.mubr.f32.mxu0 0.0
        %4686 = vmatmul.mubr.f32.gmra.mxu0 %v862
        %v4687 = vpop.f32.mrf.mxu0
        %v4688 = vadd.f32 %v4460, %v4687
        %v4689 = vpop.f32.mrf.mxu0
        %4690 = vmatprep.mubr.f32.mxu0 0.0
        %4691 = vmatmul.mubr.f32.gmra.mxu0 %v865
        %v4692 = vpop.f32.mrf.mxu0
        %v4693 = vadd.f32 %v4465, %v4692
        %v4694 = vpop.f32.mrf.mxu0
        %4695 = vmatprep.mubr.f32.mxu0 0.0
        %4696 = vmatmul.mubr.f32.gmra.mxu0 %v868
        %v4697 = vpop.f32.mrf.mxu0
        %v4698 = vadd.f32 %v4470, %v4697
        %v4699 = vpop.f32.mrf.mxu0
        %4700 = vmatprep.mubr.f32.mxu0 0.0
        %4701 = vmatmul.mubr.f32.gmra.mxu0 %v871
        %v4702 = vpop.f32.mrf.mxu0
        %v4703 = vadd.f32 %v4475, %v4702
        %v4704 = vpop.f32.mrf.mxu0
        %4705 = vmatprep.mubr.f32.mxu0 0.0
        %4706 = vmatmul.mubr.f32.gmra.mxu0 %v874
        %v4707 = vpop.f32.mrf.mxu0
        %v4708 = vadd.f32 %v4480, %v4707
        %v4709 = vpop.f32.mrf.mxu0
        %4710 = vmatprep.mubr.f32.mxu0 0.0
        %4711 = vmatmul.mubr.f32.gmra.mxu0 %v877
        %v4712 = vpop.f32.mrf.mxu0
        %v4713 = vadd.f32 %v4485, %v4712
        %v4714 = vpop.f32.mrf.mxu0
        %4715 = vmatprep.mubr.f32.mxu0 0.0
        %4716 = vmatmul.mubr.f32.gmra.mxu0 %v880
        %v4717 = vpop.f32.mrf.mxu0
        %v4718 = vadd.f32 %v4490, %v4717
        %v4719 = vpop.f32.mrf.mxu0
        %4720 = vmatprep.mubr.f32.mxu0 0.0
        %4721 = vmatmul.mubr.f32.gmra.mxu0 %v883
        %v4722 = vpop.f32.mrf.mxu0
        %v4723 = vadd.f32 %v4495, %v4722
        %v4724 = vpop.f32.mrf.mxu0
        %4725 = vmatprep.mubr.f32.mxu0 0.0
        %4726 = vmatmul.mubr.f32.gmra.mxu0 %v886
        %v4727 = vpop.f32.mrf.mxu0
        %v4728 = vadd.f32 %v4500, %v4727
        %v4729 = vpop.f32.mrf.mxu0
        %4730 = vmatprep.mubr.f32.mxu0 0.0
        %4731 = vmatmul.mubr.f32.gmra.mxu0 %v889
        %v4732 = vpop.f32.mrf.mxu0
        %v4733 = vadd.f32 %v4505, %v4732
        %v4734 = vpop.f32.mrf.mxu0
        %4735 = vmatprep.mubr.f32.mxu0 0.0
        %4736 = vmatmul.mubr.f32.gmra.mxu0 %v892
        %v4737 = vpop.f32.mrf.mxu0
        %v4738 = vadd.f32 %v4510, %v4737
        %v4739 = vpop.f32.mrf.mxu0
        %4740 = vmatprep.mubr.f32.mxu0 0.0
        %4741 = vmatmul.mubr.f32.gmra.mxu0 %v895
        %v4742 = vpop.f32.mrf.mxu0
        %v4743 = vadd.f32 %v4515, %v4742
        %v4744 = vpop.f32.mrf.mxu0
        %4745 = vmatprep.mubr.f32.mxu0 0.0
        %4746 = vmatmul.mubr.f32.gmra.mxu0 %v898
        %v4747 = vpop.f32.mrf.mxu0
        %v4748 = vadd.f32 %v4520, %v4747
        %v4749 = vpop.f32.mrf.mxu0
        %4750 = vdwg.mxu0
        %v4751 = vld [vmem:[%s11] sm:$0x1]
        %v4753 = vlaneseq
        %v4754 = vshrl.u32 %v4753, 7
        %v4755 = vsub.s32 0, %v4754
        %v4756 = vrot.slane %v4751, %v4755
        %v4758 = vadd.f32 %v4593, %v4756
        %v4759 = vadd.f32 %v4598, %v4756
        %v4760 = vadd.f32 %v4603, %v4756
        %v4761 = vadd.f32 %v4608, %v4756
        %v4762 = vadd.f32 %v4613, %v4756
        %v4763 = vadd.f32 %v4618, %v4756
        %v4764 = vadd.f32 %v4623, %v4756
        %v4765 = vadd.f32 %v4628, %v4756
        %v4766 = vadd.f32 %v4633, %v4756
        %v4767 = vadd.f32 %v4638, %v4756
        %v4768 = vadd.f32 %v4643, %v4756
        %v4769 = vadd.f32 %v4648, %v4756
        %v4770 = vadd.f32 %v4653, %v4756
        %v4771 = vadd.f32 %v4658, %v4756
        %v4772 = vadd.f32 %v4663, %v4756
        %v4773 = vadd.f32 %v4668, %v4756
        %v4774 = vadd.f32 %v4673, %v4756
        %v4775 = vadd.f32 %v4678, %v4756
        %v4776 = vadd.f32 %v4683, %v4756
        %v4777 = vadd.f32 %v4688, %v4756
        %v4778 = vadd.f32 %v4693, %v4756
        %v4779 = vadd.f32 %v4698, %v4756
        %v4780 = vadd.f32 %v4703, %v4756
        %v4781 = vadd.f32 %v4708, %v4756
        %v4782 = vadd.f32 %v4713, %v4756
        %v4783 = vadd.f32 %v4718, %v4756
        %v4784 = vadd.f32 %v4723, %v4756
        %v4785 = vadd.f32 %v4728, %v4756
        %v4786 = vadd.f32 %v4733, %v4756
        %v4787 = vadd.f32 %v4738, %v4756
        %v4788 = vadd.f32 %v4743, %v4756
        %v4789 = vadd.f32 %v4748, %v4756
        %v4790 = vld [vmem:[%s15] sm:$0xff]
        %v4791 = vld [vmem:[%s14] sm:$0x1]
        %v4793 = vlaneseq
        %v4794 = vshrl.u32 %v4793, 7
        %v4795 = vsub.s32 0, %v4794
        %v4796 = vrot.slane %v4791, %v4795
        %v4799 = vsel %vm1169, %v4758, 0
        %v4802 = vsel %vm1169, %v4759, 0
        %v4805 = vsel %vm1169, %v4760, 0
        %v4808 = vsel %vm1169, %v4761, 0
        %v4811 = vsel %vm1169, %v4762, 0
        %v4814 = vsel %vm1169, %v4763, 0
        %v4817 = vsel %vm1169, %v4764, 0
        %v4820 = vsel %vm1169, %v4765, 0
        %v4823 = vsel %vm1169, %v4766, 0
        %v4826 = vsel %vm1169, %v4767, 0
        %v4829 = vsel %vm1169, %v4768, 0
        %v4832 = vsel %vm1169, %v4769, 0
        %v4835 = vsel %vm1169, %v4770, 0
        %v4838 = vsel %vm1169, %v4771, 0
        %v4841 = vsel %vm1169, %v4772, 0
        %v4844 = vsel %vm1169, %v4773, 0
        %v4847 = vsel %vm1169, %v4774, 0
        %v4850 = vsel %vm1169, %v4775, 0
        %v4853 = vsel %vm1169, %v4776, 0
        %v4856 = vsel %vm1169, %v4777, 0
        %v4859 = vsel %vm1169, %v4778, 0
        %v4862 = vsel %vm1169, %v4779, 0
        %v4865 = vsel %vm1169, %v4780, 0
        %v4868 = vsel %vm1169, %v4781, 0
        %v4871 = vsel %vm1169, %v4782, 0
        %v4874 = vsel %vm1169, %v4783, 0
        %v4877 = vsel %vm1169, %v4784, 0
        %v4880 = vsel %vm1169, %v4785, 0
        %v4883 = vsel %vm1169, %v4786, 0
        %v4886 = vsel %vm1169, %v4787, 0
        %v4889 = vsel %vm1169, %v4788, 0
        %v4892 = vsel %vm1169, %v4789, 0
        %4894 = vmatprep.subr.mxu0 0.0
        %4895 = vmatpush1.msra.mxu0 0.0
        %4896 = vmatprep.subr.mxu0 0.0
        %4897 = vmatpush1.msra.mxu0 0.0
        %4898 = vmatprep.subr.mxu0 0.0
        %4899 = vmatpush1.msra.mxu0 0.0
        %4900 = vmatprep.subr.mxu0 0.0
        %4901 = vmatpush1.msra.mxu0 0.0
        %4902 = vmatprep.subr.mxu0 0.0
        %4903 = vmatpush1.msra.mxu0 0.0
        %4904 = vmatprep.subr.mxu0 0.0
        %4905 = vmatpush1.msra.mxu0 0.0
        %4906 = vmatprep.subr.mxu0 0.0
        %4907 = vmatpush1.msra.mxu0 0.0
        %4908 = vmatprep.subr.mxu0 0.0
        %4909 = vmatpush1.msra.mxu0 0.0
        %4910 = vmatprep.subr.mxu0 0.0
        %4911 = vmatpush1.msra.mxu0 0.0
        %4912 = vmatprep.subr.mxu0 0.0
        %4913 = vmatpush1.msra.mxu0 0.0
        %4914 = vmatprep.subr.mxu0 0.0
        %4915 = vmatpush1.msra.mxu0 0.0
        %4916 = vmatprep.subr.mxu0 0.0
        %4917 = vmatpush1.msra.mxu0 0.0
        %4918 = vmatprep.subr.mxu0 0.0
        %4919 = vmatpush1.msra.mxu0 0.0
        %4920 = vmatprep.subr.mxu0 0.0
        %4921 = vmatpush1.msra.mxu0 0.0
        %4922 = vmatprep.subr.mxu0 0.0
        %4923 = vmatpush1.msra.mxu0 0.0
        %4924 = vmatprep.subr.mxu0 0.0
        %4925 = vmatpush1.msra.mxu0 %v4790
        %4926 = vmatprep.subr.mxu0 0.0
        %4927 = vmatpush2.msra.mxu0 0.0
        %4928 = vmatprep.subr.mxu0 0.0
        %4929 = vmatpush2.msra.mxu0 0.0
        %4930 = vmatprep.subr.mxu0 0.0
        %4931 = vmatpush2.msra.mxu0 0.0
        %4932 = vmatprep.subr.mxu0 0.0
        %4933 = vmatpush2.msra.mxu0 0.0
        %4934 = vmatprep.subr.mxu0 0.0
        %4935 = vmatpush2.msra.mxu0 0.0
        %4936 = vmatprep.subr.mxu0 0.0
        %4937 = vmatpush2.msra.mxu0 0.0
        %4938 = vmatprep.subr.mxu0 0.0
        %4939 = vmatpush2.msra.mxu0 0.0
        %4940 = vmatprep.subr.mxu0 0.0
        %4941 = vmatpush2.msra.mxu0 0.0
        %4942 = vmatprep.subr.mxu0 0.0
        %4943 = vmatpush2.msra.mxu0 0.0
        %4944 = vmatprep.subr.mxu0 0.0
        %4945 = vmatpush2.msra.mxu0 0.0
        %4946 = vmatprep.subr.mxu0 0.0
        %4947 = vmatpush2.msra.mxu0 0.0
        %4948 = vmatprep.subr.mxu0 0.0
        %4949 = vmatpush2.msra.mxu0 0.0
        %4950 = vmatprep.subr.mxu0 0.0
        %4951 = vmatpush2.msra.mxu0 0.0
        %4952 = vmatprep.subr.mxu0 0.0
        %4953 = vmatpush2.msra.mxu0 0.0
        %4954 = vmatprep.subr.mxu0 0.0
        %4955 = vmatpush2.msra.mxu0 0.0
        %4956 = vmatprep.subr.mxu0 0.0
        %4957 = vmatpush2.msra.mxu0 0.0
        %4958 = vmatprep.mubr.f32.mxu0 0.0
        %4959 = vmatmul.mubr.f32.gmra.mxu0 %v4799
        %v4960 = vpop.f32.mrf.mxu0
        %v4961 = vadd.f32 %v4796, %v4960
        %v4962 = vpop.f32.mrf.mxu0
        %4963 = vmatprep.mubr.f32.mxu0 0.0
        %4964 = vmatmul.mubr.f32.gmra.mxu0 %v4802
        %v4965 = vpop.f32.mrf.mxu0
        %v4966 = vadd.f32 %v4796, %v4965
        %v4967 = vpop.f32.mrf.mxu0
        %4968 = vmatprep.mubr.f32.mxu0 0.0
        %4969 = vmatmul.mubr.f32.gmra.mxu0 %v4805
        %v4970 = vpop.f32.mrf.mxu0
        %v4971 = vadd.f32 %v4796, %v4970
        %v4972 = vpop.f32.mrf.mxu0
        %4973 = vmatprep.mubr.f32.mxu0 0.0
        %4974 = vmatmul.mubr.f32.gmra.mxu0 %v4808
        %v4975 = vpop.f32.mrf.mxu0
        %v4976 = vadd.f32 %v4796, %v4975
        %v4977 = vpop.f32.mrf.mxu0
        %4978 = vmatprep.mubr.f32.mxu0 0.0
        %4979 = vmatmul.mubr.f32.gmra.mxu0 %v4811
        %v4980 = vpop.f32.mrf.mxu0
        %v4981 = vadd.f32 %v4796, %v4980
        %v4982 = vpop.f32.mrf.mxu0
        %4983 = vmatprep.mubr.f32.mxu0 0.0
        %4984 = vmatmul.mubr.f32.gmra.mxu0 %v4814
        %v4985 = vpop.f32.mrf.mxu0
        %v4986 = vadd.f32 %v4796, %v4985
        %v4987 = vpop.f32.mrf.mxu0
        %4988 = vmatprep.mubr.f32.mxu0 0.0
        %4989 = vmatmul.mubr.f32.gmra.mxu0 %v4817
        %v4990 = vpop.f32.mrf.mxu0
        %v4991 = vadd.f32 %v4796, %v4990
        %v4992 = vpop.f32.mrf.mxu0
        %4993 = vmatprep.mubr.f32.mxu0 0.0
        %4994 = vmatmul.mubr.f32.gmra.mxu0 %v4820
        %v4995 = vpop.f32.mrf.mxu0
        %v4996 = vadd.f32 %v4796, %v4995
        %v4997 = vpop.f32.mrf.mxu0
        %4998 = vmatprep.mubr.f32.mxu0 0.0
        %4999 = vmatmul.mubr.f32.gmra.mxu0 %v4823
        %v5000 = vpop.f32.mrf.mxu0
        %v5001 = vadd.f32 %v4796, %v5000
        %v5002 = vpop.f32.mrf.mxu0
        %5003 = vmatprep.mubr.f32.mxu0 0.0
        %5004 = vmatmul.mubr.f32.gmra.mxu0 %v4826
        %v5005 = vpop.f32.mrf.mxu0
        %v5006 = vadd.f32 %v4796, %v5005
        %v5007 = vpop.f32.mrf.mxu0
        %5008 = vmatprep.mubr.f32.mxu0 0.0
        %5009 = vmatmul.mubr.f32.gmra.mxu0 %v4829
        %v5010 = vpop.f32.mrf.mxu0
        %v5011 = vadd.f32 %v4796, %v5010
        %v5012 = vpop.f32.mrf.mxu0
        %5013 = vmatprep.mubr.f32.mxu0 0.0
        %5014 = vmatmul.mubr.f32.gmra.mxu0 %v4832
        %v5015 = vpop.f32.mrf.mxu0
        %v5016 = vadd.f32 %v4796, %v5015
        %v5017 = vpop.f32.mrf.mxu0
        %5018 = vmatprep.mubr.f32.mxu0 0.0
        %5019 = vmatmul.mubr.f32.gmra.mxu0 %v4835
        %v5020 = vpop.f32.mrf.mxu0
        %v5021 = vadd.f32 %v4796, %v5020
        %v5022 = vpop.f32.mrf.mxu0
        %5023 = vmatprep.mubr.f32.mxu0 0.0
        %5024 = vmatmul.mubr.f32.gmra.mxu0 %v4838
        %v5025 = vpop.f32.mrf.mxu0
        %v5026 = vadd.f32 %v4796, %v5025
        %v5027 = vpop.f32.mrf.mxu0
        %5028 = vmatprep.mubr.f32.mxu0 0.0
        %5029 = vmatmul.mubr.f32.gmra.mxu0 %v4841
        %v5030 = vpop.f32.mrf.mxu0
        %v5031 = vadd.f32 %v4796, %v5030
        %v5032 = vpop.f32.mrf.mxu0
        %5033 = vmatprep.mubr.f32.mxu0 0.0
        %5034 = vmatmul.mubr.f32.gmra.mxu0 %v4844
        %v5035 = vpop.f32.mrf.mxu0
        %v5036 = vadd.f32 %v4796, %v5035
        %v5037 = vpop.f32.mrf.mxu0
        %5038 = vmatprep.mubr.f32.mxu0 0.0
        %5039 = vmatmul.mubr.f32.gmra.mxu0 %v4847
        %v5040 = vpop.f32.mrf.mxu0
        %v5041 = vadd.f32 %v4796, %v5040
        %v5042 = vpop.f32.mrf.mxu0
        %5043 = vmatprep.mubr.f32.mxu0 0.0
        %5044 = vmatmul.mubr.f32.gmra.mxu0 %v4850
        %v5045 = vpop.f32.mrf.mxu0
        %v5046 = vadd.f32 %v4796, %v5045
        %v5047 = vpop.f32.mrf.mxu0
        %5048 = vmatprep.mubr.f32.mxu0 0.0
        %5049 = vmatmul.mubr.f32.gmra.mxu0 %v4853
        %v5050 = vpop.f32.mrf.mxu0
        %v5051 = vadd.f32 %v4796, %v5050
        %v5052 = vpop.f32.mrf.mxu0
        %5053 = vmatprep.mubr.f32.mxu0 0.0
        %5054 = vmatmul.mubr.f32.gmra.mxu0 %v4856
        %v5055 = vpop.f32.mrf.mxu0
        %v5056 = vadd.f32 %v4796, %v5055
        %v5057 = vpop.f32.mrf.mxu0
        %5058 = vmatprep.mubr.f32.mxu0 0.0
        %5059 = vmatmul.mubr.f32.gmra.mxu0 %v4859
        %v5060 = vpop.f32.mrf.mxu0
        %v5061 = vadd.f32 %v4796, %v5060
        %v5062 = vpop.f32.mrf.mxu0
        %5063 = vmatprep.mubr.f32.mxu0 0.0
        %5064 = vmatmul.mubr.f32.gmra.mxu0 %v4862
        %v5065 = vpop.f32.mrf.mxu0
        %v5066 = vadd.f32 %v4796, %v5065
        %v5067 = vpop.f32.mrf.mxu0
        %5068 = vmatprep.mubr.f32.mxu0 0.0
        %5069 = vmatmul.mubr.f32.gmra.mxu0 %v4865
        %v5070 = vpop.f32.mrf.mxu0
        %v5071 = vadd.f32 %v4796, %v5070
        %v5072 = vpop.f32.mrf.mxu0
        %5073 = vmatprep.mubr.f32.mxu0 0.0
        %5074 = vmatmul.mubr.f32.gmra.mxu0 %v4868
        %v5075 = vpop.f32.mrf.mxu0
        %v5076 = vadd.f32 %v4796, %v5075
        %v5077 = vpop.f32.mrf.mxu0
        %5078 = vmatprep.mubr.f32.mxu0 0.0
        %5079 = vmatmul.mubr.f32.gmra.mxu0 %v4871
        %v5080 = vpop.f32.mrf.mxu0
        %v5081 = vadd.f32 %v4796, %v5080
        %v5082 = vpop.f32.mrf.mxu0
        %5083 = vmatprep.mubr.f32.mxu0 0.0
        %5084 = vmatmul.mubr.f32.gmra.mxu0 %v4874
        %v5085 = vpop.f32.mrf.mxu0
        %v5086 = vadd.f32 %v4796, %v5085
        %v5087 = vpop.f32.mrf.mxu0
        %5088 = vmatprep.mubr.f32.mxu0 0.0
        %5089 = vmatmul.mubr.f32.gmra.mxu0 %v4877
        %v5090 = vpop.f32.mrf.mxu0
        %v5091 = vadd.f32 %v4796, %v5090
        %v5092 = vpop.f32.mrf.mxu0
        %5093 = vmatprep.mubr.f32.mxu0 0.0
        %5094 = vmatmul.mubr.f32.gmra.mxu0 %v4880
        %v5095 = vpop.f32.mrf.mxu0
        %v5096 = vadd.f32 %v4796, %v5095
        %v5097 = vpop.f32.mrf.mxu0
        %5098 = vmatprep.mubr.f32.mxu0 0.0
        %5099 = vmatmul.mubr.f32.gmra.mxu0 %v4883
        %v5100 = vpop.f32.mrf.mxu0
        %v5101 = vadd.f32 %v4796, %v5100
        %v5102 = vpop.f32.mrf.mxu0
        %5103 = vmatprep.mubr.f32.mxu0 0.0
        %5104 = vmatmul.mubr.f32.gmra.mxu0 %v4886
        %v5105 = vpop.f32.mrf.mxu0
        %v5106 = vadd.f32 %v4796, %v5105
        %v5107 = vpop.f32.mrf.mxu0
        %5108 = vmatprep.mubr.f32.mxu0 0.0
        %5109 = vmatmul.mubr.f32.gmra.mxu0 %v4889
        %v5110 = vpop.f32.mrf.mxu0
        %v5111 = vadd.f32 %v4796, %v5110
        %v5112 = vpop.f32.mrf.mxu0
        %5113 = vmatprep.mubr.f32.mxu0 0.0
        %5114 = vmatmul.mubr.f32.gmra.mxu0 %v4892
        %v5115 = vpop.f32.mrf.mxu0
        %v5116 = vadd.f32 %v4796, %v5115
        %v5117 = vpop.f32.mrf.mxu0
        %5118 = vdwg.mxu0
        %v5119 = vmax.f32 %v4961, 0.0
        %v5120 = vmax.f32 %v4966, 0.0
        %v5121 = vmax.f32 %v4971, 0.0
        %v5122 = vmax.f32 %v4976, 0.0
        %v5123 = vmax.f32 %v4981, 0.0
        %v5124 = vmax.f32 %v4986, 0.0
        %v5125 = vmax.f32 %v4991, 0.0
        %v5126 = vmax.f32 %v4996, 0.0
        %v5127 = vmax.f32 %v5001, 0.0
        %v5128 = vmax.f32 %v5006, 0.0
        %v5129 = vmax.f32 %v5011, 0.0
        %v5130 = vmax.f32 %v5016, 0.0
        %v5131 = vmax.f32 %v5021, 0.0
        %v5132 = vmax.f32 %v5026, 0.0
        %v5133 = vmax.f32 %v5031, 0.0
        %v5134 = vmax.f32 %v5036, 0.0
        %v5135 = vmax.f32 %v5041, 0.0
        %v5136 = vmax.f32 %v5046, 0.0
        %v5137 = vmax.f32 %v5051, 0.0
        %v5138 = vmax.f32 %v5056, 0.0
        %v5139 = vmax.f32 %v5061, 0.0
        %v5140 = vmax.f32 %v5066, 0.0
        %v5141 = vmax.f32 %v5071, 0.0
        %v5142 = vmax.f32 %v5076, 0.0
        %v5143 = vmax.f32 %v5081, 0.0
        %v5144 = vmax.f32 %v5086, 0.0
        %v5145 = vmax.f32 %v5091, 0.0
        %v5146 = vmax.f32 %v5096, 0.0
        %v5147 = vmax.f32 %v5101, 0.0
        %v5148 = vmax.f32 %v5106, 0.0
        %v5149 = vmax.f32 %v5111, 0.0
        %v5150 = vmax.f32 %v5116, 0.0
        %v5151 = vld [vmem:[%s17] sm:$0xff]
        %v5152 = vld [vmem:[%s16] sm:$0x1]
        %v5154 = vlaneseq
        %v5155 = vshrl.u32 %v5154, 7
        %v5156 = vsub.s32 0, %v5155
        %v5157 = vrot.slane %v5152, %v5156
        %v5160 = vsel %vm1169, %v5119, 0
        %v5163 = vsel %vm1169, %v5120, 0
        %v5166 = vsel %vm1169, %v5121, 0
        %v5169 = vsel %vm1169, %v5122, 0
        %v5172 = vsel %vm1169, %v5123, 0
        %v5175 = vsel %vm1169, %v5124, 0
        %v5178 = vsel %vm1169, %v5125, 0
        %v5181 = vsel %vm1169, %v5126, 0
        %v5184 = vsel %vm1169, %v5127, 0
        %v5187 = vsel %vm1169, %v5128, 0
        %v5190 = vsel %vm1169, %v5129, 0
        %v5193 = vsel %vm1169, %v5130, 0
        %v5196 = vsel %vm1169, %v5131, 0
        %v5199 = vsel %vm1169, %v5132, 0
        %v5202 = vsel %vm1169, %v5133, 0
        %v5205 = vsel %vm1169, %v5134, 0
        %v5208 = vsel %vm1169, %v5135, 0
        %v5211 = vsel %vm1169, %v5136, 0
        %v5214 = vsel %vm1169, %v5137, 0
        %v5217 = vsel %vm1169, %v5138, 0
        %v5220 = vsel %vm1169, %v5139, 0
        %v5223 = vsel %vm1169, %v5140, 0
        %v5226 = vsel %vm1169, %v5141, 0
        %v5229 = vsel %vm1169, %v5142, 0
        %v5232 = vsel %vm1169, %v5143, 0
        %v5235 = vsel %vm1169, %v5144, 0
        %v5238 = vsel %vm1169, %v5145, 0
        %v5241 = vsel %vm1169, %v5146, 0
        %v5244 = vsel %vm1169, %v5147, 0
        %v5247 = vsel %vm1169, %v5148, 0
        %v5250 = vsel %vm1169, %v5149, 0
        %v5253 = vsel %vm1169, %v5150, 0
        %5255 = vmatprep.subr.mxu0 0.0
        %5256 = vmatpush1.msra.mxu0 0.0
        %5257 = vmatprep.subr.mxu0 0.0
        %5258 = vmatpush1.msra.mxu0 0.0
        %5259 = vmatprep.subr.mxu0 0.0
        %5260 = vmatpush1.msra.mxu0 0.0
        %5261 = vmatprep.subr.mxu0 0.0
        %5262 = vmatpush1.msra.mxu0 0.0
        %5263 = vmatprep.subr.mxu0 0.0
        %5264 = vmatpush1.msra.mxu0 0.0
        %5265 = vmatprep.subr.mxu0 0.0
        %5266 = vmatpush1.msra.mxu0 0.0
        %5267 = vmatprep.subr.mxu0 0.0
        %5268 = vmatpush1.msra.mxu0 0.0
        %5269 = vmatprep.subr.mxu0 0.0
        %5270 = vmatpush1.msra.mxu0 0.0
        %5271 = vmatprep.subr.mxu0 0.0
        %5272 = vmatpush1.msra.mxu0 0.0
        %5273 = vmatprep.subr.mxu0 0.0
        %5274 = vmatpush1.msra.mxu0 0.0
        %5275 = vmatprep.subr.mxu0 0.0
        %5276 = vmatpush1.msra.mxu0 0.0
        %5277 = vmatprep.subr.mxu0 0.0
        %5278 = vmatpush1.msra.mxu0 0.0
        %5279 = vmatprep.subr.mxu0 0.0
        %5280 = vmatpush1.msra.mxu0 0.0
        %5281 = vmatprep.subr.mxu0 0.0
        %5282 = vmatpush1.msra.mxu0 0.0
        %5283 = vmatprep.subr.mxu0 0.0
        %5284 = vmatpush1.msra.mxu0 0.0
        %5285 = vmatprep.subr.mxu0 0.0
        %5286 = vmatpush1.msra.mxu0 %v5151
        %5287 = vmatprep.subr.mxu0 0.0
        %5288 = vmatpush2.msra.mxu0 0.0
        %5289 = vmatprep.subr.mxu0 0.0
        %5290 = vmatpush2.msra.mxu0 0.0
        %5291 = vmatprep.subr.mxu0 0.0
        %5292 = vmatpush2.msra.mxu0 0.0
        %5293 = vmatprep.subr.mxu0 0.0
        %5294 = vmatpush2.msra.mxu0 0.0
        %5295 = vmatprep.subr.mxu0 0.0
        %5296 = vmatpush2.msra.mxu0 0.0
        %5297 = vmatprep.subr.mxu0 0.0
        %5298 = vmatpush2.msra.mxu0 0.0
        %5299 = vmatprep.subr.mxu0 0.0
        %5300 = vmatpush2.msra.mxu0 0.0
        %5301 = vmatprep.subr.mxu0 0.0
        %5302 = vmatpush2.msra.mxu0 0.0
        %5303 = vmatprep.subr.mxu0 0.0
        %5304 = vmatpush2.msra.mxu0 0.0
        %5305 = vmatprep.subr.mxu0 0.0
        %5306 = vmatpush2.msra.mxu0 0.0
        %5307 = vmatprep.subr.mxu0 0.0
        %5308 = vmatpush2.msra.mxu0 0.0
        %5309 = vmatprep.subr.mxu0 0.0
        %5310 = vmatpush2.msra.mxu0 0.0
        %5311 = vmatprep.subr.mxu0 0.0
        %5312 = vmatpush2.msra.mxu0 0.0
        %5313 = vmatprep.subr.mxu0 0.0
        %5314 = vmatpush2.msra.mxu0 0.0
        %5315 = vmatprep.subr.mxu0 0.0
        %5316 = vmatpush2.msra.mxu0 0.0
        %5317 = vmatprep.subr.mxu0 0.0
        %5318 = vmatpush2.msra.mxu0 0.0
        %5319 = vmatprep.mubr.f32.mxu0 0.0
        %5320 = vmatmul.mubr.f32.gmra.mxu0 %v5160
        %v5321 = vpop.f32.mrf.mxu0
        %v5322 = vadd.f32 %v5157, %v5321
        %v5323 = vpop.f32.mrf.mxu0
        %5324 = vmatprep.mubr.f32.mxu0 0.0
        %5325 = vmatmul.mubr.f32.gmra.mxu0 %v5163
        %v5326 = vpop.f32.mrf.mxu0
        %v5327 = vadd.f32 %v5157, %v5326
        %v5328 = vpop.f32.mrf.mxu0
        %5329 = vmatprep.mubr.f32.mxu0 0.0
        %5330 = vmatmul.mubr.f32.gmra.mxu0 %v5166
        %v5331 = vpop.f32.mrf.mxu0
        %v5332 = vadd.f32 %v5157, %v5331
        %v5333 = vpop.f32.mrf.mxu0
        %5334 = vmatprep.mubr.f32.mxu0 0.0
        %5335 = vmatmul.mubr.f32.gmra.mxu0 %v5169
        %v5336 = vpop.f32.mrf.mxu0
        %v5337 = vadd.f32 %v5157, %v5336
        %v5338 = vpop.f32.mrf.mxu0
        %5339 = vmatprep.mubr.f32.mxu0 0.0
        %5340 = vmatmul.mubr.f32.gmra.mxu0 %v5172
        %v5341 = vpop.f32.mrf.mxu0
        %v5342 = vadd.f32 %v5157, %v5341
        %v5343 = vpop.f32.mrf.mxu0
        %5344 = vmatprep.mubr.f32.mxu0 0.0
        %5345 = vmatmul.mubr.f32.gmra.mxu0 %v5175
        %v5346 = vpop.f32.mrf.mxu0
        %v5347 = vadd.f32 %v5157, %v5346
        %v5348 = vpop.f32.mrf.mxu0
        %5349 = vmatprep.mubr.f32.mxu0 0.0
        %5350 = vmatmul.mubr.f32.gmra.mxu0 %v5178
        %v5351 = vpop.f32.mrf.mxu0
        %v5352 = vadd.f32 %v5157, %v5351
        %v5353 = vpop.f32.mrf.mxu0
        %5354 = vmatprep.mubr.f32.mxu0 0.0
        %5355 = vmatmul.mubr.f32.gmra.mxu0 %v5181
        %v5356 = vpop.f32.mrf.mxu0
        %v5357 = vadd.f32 %v5157, %v5356
        %v5358 = vpop.f32.mrf.mxu0
        %5359 = vmatprep.mubr.f32.mxu0 0.0
        %5360 = vmatmul.mubr.f32.gmra.mxu0 %v5184
        %v5361 = vpop.f32.mrf.mxu0
        %v5362 = vadd.f32 %v5157, %v5361
        %v5363 = vpop.f32.mrf.mxu0
        %5364 = vmatprep.mubr.f32.mxu0 0.0
        %5365 = vmatmul.mubr.f32.gmra.mxu0 %v5187
        %v5366 = vpop.f32.mrf.mxu0
        %v5367 = vadd.f32 %v5157, %v5366
        %v5368 = vpop.f32.mrf.mxu0
        %5369 = vmatprep.mubr.f32.mxu0 0.0
        %5370 = vmatmul.mubr.f32.gmra.mxu0 %v5190
        %v5371 = vpop.f32.mrf.mxu0
        %v5372 = vadd.f32 %v5157, %v5371
        %v5373 = vpop.f32.mrf.mxu0
        %5374 = vmatprep.mubr.f32.mxu0 0.0
        %5375 = vmatmul.mubr.f32.gmra.mxu0 %v5193
        %v5376 = vpop.f32.mrf.mxu0
        %v5377 = vadd.f32 %v5157, %v5376
        %v5378 = vpop.f32.mrf.mxu0
        %5379 = vmatprep.mubr.f32.mxu0 0.0
        %5380 = vmatmul.mubr.f32.gmra.mxu0 %v5196
        %v5381 = vpop.f32.mrf.mxu0
        %v5382 = vadd.f32 %v5157, %v5381
        %v5383 = vpop.f32.mrf.mxu0
        %5384 = vmatprep.mubr.f32.mxu0 0.0
        %5385 = vmatmul.mubr.f32.gmra.mxu0 %v5199
        %v5386 = vpop.f32.mrf.mxu0
        %v5387 = vadd.f32 %v5157, %v5386
        %v5388 = vpop.f32.mrf.mxu0
        %5389 = vmatprep.mubr.f32.mxu0 0.0
        %5390 = vmatmul.mubr.f32.gmra.mxu0 %v5202
        %v5391 = vpop.f32.mrf.mxu0
        %v5392 = vadd.f32 %v5157, %v5391
        %v5393 = vpop.f32.mrf.mxu0
        %5394 = vmatprep.mubr.f32.mxu0 0.0
        %5395 = vmatmul.mubr.f32.gmra.mxu0 %v5205
        %v5396 = vpop.f32.mrf.mxu0
        %v5397 = vadd.f32 %v5157, %v5396
        %v5398 = vpop.f32.mrf.mxu0
        %5399 = vmatprep.mubr.f32.mxu0 0.0
        %5400 = vmatmul.mubr.f32.gmra.mxu0 %v5208
        %v5401 = vpop.f32.mrf.mxu0
        %v5402 = vadd.f32 %v5157, %v5401
        %v5403 = vpop.f32.mrf.mxu0
        %5404 = vmatprep.mubr.f32.mxu0 0.0
        %5405 = vmatmul.mubr.f32.gmra.mxu0 %v5211
        %v5406 = vpop.f32.mrf.mxu0
        %v5407 = vadd.f32 %v5157, %v5406
        %v5408 = vpop.f32.mrf.mxu0
        %5409 = vmatprep.mubr.f32.mxu0 0.0
        %5410 = vmatmul.mubr.f32.gmra.mxu0 %v5214
        %v5411 = vpop.f32.mrf.mxu0
        %v5412 = vadd.f32 %v5157, %v5411
        %v5413 = vpop.f32.mrf.mxu0
        %5414 = vmatprep.mubr.f32.mxu0 0.0
        %5415 = vmatmul.mubr.f32.gmra.mxu0 %v5217
        %v5416 = vpop.f32.mrf.mxu0
        %v5417 = vadd.f32 %v5157, %v5416
        %v5418 = vpop.f32.mrf.mxu0
        %5419 = vmatprep.mubr.f32.mxu0 0.0
        %5420 = vmatmul.mubr.f32.gmra.mxu0 %v5220
        %v5421 = vpop.f32.mrf.mxu0
        %v5422 = vadd.f32 %v5157, %v5421
        %v5423 = vpop.f32.mrf.mxu0
        %5424 = vmatprep.mubr.f32.mxu0 0.0
        %5425 = vmatmul.mubr.f32.gmra.mxu0 %v5223
        %v5426 = vpop.f32.mrf.mxu0
        %v5427 = vadd.f32 %v5157, %v5426
        %v5428 = vpop.f32.mrf.mxu0
        %5429 = vmatprep.mubr.f32.mxu0 0.0
        %5430 = vmatmul.mubr.f32.gmra.mxu0 %v5226
        %v5431 = vpop.f32.mrf.mxu0
        %v5432 = vadd.f32 %v5157, %v5431
        %v5433 = vpop.f32.mrf.mxu0
        %5434 = vmatprep.mubr.f32.mxu0 0.0
        %5435 = vmatmul.mubr.f32.gmra.mxu0 %v5229
        %v5436 = vpop.f32.mrf.mxu0
        %v5437 = vadd.f32 %v5157, %v5436
        %v5438 = vpop.f32.mrf.mxu0
        %5439 = vmatprep.mubr.f32.mxu0 0.0
        %5440 = vmatmul.mubr.f32.gmra.mxu0 %v5232
        %v5441 = vpop.f32.mrf.mxu0
        %v5442 = vadd.f32 %v5157, %v5441
        %v5443 = vpop.f32.mrf.mxu0
        %5444 = vmatprep.mubr.f32.mxu0 0.0
        %5445 = vmatmul.mubr.f32.gmra.mxu0 %v5235
        %v5446 = vpop.f32.mrf.mxu0
        %v5447 = vadd.f32 %v5157, %v5446
        %v5448 = vpop.f32.mrf.mxu0
        %5449 = vmatprep.mubr.f32.mxu0 0.0
        %5450 = vmatmul.mubr.f32.gmra.mxu0 %v5238
        %v5451 = vpop.f32.mrf.mxu0
        %v5452 = vadd.f32 %v5157, %v5451
        %v5453 = vpop.f32.mrf.mxu0
        %5454 = vmatprep.mubr.f32.mxu0 0.0
        %5455 = vmatmul.mubr.f32.gmra.mxu0 %v5241
        %v5456 = vpop.f32.mrf.mxu0
        %v5457 = vadd.f32 %v5157, %v5456
        %v5458 = vpop.f32.mrf.mxu0
        %5459 = vmatprep.mubr.f32.mxu0 0.0
        %5460 = vmatmul.mubr.f32.gmra.mxu0 %v5244
        %v5461 = vpop.f32.mrf.mxu0
        %v5462 = vadd.f32 %v5157, %v5461
        %v5463 = vpop.f32.mrf.mxu0
        %5464 = vmatprep.mubr.f32.mxu0 0.0
        %5465 = vmatmul.mubr.f32.gmra.mxu0 %v5247
        %v5466 = vpop.f32.mrf.mxu0
        %v5467 = vadd.f32 %v5157, %v5466
        %v5468 = vpop.f32.mrf.mxu0
        %5469 = vmatprep.mubr.f32.mxu0 0.0
        %5470 = vmatmul.mubr.f32.gmra.mxu0 %v5250
        %v5471 = vpop.f32.mrf.mxu0
        %v5472 = vadd.f32 %v5157, %v5471
        %v5473 = vpop.f32.mrf.mxu0
        %5474 = vmatprep.mubr.f32.mxu0 0.0
        %5475 = vmatmul.mubr.f32.gmra.mxu0 %v5253
        %v5476 = vpop.f32.mrf.mxu0
        %v5477 = vadd.f32 %v5157, %v5476
        %v5478 = vpop.f32.mrf.mxu0
        %5479 = vdwg.mxu0
        %v5480 = vmax.f32 %v5322, 0.0
        %v5481 = vmax.f32 %v5327, 0.0
        %v5482 = vmax.f32 %v5332, 0.0
        %v5483 = vmax.f32 %v5337, 0.0
        %v5484 = vmax.f32 %v5342, 0.0
        %v5485 = vmax.f32 %v5347, 0.0
        %v5486 = vmax.f32 %v5352, 0.0
        %v5487 = vmax.f32 %v5357, 0.0
        %v5488 = vmax.f32 %v5362, 0.0
        %v5489 = vmax.f32 %v5367, 0.0
        %v5490 = vmax.f32 %v5372, 0.0
        %v5491 = vmax.f32 %v5377, 0.0
        %v5492 = vmax.f32 %v5382, 0.0
        %v5493 = vmax.f32 %v5387, 0.0
        %v5494 = vmax.f32 %v5392, 0.0
        %v5495 = vmax.f32 %v5397, 0.0
        %v5496 = vmax.f32 %v5402, 0.0
        %v5497 = vmax.f32 %v5407, 0.0
        %v5498 = vmax.f32 %v5412, 0.0
        %v5499 = vmax.f32 %v5417, 0.0
        %v5500 = vmax.f32 %v5422, 0.0
        %v5501 = vmax.f32 %v5427, 0.0
        %v5502 = vmax.f32 %v5432, 0.0
        %v5503 = vmax.f32 %v5437, 0.0
        %v5504 = vmax.f32 %v5442, 0.0
        %v5505 = vmax.f32 %v5447, 0.0
        %v5506 = vmax.f32 %v5452, 0.0
        %v5507 = vmax.f32 %v5457, 0.0
        %v5508 = vmax.f32 %v5462, 0.0
        %v5509 = vmax.f32 %v5467, 0.0
        %v5510 = vmax.f32 %v5472, 0.0
        %v5511 = vmax.f32 %v5477, 0.0
        %v5512 = vld [vmem:[%s19] sm:$0xff]
        %v5513 = vld [vmem:[%s18] sm:$0x1]
        %v5515 = vlaneseq
        %v5516 = vshrl.u32 %v5515, 7
        %v5517 = vsub.s32 0, %v5516
        %v5518 = vrot.slane %v5513, %v5517
        %5520 = vmatprep.subr.mxu0 0.0
        %5521 = vmatpush1.msra.mxu0 0.0
        %5522 = vmatprep.subr.mxu0 0.0
        %5523 = vmatpush1.msra.mxu0 0.0
        %5524 = vmatprep.subr.mxu0 0.0
        %5525 = vmatpush1.msra.mxu0 0.0
        %5526 = vmatprep.subr.mxu0 0.0
        %5527 = vmatpush1.msra.mxu0 0.0
        %5528 = vmatprep.subr.mxu0 0.0
        %5529 = vmatpush1.msra.mxu0 0.0
        %5530 = vmatprep.subr.mxu0 0.0
        %5531 = vmatpush1.msra.mxu0 0.0
        %5532 = vmatprep.subr.mxu0 0.0
        %5533 = vmatpush1.msra.mxu0 0.0
        %5534 = vmatprep.subr.mxu0 0.0
        %5535 = vmatpush1.msra.mxu0 0.0
        %5536 = vmatprep.subr.mxu0 0.0
        %5537 = vmatpush1.msra.mxu0 0.0
        %5538 = vmatprep.subr.mxu0 0.0
        %5539 = vmatpush1.msra.mxu0 0.0
        %5540 = vmatprep.subr.mxu0 0.0
        %5541 = vmatpush1.msra.mxu0 0.0
        %5542 = vmatprep.subr.mxu0 0.0
        %5543 = vmatpush1.msra.mxu0 0.0
        %5544 = vmatprep.subr.mxu0 0.0
        %5545 = vmatpush1.msra.mxu0 0.0
        %5546 = vmatprep.subr.mxu0 0.0
        %5547 = vmatpush1.msra.mxu0 0.0
        %5548 = vmatprep.subr.mxu0 0.0
        %5549 = vmatpush1.msra.mxu0 0.0
        %5550 = vmatprep.subr.mxu0 0.0
        %5551 = vmatpush1.msra.mxu0 %v5512
        %5552 = vmatprep.subr.mxu0 0.0
        %5553 = vmatpush2.msra.mxu0 0.0
        %5554 = vmatprep.subr.mxu0 0.0
        %5555 = vmatpush2.msra.mxu0 0.0
        %5556 = vmatprep.subr.mxu0 0.0
        %5557 = vmatpush2.msra.mxu0 0.0
        %5558 = vmatprep.subr.mxu0 0.0
        %5559 = vmatpush2.msra.mxu0 0.0
        %5560 = vmatprep.subr.mxu0 0.0
        %5561 = vmatpush2.msra.mxu0 0.0
        %5562 = vmatprep.subr.mxu0 0.0
        %5563 = vmatpush2.msra.mxu0 0.0
        %5564 = vmatprep.subr.mxu0 0.0
        %5565 = vmatpush2.msra.mxu0 0.0
        %5566 = vmatprep.subr.mxu0 0.0
        %5567 = vmatpush2.msra.mxu0 0.0
        %5568 = vmatprep.subr.mxu0 0.0
        %5569 = vmatpush2.msra.mxu0 0.0
        %5570 = vmatprep.subr.mxu0 0.0
        %5571 = vmatpush2.msra.mxu0 0.0
        %5572 = vmatprep.subr.mxu0 0.0
        %5573 = vmatpush2.msra.mxu0 0.0
        %5574 = vmatprep.subr.mxu0 0.0
        %5575 = vmatpush2.msra.mxu0 0.0
        %5576 = vmatprep.subr.mxu0 0.0
        %5577 = vmatpush2.msra.mxu0 0.0
        %5578 = vmatprep.subr.mxu0 0.0
        %5579 = vmatpush2.msra.mxu0 0.0
        %5580 = vmatprep.subr.mxu0 0.0
        %5581 = vmatpush2.msra.mxu0 0.0
        %5582 = vmatprep.subr.mxu0 0.0
        %5583 = vmatpush2.msra.mxu0 0.0
        %5584 = vmatprep.mubr.f32.mxu0 0.0
        %5585 = vmatmul.mubr.f32.gmra.mxu0 %v4799
        %v5586 = vpop.f32.mrf.mxu0
        %v5587 = vadd.f32 %v5518, %v5586
        %v5588 = vpop.f32.mrf.mxu0
        %5589 = vmatprep.mubr.f32.mxu0 0.0
        %5590 = vmatmul.mubr.f32.gmra.mxu0 %v4802
        %v5591 = vpop.f32.mrf.mxu0
        %v5592 = vadd.f32 %v5518, %v5591
        %v5593 = vpop.f32.mrf.mxu0
        %5594 = vmatprep.mubr.f32.mxu0 0.0
        %5595 = vmatmul.mubr.f32.gmra.mxu0 %v4805
        %v5596 = vpop.f32.mrf.mxu0
        %v5597 = vadd.f32 %v5518, %v5596
        %v5598 = vpop.f32.mrf.mxu0
        %5599 = vmatprep.mubr.f32.mxu0 0.0
        %5600 = vmatmul.mubr.f32.gmra.mxu0 %v4808
        %v5601 = vpop.f32.mrf.mxu0
        %v5602 = vadd.f32 %v5518, %v5601
        %v5603 = vpop.f32.mrf.mxu0
        %5604 = vmatprep.mubr.f32.mxu0 0.0
        %5605 = vmatmul.mubr.f32.gmra.mxu0 %v4811
        %v5606 = vpop.f32.mrf.mxu0
        %v5607 = vadd.f32 %v5518, %v5606
        %v5608 = vpop.f32.mrf.mxu0
        %5609 = vmatprep.mubr.f32.mxu0 0.0
        %5610 = vmatmul.mubr.f32.gmra.mxu0 %v4814
        %v5611 = vpop.f32.mrf.mxu0
        %v5612 = vadd.f32 %v5518, %v5611
        %v5613 = vpop.f32.mrf.mxu0
        %5614 = vmatprep.mubr.f32.mxu0 0.0
        %5615 = vmatmul.mubr.f32.gmra.mxu0 %v4817
        %v5616 = vpop.f32.mrf.mxu0
        %v5617 = vadd.f32 %v5518, %v5616
        %v5618 = vpop.f32.mrf.mxu0
        %5619 = vmatprep.mubr.f32.mxu0 0.0
        %5620 = vmatmul.mubr.f32.gmra.mxu0 %v4820
        %v5621 = vpop.f32.mrf.mxu0
        %v5622 = vadd.f32 %v5518, %v5621
        %v5623 = vpop.f32.mrf.mxu0
        %5624 = vmatprep.mubr.f32.mxu0 0.0
        %5625 = vmatmul.mubr.f32.gmra.mxu0 %v4823
        %v5626 = vpop.f32.mrf.mxu0
        %v5627 = vadd.f32 %v5518, %v5626
        %v5628 = vpop.f32.mrf.mxu0
        %5629 = vmatprep.mubr.f32.mxu0 0.0
        %5630 = vmatmul.mubr.f32.gmra.mxu0 %v4826
        %v5631 = vpop.f32.mrf.mxu0
        %v5632 = vadd.f32 %v5518, %v5631
        %v5633 = vpop.f32.mrf.mxu0
        %5634 = vmatprep.mubr.f32.mxu0 0.0
        %5635 = vmatmul.mubr.f32.gmra.mxu0 %v4829
        %v5636 = vpop.f32.mrf.mxu0
        %v5637 = vadd.f32 %v5518, %v5636
        %v5638 = vpop.f32.mrf.mxu0
        %5639 = vmatprep.mubr.f32.mxu0 0.0
        %5640 = vmatmul.mubr.f32.gmra.mxu0 %v4832
        %v5641 = vpop.f32.mrf.mxu0
        %v5642 = vadd.f32 %v5518, %v5641
        %v5643 = vpop.f32.mrf.mxu0
        %5644 = vmatprep.mubr.f32.mxu0 0.0
        %5645 = vmatmul.mubr.f32.gmra.mxu0 %v4835
        %v5646 = vpop.f32.mrf.mxu0
        %v5647 = vadd.f32 %v5518, %v5646
        %v5648 = vpop.f32.mrf.mxu0
        %5649 = vmatprep.mubr.f32.mxu0 0.0
        %5650 = vmatmul.mubr.f32.gmra.mxu0 %v4838
        %v5651 = vpop.f32.mrf.mxu0
        %v5652 = vadd.f32 %v5518, %v5651
        %v5653 = vpop.f32.mrf.mxu0
        %5654 = vmatprep.mubr.f32.mxu0 0.0
        %5655 = vmatmul.mubr.f32.gmra.mxu0 %v4841
        %v5656 = vpop.f32.mrf.mxu0
        %v5657 = vadd.f32 %v5518, %v5656
        %v5658 = vpop.f32.mrf.mxu0
        %5659 = vmatprep.mubr.f32.mxu0 0.0
        %5660 = vmatmul.mubr.f32.gmra.mxu0 %v4844
        %v5661 = vpop.f32.mrf.mxu0
        %v5662 = vadd.f32 %v5518, %v5661
        %v5663 = vpop.f32.mrf.mxu0
        %5664 = vmatprep.mubr.f32.mxu0 0.0
        %5665 = vmatmul.mubr.f32.gmra.mxu0 %v4847
        %v5666 = vpop.f32.mrf.mxu0
        %v5667 = vadd.f32 %v5518, %v5666
        %v5668 = vpop.f32.mrf.mxu0
        %5669 = vmatprep.mubr.f32.mxu0 0.0
        %5670 = vmatmul.mubr.f32.gmra.mxu0 %v4850
        %v5671 = vpop.f32.mrf.mxu0
        %v5672 = vadd.f32 %v5518, %v5671
        %v5673 = vpop.f32.mrf.mxu0
        %5674 = vmatprep.mubr.f32.mxu0 0.0
        %5675 = vmatmul.mubr.f32.gmra.mxu0 %v4853
        %v5676 = vpop.f32.mrf.mxu0
        %v5677 = vadd.f32 %v5518, %v5676
        %v5678 = vpop.f32.mrf.mxu0
        %5679 = vmatprep.mubr.f32.mxu0 0.0
        %5680 = vmatmul.mubr.f32.gmra.mxu0 %v4856
        %v5681 = vpop.f32.mrf.mxu0
        %v5682 = vadd.f32 %v5518, %v5681
        %v5683 = vpop.f32.mrf.mxu0
        %5684 = vmatprep.mubr.f32.mxu0 0.0
        %5685 = vmatmul.mubr.f32.gmra.mxu0 %v4859
        %v5686 = vpop.f32.mrf.mxu0
        %v5687 = vadd.f32 %v5518, %v5686
        %v5688 = vpop.f32.mrf.mxu0
        %5689 = vmatprep.mubr.f32.mxu0 0.0
        %5690 = vmatmul.mubr.f32.gmra.mxu0 %v4862
        %v5691 = vpop.f32.mrf.mxu0
        %v5692 = vadd.f32 %v5518, %v5691
        %v5693 = vpop.f32.mrf.mxu0
        %5694 = vmatprep.mubr.f32.mxu0 0.0
        %5695 = vmatmul.mubr.f32.gmra.mxu0 %v4865
        %v5696 = vpop.f32.mrf.mxu0
        %v5697 = vadd.f32 %v5518, %v5696
        %v5698 = vpop.f32.mrf.mxu0
        %5699 = vmatprep.mubr.f32.mxu0 0.0
        %5700 = vmatmul.mubr.f32.gmra.mxu0 %v4868
        %v5701 = vpop.f32.mrf.mxu0
        %v5702 = vadd.f32 %v5518, %v5701
        %v5703 = vpop.f32.mrf.mxu0
        %5704 = vmatprep.mubr.f32.mxu0 0.0
        %5705 = vmatmul.mubr.f32.gmra.mxu0 %v4871
        %v5706 = vpop.f32.mrf.mxu0
        %v5707 = vadd.f32 %v5518, %v5706
        %v5708 = vpop.f32.mrf.mxu0
        %5709 = vmatprep.mubr.f32.mxu0 0.0
        %5710 = vmatmul.mubr.f32.gmra.mxu0 %v4874
        %v5711 = vpop.f32.mrf.mxu0
        %v5712 = vadd.f32 %v5518, %v5711
        %v5713 = vpop.f32.mrf.mxu0
        %5714 = vmatprep.mubr.f32.mxu0 0.0
        %5715 = vmatmul.mubr.f32.gmra.mxu0 %v4877
        %v5716 = vpop.f32.mrf.mxu0
        %v5717 = vadd.f32 %v5518, %v5716
        %v5718 = vpop.f32.mrf.mxu0
        %5719 = vmatprep.mubr.f32.mxu0 0.0
        %5720 = vmatmul.mubr.f32.gmra.mxu0 %v4880
        %v5721 = vpop.f32.mrf.mxu0
        %v5722 = vadd.f32 %v5518, %v5721
        %v5723 = vpop.f32.mrf.mxu0
        %5724 = vmatprep.mubr.f32.mxu0 0.0
        %5725 = vmatmul.mubr.f32.gmra.mxu0 %v4883
        %v5726 = vpop.f32.mrf.mxu0
        %v5727 = vadd.f32 %v5518, %v5726
        %v5728 = vpop.f32.mrf.mxu0
        %5729 = vmatprep.mubr.f32.mxu0 0.0
        %5730 = vmatmul.mubr.f32.gmra.mxu0 %v4886
        %v5731 = vpop.f32.mrf.mxu0
        %v5732 = vadd.f32 %v5518, %v5731
        %v5733 = vpop.f32.mrf.mxu0
        %5734 = vmatprep.mubr.f32.mxu0 0.0
        %5735 = vmatmul.mubr.f32.gmra.mxu0 %v4889
        %v5736 = vpop.f32.mrf.mxu0
        %v5737 = vadd.f32 %v5518, %v5736
        %v5738 = vpop.f32.mrf.mxu0
        %5739 = vmatprep.mubr.f32.mxu0 0.0
        %5740 = vmatmul.mubr.f32.gmra.mxu0 %v4892
        %v5741 = vpop.f32.mrf.mxu0
        %v5742 = vadd.f32 %v5518, %v5741
        %v5743 = vpop.f32.mrf.mxu0
        %5744 = vdwg.mxu0
        %v5745 = vmax.f32 %v5587, 0.0
        %v5746 = vmax.f32 %v5592, 0.0
        %v5747 = vmax.f32 %v5597, 0.0
        %v5748 = vmax.f32 %v5602, 0.0
        %v5749 = vmax.f32 %v5607, 0.0
        %v5750 = vmax.f32 %v5612, 0.0
        %v5751 = vmax.f32 %v5617, 0.0
        %v5752 = vmax.f32 %v5622, 0.0
        %v5753 = vmax.f32 %v5627, 0.0
        %v5754 = vmax.f32 %v5632, 0.0
        %v5755 = vmax.f32 %v5637, 0.0
        %v5756 = vmax.f32 %v5642, 0.0
        %v5757 = vmax.f32 %v5647, 0.0
        %v5758 = vmax.f32 %v5652, 0.0
        %v5759 = vmax.f32 %v5657, 0.0
        %v5760 = vmax.f32 %v5662, 0.0
        %v5761 = vmax.f32 %v5667, 0.0
        %v5762 = vmax.f32 %v5672, 0.0
        %v5763 = vmax.f32 %v5677, 0.0
        %v5764 = vmax.f32 %v5682, 0.0
        %v5765 = vmax.f32 %v5687, 0.0
        %v5766 = vmax.f32 %v5692, 0.0
        %v5767 = vmax.f32 %v5697, 0.0
        %v5768 = vmax.f32 %v5702, 0.0
        %v5769 = vmax.f32 %v5707, 0.0
        %v5770 = vmax.f32 %v5712, 0.0
        %v5771 = vmax.f32 %v5717, 0.0
        %v5772 = vmax.f32 %v5722, 0.0
        %v5773 = vmax.f32 %v5727, 0.0
        %v5774 = vmax.f32 %v5732, 0.0
        %v5775 = vmax.f32 %v5737, 0.0
        %v5776 = vmax.f32 %v5742, 0.0
        %v5777 = vld [vmem:[%s21] sm:$0xff]
        %v5778 = vld [vmem:[%s20] sm:$0x1]
        %v5780 = vlaneseq
        %v5781 = vshrl.u32 %v5780, 7
        %v5782 = vsub.s32 0, %v5781
        %v5783 = vrot.slane %v5778, %v5782
        %v5786 = vsel %vm1169, %v5745, 0
        %v5789 = vsel %vm1169, %v5746, 0
        %v5792 = vsel %vm1169, %v5747, 0
        %v5795 = vsel %vm1169, %v5748, 0
        %v5798 = vsel %vm1169, %v5749, 0
        %v5801 = vsel %vm1169, %v5750, 0
        %v5804 = vsel %vm1169, %v5751, 0
        %v5807 = vsel %vm1169, %v5752, 0
        %v5810 = vsel %vm1169, %v5753, 0
        %v5813 = vsel %vm1169, %v5754, 0
        %v5816 = vsel %vm1169, %v5755, 0
        %v5819 = vsel %vm1169, %v5756, 0
        %v5822 = vsel %vm1169, %v5757, 0
        %v5825 = vsel %vm1169, %v5758, 0
        %v5828 = vsel %vm1169, %v5759, 0
        %v5831 = vsel %vm1169, %v5760, 0
        %v5834 = vsel %vm1169, %v5761, 0
        %v5837 = vsel %vm1169, %v5762, 0
        %v5840 = vsel %vm1169, %v5763, 0
        %v5843 = vsel %vm1169, %v5764, 0
        %v5846 = vsel %vm1169, %v5765, 0
        %v5849 = vsel %vm1169, %v5766, 0
        %v5852 = vsel %vm1169, %v5767, 0
        %v5855 = vsel %vm1169, %v5768, 0
        %v5858 = vsel %vm1169, %v5769, 0
        %v5861 = vsel %vm1169, %v5770, 0
        %v5864 = vsel %vm1169, %v5771, 0
        %v5867 = vsel %vm1169, %v5772, 0
        %v5870 = vsel %vm1169, %v5773, 0
        %v5873 = vsel %vm1169, %v5774, 0
        %v5876 = vsel %vm1169, %v5775, 0
        %v5879 = vsel %vm1169, %v5776, 0
        %5881 = vmatprep.subr.mxu0 0.0
        %5882 = vmatpush1.msra.mxu0 0.0
        %5883 = vmatprep.subr.mxu0 0.0
        %5884 = vmatpush1.msra.mxu0 0.0
        %5885 = vmatprep.subr.mxu0 0.0
        %5886 = vmatpush1.msra.mxu0 0.0
        %5887 = vmatprep.subr.mxu0 0.0
        %5888 = vmatpush1.msra.mxu0 0.0
        %5889 = vmatprep.subr.mxu0 0.0
        %5890 = vmatpush1.msra.mxu0 0.0
        %5891 = vmatprep.subr.mxu0 0.0
        %5892 = vmatpush1.msra.mxu0 0.0
        %5893 = vmatprep.subr.mxu0 0.0
        %5894 = vmatpush1.msra.mxu0 0.0
        %5895 = vmatprep.subr.mxu0 0.0
        %5896 = vmatpush1.msra.mxu0 0.0
        %5897 = vmatprep.subr.mxu0 0.0
        %5898 = vmatpush1.msra.mxu0 0.0
        %5899 = vmatprep.subr.mxu0 0.0
        %5900 = vmatpush1.msra.mxu0 0.0
        %5901 = vmatprep.subr.mxu0 0.0
        %5902 = vmatpush1.msra.mxu0 0.0
        %5903 = vmatprep.subr.mxu0 0.0
        %5904 = vmatpush1.msra.mxu0 0.0
        %5905 = vmatprep.subr.mxu0 0.0
        %5906 = vmatpush1.msra.mxu0 0.0
        %5907 = vmatprep.subr.mxu0 0.0
        %5908 = vmatpush1.msra.mxu0 0.0
        %5909 = vmatprep.subr.mxu0 0.0
        %5910 = vmatpush1.msra.mxu0 0.0
        %5911 = vmatprep.subr.mxu0 0.0
        %5912 = vmatpush1.msra.mxu0 %v5777
        %5913 = vmatprep.subr.mxu0 0.0
        %5914 = vmatpush2.msra.mxu0 0.0
        %5915 = vmatprep.subr.mxu0 0.0
        %5916 = vmatpush2.msra.mxu0 0.0
        %5917 = vmatprep.subr.mxu0 0.0
        %5918 = vmatpush2.msra.mxu0 0.0
        %5919 = vmatprep.subr.mxu0 0.0
        %5920 = vmatpush2.msra.mxu0 0.0
        %5921 = vmatprep.subr.mxu0 0.0
        %5922 = vmatpush2.msra.mxu0 0.0
        %5923 = vmatprep.subr.mxu0 0.0
        %5924 = vmatpush2.msra.mxu0 0.0
        %5925 = vmatprep.subr.mxu0 0.0
        %5926 = vmatpush2.msra.mxu0 0.0
        %5927 = vmatprep.subr.mxu0 0.0
        %5928 = vmatpush2.msra.mxu0 0.0
        %5929 = vmatprep.subr.mxu0 0.0
        %5930 = vmatpush2.msra.mxu0 0.0
        %5931 = vmatprep.subr.mxu0 0.0
        %5932 = vmatpush2.msra.mxu0 0.0
        %5933 = vmatprep.subr.mxu0 0.0
        %5934 = vmatpush2.msra.mxu0 0.0
        %5935 = vmatprep.subr.mxu0 0.0
        %5936 = vmatpush2.msra.mxu0 0.0
        %5937 = vmatprep.subr.mxu0 0.0
        %5938 = vmatpush2.msra.mxu0 0.0
        %5939 = vmatprep.subr.mxu0 0.0
        %5940 = vmatpush2.msra.mxu0 0.0
        %5941 = vmatprep.subr.mxu0 0.0
        %5942 = vmatpush2.msra.mxu0 0.0
        %5943 = vmatprep.subr.mxu0 0.0
        %5944 = vmatpush2.msra.mxu0 0.0
        %5945 = vmatprep.mubr.f32.mxu0 0.0
        %5946 = vmatmul.mubr.f32.gmra.mxu0 %v5786
        %v5947 = vpop.f32.mrf.mxu0
        %v5948 = vadd.f32 %v5783, %v5947
        %v5949 = vpop.f32.mrf.mxu0
        %5950 = vmatprep.mubr.f32.mxu0 0.0
        %5951 = vmatmul.mubr.f32.gmra.mxu0 %v5789
        %v5952 = vpop.f32.mrf.mxu0
        %v5953 = vadd.f32 %v5783, %v5952
        %v5954 = vpop.f32.mrf.mxu0
        %5955 = vmatprep.mubr.f32.mxu0 0.0
        %5956 = vmatmul.mubr.f32.gmra.mxu0 %v5792
        %v5957 = vpop.f32.mrf.mxu0
        %v5958 = vadd.f32 %v5783, %v5957
        %v5959 = vpop.f32.mrf.mxu0
        %5960 = vmatprep.mubr.f32.mxu0 0.0
        %5961 = vmatmul.mubr.f32.gmra.mxu0 %v5795
        %v5962 = vpop.f32.mrf.mxu0
        %v5963 = vadd.f32 %v5783, %v5962
        %v5964 = vpop.f32.mrf.mxu0
        %5965 = vmatprep.mubr.f32.mxu0 0.0
        %5966 = vmatmul.mubr.f32.gmra.mxu0 %v5798
        %v5967 = vpop.f32.mrf.mxu0
        %v5968 = vadd.f32 %v5783, %v5967
        %v5969 = vpop.f32.mrf.mxu0
        %5970 = vmatprep.mubr.f32.mxu0 0.0
        %5971 = vmatmul.mubr.f32.gmra.mxu0 %v5801
        %v5972 = vpop.f32.mrf.mxu0
        %v5973 = vadd.f32 %v5783, %v5972
        %v5974 = vpop.f32.mrf.mxu0
        %5975 = vmatprep.mubr.f32.mxu0 0.0
        %5976 = vmatmul.mubr.f32.gmra.mxu0 %v5804
        %v5977 = vpop.f32.mrf.mxu0
        %v5978 = vadd.f32 %v5783, %v5977
        %v5979 = vpop.f32.mrf.mxu0
        %5980 = vmatprep.mubr.f32.mxu0 0.0
        %5981 = vmatmul.mubr.f32.gmra.mxu0 %v5807
        %v5982 = vpop.f32.mrf.mxu0
        %v5983 = vadd.f32 %v5783, %v5982
        %v5984 = vpop.f32.mrf.mxu0
        %5985 = vmatprep.mubr.f32.mxu0 0.0
        %5986 = vmatmul.mubr.f32.gmra.mxu0 %v5810
        %v5987 = vpop.f32.mrf.mxu0
        %v5988 = vadd.f32 %v5783, %v5987
        %v5989 = vpop.f32.mrf.mxu0
        %5990 = vmatprep.mubr.f32.mxu0 0.0
        %5991 = vmatmul.mubr.f32.gmra.mxu0 %v5813
        %v5992 = vpop.f32.mrf.mxu0
        %v5993 = vadd.f32 %v5783, %v5992
        %v5994 = vpop.f32.mrf.mxu0
        %5995 = vmatprep.mubr.f32.mxu0 0.0
        %5996 = vmatmul.mubr.f32.gmra.mxu0 %v5816
        %v5997 = vpop.f32.mrf.mxu0
        %v5998 = vadd.f32 %v5783, %v5997
        %v5999 = vpop.f32.mrf.mxu0
        %6000 = vmatprep.mubr.f32.mxu0 0.0
        %6001 = vmatmul.mubr.f32.gmra.mxu0 %v5819
        %v6002 = vpop.f32.mrf.mxu0
        %v6003 = vadd.f32 %v5783, %v6002
        %v6004 = vpop.f32.mrf.mxu0
        %6005 = vmatprep.mubr.f32.mxu0 0.0
        %6006 = vmatmul.mubr.f32.gmra.mxu0 %v5822
        %v6007 = vpop.f32.mrf.mxu0
        %v6008 = vadd.f32 %v5783, %v6007
        %v6009 = vpop.f32.mrf.mxu0
        %6010 = vmatprep.mubr.f32.mxu0 0.0
        %6011 = vmatmul.mubr.f32.gmra.mxu0 %v5825
        %v6012 = vpop.f32.mrf.mxu0
        %v6013 = vadd.f32 %v5783, %v6012
        %v6014 = vpop.f32.mrf.mxu0
        %6015 = vmatprep.mubr.f32.mxu0 0.0
        %6016 = vmatmul.mubr.f32.gmra.mxu0 %v5828
        %v6017 = vpop.f32.mrf.mxu0
        %v6018 = vadd.f32 %v5783, %v6017
        %v6019 = vpop.f32.mrf.mxu0
        %6020 = vmatprep.mubr.f32.mxu0 0.0
        %6021 = vmatmul.mubr.f32.gmra.mxu0 %v5831
        %v6022 = vpop.f32.mrf.mxu0
        %v6023 = vadd.f32 %v5783, %v6022
        %v6024 = vpop.f32.mrf.mxu0
        %6025 = vmatprep.mubr.f32.mxu0 0.0
        %6026 = vmatmul.mubr.f32.gmra.mxu0 %v5834
        %v6027 = vpop.f32.mrf.mxu0
        %v6028 = vadd.f32 %v5783, %v6027
        %v6029 = vpop.f32.mrf.mxu0
        %6030 = vmatprep.mubr.f32.mxu0 0.0
        %6031 = vmatmul.mubr.f32.gmra.mxu0 %v5837
        %v6032 = vpop.f32.mrf.mxu0
        %v6033 = vadd.f32 %v5783, %v6032
        %v6034 = vpop.f32.mrf.mxu0
        %6035 = vmatprep.mubr.f32.mxu0 0.0
        %6036 = vmatmul.mubr.f32.gmra.mxu0 %v5840
        %v6037 = vpop.f32.mrf.mxu0
        %v6038 = vadd.f32 %v5783, %v6037
        %v6039 = vpop.f32.mrf.mxu0
        %6040 = vmatprep.mubr.f32.mxu0 0.0
        %6041 = vmatmul.mubr.f32.gmra.mxu0 %v5843
        %v6042 = vpop.f32.mrf.mxu0
        %v6043 = vadd.f32 %v5783, %v6042
        %v6044 = vpop.f32.mrf.mxu0
        %6045 = vmatprep.mubr.f32.mxu0 0.0
        %6046 = vmatmul.mubr.f32.gmra.mxu0 %v5846
        %v6047 = vpop.f32.mrf.mxu0
        %v6048 = vadd.f32 %v5783, %v6047
        %v6049 = vpop.f32.mrf.mxu0
        %6050 = vmatprep.mubr.f32.mxu0 0.0
        %6051 = vmatmul.mubr.f32.gmra.mxu0 %v5849
        %v6052 = vpop.f32.mrf.mxu0
        %v6053 = vadd.f32 %v5783, %v6052
        %v6054 = vpop.f32.mrf.mxu0
        %6055 = vmatprep.mubr.f32.mxu0 0.0
        %6056 = vmatmul.mubr.f32.gmra.mxu0 %v5852
        %v6057 = vpop.f32.mrf.mxu0
        %v6058 = vadd.f32 %v5783, %v6057
        %v6059 = vpop.f32.mrf.mxu0
        %6060 = vmatprep.mubr.f32.mxu0 0.0
        %6061 = vmatmul.mubr.f32.gmra.mxu0 %v5855
        %v6062 = vpop.f32.mrf.mxu0
        %v6063 = vadd.f32 %v5783, %v6062
        %v6064 = vpop.f32.mrf.mxu0
        %6065 = vmatprep.mubr.f32.mxu0 0.0
        %6066 = vmatmul.mubr.f32.gmra.mxu0 %v5858
        %v6067 = vpop.f32.mrf.mxu0
        %v6068 = vadd.f32 %v5783, %v6067
        %v6069 = vpop.f32.mrf.mxu0
        %6070 = vmatprep.mubr.f32.mxu0 0.0
        %6071 = vmatmul.mubr.f32.gmra.mxu0 %v5861
        %v6072 = vpop.f32.mrf.mxu0
        %v6073 = vadd.f32 %v5783, %v6072
        %v6074 = vpop.f32.mrf.mxu0
        %6075 = vmatprep.mubr.f32.mxu0 0.0
        %6076 = vmatmul.mubr.f32.gmra.mxu0 %v5864
        %v6077 = vpop.f32.mrf.mxu0
        %v6078 = vadd.f32 %v5783, %v6077
        %v6079 = vpop.f32.mrf.mxu0
        %6080 = vmatprep.mubr.f32.mxu0 0.0
        %6081 = vmatmul.mubr.f32.gmra.mxu0 %v5867
        %v6082 = vpop.f32.mrf.mxu0
        %v6083 = vadd.f32 %v5783, %v6082
        %v6084 = vpop.f32.mrf.mxu0
        %6085 = vmatprep.mubr.f32.mxu0 0.0
        %6086 = vmatmul.mubr.f32.gmra.mxu0 %v5870
        %v6087 = vpop.f32.mrf.mxu0
        %v6088 = vadd.f32 %v5783, %v6087
        %v6089 = vpop.f32.mrf.mxu0
        %6090 = vmatprep.mubr.f32.mxu0 0.0
        %6091 = vmatmul.mubr.f32.gmra.mxu0 %v5873
        %v6092 = vpop.f32.mrf.mxu0
        %v6093 = vadd.f32 %v5783, %v6092
        %v6094 = vpop.f32.mrf.mxu0
        %6095 = vmatprep.mubr.f32.mxu0 0.0
        %6096 = vmatmul.mubr.f32.gmra.mxu0 %v5876
        %v6097 = vpop.f32.mrf.mxu0
        %v6098 = vadd.f32 %v5783, %v6097
        %v6099 = vpop.f32.mrf.mxu0
        %6100 = vmatprep.mubr.f32.mxu0 0.0
        %6101 = vmatmul.mubr.f32.gmra.mxu0 %v5879
        %v6102 = vpop.f32.mrf.mxu0
        %v6103 = vadd.f32 %v5783, %v6102
        %v6104 = vpop.f32.mrf.mxu0
        %6105 = vdwg.mxu0
        %v6106 = vmax.f32 %v5948, 0.0
        %v6107 = vmax.f32 %v5953, 0.0
        %v6108 = vmax.f32 %v5958, 0.0
        %v6109 = vmax.f32 %v5963, 0.0
        %v6110 = vmax.f32 %v5968, 0.0
        %v6111 = vmax.f32 %v5973, 0.0
        %v6112 = vmax.f32 %v5978, 0.0
        %v6113 = vmax.f32 %v5983, 0.0
        %v6114 = vmax.f32 %v5988, 0.0
        %v6115 = vmax.f32 %v5993, 0.0
        %v6116 = vmax.f32 %v5998, 0.0
        %v6117 = vmax.f32 %v6003, 0.0
        %v6118 = vmax.f32 %v6008, 0.0
        %v6119 = vmax.f32 %v6013, 0.0
        %v6120 = vmax.f32 %v6018, 0.0
        %v6121 = vmax.f32 %v6023, 0.0
        %v6122 = vmax.f32 %v6028, 0.0
        %v6123 = vmax.f32 %v6033, 0.0
        %v6124 = vmax.f32 %v6038, 0.0
        %v6125 = vmax.f32 %v6043, 0.0
        %v6126 = vmax.f32 %v6048, 0.0
        %v6127 = vmax.f32 %v6053, 0.0
        %v6128 = vmax.f32 %v6058, 0.0
        %v6129 = vmax.f32 %v6063, 0.0
        %v6130 = vmax.f32 %v6068, 0.0
        %v6131 = vmax.f32 %v6073, 0.0
        %v6132 = vmax.f32 %v6078, 0.0
        %v6133 = vmax.f32 %v6083, 0.0
        %v6134 = vmax.f32 %v6088, 0.0
        %v6135 = vmax.f32 %v6093, 0.0
        %v6136 = vmax.f32 %v6098, 0.0
        %v6137 = vmax.f32 %v6103, 0.0
        %v6138 = vlaneseq
        %v6139 = vshrl.u32 %v6138, 7
        %v6140 = vsub.s32 0, %v6139
        %v6141 = vrot.slane %v5480, %v6140
        %v6142 = vlaneseq
        %v6143 = vshrl.u32 %v6142, 7
        %v6144 = vsub.s32 0, %v6143
        %v6145 = vrot.slane %v5482, %v6144
        %v6146 = vlaneseq
        %v6147 = vshrl.u32 %v6146, 7
        %v6148 = vsub.s32 0, %v6147
        %v6149 = vrot.slane %v5484, %v6148
        %v6150 = vlaneseq
        %v6151 = vshrl.u32 %v6150, 7
        %v6152 = vsub.s32 0, %v6151
        %v6153 = vrot.slane %v5486, %v6152
        %v6154 = vlaneseq
        %v6155 = vshrl.u32 %v6154, 7
        %v6156 = vsub.s32 0, %v6155
        %v6157 = vrot.slane %v5488, %v6156
        %v6158 = vlaneseq
        %v6159 = vshrl.u32 %v6158, 7
        %v6160 = vsub.s32 0, %v6159
        %v6161 = vrot.slane %v5490, %v6160
        %v6162 = vlaneseq
        %v6163 = vshrl.u32 %v6162, 7
        %v6164 = vsub.s32 0, %v6163
        %v6165 = vrot.slane %v5492, %v6164
        %v6166 = vlaneseq
        %v6167 = vshrl.u32 %v6166, 7
        %v6168 = vsub.s32 0, %v6167
        %v6169 = vrot.slane %v5494, %v6168
        %v6170 = vlaneseq
        %v6171 = vshrl.u32 %v6170, 7
        %v6172 = vsub.s32 0, %v6171
        %v6173 = vrot.slane %v5496, %v6172
        %v6174 = vlaneseq
        %v6175 = vshrl.u32 %v6174, 7
        %v6176 = vsub.s32 0, %v6175
        %v6177 = vrot.slane %v5498, %v6176
        %v6178 = vlaneseq
        %v6179 = vshrl.u32 %v6178, 7
        %v6180 = vsub.s32 0, %v6179
        %v6181 = vrot.slane %v5500, %v6180
        %v6182 = vlaneseq
        %v6183 = vshrl.u32 %v6182, 7
        %v6184 = vsub.s32 0, %v6183
        %v6185 = vrot.slane %v5502, %v6184
        %v6186 = vlaneseq
        %v6187 = vshrl.u32 %v6186, 7
        %v6188 = vsub.s32 0, %v6187
        %v6189 = vrot.slane %v5504, %v6188
        %v6190 = vlaneseq
        %v6191 = vshrl.u32 %v6190, 7
        %v6192 = vsub.s32 0, %v6191
        %v6193 = vrot.slane %v5506, %v6192
        %v6194 = vlaneseq
        %v6195 = vshrl.u32 %v6194, 7
        %v6196 = vsub.s32 0, %v6195
        %v6197 = vrot.slane %v5508, %v6196
        %v6198 = vlaneseq
        %v6199 = vshrl.u32 %v6198, 7
        %v6200 = vsub.s32 0, %v6199
        %v6201 = vrot.slane %v5510, %v6200
        %v6202 = vmul.f32 %v6141, %v6106
        %v6203 = vmul.f32 %v6141, %v6107
        %v6204 = vmul.f32 %v6145, %v6106
        %v6205 = vmul.f32 %v6145, %v6107
        %v6206 = vmul.f32 %v6149, %v6106
        %v6207 = vmul.f32 %v6149, %v6107
        %v6208 = vmul.f32 %v6153, %v6106
        %v6209 = vmul.f32 %v6153, %v6107
        %v6210 = vmul.f32 %v6157, %v6106
        %v6211 = vmul.f32 %v6157, %v6107
        %v6212 = vmul.f32 %v6161, %v6106
        %v6213 = vmul.f32 %v6161, %v6107
        %v6214 = vmul.f32 %v6165, %v6106
        %v6215 = vmul.f32 %v6165, %v6107
        %v6216 = vmul.f32 %v6169, %v6106
        %v6217 = vmul.f32 %v6169, %v6107
        %v6218 = vmul.f32 %v6173, %v6106
        %v6219 = vmul.f32 %v6173, %v6107
        %v6220 = vmul.f32 %v6177, %v6106
        %v6221 = vmul.f32 %v6177, %v6107
        %v6222 = vmul.f32 %v6181, %v6106
        %v6223 = vmul.f32 %v6181, %v6107
        %v6224 = vmul.f32 %v6185, %v6106
        %v6225 = vmul.f32 %v6185, %v6107
        %v6226 = vmul.f32 %v6189, %v6106
        %v6227 = vmul.f32 %v6189, %v6107
        %v6228 = vmul.f32 %v6193, %v6106
        %v6229 = vmul.f32 %v6193, %v6107
        %v6230 = vmul.f32 %v6197, %v6106
        %v6231 = vmul.f32 %v6197, %v6107
        %v6232 = vmul.f32 %v6201, %v6106
        %v6233 = vmul.f32 %v6201, %v6107
        %v6234 = vadd.f32 %v6202, 0.0
        %v6235 = vadd.f32 %v6203, 0.0
        %v6236 = vadd.f32 %v6204, 0.0
        %v6237 = vadd.f32 %v6205, 0.0
        %v6238 = vadd.f32 %v6206, 0.0
        %v6239 = vadd.f32 %v6207, 0.0
        %v6240 = vadd.f32 %v6208, 0.0
        %v6241 = vadd.f32 %v6209, 0.0
        %v6242 = vadd.f32 %v6210, 0.0
        %v6243 = vadd.f32 %v6211, 0.0
        %v6244 = vadd.f32 %v6212, 0.0
        %v6245 = vadd.f32 %v6213, 0.0
        %v6246 = vadd.f32 %v6214, 0.0
        %v6247 = vadd.f32 %v6215, 0.0
        %v6248 = vadd.f32 %v6216, 0.0
        %v6249 = vadd.f32 %v6217, 0.0
        %v6250 = vadd.f32 %v6218, 0.0
        %v6251 = vadd.f32 %v6219, 0.0
        %v6252 = vadd.f32 %v6220, 0.0
        %v6253 = vadd.f32 %v6221, 0.0
        %v6254 = vadd.f32 %v6222, 0.0
        %v6255 = vadd.f32 %v6223, 0.0
        %v6256 = vadd.f32 %v6224, 0.0
        %v6257 = vadd.f32 %v6225, 0.0
        %v6258 = vadd.f32 %v6226, 0.0
        %v6259 = vadd.f32 %v6227, 0.0
        %v6260 = vadd.f32 %v6228, 0.0
        %v6261 = vadd.f32 %v6229, 0.0
        %v6262 = vadd.f32 %v6230, 0.0
        %v6263 = vadd.f32 %v6231, 0.0
        %v6264 = vadd.f32 %v6232, 0.0
        %v6265 = vadd.f32 %v6233, 0.0
        %v6266 = vlaneseq
        %v6267 = vshrl.u32 %v6266, 7
        %v6268 = vsub.s32 1, %v6267
        %v6269 = vrot.slane %v5480, %v6268
        %v6270 = vlaneseq
        %v6271 = vshrl.u32 %v6270, 7
        %v6272 = vsub.s32 1, %v6271
        %v6273 = vrot.slane %v5482, %v6272
        %v6274 = vlaneseq
        %v6275 = vshrl.u32 %v6274, 7
        %v6276 = vsub.s32 1, %v6275
        %v6277 = vrot.slane %v5484, %v6276
        %v6278 = vlaneseq
        %v6279 = vshrl.u32 %v6278, 7
        %v6280 = vsub.s32 1, %v6279
        %v6281 = vrot.slane %v5486, %v6280
        %v6282 = vlaneseq
        %v6283 = vshrl.u32 %v6282, 7
        %v6284 = vsub.s32 1, %v6283
        %v6285 = vrot.slane %v5488, %v6284
        %v6286 = vlaneseq
        %v6287 = vshrl.u32 %v6286, 7
        %v6288 = vsub.s32 1, %v6287
        %v6289 = vrot.slane %v5490, %v6288
        %v6290 = vlaneseq
        %v6291 = vshrl.u32 %v6290, 7
        %v6292 = vsub.s32 1, %v6291
        %v6293 = vrot.slane %v5492, %v6292
        %v6294 = vlaneseq
        %v6295 = vshrl.u32 %v6294, 7
        %v6296 = vsub.s32 1, %v6295
        %v6297 = vrot.slane %v5494, %v6296
        %v6298 = vlaneseq
        %v6299 = vshrl.u32 %v6298, 7
        %v6300 = vsub.s32 1, %v6299
        %v6301 = vrot.slane %v5496, %v6300
        %v6302 = vlaneseq
        %v6303 = vshrl.u32 %v6302, 7
        %v6304 = vsub.s32 1, %v6303
        %v6305 = vrot.slane %v5498, %v6304
        %v6306 = vlaneseq
        %v6307 = vshrl.u32 %v6306, 7
        %v6308 = vsub.s32 1, %v6307
        %v6309 = vrot.slane %v5500, %v6308
        %v6310 = vlaneseq
        %v6311 = vshrl.u32 %v6310, 7
        %v6312 = vsub.s32 1, %v6311
        %v6313 = vrot.slane %v5502, %v6312
        %v6314 = vlaneseq
        %v6315 = vshrl.u32 %v6314, 7
        %v6316 = vsub.s32 1, %v6315
        %v6317 = vrot.slane %v5504, %v6316
        %v6318 = vlaneseq
        %v6319 = vshrl.u32 %v6318, 7
        %v6320 = vsub.s32 1, %v6319
        %v6321 = vrot.slane %v5506, %v6320
        %v6322 = vlaneseq
        %v6323 = vshrl.u32 %v6322, 7
        %v6324 = vsub.s32 1, %v6323
        %v6325 = vrot.slane %v5508, %v6324
        %v6326 = vlaneseq
        %v6327 = vshrl.u32 %v6326, 7
        %v6328 = vsub.s32 1, %v6327
        %v6329 = vrot.slane %v5510, %v6328
        %v6330 = vmul.f32 %v6269, %v6108
        %v6331 = vmul.f32 %v6269, %v6109
        %v6332 = vmul.f32 %v6273, %v6108
        %v6333 = vmul.f32 %v6273, %v6109
        %v6334 = vmul.f32 %v6277, %v6108
        %v6335 = vmul.f32 %v6277, %v6109
        %v6336 = vmul.f32 %v6281, %v6108
        %v6337 = vmul.f32 %v6281, %v6109
        %v6338 = vmul.f32 %v6285, %v6108
        %v6339 = vmul.f32 %v6285, %v6109
        %v6340 = vmul.f32 %v6289, %v6108
        %v6341 = vmul.f32 %v6289, %v6109
        %v6342 = vmul.f32 %v6293, %v6108
        %v6343 = vmul.f32 %v6293, %v6109
        %v6344 = vmul.f32 %v6297, %v6108
        %v6345 = vmul.f32 %v6297, %v6109
        %v6346 = vmul.f32 %v6301, %v6108
        %v6347 = vmul.f32 %v6301, %v6109
        %v6348 = vmul.f32 %v6305, %v6108
        %v6349 = vmul.f32 %v6305, %v6109
        %v6350 = vmul.f32 %v6309, %v6108
        %v6351 = vmul.f32 %v6309, %v6109
        %v6352 = vmul.f32 %v6313, %v6108
        %v6353 = vmul.f32 %v6313, %v6109
        %v6354 = vmul.f32 %v6317, %v6108
        %v6355 = vmul.f32 %v6317, %v6109
        %v6356 = vmul.f32 %v6321, %v6108
        %v6357 = vmul.f32 %v6321, %v6109
        %v6358 = vmul.f32 %v6325, %v6108
        %v6359 = vmul.f32 %v6325, %v6109
        %v6360 = vmul.f32 %v6329, %v6108
        %v6361 = vmul.f32 %v6329, %v6109
        %v6362 = vadd.f32 %v6234, %v6330
        %v6363 = vadd.f32 %v6235, %v6331
        %v6364 = vadd.f32 %v6236, %v6332
        %v6365 = vadd.f32 %v6237, %v6333
        %v6366 = vadd.f32 %v6238, %v6334
        %v6367 = vadd.f32 %v6239, %v6335
        %v6368 = vadd.f32 %v6240, %v6336
        %v6369 = vadd.f32 %v6241, %v6337
        %v6370 = vadd.f32 %v6242, %v6338
        %v6371 = vadd.f32 %v6243, %v6339
        %v6372 = vadd.f32 %v6244, %v6340
        %v6373 = vadd.f32 %v6245, %v6341
        %v6374 = vadd.f32 %v6246, %v6342
        %v6375 = vadd.f32 %v6247, %v6343
        %v6376 = vadd.f32 %v6248, %v6344
        %v6377 = vadd.f32 %v6249, %v6345
        %v6378 = vadd.f32 %v6250, %v6346
        %v6379 = vadd.f32 %v6251, %v6347
        %v6380 = vadd.f32 %v6252, %v6348
        %v6381 = vadd.f32 %v6253, %v6349
        %v6382 = vadd.f32 %v6254, %v6350
        %v6383 = vadd.f32 %v6255, %v6351
        %v6384 = vadd.f32 %v6256, %v6352
        %v6385 = vadd.f32 %v6257, %v6353
        %v6386 = vadd.f32 %v6258, %v6354
        %v6387 = vadd.f32 %v6259, %v6355
        %v6388 = vadd.f32 %v6260, %v6356
        %v6389 = vadd.f32 %v6261, %v6357
        %v6390 = vadd.f32 %v6262, %v6358
        %v6391 = vadd.f32 %v6263, %v6359
        %v6392 = vadd.f32 %v6264, %v6360
        %v6393 = vadd.f32 %v6265, %v6361
        %v6394 = vlaneseq
        %v6395 = vshrl.u32 %v6394, 7
        %v6396 = vsub.s32 2, %v6395
        %v6397 = vrot.slane %v5480, %v6396
        %v6398 = vlaneseq
        %v6399 = vshrl.u32 %v6398, 7
        %v6400 = vsub.s32 2, %v6399
        %v6401 = vrot.slane %v5482, %v6400
        %v6402 = vlaneseq
        %v6403 = vshrl.u32 %v6402, 7
        %v6404 = vsub.s32 2, %v6403
        %v6405 = vrot.slane %v5484, %v6404
        %v6406 = vlaneseq
        %v6407 = vshrl.u32 %v6406, 7
        %v6408 = vsub.s32 2, %v6407
        %v6409 = vrot.slane %v5486, %v6408
        %v6410 = vlaneseq
        %v6411 = vshrl.u32 %v6410, 7
        %v6412 = vsub.s32 2, %v6411
        %v6413 = vrot.slane %v5488, %v6412
        %v6414 = vlaneseq
        %v6415 = vshrl.u32 %v6414, 7
        %v6416 = vsub.s32 2, %v6415
        %v6417 = vrot.slane %v5490, %v6416
        %v6418 = vlaneseq
        %v6419 = vshrl.u32 %v6418, 7
        %v6420 = vsub.s32 2, %v6419
        %v6421 = vrot.slane %v5492, %v6420
        %v6422 = vlaneseq
        %v6423 = vshrl.u32 %v6422, 7
        %v6424 = vsub.s32 2, %v6423
        %v6425 = vrot.slane %v5494, %v6424
        %v6426 = vlaneseq
        %v6427 = vshrl.u32 %v6426, 7
        %v6428 = vsub.s32 2, %v6427
        %v6429 = vrot.slane %v5496, %v6428
        %v6430 = vlaneseq
        %v6431 = vshrl.u32 %v6430, 7
        %v6432 = vsub.s32 2, %v6431
        %v6433 = vrot.slane %v5498, %v6432
        %v6434 = vlaneseq
        %v6435 = vshrl.u32 %v6434, 7
        %v6436 = vsub.s32 2, %v6435
        %v6437 = vrot.slane %v5500, %v6436
        %v6438 = vlaneseq
        %v6439 = vshrl.u32 %v6438, 7
        %v6440 = vsub.s32 2, %v6439
        %v6441 = vrot.slane %v5502, %v6440
        %v6442 = vlaneseq
        %v6443 = vshrl.u32 %v6442, 7
        %v6444 = vsub.s32 2, %v6443
        %v6445 = vrot.slane %v5504, %v6444
        %v6446 = vlaneseq
        %v6447 = vshrl.u32 %v6446, 7
        %v6448 = vsub.s32 2, %v6447
        %v6449 = vrot.slane %v5506, %v6448
        %v6450 = vlaneseq
        %v6451 = vshrl.u32 %v6450, 7
        %v6452 = vsub.s32 2, %v6451
        %v6453 = vrot.slane %v5508, %v6452
        %v6454 = vlaneseq
        %v6455 = vshrl.u32 %v6454, 7
        %v6456 = vsub.s32 2, %v6455
        %v6457 = vrot.slane %v5510, %v6456
        %v6458 = vmul.f32 %v6397, %v6110
        %v6459 = vmul.f32 %v6397, %v6111
        %v6460 = vmul.f32 %v6401, %v6110
        %v6461 = vmul.f32 %v6401, %v6111
        %v6462 = vmul.f32 %v6405, %v6110
        %v6463 = vmul.f32 %v6405, %v6111
        %v6464 = vmul.f32 %v6409, %v6110
        %v6465 = vmul.f32 %v6409, %v6111
        %v6466 = vmul.f32 %v6413, %v6110
        %v6467 = vmul.f32 %v6413, %v6111
        %v6468 = vmul.f32 %v6417, %v6110
        %v6469 = vmul.f32 %v6417, %v6111
        %v6470 = vmul.f32 %v6421, %v6110
        %v6471 = vmul.f32 %v6421, %v6111
        %v6472 = vmul.f32 %v6425, %v6110
        %v6473 = vmul.f32 %v6425, %v6111
        %v6474 = vmul.f32 %v6429, %v6110
        %v6475 = vmul.f32 %v6429, %v6111
        %v6476 = vmul.f32 %v6433, %v6110
        %v6477 = vmul.f32 %v6433, %v6111
        %v6478 = vmul.f32 %v6437, %v6110
        %v6479 = vmul.f32 %v6437, %v6111
        %v6480 = vmul.f32 %v6441, %v6110
        %v6481 = vmul.f32 %v6441, %v6111
        %v6482 = vmul.f32 %v6445, %v6110
        %v6483 = vmul.f32 %v6445, %v6111
        %v6484 = vmul.f32 %v6449, %v6110
        %v6485 = vmul.f32 %v6449, %v6111
        %v6486 = vmul.f32 %v6453, %v6110
        %v6487 = vmul.f32 %v6453, %v6111
        %v6488 = vmul.f32 %v6457, %v6110
        %v6489 = vmul.f32 %v6457, %v6111
        %v6490 = vadd.f32 %v6362, %v6458
        %v6491 = vadd.f32 %v6363, %v6459
        %v6492 = vadd.f32 %v6364, %v6460
        %v6493 = vadd.f32 %v6365, %v6461
        %v6494 = vadd.f32 %v6366, %v6462
        %v6495 = vadd.f32 %v6367, %v6463
        %v6496 = vadd.f32 %v6368, %v6464
        %v6497 = vadd.f32 %v6369, %v6465
        %v6498 = vadd.f32 %v6370, %v6466
        %v6499 = vadd.f32 %v6371, %v6467
        %v6500 = vadd.f32 %v6372, %v6468
        %v6501 = vadd.f32 %v6373, %v6469
        %v6502 = vadd.f32 %v6374, %v6470
        %v6503 = vadd.f32 %v6375, %v6471
        %v6504 = vadd.f32 %v6376, %v6472
        %v6505 = vadd.f32 %v6377, %v6473
        %v6506 = vadd.f32 %v6378, %v6474
        %v6507 = vadd.f32 %v6379, %v6475
        %v6508 = vadd.f32 %v6380, %v6476
        %v6509 = vadd.f32 %v6381, %v6477
        %v6510 = vadd.f32 %v6382, %v6478
        %v6511 = vadd.f32 %v6383, %v6479
        %v6512 = vadd.f32 %v6384, %v6480
        %v6513 = vadd.f32 %v6385, %v6481
        %v6514 = vadd.f32 %v6386, %v6482
        %v6515 = vadd.f32 %v6387, %v6483
        %v6516 = vadd.f32 %v6388, %v6484
        %v6517 = vadd.f32 %v6389, %v6485
        %v6518 = vadd.f32 %v6390, %v6486
        %v6519 = vadd.f32 %v6391, %v6487
        %v6520 = vadd.f32 %v6392, %v6488
        %v6521 = vadd.f32 %v6393, %v6489
        %v6522 = vlaneseq
        %v6523 = vshrl.u32 %v6522, 7
        %v6524 = vsub.s32 3, %v6523
        %v6525 = vrot.slane %v5480, %v6524
        %v6526 = vlaneseq
        %v6527 = vshrl.u32 %v6526, 7
        %v6528 = vsub.s32 3, %v6527
        %v6529 = vrot.slane %v5482, %v6528
        %v6530 = vlaneseq
        %v6531 = vshrl.u32 %v6530, 7
        %v6532 = vsub.s32 3, %v6531
        %v6533 = vrot.slane %v5484, %v6532
        %v6534 = vlaneseq
        %v6535 = vshrl.u32 %v6534, 7
        %v6536 = vsub.s32 3, %v6535
        %v6537 = vrot.slane %v5486, %v6536
        %v6538 = vlaneseq
        %v6539 = vshrl.u32 %v6538, 7
        %v6540 = vsub.s32 3, %v6539
        %v6541 = vrot.slane %v5488, %v6540
        %v6542 = vlaneseq
        %v6543 = vshrl.u32 %v6542, 7
        %v6544 = vsub.s32 3, %v6543
        %v6545 = vrot.slane %v5490, %v6544
        %v6546 = vlaneseq
        %v6547 = vshrl.u32 %v6546, 7
        %v6548 = vsub.s32 3, %v6547
        %v6549 = vrot.slane %v5492, %v6548
        %v6550 = vlaneseq
        %v6551 = vshrl.u32 %v6550, 7
        %v6552 = vsub.s32 3, %v6551
        %v6553 = vrot.slane %v5494, %v6552
        %v6554 = vlaneseq
        %v6555 = vshrl.u32 %v6554, 7
        %v6556 = vsub.s32 3, %v6555
        %v6557 = vrot.slane %v5496, %v6556
        %v6558 = vlaneseq
        %v6559 = vshrl.u32 %v6558, 7
        %v6560 = vsub.s32 3, %v6559
        %v6561 = vrot.slane %v5498, %v6560
        %v6562 = vlaneseq
        %v6563 = vshrl.u32 %v6562, 7
        %v6564 = vsub.s32 3, %v6563
        %v6565 = vrot.slane %v5500, %v6564
        %v6566 = vlaneseq
        %v6567 = vshrl.u32 %v6566, 7
        %v6568 = vsub.s32 3, %v6567
        %v6569 = vrot.slane %v5502, %v6568
        %v6570 = vlaneseq
        %v6571 = vshrl.u32 %v6570, 7
        %v6572 = vsub.s32 3, %v6571
        %v6573 = vrot.slane %v5504, %v6572
        %v6574 = vlaneseq
        %v6575 = vshrl.u32 %v6574, 7
        %v6576 = vsub.s32 3, %v6575
        %v6577 = vrot.slane %v5506, %v6576
        %v6578 = vlaneseq
        %v6579 = vshrl.u32 %v6578, 7
        %v6580 = vsub.s32 3, %v6579
        %v6581 = vrot.slane %v5508, %v6580
        %v6582 = vlaneseq
        %v6583 = vshrl.u32 %v6582, 7
        %v6584 = vsub.s32 3, %v6583
        %v6585 = vrot.slane %v5510, %v6584
        %v6586 = vmul.f32 %v6525, %v6112
        %v6587 = vmul.f32 %v6525, %v6113
        %v6588 = vmul.f32 %v6529, %v6112
        %v6589 = vmul.f32 %v6529, %v6113
        %v6590 = vmul.f32 %v6533, %v6112
        %v6591 = vmul.f32 %v6533, %v6113
        %v6592 = vmul.f32 %v6537, %v6112
        %v6593 = vmul.f32 %v6537, %v6113
        %v6594 = vmul.f32 %v6541, %v6112
        %v6595 = vmul.f32 %v6541, %v6113
        %v6596 = vmul.f32 %v6545, %v6112
        %v6597 = vmul.f32 %v6545, %v6113
        %v6598 = vmul.f32 %v6549, %v6112
        %v6599 = vmul.f32 %v6549, %v6113
        %v6600 = vmul.f32 %v6553, %v6112
        %v6601 = vmul.f32 %v6553, %v6113
        %v6602 = vmul.f32 %v6557, %v6112
        %v6603 = vmul.f32 %v6557, %v6113
        %v6604 = vmul.f32 %v6561, %v6112
        %v6605 = vmul.f32 %v6561, %v6113
        %v6606 = vmul.f32 %v6565, %v6112
        %v6607 = vmul.f32 %v6565, %v6113
        %v6608 = vmul.f32 %v6569, %v6112
        %v6609 = vmul.f32 %v6569, %v6113
        %v6610 = vmul.f32 %v6573, %v6112
        %v6611 = vmul.f32 %v6573, %v6113
        %v6612 = vmul.f32 %v6577, %v6112
        %v6613 = vmul.f32 %v6577, %v6113
        %v6614 = vmul.f32 %v6581, %v6112
        %v6615 = vmul.f32 %v6581, %v6113
        %v6616 = vmul.f32 %v6585, %v6112
        %v6617 = vmul.f32 %v6585, %v6113
        %v6618 = vadd.f32 %v6490, %v6586
        %v6619 = vadd.f32 %v6491, %v6587
        %v6620 = vadd.f32 %v6492, %v6588
        %v6621 = vadd.f32 %v6493, %v6589
        %v6622 = vadd.f32 %v6494, %v6590
        %v6623 = vadd.f32 %v6495, %v6591
        %v6624 = vadd.f32 %v6496, %v6592
        %v6625 = vadd.f32 %v6497, %v6593
        %v6626 = vadd.f32 %v6498, %v6594
        %v6627 = vadd.f32 %v6499, %v6595
        %v6628 = vadd.f32 %v6500, %v6596
        %v6629 = vadd.f32 %v6501, %v6597
        %v6630 = vadd.f32 %v6502, %v6598
        %v6631 = vadd.f32 %v6503, %v6599
        %v6632 = vadd.f32 %v6504, %v6600
        %v6633 = vadd.f32 %v6505, %v6601
        %v6634 = vadd.f32 %v6506, %v6602
        %v6635 = vadd.f32 %v6507, %v6603
        %v6636 = vadd.f32 %v6508, %v6604
        %v6637 = vadd.f32 %v6509, %v6605
        %v6638 = vadd.f32 %v6510, %v6606
        %v6639 = vadd.f32 %v6511, %v6607
        %v6640 = vadd.f32 %v6512, %v6608
        %v6641 = vadd.f32 %v6513, %v6609
        %v6642 = vadd.f32 %v6514, %v6610
        %v6643 = vadd.f32 %v6515, %v6611
        %v6644 = vadd.f32 %v6516, %v6612
        %v6645 = vadd.f32 %v6517, %v6613
        %v6646 = vadd.f32 %v6518, %v6614
        %v6647 = vadd.f32 %v6519, %v6615
        %v6648 = vadd.f32 %v6520, %v6616
        %v6649 = vadd.f32 %v6521, %v6617
        %v6650 = vlaneseq
        %v6651 = vshrl.u32 %v6650, 7
        %v6652 = vsub.s32 4, %v6651
        %v6653 = vrot.slane %v5480, %v6652
        %v6654 = vlaneseq
        %v6655 = vshrl.u32 %v6654, 7
        %v6656 = vsub.s32 4, %v6655
        %v6657 = vrot.slane %v5482, %v6656
        %v6658 = vlaneseq
        %v6659 = vshrl.u32 %v6658, 7
        %v6660 = vsub.s32 4, %v6659
        %v6661 = vrot.slane %v5484, %v6660
        %v6662 = vlaneseq
        %v6663 = vshrl.u32 %v6662, 7
        %v6664 = vsub.s32 4, %v6663
        %v6665 = vrot.slane %v5486, %v6664
        %v6666 = vlaneseq
        %v6667 = vshrl.u32 %v6666, 7
        %v6668 = vsub.s32 4, %v6667
        %v6669 = vrot.slane %v5488, %v6668
        %v6670 = vlaneseq
        %v6671 = vshrl.u32 %v6670, 7
        %v6672 = vsub.s32 4, %v6671
        %v6673 = vrot.slane %v5490, %v6672
        %v6674 = vlaneseq
        %v6675 = vshrl.u32 %v6674, 7
        %v6676 = vsub.s32 4, %v6675
        %v6677 = vrot.slane %v5492, %v6676
        %v6678 = vlaneseq
        %v6679 = vshrl.u32 %v6678, 7
        %v6680 = vsub.s32 4, %v6679
        %v6681 = vrot.slane %v5494, %v6680
        %v6682 = vlaneseq
        %v6683 = vshrl.u32 %v6682, 7
        %v6684 = vsub.s32 4, %v6683
        %v6685 = vrot.slane %v5496, %v6684
        %v6686 = vlaneseq
        %v6687 = vshrl.u32 %v6686, 7
        %v6688 = vsub.s32 4, %v6687
        %v6689 = vrot.slane %v5498, %v6688
        %v6690 = vlaneseq
        %v6691 = vshrl.u32 %v6690, 7
        %v6692 = vsub.s32 4, %v6691
        %v6693 = vrot.slane %v5500, %v6692
        %v6694 = vlaneseq
        %v6695 = vshrl.u32 %v6694, 7
        %v6696 = vsub.s32 4, %v6695
        %v6697 = vrot.slane %v5502, %v6696
        %v6698 = vlaneseq
        %v6699 = vshrl.u32 %v6698, 7
        %v6700 = vsub.s32 4, %v6699
        %v6701 = vrot.slane %v5504, %v6700
        %v6702 = vlaneseq
        %v6703 = vshrl.u32 %v6702, 7
        %v6704 = vsub.s32 4, %v6703
        %v6705 = vrot.slane %v5506, %v6704
        %v6706 = vlaneseq
        %v6707 = vshrl.u32 %v6706, 7
        %v6708 = vsub.s32 4, %v6707
        %v6709 = vrot.slane %v5508, %v6708
        %v6710 = vlaneseq
        %v6711 = vshrl.u32 %v6710, 7
        %v6712 = vsub.s32 4, %v6711
        %v6713 = vrot.slane %v5510, %v6712
        %v6714 = vmul.f32 %v6653, %v6114
        %v6715 = vmul.f32 %v6653, %v6115
        %v6716 = vmul.f32 %v6657, %v6114
        %v6717 = vmul.f32 %v6657, %v6115
        %v6718 = vmul.f32 %v6661, %v6114
        %v6719 = vmul.f32 %v6661, %v6115
        %v6720 = vmul.f32 %v6665, %v6114
        %v6721 = vmul.f32 %v6665, %v6115
        %v6722 = vmul.f32 %v6669, %v6114
        %v6723 = vmul.f32 %v6669, %v6115
        %v6724 = vmul.f32 %v6673, %v6114
        %v6725 = vmul.f32 %v6673, %v6115
        %v6726 = vmul.f32 %v6677, %v6114
        %v6727 = vmul.f32 %v6677, %v6115
        %v6728 = vmul.f32 %v6681, %v6114
        %v6729 = vmul.f32 %v6681, %v6115
        %v6730 = vmul.f32 %v6685, %v6114
        %v6731 = vmul.f32 %v6685, %v6115
        %v6732 = vmul.f32 %v6689, %v6114
        %v6733 = vmul.f32 %v6689, %v6115
        %v6734 = vmul.f32 %v6693, %v6114
        %v6735 = vmul.f32 %v6693, %v6115
        %v6736 = vmul.f32 %v6697, %v6114
        %v6737 = vmul.f32 %v6697, %v6115
        %v6738 = vmul.f32 %v6701, %v6114
        %v6739 = vmul.f32 %v6701, %v6115
        %v6740 = vmul.f32 %v6705, %v6114
        %v6741 = vmul.f32 %v6705, %v6115
        %v6742 = vmul.f32 %v6709, %v6114
        %v6743 = vmul.f32 %v6709, %v6115
        %v6744 = vmul.f32 %v6713, %v6114
        %v6745 = vmul.f32 %v6713, %v6115
        %v6746 = vadd.f32 %v6618, %v6714
        %v6747 = vadd.f32 %v6619, %v6715
        %v6748 = vadd.f32 %v6620, %v6716
        %v6749 = vadd.f32 %v6621, %v6717
        %v6750 = vadd.f32 %v6622, %v6718
        %v6751 = vadd.f32 %v6623, %v6719
        %v6752 = vadd.f32 %v6624, %v6720
        %v6753 = vadd.f32 %v6625, %v6721
        %v6754 = vadd.f32 %v6626, %v6722
        %v6755 = vadd.f32 %v6627, %v6723
        %v6756 = vadd.f32 %v6628, %v6724
        %v6757 = vadd.f32 %v6629, %v6725
        %v6758 = vadd.f32 %v6630, %v6726
        %v6759 = vadd.f32 %v6631, %v6727
        %v6760 = vadd.f32 %v6632, %v6728
        %v6761 = vadd.f32 %v6633, %v6729
        %v6762 = vadd.f32 %v6634, %v6730
        %v6763 = vadd.f32 %v6635, %v6731
        %v6764 = vadd.f32 %v6636, %v6732
        %v6765 = vadd.f32 %v6637, %v6733
        %v6766 = vadd.f32 %v6638, %v6734
        %v6767 = vadd.f32 %v6639, %v6735
        %v6768 = vadd.f32 %v6640, %v6736
        %v6769 = vadd.f32 %v6641, %v6737
        %v6770 = vadd.f32 %v6642, %v6738
        %v6771 = vadd.f32 %v6643, %v6739
        %v6772 = vadd.f32 %v6644, %v6740
        %v6773 = vadd.f32 %v6645, %v6741
        %v6774 = vadd.f32 %v6646, %v6742
        %v6775 = vadd.f32 %v6647, %v6743
        %v6776 = vadd.f32 %v6648, %v6744
        %v6777 = vadd.f32 %v6649, %v6745
        %v6778 = vlaneseq
        %v6779 = vshrl.u32 %v6778, 7
        %v6780 = vsub.s32 5, %v6779
        %v6781 = vrot.slane %v5480, %v6780
        %v6782 = vlaneseq
        %v6783 = vshrl.u32 %v6782, 7
        %v6784 = vsub.s32 5, %v6783
        %v6785 = vrot.slane %v5482, %v6784
        %v6786 = vlaneseq
        %v6787 = vshrl.u32 %v6786, 7
        %v6788 = vsub.s32 5, %v6787
        %v6789 = vrot.slane %v5484, %v6788
        %v6790 = vlaneseq
        %v6791 = vshrl.u32 %v6790, 7
        %v6792 = vsub.s32 5, %v6791
        %v6793 = vrot.slane %v5486, %v6792
        %v6794 = vlaneseq
        %v6795 = vshrl.u32 %v6794, 7
        %v6796 = vsub.s32 5, %v6795
        %v6797 = vrot.slane %v5488, %v6796
        %v6798 = vlaneseq
        %v6799 = vshrl.u32 %v6798, 7
        %v6800 = vsub.s32 5, %v6799
        %v6801 = vrot.slane %v5490, %v6800
        %v6802 = vlaneseq
        %v6803 = vshrl.u32 %v6802, 7
        %v6804 = vsub.s32 5, %v6803
        %v6805 = vrot.slane %v5492, %v6804
        %v6806 = vlaneseq
        %v6807 = vshrl.u32 %v6806, 7
        %v6808 = vsub.s32 5, %v6807
        %v6809 = vrot.slane %v5494, %v6808
        %v6810 = vlaneseq
        %v6811 = vshrl.u32 %v6810, 7
        %v6812 = vsub.s32 5, %v6811
        %v6813 = vrot.slane %v5496, %v6812
        %v6814 = vlaneseq
        %v6815 = vshrl.u32 %v6814, 7
        %v6816 = vsub.s32 5, %v6815
        %v6817 = vrot.slane %v5498, %v6816
        %v6818 = vlaneseq
        %v6819 = vshrl.u32 %v6818, 7
        %v6820 = vsub.s32 5, %v6819
        %v6821 = vrot.slane %v5500, %v6820
        %v6822 = vlaneseq
        %v6823 = vshrl.u32 %v6822, 7
        %v6824 = vsub.s32 5, %v6823
        %v6825 = vrot.slane %v5502, %v6824
        %v6826 = vlaneseq
        %v6827 = vshrl.u32 %v6826, 7
        %v6828 = vsub.s32 5, %v6827
        %v6829 = vrot.slane %v5504, %v6828
        %v6830 = vlaneseq
        %v6831 = vshrl.u32 %v6830, 7
        %v6832 = vsub.s32 5, %v6831
        %v6833 = vrot.slane %v5506, %v6832
        %v6834 = vlaneseq
        %v6835 = vshrl.u32 %v6834, 7
        %v6836 = vsub.s32 5, %v6835
        %v6837 = vrot.slane %v5508, %v6836
        %v6838 = vlaneseq
        %v6839 = vshrl.u32 %v6838, 7
        %v6840 = vsub.s32 5, %v6839
        %v6841 = vrot.slane %v5510, %v6840
        %v6842 = vmul.f32 %v6781, %v6116
        %v6843 = vmul.f32 %v6781, %v6117
        %v6844 = vmul.f32 %v6785, %v6116
        %v6845 = vmul.f32 %v6785, %v6117
        %v6846 = vmul.f32 %v6789, %v6116
        %v6847 = vmul.f32 %v6789, %v6117
        %v6848 = vmul.f32 %v6793, %v6116
        %v6849 = vmul.f32 %v6793, %v6117
        %v6850 = vmul.f32 %v6797, %v6116
        %v6851 = vmul.f32 %v6797, %v6117
        %v6852 = vmul.f32 %v6801, %v6116
        %v6853 = vmul.f32 %v6801, %v6117
        %v6854 = vmul.f32 %v6805, %v6116
        %v6855 = vmul.f32 %v6805, %v6117
        %v6856 = vmul.f32 %v6809, %v6116
        %v6857 = vmul.f32 %v6809, %v6117
        %v6858 = vmul.f32 %v6813, %v6116
        %v6859 = vmul.f32 %v6813, %v6117
        %v6860 = vmul.f32 %v6817, %v6116
        %v6861 = vmul.f32 %v6817, %v6117
        %v6862 = vmul.f32 %v6821, %v6116
        %v6863 = vmul.f32 %v6821, %v6117
        %v6864 = vmul.f32 %v6825, %v6116
        %v6865 = vmul.f32 %v6825, %v6117
        %v6866 = vmul.f32 %v6829, %v6116
        %v6867 = vmul.f32 %v6829, %v6117
        %v6868 = vmul.f32 %v6833, %v6116
        %v6869 = vmul.f32 %v6833, %v6117
        %v6870 = vmul.f32 %v6837, %v6116
        %v6871 = vmul.f32 %v6837, %v6117
        %v6872 = vmul.f32 %v6841, %v6116
        %v6873 = vmul.f32 %v6841, %v6117
        %v6874 = vadd.f32 %v6746, %v6842
        %v6875 = vadd.f32 %v6747, %v6843
        %v6876 = vadd.f32 %v6748, %v6844
        %v6877 = vadd.f32 %v6749, %v6845
        %v6878 = vadd.f32 %v6750, %v6846
        %v6879 = vadd.f32 %v6751, %v6847
        %v6880 = vadd.f32 %v6752, %v6848
        %v6881 = vadd.f32 %v6753, %v6849
        %v6882 = vadd.f32 %v6754, %v6850
        %v6883 = vadd.f32 %v6755, %v6851
        %v6884 = vadd.f32 %v6756, %v6852
        %v6885 = vadd.f32 %v6757, %v6853
        %v6886 = vadd.f32 %v6758, %v6854
        %v6887 = vadd.f32 %v6759, %v6855
        %v6888 = vadd.f32 %v6760, %v6856
        %v6889 = vadd.f32 %v6761, %v6857
        %v6890 = vadd.f32 %v6762, %v6858
        %v6891 = vadd.f32 %v6763, %v6859
        %v6892 = vadd.f32 %v6764, %v6860
        %v6893 = vadd.f32 %v6765, %v6861
        %v6894 = vadd.f32 %v6766, %v6862
        %v6895 = vadd.f32 %v6767, %v6863
        %v6896 = vadd.f32 %v6768, %v6864
        %v6897 = vadd.f32 %v6769, %v6865
        %v6898 = vadd.f32 %v6770, %v6866
        %v6899 = vadd.f32 %v6771, %v6867
        %v6900 = vadd.f32 %v6772, %v6868
        %v6901 = vadd.f32 %v6773, %v6869
        %v6902 = vadd.f32 %v6774, %v6870
        %v6903 = vadd.f32 %v6775, %v6871
        %v6904 = vadd.f32 %v6776, %v6872
        %v6905 = vadd.f32 %v6777, %v6873
        %v6906 = vlaneseq
        %v6907 = vshrl.u32 %v6906, 7
        %v6908 = vsub.s32 6, %v6907
        %v6909 = vrot.slane %v5480, %v6908
        %v6910 = vlaneseq
        %v6911 = vshrl.u32 %v6910, 7
        %v6912 = vsub.s32 6, %v6911
        %v6913 = vrot.slane %v5482, %v6912
        %v6914 = vlaneseq
        %v6915 = vshrl.u32 %v6914, 7
        %v6916 = vsub.s32 6, %v6915
        %v6917 = vrot.slane %v5484, %v6916
        %v6918 = vlaneseq
        %v6919 = vshrl.u32 %v6918, 7
        %v6920 = vsub.s32 6, %v6919
        %v6921 = vrot.slane %v5486, %v6920
        %v6922 = vlaneseq
        %v6923 = vshrl.u32 %v6922, 7
        %v6924 = vsub.s32 6, %v6923
        %v6925 = vrot.slane %v5488, %v6924
        %v6926 = vlaneseq
        %v6927 = vshrl.u32 %v6926, 7
        %v6928 = vsub.s32 6, %v6927
        %v6929 = vrot.slane %v5490, %v6928
        %v6930 = vlaneseq
        %v6931 = vshrl.u32 %v6930, 7
        %v6932 = vsub.s32 6, %v6931
        %v6933 = vrot.slane %v5492, %v6932
        %v6934 = vlaneseq
        %v6935 = vshrl.u32 %v6934, 7
        %v6936 = vsub.s32 6, %v6935
        %v6937 = vrot.slane %v5494, %v6936
        %v6938 = vlaneseq
        %v6939 = vshrl.u32 %v6938, 7
        %v6940 = vsub.s32 6, %v6939
        %v6941 = vrot.slane %v5496, %v6940
        %v6942 = vlaneseq
        %v6943 = vshrl.u32 %v6942, 7
        %v6944 = vsub.s32 6, %v6943
        %v6945 = vrot.slane %v5498, %v6944
        %v6946 = vlaneseq
        %v6947 = vshrl.u32 %v6946, 7
        %v6948 = vsub.s32 6, %v6947
        %v6949 = vrot.slane %v5500, %v6948
        %v6950 = vlaneseq
        %v6951 = vshrl.u32 %v6950, 7
        %v6952 = vsub.s32 6, %v6951
        %v6953 = vrot.slane %v5502, %v6952
        %v6954 = vlaneseq
        %v6955 = vshrl.u32 %v6954, 7
        %v6956 = vsub.s32 6, %v6955
        %v6957 = vrot.slane %v5504, %v6956
        %v6958 = vlaneseq
        %v6959 = vshrl.u32 %v6958, 7
        %v6960 = vsub.s32 6, %v6959
        %v6961 = vrot.slane %v5506, %v6960
        %v6962 = vlaneseq
        %v6963 = vshrl.u32 %v6962, 7
        %v6964 = vsub.s32 6, %v6963
        %v6965 = vrot.slane %v5508, %v6964
        %v6966 = vlaneseq
        %v6967 = vshrl.u32 %v6966, 7
        %v6968 = vsub.s32 6, %v6967
        %v6969 = vrot.slane %v5510, %v6968
        %v6970 = vmul.f32 %v6909, %v6118
        %v6971 = vmul.f32 %v6909, %v6119
        %v6972 = vmul.f32 %v6913, %v6118
        %v6973 = vmul.f32 %v6913, %v6119
        %v6974 = vmul.f32 %v6917, %v6118
        %v6975 = vmul.f32 %v6917, %v6119
        %v6976 = vmul.f32 %v6921, %v6118
        %v6977 = vmul.f32 %v6921, %v6119
        %v6978 = vmul.f32 %v6925, %v6118
        %v6979 = vmul.f32 %v6925, %v6119
        %v6980 = vmul.f32 %v6929, %v6118
        %v6981 = vmul.f32 %v6929, %v6119
        %v6982 = vmul.f32 %v6933, %v6118
        %v6983 = vmul.f32 %v6933, %v6119
        %v6984 = vmul.f32 %v6937, %v6118
        %v6985 = vmul.f32 %v6937, %v6119
        %v6986 = vmul.f32 %v6941, %v6118
        %v6987 = vmul.f32 %v6941, %v6119
        %v6988 = vmul.f32 %v6945, %v6118
        %v6989 = vmul.f32 %v6945, %v6119
        %v6990 = vmul.f32 %v6949, %v6118
        %v6991 = vmul.f32 %v6949, %v6119
        %v6992 = vmul.f32 %v6953, %v6118
        %v6993 = vmul.f32 %v6953, %v6119
        %v6994 = vmul.f32 %v6957, %v6118
        %v6995 = vmul.f32 %v6957, %v6119
        %v6996 = vmul.f32 %v6961, %v6118
        %v6997 = vmul.f32 %v6961, %v6119
        %v6998 = vmul.f32 %v6965, %v6118
        %v6999 = vmul.f32 %v6965, %v6119
        %v7000 = vmul.f32 %v6969, %v6118
        %v7001 = vmul.f32 %v6969, %v6119
        %v7002 = vadd.f32 %v6874, %v6970
        %v7003 = vadd.f32 %v6875, %v6971
        %v7004 = vadd.f32 %v6876, %v6972
        %v7005 = vadd.f32 %v6877, %v6973
        %v7006 = vadd.f32 %v6878, %v6974
        %v7007 = vadd.f32 %v6879, %v6975
        %v7008 = vadd.f32 %v6880, %v6976
        %v7009 = vadd.f32 %v6881, %v6977
        %v7010 = vadd.f32 %v6882, %v6978
        %v7011 = vadd.f32 %v6883, %v6979
        %v7012 = vadd.f32 %v6884, %v6980
        %v7013 = vadd.f32 %v6885, %v6981
        %v7014 = vadd.f32 %v6886, %v6982
        %v7015 = vadd.f32 %v6887, %v6983
        %v7016 = vadd.f32 %v6888, %v6984
        %v7017 = vadd.f32 %v6889, %v6985
        %v7018 = vadd.f32 %v6890, %v6986
        %v7019 = vadd.f32 %v6891, %v6987
        %v7020 = vadd.f32 %v6892, %v6988
        %v7021 = vadd.f32 %v6893, %v6989
        %v7022 = vadd.f32 %v6894, %v6990
        %v7023 = vadd.f32 %v6895, %v6991
        %v7024 = vadd.f32 %v6896, %v6992
        %v7025 = vadd.f32 %v6897, %v6993
        %v7026 = vadd.f32 %v6898, %v6994
        %v7027 = vadd.f32 %v6899, %v6995
        %v7028 = vadd.f32 %v6900, %v6996
        %v7029 = vadd.f32 %v6901, %v6997
        %v7030 = vadd.f32 %v6902, %v6998
        %v7031 = vadd.f32 %v6903, %v6999
        %v7032 = vadd.f32 %v6904, %v7000
        %v7033 = vadd.f32 %v6905, %v7001
        %v7034 = vlaneseq
        %v7035 = vshrl.u32 %v7034, 7
        %v7036 = vsub.s32 7, %v7035
        %v7037 = vrot.slane %v5480, %v7036
        %v7038 = vlaneseq
        %v7039 = vshrl.u32 %v7038, 7
        %v7040 = vsub.s32 7, %v7039
        %v7041 = vrot.slane %v5482, %v7040
        %v7042 = vlaneseq
        %v7043 = vshrl.u32 %v7042, 7
        %v7044 = vsub.s32 7, %v7043
        %v7045 = vrot.slane %v5484, %v7044
        %v7046 = vlaneseq
        %v7047 = vshrl.u32 %v7046, 7
        %v7048 = vsub.s32 7, %v7047
        %v7049 = vrot.slane %v5486, %v7048
        %v7050 = vlaneseq
        %v7051 = vshrl.u32 %v7050, 7
        %v7052 = vsub.s32 7, %v7051
        %v7053 = vrot.slane %v5488, %v7052
        %v7054 = vlaneseq
        %v7055 = vshrl.u32 %v7054, 7
        %v7056 = vsub.s32 7, %v7055
        %v7057 = vrot.slane %v5490, %v7056
        %v7058 = vlaneseq
        %v7059 = vshrl.u32 %v7058, 7
        %v7060 = vsub.s32 7, %v7059
        %v7061 = vrot.slane %v5492, %v7060
        %v7062 = vlaneseq
        %v7063 = vshrl.u32 %v7062, 7
        %v7064 = vsub.s32 7, %v7063
        %v7065 = vrot.slane %v5494, %v7064
        %v7066 = vlaneseq
        %v7067 = vshrl.u32 %v7066, 7
        %v7068 = vsub.s32 7, %v7067
        %v7069 = vrot.slane %v5496, %v7068
        %v7070 = vlaneseq
        %v7071 = vshrl.u32 %v7070, 7
        %v7072 = vsub.s32 7, %v7071
        %v7073 = vrot.slane %v5498, %v7072
        %v7074 = vlaneseq
        %v7075 = vshrl.u32 %v7074, 7
        %v7076 = vsub.s32 7, %v7075
        %v7077 = vrot.slane %v5500, %v7076
        %v7078 = vlaneseq
        %v7079 = vshrl.u32 %v7078, 7
        %v7080 = vsub.s32 7, %v7079
        %v7081 = vrot.slane %v5502, %v7080
        %v7082 = vlaneseq
        %v7083 = vshrl.u32 %v7082, 7
        %v7084 = vsub.s32 7, %v7083
        %v7085 = vrot.slane %v5504, %v7084
        %v7086 = vlaneseq
        %v7087 = vshrl.u32 %v7086, 7
        %v7088 = vsub.s32 7, %v7087
        %v7089 = vrot.slane %v5506, %v7088
        %v7090 = vlaneseq
        %v7091 = vshrl.u32 %v7090, 7
        %v7092 = vsub.s32 7, %v7091
        %v7093 = vrot.slane %v5508, %v7092
        %v7094 = vlaneseq
        %v7095 = vshrl.u32 %v7094, 7
        %v7096 = vsub.s32 7, %v7095
        %v7097 = vrot.slane %v5510, %v7096
        %v7098 = vmul.f32 %v7037, %v6120
        %v7099 = vmul.f32 %v7037, %v6121
        %v7100 = vmul.f32 %v7041, %v6120
        %v7101 = vmul.f32 %v7041, %v6121
        %v7102 = vmul.f32 %v7045, %v6120
        %v7103 = vmul.f32 %v7045, %v6121
        %v7104 = vmul.f32 %v7049, %v6120
        %v7105 = vmul.f32 %v7049, %v6121
        %v7106 = vmul.f32 %v7053, %v6120
        %v7107 = vmul.f32 %v7053, %v6121
        %v7108 = vmul.f32 %v7057, %v6120
        %v7109 = vmul.f32 %v7057, %v6121
        %v7110 = vmul.f32 %v7061, %v6120
        %v7111 = vmul.f32 %v7061, %v6121
        %v7112 = vmul.f32 %v7065, %v6120
        %v7113 = vmul.f32 %v7065, %v6121
        %v7114 = vmul.f32 %v7069, %v6120
        %v7115 = vmul.f32 %v7069, %v6121
        %v7116 = vmul.f32 %v7073, %v6120
        %v7117 = vmul.f32 %v7073, %v6121
        %v7118 = vmul.f32 %v7077, %v6120
        %v7119 = vmul.f32 %v7077, %v6121
        %v7120 = vmul.f32 %v7081, %v6120
        %v7121 = vmul.f32 %v7081, %v6121
        %v7122 = vmul.f32 %v7085, %v6120
        %v7123 = vmul.f32 %v7085, %v6121
        %v7124 = vmul.f32 %v7089, %v6120
        %v7125 = vmul.f32 %v7089, %v6121
        %v7126 = vmul.f32 %v7093, %v6120
        %v7127 = vmul.f32 %v7093, %v6121
        %v7128 = vmul.f32 %v7097, %v6120
        %v7129 = vmul.f32 %v7097, %v6121
        %v7130 = vadd.f32 %v7002, %v7098
        %v7131 = vadd.f32 %v7003, %v7099
        %v7132 = vadd.f32 %v7004, %v7100
        %v7133 = vadd.f32 %v7005, %v7101
        %v7134 = vadd.f32 %v7006, %v7102
        %v7135 = vadd.f32 %v7007, %v7103
        %v7136 = vadd.f32 %v7008, %v7104
        %v7137 = vadd.f32 %v7009, %v7105
        %v7138 = vadd.f32 %v7010, %v7106
        %v7139 = vadd.f32 %v7011, %v7107
        %v7140 = vadd.f32 %v7012, %v7108
        %v7141 = vadd.f32 %v7013, %v7109
        %v7142 = vadd.f32 %v7014, %v7110
        %v7143 = vadd.f32 %v7015, %v7111
        %v7144 = vadd.f32 %v7016, %v7112
        %v7145 = vadd.f32 %v7017, %v7113
        %v7146 = vadd.f32 %v7018, %v7114
        %v7147 = vadd.f32 %v7019, %v7115
        %v7148 = vadd.f32 %v7020, %v7116
        %v7149 = vadd.f32 %v7021, %v7117
        %v7150 = vadd.f32 %v7022, %v7118
        %v7151 = vadd.f32 %v7023, %v7119
        %v7152 = vadd.f32 %v7024, %v7120
        %v7153 = vadd.f32 %v7025, %v7121
        %v7154 = vadd.f32 %v7026, %v7122
        %v7155 = vadd.f32 %v7027, %v7123
        %v7156 = vadd.f32 %v7028, %v7124
        %v7157 = vadd.f32 %v7029, %v7125
        %v7158 = vadd.f32 %v7030, %v7126
        %v7159 = vadd.f32 %v7031, %v7127
        %v7160 = vadd.f32 %v7032, %v7128
        %v7161 = vadd.f32 %v7033, %v7129
        %v7162 = vlaneseq
        %v7163 = vshrl.u32 %v7162, 7
        %v7164 = vsub.s32 0, %v7163
        %v7165 = vrot.slane %v5481, %v7164
        %v7166 = vlaneseq
        %v7167 = vshrl.u32 %v7166, 7
        %v7168 = vsub.s32 0, %v7167
        %v7169 = vrot.slane %v5483, %v7168
        %v7170 = vlaneseq
        %v7171 = vshrl.u32 %v7170, 7
        %v7172 = vsub.s32 0, %v7171
        %v7173 = vrot.slane %v5485, %v7172
        %v7174 = vlaneseq
        %v7175 = vshrl.u32 %v7174, 7
        %v7176 = vsub.s32 0, %v7175
        %v7177 = vrot.slane %v5487, %v7176
        %v7178 = vlaneseq
        %v7179 = vshrl.u32 %v7178, 7
        %v7180 = vsub.s32 0, %v7179
        %v7181 = vrot.slane %v5489, %v7180
        %v7182 = vlaneseq
        %v7183 = vshrl.u32 %v7182, 7
        %v7184 = vsub.s32 0, %v7183
        %v7185 = vrot.slane %v5491, %v7184
        %v7186 = vlaneseq
        %v7187 = vshrl.u32 %v7186, 7
        %v7188 = vsub.s32 0, %v7187
        %v7189 = vrot.slane %v5493, %v7188
        %v7190 = vlaneseq
        %v7191 = vshrl.u32 %v7190, 7
        %v7192 = vsub.s32 0, %v7191
        %v7193 = vrot.slane %v5495, %v7192
        %v7194 = vlaneseq
        %v7195 = vshrl.u32 %v7194, 7
        %v7196 = vsub.s32 0, %v7195
        %v7197 = vrot.slane %v5497, %v7196
        %v7198 = vlaneseq
        %v7199 = vshrl.u32 %v7198, 7
        %v7200 = vsub.s32 0, %v7199
        %v7201 = vrot.slane %v5499, %v7200
        %v7202 = vlaneseq
        %v7203 = vshrl.u32 %v7202, 7
        %v7204 = vsub.s32 0, %v7203
        %v7205 = vrot.slane %v5501, %v7204
        %v7206 = vlaneseq
        %v7207 = vshrl.u32 %v7206, 7
        %v7208 = vsub.s32 0, %v7207
        %v7209 = vrot.slane %v5503, %v7208
        %v7210 = vlaneseq
        %v7211 = vshrl.u32 %v7210, 7
        %v7212 = vsub.s32 0, %v7211
        %v7213 = vrot.slane %v5505, %v7212
        %v7214 = vlaneseq
        %v7215 = vshrl.u32 %v7214, 7
        %v7216 = vsub.s32 0, %v7215
        %v7217 = vrot.slane %v5507, %v7216
        %v7218 = vlaneseq
        %v7219 = vshrl.u32 %v7218, 7
        %v7220 = vsub.s32 0, %v7219
        %v7221 = vrot.slane %v5509, %v7220
        %v7222 = vlaneseq
        %v7223 = vshrl.u32 %v7222, 7
        %v7224 = vsub.s32 0, %v7223
        %v7225 = vrot.slane %v5511, %v7224
        %v7226 = vmul.f32 %v7165, %v6122
        %v7227 = vmul.f32 %v7165, %v6123
        %v7228 = vmul.f32 %v7169, %v6122
        %v7229 = vmul.f32 %v7169, %v6123
        %v7230 = vmul.f32 %v7173, %v6122
        %v7231 = vmul.f32 %v7173, %v6123
        %v7232 = vmul.f32 %v7177, %v6122
        %v7233 = vmul.f32 %v7177, %v6123
        %v7234 = vmul.f32 %v7181, %v6122
        %v7235 = vmul.f32 %v7181, %v6123
        %v7236 = vmul.f32 %v7185, %v6122
        %v7237 = vmul.f32 %v7185, %v6123
        %v7238 = vmul.f32 %v7189, %v6122
        %v7239 = vmul.f32 %v7189, %v6123
        %v7240 = vmul.f32 %v7193, %v6122
        %v7241 = vmul.f32 %v7193, %v6123
        %v7242 = vmul.f32 %v7197, %v6122
        %v7243 = vmul.f32 %v7197, %v6123
        %v7244 = vmul.f32 %v7201, %v6122
        %v7245 = vmul.f32 %v7201, %v6123
        %v7246 = vmul.f32 %v7205, %v6122
        %v7247 = vmul.f32 %v7205, %v6123
        %v7248 = vmul.f32 %v7209, %v6122
        %v7249 = vmul.f32 %v7209, %v6123
        %v7250 = vmul.f32 %v7213, %v6122
        %v7251 = vmul.f32 %v7213, %v6123
        %v7252 = vmul.f32 %v7217, %v6122
        %v7253 = vmul.f32 %v7217, %v6123
        %v7254 = vmul.f32 %v7221, %v6122
        %v7255 = vmul.f32 %v7221, %v6123
        %v7256 = vmul.f32 %v7225, %v6122
        %v7257 = vmul.f32 %v7225, %v6123
        %v7258 = vadd.f32 %v7130, %v7226
        %v7259 = vadd.f32 %v7131, %v7227
        %v7260 = vadd.f32 %v7132, %v7228
        %v7261 = vadd.f32 %v7133, %v7229
        %v7262 = vadd.f32 %v7134, %v7230
        %v7263 = vadd.f32 %v7135, %v7231
        %v7264 = vadd.f32 %v7136, %v7232
        %v7265 = vadd.f32 %v7137, %v7233
        %v7266 = vadd.f32 %v7138, %v7234
        %v7267 = vadd.f32 %v7139, %v7235
        %v7268 = vadd.f32 %v7140, %v7236
        %v7269 = vadd.f32 %v7141, %v7237
        %v7270 = vadd.f32 %v7142, %v7238
        %v7271 = vadd.f32 %v7143, %v7239
        %v7272 = vadd.f32 %v7144, %v7240
        %v7273 = vadd.f32 %v7145, %v7241
        %v7274 = vadd.f32 %v7146, %v7242
        %v7275 = vadd.f32 %v7147, %v7243
        %v7276 = vadd.f32 %v7148, %v7244
        %v7277 = vadd.f32 %v7149, %v7245
        %v7278 = vadd.f32 %v7150, %v7246
        %v7279 = vadd.f32 %v7151, %v7247
        %v7280 = vadd.f32 %v7152, %v7248
        %v7281 = vadd.f32 %v7153, %v7249
        %v7282 = vadd.f32 %v7154, %v7250
        %v7283 = vadd.f32 %v7155, %v7251
        %v7284 = vadd.f32 %v7156, %v7252
        %v7285 = vadd.f32 %v7157, %v7253
        %v7286 = vadd.f32 %v7158, %v7254
        %v7287 = vadd.f32 %v7159, %v7255
        %v7288 = vadd.f32 %v7160, %v7256
        %v7289 = vadd.f32 %v7161, %v7257
        %v7290 = vlaneseq
        %v7291 = vshrl.u32 %v7290, 7
        %v7292 = vsub.s32 1, %v7291
        %v7293 = vrot.slane %v5481, %v7292
        %v7294 = vlaneseq
        %v7295 = vshrl.u32 %v7294, 7
        %v7296 = vsub.s32 1, %v7295
        %v7297 = vrot.slane %v5483, %v7296
        %v7298 = vlaneseq
        %v7299 = vshrl.u32 %v7298, 7
        %v7300 = vsub.s32 1, %v7299
        %v7301 = vrot.slane %v5485, %v7300
        %v7302 = vlaneseq
        %v7303 = vshrl.u32 %v7302, 7
        %v7304 = vsub.s32 1, %v7303
        %v7305 = vrot.slane %v5487, %v7304
        %v7306 = vlaneseq
        %v7307 = vshrl.u32 %v7306, 7
        %v7308 = vsub.s32 1, %v7307
        %v7309 = vrot.slane %v5489, %v7308
        %v7310 = vlaneseq
        %v7311 = vshrl.u32 %v7310, 7
        %v7312 = vsub.s32 1, %v7311
        %v7313 = vrot.slane %v5491, %v7312
        %v7314 = vlaneseq
        %v7315 = vshrl.u32 %v7314, 7
        %v7316 = vsub.s32 1, %v7315
        %v7317 = vrot.slane %v5493, %v7316
        %v7318 = vlaneseq
        %v7319 = vshrl.u32 %v7318, 7
        %v7320 = vsub.s32 1, %v7319
        %v7321 = vrot.slane %v5495, %v7320
        %v7322 = vlaneseq
        %v7323 = vshrl.u32 %v7322, 7
        %v7324 = vsub.s32 1, %v7323
        %v7325 = vrot.slane %v5497, %v7324
        %v7326 = vlaneseq
        %v7327 = vshrl.u32 %v7326, 7
        %v7328 = vsub.s32 1, %v7327
        %v7329 = vrot.slane %v5499, %v7328
        %v7330 = vlaneseq
        %v7331 = vshrl.u32 %v7330, 7
        %v7332 = vsub.s32 1, %v7331
        %v7333 = vrot.slane %v5501, %v7332
        %v7334 = vlaneseq
        %v7335 = vshrl.u32 %v7334, 7
        %v7336 = vsub.s32 1, %v7335
        %v7337 = vrot.slane %v5503, %v7336
        %v7338 = vlaneseq
        %v7339 = vshrl.u32 %v7338, 7
        %v7340 = vsub.s32 1, %v7339
        %v7341 = vrot.slane %v5505, %v7340
        %v7342 = vlaneseq
        %v7343 = vshrl.u32 %v7342, 7
        %v7344 = vsub.s32 1, %v7343
        %v7345 = vrot.slane %v5507, %v7344
        %v7346 = vlaneseq
        %v7347 = vshrl.u32 %v7346, 7
        %v7348 = vsub.s32 1, %v7347
        %v7349 = vrot.slane %v5509, %v7348
        %v7350 = vlaneseq
        %v7351 = vshrl.u32 %v7350, 7
        %v7352 = vsub.s32 1, %v7351
        %v7353 = vrot.slane %v5511, %v7352
        %v7354 = vmul.f32 %v7293, %v6124
        %v7355 = vmul.f32 %v7293, %v6125
        %v7356 = vmul.f32 %v7297, %v6124
        %v7357 = vmul.f32 %v7297, %v6125
        %v7358 = vmul.f32 %v7301, %v6124
        %v7359 = vmul.f32 %v7301, %v6125
        %v7360 = vmul.f32 %v7305, %v6124
        %v7361 = vmul.f32 %v7305, %v6125
        %v7362 = vmul.f32 %v7309, %v6124
        %v7363 = vmul.f32 %v7309, %v6125
        %v7364 = vmul.f32 %v7313, %v6124
        %v7365 = vmul.f32 %v7313, %v6125
        %v7366 = vmul.f32 %v7317, %v6124
        %v7367 = vmul.f32 %v7317, %v6125
        %v7368 = vmul.f32 %v7321, %v6124
        %v7369 = vmul.f32 %v7321, %v6125
        %v7370 = vmul.f32 %v7325, %v6124
        %v7371 = vmul.f32 %v7325, %v6125
        %v7372 = vmul.f32 %v7329, %v6124
        %v7373 = vmul.f32 %v7329, %v6125
        %v7374 = vmul.f32 %v7333, %v6124
        %v7375 = vmul.f32 %v7333, %v6125
        %v7376 = vmul.f32 %v7337, %v6124
        %v7377 = vmul.f32 %v7337, %v6125
        %v7378 = vmul.f32 %v7341, %v6124
        %v7379 = vmul.f32 %v7341, %v6125
        %v7380 = vmul.f32 %v7345, %v6124
        %v7381 = vmul.f32 %v7345, %v6125
        %v7382 = vmul.f32 %v7349, %v6124
        %v7383 = vmul.f32 %v7349, %v6125
        %v7384 = vmul.f32 %v7353, %v6124
        %v7385 = vmul.f32 %v7353, %v6125
        %v7386 = vadd.f32 %v7258, %v7354
        %v7387 = vadd.f32 %v7259, %v7355
        %v7388 = vadd.f32 %v7260, %v7356
        %v7389 = vadd.f32 %v7261, %v7357
        %v7390 = vadd.f32 %v7262, %v7358
        %v7391 = vadd.f32 %v7263, %v7359
        %v7392 = vadd.f32 %v7264, %v7360
        %v7393 = vadd.f32 %v7265, %v7361
        %v7394 = vadd.f32 %v7266, %v7362
        %v7395 = vadd.f32 %v7267, %v7363
        %v7396 = vadd.f32 %v7268, %v7364
        %v7397 = vadd.f32 %v7269, %v7365
        %v7398 = vadd.f32 %v7270, %v7366
        %v7399 = vadd.f32 %v7271, %v7367
        %v7400 = vadd.f32 %v7272, %v7368
        %v7401 = vadd.f32 %v7273, %v7369
        %v7402 = vadd.f32 %v7274, %v7370
        %v7403 = vadd.f32 %v7275, %v7371
        %v7404 = vadd.f32 %v7276, %v7372
        %v7405 = vadd.f32 %v7277, %v7373
        %v7406 = vadd.f32 %v7278, %v7374
        %v7407 = vadd.f32 %v7279, %v7375
        %v7408 = vadd.f32 %v7280, %v7376
        %v7409 = vadd.f32 %v7281, %v7377
        %v7410 = vadd.f32 %v7282, %v7378
        %v7411 = vadd.f32 %v7283, %v7379
        %v7412 = vadd.f32 %v7284, %v7380
        %v7413 = vadd.f32 %v7285, %v7381
        %v7414 = vadd.f32 %v7286, %v7382
        %v7415 = vadd.f32 %v7287, %v7383
        %v7416 = vadd.f32 %v7288, %v7384
        %v7417 = vadd.f32 %v7289, %v7385
        %v7418 = vlaneseq
        %v7419 = vshrl.u32 %v7418, 7
        %v7420 = vsub.s32 2, %v7419
        %v7421 = vrot.slane %v5481, %v7420
        %v7422 = vlaneseq
        %v7423 = vshrl.u32 %v7422, 7
        %v7424 = vsub.s32 2, %v7423
        %v7425 = vrot.slane %v5483, %v7424
        %v7426 = vlaneseq
        %v7427 = vshrl.u32 %v7426, 7
        %v7428 = vsub.s32 2, %v7427
        %v7429 = vrot.slane %v5485, %v7428
        %v7430 = vlaneseq
        %v7431 = vshrl.u32 %v7430, 7
        %v7432 = vsub.s32 2, %v7431
        %v7433 = vrot.slane %v5487, %v7432
        %v7434 = vlaneseq
        %v7435 = vshrl.u32 %v7434, 7
        %v7436 = vsub.s32 2, %v7435
        %v7437 = vrot.slane %v5489, %v7436
        %v7438 = vlaneseq
        %v7439 = vshrl.u32 %v7438, 7
        %v7440 = vsub.s32 2, %v7439
        %v7441 = vrot.slane %v5491, %v7440
        %v7442 = vlaneseq
        %v7443 = vshrl.u32 %v7442, 7
        %v7444 = vsub.s32 2, %v7443
        %v7445 = vrot.slane %v5493, %v7444
        %v7446 = vlaneseq
        %v7447 = vshrl.u32 %v7446, 7
        %v7448 = vsub.s32 2, %v7447
        %v7449 = vrot.slane %v5495, %v7448
        %v7450 = vlaneseq
        %v7451 = vshrl.u32 %v7450, 7
        %v7452 = vsub.s32 2, %v7451
        %v7453 = vrot.slane %v5497, %v7452
        %v7454 = vlaneseq
        %v7455 = vshrl.u32 %v7454, 7
        %v7456 = vsub.s32 2, %v7455
        %v7457 = vrot.slane %v5499, %v7456
        %v7458 = vlaneseq
        %v7459 = vshrl.u32 %v7458, 7
        %v7460 = vsub.s32 2, %v7459
        %v7461 = vrot.slane %v5501, %v7460
        %v7462 = vlaneseq
        %v7463 = vshrl.u32 %v7462, 7
        %v7464 = vsub.s32 2, %v7463
        %v7465 = vrot.slane %v5503, %v7464
        %v7466 = vlaneseq
        %v7467 = vshrl.u32 %v7466, 7
        %v7468 = vsub.s32 2, %v7467
        %v7469 = vrot.slane %v5505, %v7468
        %v7470 = vlaneseq
        %v7471 = vshrl.u32 %v7470, 7
        %v7472 = vsub.s32 2, %v7471
        %v7473 = vrot.slane %v5507, %v7472
        %v7474 = vlaneseq
        %v7475 = vshrl.u32 %v7474, 7
        %v7476 = vsub.s32 2, %v7475
        %v7477 = vrot.slane %v5509, %v7476
        %v7478 = vlaneseq
        %v7479 = vshrl.u32 %v7478, 7
        %v7480 = vsub.s32 2, %v7479
        %v7481 = vrot.slane %v5511, %v7480
        %v7482 = vmul.f32 %v7421, %v6126
        %v7483 = vmul.f32 %v7421, %v6127
        %v7484 = vmul.f32 %v7425, %v6126
        %v7485 = vmul.f32 %v7425, %v6127
        %v7486 = vmul.f32 %v7429, %v6126
        %v7487 = vmul.f32 %v7429, %v6127
        %v7488 = vmul.f32 %v7433, %v6126
        %v7489 = vmul.f32 %v7433, %v6127
        %v7490 = vmul.f32 %v7437, %v6126
        %v7491 = vmul.f32 %v7437, %v6127
        %v7492 = vmul.f32 %v7441, %v6126
        %v7493 = vmul.f32 %v7441, %v6127
        %v7494 = vmul.f32 %v7445, %v6126
        %v7495 = vmul.f32 %v7445, %v6127
        %v7496 = vmul.f32 %v7449, %v6126
        %v7497 = vmul.f32 %v7449, %v6127
        %v7498 = vmul.f32 %v7453, %v6126
        %v7499 = vmul.f32 %v7453, %v6127
        %v7500 = vmul.f32 %v7457, %v6126
        %v7501 = vmul.f32 %v7457, %v6127
        %v7502 = vmul.f32 %v7461, %v6126
        %v7503 = vmul.f32 %v7461, %v6127
        %v7504 = vmul.f32 %v7465, %v6126
        %v7505 = vmul.f32 %v7465, %v6127
        %v7506 = vmul.f32 %v7469, %v6126
        %v7507 = vmul.f32 %v7469, %v6127
        %v7508 = vmul.f32 %v7473, %v6126
        %v7509 = vmul.f32 %v7473, %v6127
        %v7510 = vmul.f32 %v7477, %v6126
        %v7511 = vmul.f32 %v7477, %v6127
        %v7512 = vmul.f32 %v7481, %v6126
        %v7513 = vmul.f32 %v7481, %v6127
        %v7514 = vadd.f32 %v7386, %v7482
        %v7515 = vadd.f32 %v7387, %v7483
        %v7516 = vadd.f32 %v7388, %v7484
        %v7517 = vadd.f32 %v7389, %v7485
        %v7518 = vadd.f32 %v7390, %v7486
        %v7519 = vadd.f32 %v7391, %v7487
        %v7520 = vadd.f32 %v7392, %v7488
        %v7521 = vadd.f32 %v7393, %v7489
        %v7522 = vadd.f32 %v7394, %v7490
        %v7523 = vadd.f32 %v7395, %v7491
        %v7524 = vadd.f32 %v7396, %v7492
        %v7525 = vadd.f32 %v7397, %v7493
        %v7526 = vadd.f32 %v7398, %v7494
        %v7527 = vadd.f32 %v7399, %v7495
        %v7528 = vadd.f32 %v7400, %v7496
        %v7529 = vadd.f32 %v7401, %v7497
        %v7530 = vadd.f32 %v7402, %v7498
        %v7531 = vadd.f32 %v7403, %v7499
        %v7532 = vadd.f32 %v7404, %v7500
        %v7533 = vadd.f32 %v7405, %v7501
        %v7534 = vadd.f32 %v7406, %v7502
        %v7535 = vadd.f32 %v7407, %v7503
        %v7536 = vadd.f32 %v7408, %v7504
        %v7537 = vadd.f32 %v7409, %v7505
        %v7538 = vadd.f32 %v7410, %v7506
        %v7539 = vadd.f32 %v7411, %v7507
        %v7540 = vadd.f32 %v7412, %v7508
        %v7541 = vadd.f32 %v7413, %v7509
        %v7542 = vadd.f32 %v7414, %v7510
        %v7543 = vadd.f32 %v7415, %v7511
        %v7544 = vadd.f32 %v7416, %v7512
        %v7545 = vadd.f32 %v7417, %v7513
        %v7546 = vlaneseq
        %v7547 = vshrl.u32 %v7546, 7
        %v7548 = vsub.s32 3, %v7547
        %v7549 = vrot.slane %v5481, %v7548
        %v7550 = vlaneseq
        %v7551 = vshrl.u32 %v7550, 7
        %v7552 = vsub.s32 3, %v7551
        %v7553 = vrot.slane %v5483, %v7552
        %v7554 = vlaneseq
        %v7555 = vshrl.u32 %v7554, 7
        %v7556 = vsub.s32 3, %v7555
        %v7557 = vrot.slane %v5485, %v7556
        %v7558 = vlaneseq
        %v7559 = vshrl.u32 %v7558, 7
        %v7560 = vsub.s32 3, %v7559
        %v7561 = vrot.slane %v5487, %v7560
        %v7562 = vlaneseq
        %v7563 = vshrl.u32 %v7562, 7
        %v7564 = vsub.s32 3, %v7563
        %v7565 = vrot.slane %v5489, %v7564
        %v7566 = vlaneseq
        %v7567 = vshrl.u32 %v7566, 7
        %v7568 = vsub.s32 3, %v7567
        %v7569 = vrot.slane %v5491, %v7568
        %v7570 = vlaneseq
        %v7571 = vshrl.u32 %v7570, 7
        %v7572 = vsub.s32 3, %v7571
        %v7573 = vrot.slane %v5493, %v7572
        %v7574 = vlaneseq
        %v7575 = vshrl.u32 %v7574, 7
        %v7576 = vsub.s32 3, %v7575
        %v7577 = vrot.slane %v5495, %v7576
        %v7578 = vlaneseq
        %v7579 = vshrl.u32 %v7578, 7
        %v7580 = vsub.s32 3, %v7579
        %v7581 = vrot.slane %v5497, %v7580
        %v7582 = vlaneseq
        %v7583 = vshrl.u32 %v7582, 7
        %v7584 = vsub.s32 3, %v7583
        %v7585 = vrot.slane %v5499, %v7584
        %v7586 = vlaneseq
        %v7587 = vshrl.u32 %v7586, 7
        %v7588 = vsub.s32 3, %v7587
        %v7589 = vrot.slane %v5501, %v7588
        %v7590 = vlaneseq
        %v7591 = vshrl.u32 %v7590, 7
        %v7592 = vsub.s32 3, %v7591
        %v7593 = vrot.slane %v5503, %v7592
        %v7594 = vlaneseq
        %v7595 = vshrl.u32 %v7594, 7
        %v7596 = vsub.s32 3, %v7595
        %v7597 = vrot.slane %v5505, %v7596
        %v7598 = vlaneseq
        %v7599 = vshrl.u32 %v7598, 7
        %v7600 = vsub.s32 3, %v7599
        %v7601 = vrot.slane %v5507, %v7600
        %v7602 = vlaneseq
        %v7603 = vshrl.u32 %v7602, 7
        %v7604 = vsub.s32 3, %v7603
        %v7605 = vrot.slane %v5509, %v7604
        %v7606 = vlaneseq
        %v7607 = vshrl.u32 %v7606, 7
        %v7608 = vsub.s32 3, %v7607
        %v7609 = vrot.slane %v5511, %v7608
        %v7610 = vmul.f32 %v7549, %v6128
        %v7611 = vmul.f32 %v7549, %v6129
        %v7612 = vmul.f32 %v7553, %v6128
        %v7613 = vmul.f32 %v7553, %v6129
        %v7614 = vmul.f32 %v7557, %v6128
        %v7615 = vmul.f32 %v7557, %v6129
        %v7616 = vmul.f32 %v7561, %v6128
        %v7617 = vmul.f32 %v7561, %v6129
        %v7618 = vmul.f32 %v7565, %v6128
        %v7619 = vmul.f32 %v7565, %v6129
        %v7620 = vmul.f32 %v7569, %v6128
        %v7621 = vmul.f32 %v7569, %v6129
        %v7622 = vmul.f32 %v7573, %v6128
        %v7623 = vmul.f32 %v7573, %v6129
        %v7624 = vmul.f32 %v7577, %v6128
        %v7625 = vmul.f32 %v7577, %v6129
        %v7626 = vmul.f32 %v7581, %v6128
        %v7627 = vmul.f32 %v7581, %v6129
        %v7628 = vmul.f32 %v7585, %v6128
        %v7629 = vmul.f32 %v7585, %v6129
        %v7630 = vmul.f32 %v7589, %v6128
        %v7631 = vmul.f32 %v7589, %v6129
        %v7632 = vmul.f32 %v7593, %v6128
        %v7633 = vmul.f32 %v7593, %v6129
        %v7634 = vmul.f32 %v7597, %v6128
        %v7635 = vmul.f32 %v7597, %v6129
        %v7636 = vmul.f32 %v7601, %v6128
        %v7637 = vmul.f32 %v7601, %v6129
        %v7638 = vmul.f32 %v7605, %v6128
        %v7639 = vmul.f32 %v7605, %v6129
        %v7640 = vmul.f32 %v7609, %v6128
        %v7641 = vmul.f32 %v7609, %v6129
        %v7642 = vadd.f32 %v7514, %v7610
        %v7643 = vadd.f32 %v7515, %v7611
        %v7644 = vadd.f32 %v7516, %v7612
        %v7645 = vadd.f32 %v7517, %v7613
        %v7646 = vadd.f32 %v7518, %v7614
        %v7647 = vadd.f32 %v7519, %v7615
        %v7648 = vadd.f32 %v7520, %v7616
        %v7649 = vadd.f32 %v7521, %v7617
        %v7650 = vadd.f32 %v7522, %v7618
        %v7651 = vadd.f32 %v7523, %v7619
        %v7652 = vadd.f32 %v7524, %v7620
        %v7653 = vadd.f32 %v7525, %v7621
        %v7654 = vadd.f32 %v7526, %v7622
        %v7655 = vadd.f32 %v7527, %v7623
        %v7656 = vadd.f32 %v7528, %v7624
        %v7657 = vadd.f32 %v7529, %v7625
        %v7658 = vadd.f32 %v7530, %v7626
        %v7659 = vadd.f32 %v7531, %v7627
        %v7660 = vadd.f32 %v7532, %v7628
        %v7661 = vadd.f32 %v7533, %v7629
        %v7662 = vadd.f32 %v7534, %v7630
        %v7663 = vadd.f32 %v7535, %v7631
        %v7664 = vadd.f32 %v7536, %v7632
        %v7665 = vadd.f32 %v7537, %v7633
        %v7666 = vadd.f32 %v7538, %v7634
        %v7667 = vadd.f32 %v7539, %v7635
        %v7668 = vadd.f32 %v7540, %v7636
        %v7669 = vadd.f32 %v7541, %v7637
        %v7670 = vadd.f32 %v7542, %v7638
        %v7671 = vadd.f32 %v7543, %v7639
        %v7672 = vadd.f32 %v7544, %v7640
        %v7673 = vadd.f32 %v7545, %v7641
        %v7674 = vlaneseq
        %v7675 = vshrl.u32 %v7674, 7
        %v7676 = vsub.s32 4, %v7675
        %v7677 = vrot.slane %v5481, %v7676
        %v7678 = vlaneseq
        %v7679 = vshrl.u32 %v7678, 7
        %v7680 = vsub.s32 4, %v7679
        %v7681 = vrot.slane %v5483, %v7680
        %v7682 = vlaneseq
        %v7683 = vshrl.u32 %v7682, 7
        %v7684 = vsub.s32 4, %v7683
        %v7685 = vrot.slane %v5485, %v7684
        %v7686 = vlaneseq
        %v7687 = vshrl.u32 %v7686, 7
        %v7688 = vsub.s32 4, %v7687
        %v7689 = vrot.slane %v5487, %v7688
        %v7690 = vlaneseq
        %v7691 = vshrl.u32 %v7690, 7
        %v7692 = vsub.s32 4, %v7691
        %v7693 = vrot.slane %v5489, %v7692
        %v7694 = vlaneseq
        %v7695 = vshrl.u32 %v7694, 7
        %v7696 = vsub.s32 4, %v7695
        %v7697 = vrot.slane %v5491, %v7696
        %v7698 = vlaneseq
        %v7699 = vshrl.u32 %v7698, 7
        %v7700 = vsub.s32 4, %v7699
        %v7701 = vrot.slane %v5493, %v7700
        %v7702 = vlaneseq
        %v7703 = vshrl.u32 %v7702, 7
        %v7704 = vsub.s32 4, %v7703
        %v7705 = vrot.slane %v5495, %v7704
        %v7706 = vlaneseq
        %v7707 = vshrl.u32 %v7706, 7
        %v7708 = vsub.s32 4, %v7707
        %v7709 = vrot.slane %v5497, %v7708
        %v7710 = vlaneseq
        %v7711 = vshrl.u32 %v7710, 7
        %v7712 = vsub.s32 4, %v7711
        %v7713 = vrot.slane %v5499, %v7712
        %v7714 = vlaneseq
        %v7715 = vshrl.u32 %v7714, 7
        %v7716 = vsub.s32 4, %v7715
        %v7717 = vrot.slane %v5501, %v7716
        %v7718 = vlaneseq
        %v7719 = vshrl.u32 %v7718, 7
        %v7720 = vsub.s32 4, %v7719
        %v7721 = vrot.slane %v5503, %v7720
        %v7722 = vlaneseq
        %v7723 = vshrl.u32 %v7722, 7
        %v7724 = vsub.s32 4, %v7723
        %v7725 = vrot.slane %v5505, %v7724
        %v7726 = vlaneseq
        %v7727 = vshrl.u32 %v7726, 7
        %v7728 = vsub.s32 4, %v7727
        %v7729 = vrot.slane %v5507, %v7728
        %v7730 = vlaneseq
        %v7731 = vshrl.u32 %v7730, 7
        %v7732 = vsub.s32 4, %v7731
        %v7733 = vrot.slane %v5509, %v7732
        %v7734 = vlaneseq
        %v7735 = vshrl.u32 %v7734, 7
        %v7736 = vsub.s32 4, %v7735
        %v7737 = vrot.slane %v5511, %v7736
        %v7738 = vmul.f32 %v7677, %v6130
        %v7739 = vmul.f32 %v7677, %v6131
        %v7740 = vmul.f32 %v7681, %v6130
        %v7741 = vmul.f32 %v7681, %v6131
        %v7742 = vmul.f32 %v7685, %v6130
        %v7743 = vmul.f32 %v7685, %v6131
        %v7744 = vmul.f32 %v7689, %v6130
        %v7745 = vmul.f32 %v7689, %v6131
        %v7746 = vmul.f32 %v7693, %v6130
        %v7747 = vmul.f32 %v7693, %v6131
        %v7748 = vmul.f32 %v7697, %v6130
        %v7749 = vmul.f32 %v7697, %v6131
        %v7750 = vmul.f32 %v7701, %v6130
        %v7751 = vmul.f32 %v7701, %v6131
        %v7752 = vmul.f32 %v7705, %v6130
        %v7753 = vmul.f32 %v7705, %v6131
        %v7754 = vmul.f32 %v7709, %v6130
        %v7755 = vmul.f32 %v7709, %v6131
        %v7756 = vmul.f32 %v7713, %v6130
        %v7757 = vmul.f32 %v7713, %v6131
        %v7758 = vmul.f32 %v7717, %v6130
        %v7759 = vmul.f32 %v7717, %v6131
        %v7760 = vmul.f32 %v7721, %v6130
        %v7761 = vmul.f32 %v7721, %v6131
        %v7762 = vmul.f32 %v7725, %v6130
        %v7763 = vmul.f32 %v7725, %v6131
        %v7764 = vmul.f32 %v7729, %v6130
        %v7765 = vmul.f32 %v7729, %v6131
        %v7766 = vmul.f32 %v7733, %v6130
        %v7767 = vmul.f32 %v7733, %v6131
        %v7768 = vmul.f32 %v7737, %v6130
        %v7769 = vmul.f32 %v7737, %v6131
        %v7770 = vadd.f32 %v7642, %v7738
        %v7771 = vadd.f32 %v7643, %v7739
        %v7772 = vadd.f32 %v7644, %v7740
        %v7773 = vadd.f32 %v7645, %v7741
        %v7774 = vadd.f32 %v7646, %v7742
        %v7775 = vadd.f32 %v7647, %v7743
        %v7776 = vadd.f32 %v7648, %v7744
        %v7777 = vadd.f32 %v7649, %v7745
        %v7778 = vadd.f32 %v7650, %v7746
        %v7779 = vadd.f32 %v7651, %v7747
        %v7780 = vadd.f32 %v7652, %v7748
        %v7781 = vadd.f32 %v7653, %v7749
        %v7782 = vadd.f32 %v7654, %v7750
        %v7783 = vadd.f32 %v7655, %v7751
        %v7784 = vadd.f32 %v7656, %v7752
        %v7785 = vadd.f32 %v7657, %v7753
        %v7786 = vadd.f32 %v7658, %v7754
        %v7787 = vadd.f32 %v7659, %v7755
        %v7788 = vadd.f32 %v7660, %v7756
        %v7789 = vadd.f32 %v7661, %v7757
        %v7790 = vadd.f32 %v7662, %v7758
        %v7791 = vadd.f32 %v7663, %v7759
        %v7792 = vadd.f32 %v7664, %v7760
        %v7793 = vadd.f32 %v7665, %v7761
        %v7794 = vadd.f32 %v7666, %v7762
        %v7795 = vadd.f32 %v7667, %v7763
        %v7796 = vadd.f32 %v7668, %v7764
        %v7797 = vadd.f32 %v7669, %v7765
        %v7798 = vadd.f32 %v7670, %v7766
        %v7799 = vadd.f32 %v7671, %v7767
        %v7800 = vadd.f32 %v7672, %v7768
        %v7801 = vadd.f32 %v7673, %v7769
        %v7802 = vlaneseq
        %v7803 = vshrl.u32 %v7802, 7
        %v7804 = vsub.s32 5, %v7803
        %v7805 = vrot.slane %v5481, %v7804
        %v7806 = vlaneseq
        %v7807 = vshrl.u32 %v7806, 7
        %v7808 = vsub.s32 5, %v7807
        %v7809 = vrot.slane %v5483, %v7808
        %v7810 = vlaneseq
        %v7811 = vshrl.u32 %v7810, 7
        %v7812 = vsub.s32 5, %v7811
        %v7813 = vrot.slane %v5485, %v7812
        %v7814 = vlaneseq
        %v7815 = vshrl.u32 %v7814, 7
        %v7816 = vsub.s32 5, %v7815
        %v7817 = vrot.slane %v5487, %v7816
        %v7818 = vlaneseq
        %v7819 = vshrl.u32 %v7818, 7
        %v7820 = vsub.s32 5, %v7819
        %v7821 = vrot.slane %v5489, %v7820
        %v7822 = vlaneseq
        %v7823 = vshrl.u32 %v7822, 7
        %v7824 = vsub.s32 5, %v7823
        %v7825 = vrot.slane %v5491, %v7824
        %v7826 = vlaneseq
        %v7827 = vshrl.u32 %v7826, 7
        %v7828 = vsub.s32 5, %v7827
        %v7829 = vrot.slane %v5493, %v7828
        %v7830 = vlaneseq
        %v7831 = vshrl.u32 %v7830, 7
        %v7832 = vsub.s32 5, %v7831
        %v7833 = vrot.slane %v5495, %v7832
        %v7834 = vlaneseq
        %v7835 = vshrl.u32 %v7834, 7
        %v7836 = vsub.s32 5, %v7835
        %v7837 = vrot.slane %v5497, %v7836
        %v7838 = vlaneseq
        %v7839 = vshrl.u32 %v7838, 7
        %v7840 = vsub.s32 5, %v7839
        %v7841 = vrot.slane %v5499, %v7840
        %v7842 = vlaneseq
        %v7843 = vshrl.u32 %v7842, 7
        %v7844 = vsub.s32 5, %v7843
        %v7845 = vrot.slane %v5501, %v7844
        %v7846 = vlaneseq
        %v7847 = vshrl.u32 %v7846, 7
        %v7848 = vsub.s32 5, %v7847
        %v7849 = vrot.slane %v5503, %v7848
        %v7850 = vlaneseq
        %v7851 = vshrl.u32 %v7850, 7
        %v7852 = vsub.s32 5, %v7851
        %v7853 = vrot.slane %v5505, %v7852
        %v7854 = vlaneseq
        %v7855 = vshrl.u32 %v7854, 7
        %v7856 = vsub.s32 5, %v7855
        %v7857 = vrot.slane %v5507, %v7856
        %v7858 = vlaneseq
        %v7859 = vshrl.u32 %v7858, 7
        %v7860 = vsub.s32 5, %v7859
        %v7861 = vrot.slane %v5509, %v7860
        %v7862 = vlaneseq
        %v7863 = vshrl.u32 %v7862, 7
        %v7864 = vsub.s32 5, %v7863
        %v7865 = vrot.slane %v5511, %v7864
        %v7866 = vmul.f32 %v7805, %v6132
        %v7867 = vmul.f32 %v7805, %v6133
        %v7868 = vmul.f32 %v7809, %v6132
        %v7869 = vmul.f32 %v7809, %v6133
        %v7870 = vmul.f32 %v7813, %v6132
        %v7871 = vmul.f32 %v7813, %v6133
        %v7872 = vmul.f32 %v7817, %v6132
        %v7873 = vmul.f32 %v7817, %v6133
        %v7874 = vmul.f32 %v7821, %v6132
        %v7875 = vmul.f32 %v7821, %v6133
        %v7876 = vmul.f32 %v7825, %v6132
        %v7877 = vmul.f32 %v7825, %v6133
        %v7878 = vmul.f32 %v7829, %v6132
        %v7879 = vmul.f32 %v7829, %v6133
        %v7880 = vmul.f32 %v7833, %v6132
        %v7881 = vmul.f32 %v7833, %v6133
        %v7882 = vmul.f32 %v7837, %v6132
        %v7883 = vmul.f32 %v7837, %v6133
        %v7884 = vmul.f32 %v7841, %v6132
        %v7885 = vmul.f32 %v7841, %v6133
        %v7886 = vmul.f32 %v7845, %v6132
        %v7887 = vmul.f32 %v7845, %v6133
        %v7888 = vmul.f32 %v7849, %v6132
        %v7889 = vmul.f32 %v7849, %v6133
        %v7890 = vmul.f32 %v7853, %v6132
        %v7891 = vmul.f32 %v7853, %v6133
        %v7892 = vmul.f32 %v7857, %v6132
        %v7893 = vmul.f32 %v7857, %v6133
        %v7894 = vmul.f32 %v7861, %v6132
        %v7895 = vmul.f32 %v7861, %v6133
        %v7896 = vmul.f32 %v7865, %v6132
        %v7897 = vmul.f32 %v7865, %v6133
        %v7898 = vadd.f32 %v7770, %v7866
        %v7899 = vadd.f32 %v7771, %v7867
        %v7900 = vadd.f32 %v7772, %v7868
        %v7901 = vadd.f32 %v7773, %v7869
        %v7902 = vadd.f32 %v7774, %v7870
        %v7903 = vadd.f32 %v7775, %v7871
        %v7904 = vadd.f32 %v7776, %v7872
        %v7905 = vadd.f32 %v7777, %v7873
        %v7906 = vadd.f32 %v7778, %v7874
        %v7907 = vadd.f32 %v7779, %v7875
        %v7908 = vadd.f32 %v7780, %v7876
        %v7909 = vadd.f32 %v7781, %v7877
        %v7910 = vadd.f32 %v7782, %v7878
        %v7911 = vadd.f32 %v7783, %v7879
        %v7912 = vadd.f32 %v7784, %v7880
        %v7913 = vadd.f32 %v7785, %v7881
        %v7914 = vadd.f32 %v7786, %v7882
        %v7915 = vadd.f32 %v7787, %v7883
        %v7916 = vadd.f32 %v7788, %v7884
        %v7917 = vadd.f32 %v7789, %v7885
        %v7918 = vadd.f32 %v7790, %v7886
        %v7919 = vadd.f32 %v7791, %v7887
        %v7920 = vadd.f32 %v7792, %v7888
        %v7921 = vadd.f32 %v7793, %v7889
        %v7922 = vadd.f32 %v7794, %v7890
        %v7923 = vadd.f32 %v7795, %v7891
        %v7924 = vadd.f32 %v7796, %v7892
        %v7925 = vadd.f32 %v7797, %v7893
        %v7926 = vadd.f32 %v7798, %v7894
        %v7927 = vadd.f32 %v7799, %v7895
        %v7928 = vadd.f32 %v7800, %v7896
        %v7929 = vadd.f32 %v7801, %v7897
        %v7930 = vlaneseq
        %v7931 = vshrl.u32 %v7930, 7
        %v7932 = vsub.s32 6, %v7931
        %v7933 = vrot.slane %v5481, %v7932
        %v7934 = vlaneseq
        %v7935 = vshrl.u32 %v7934, 7
        %v7936 = vsub.s32 6, %v7935
        %v7937 = vrot.slane %v5483, %v7936
        %v7938 = vlaneseq
        %v7939 = vshrl.u32 %v7938, 7
        %v7940 = vsub.s32 6, %v7939
        %v7941 = vrot.slane %v5485, %v7940
        %v7942 = vlaneseq
        %v7943 = vshrl.u32 %v7942, 7
        %v7944 = vsub.s32 6, %v7943
        %v7945 = vrot.slane %v5487, %v7944
        %v7946 = vlaneseq
        %v7947 = vshrl.u32 %v7946, 7
        %v7948 = vsub.s32 6, %v7947
        %v7949 = vrot.slane %v5489, %v7948
        %v7950 = vlaneseq
        %v7951 = vshrl.u32 %v7950, 7
        %v7952 = vsub.s32 6, %v7951
        %v7953 = vrot.slane %v5491, %v7952
        %v7954 = vlaneseq
        %v7955 = vshrl.u32 %v7954, 7
        %v7956 = vsub.s32 6, %v7955
        %v7957 = vrot.slane %v5493, %v7956
        %v7958 = vlaneseq
        %v7959 = vshrl.u32 %v7958, 7
        %v7960 = vsub.s32 6, %v7959
        %v7961 = vrot.slane %v5495, %v7960
        %v7962 = vlaneseq
        %v7963 = vshrl.u32 %v7962, 7
        %v7964 = vsub.s32 6, %v7963
        %v7965 = vrot.slane %v5497, %v7964
        %v7966 = vlaneseq
        %v7967 = vshrl.u32 %v7966, 7
        %v7968 = vsub.s32 6, %v7967
        %v7969 = vrot.slane %v5499, %v7968
        %v7970 = vlaneseq
        %v7971 = vshrl.u32 %v7970, 7
        %v7972 = vsub.s32 6, %v7971
        %v7973 = vrot.slane %v5501, %v7972
        %v7974 = vlaneseq
        %v7975 = vshrl.u32 %v7974, 7
        %v7976 = vsub.s32 6, %v7975
        %v7977 = vrot.slane %v5503, %v7976
        %v7978 = vlaneseq
        %v7979 = vshrl.u32 %v7978, 7
        %v7980 = vsub.s32 6, %v7979
        %v7981 = vrot.slane %v5505, %v7980
        %v7982 = vlaneseq
        %v7983 = vshrl.u32 %v7982, 7
        %v7984 = vsub.s32 6, %v7983
        %v7985 = vrot.slane %v5507, %v7984
        %v7986 = vlaneseq
        %v7987 = vshrl.u32 %v7986, 7
        %v7988 = vsub.s32 6, %v7987
        %v7989 = vrot.slane %v5509, %v7988
        %v7990 = vlaneseq
        %v7991 = vshrl.u32 %v7990, 7
        %v7992 = vsub.s32 6, %v7991
        %v7993 = vrot.slane %v5511, %v7992
        %v7994 = vmul.f32 %v7933, %v6134
        %v7995 = vmul.f32 %v7933, %v6135
        %v7996 = vmul.f32 %v7937, %v6134
        %v7997 = vmul.f32 %v7937, %v6135
        %v7998 = vmul.f32 %v7941, %v6134
        %v7999 = vmul.f32 %v7941, %v6135
        %v8000 = vmul.f32 %v7945, %v6134
        %v8001 = vmul.f32 %v7945, %v6135
        %v8002 = vmul.f32 %v7949, %v6134
        %v8003 = vmul.f32 %v7949, %v6135
        %v8004 = vmul.f32 %v7953, %v6134
        %v8005 = vmul.f32 %v7953, %v6135
        %v8006 = vmul.f32 %v7957, %v6134
        %v8007 = vmul.f32 %v7957, %v6135
        %v8008 = vmul.f32 %v7961, %v6134
        %v8009 = vmul.f32 %v7961, %v6135
        %v8010 = vmul.f32 %v7965, %v6134
        %v8011 = vmul.f32 %v7965, %v6135
        %v8012 = vmul.f32 %v7969, %v6134
        %v8013 = vmul.f32 %v7969, %v6135
        %v8014 = vmul.f32 %v7973, %v6134
        %v8015 = vmul.f32 %v7973, %v6135
        %v8016 = vmul.f32 %v7977, %v6134
        %v8017 = vmul.f32 %v7977, %v6135
        %v8018 = vmul.f32 %v7981, %v6134
        %v8019 = vmul.f32 %v7981, %v6135
        %v8020 = vmul.f32 %v7985, %v6134
        %v8021 = vmul.f32 %v7985, %v6135
        %v8022 = vmul.f32 %v7989, %v6134
        %v8023 = vmul.f32 %v7989, %v6135
        %v8024 = vmul.f32 %v7993, %v6134
        %v8025 = vmul.f32 %v7993, %v6135
        %v8026 = vadd.f32 %v7898, %v7994
        %v8027 = vadd.f32 %v7899, %v7995
        %v8028 = vadd.f32 %v7900, %v7996
        %v8029 = vadd.f32 %v7901, %v7997
        %v8030 = vadd.f32 %v7902, %v7998
        %v8031 = vadd.f32 %v7903, %v7999
        %v8032 = vadd.f32 %v7904, %v8000
        %v8033 = vadd.f32 %v7905, %v8001
        %v8034 = vadd.f32 %v7906, %v8002
        %v8035 = vadd.f32 %v7907, %v8003
        %v8036 = vadd.f32 %v7908, %v8004
        %v8037 = vadd.f32 %v7909, %v8005
        %v8038 = vadd.f32 %v7910, %v8006
        %v8039 = vadd.f32 %v7911, %v8007
        %v8040 = vadd.f32 %v7912, %v8008
        %v8041 = vadd.f32 %v7913, %v8009
        %v8042 = vadd.f32 %v7914, %v8010
        %v8043 = vadd.f32 %v7915, %v8011
        %v8044 = vadd.f32 %v7916, %v8012
        %v8045 = vadd.f32 %v7917, %v8013
        %v8046 = vadd.f32 %v7918, %v8014
        %v8047 = vadd.f32 %v7919, %v8015
        %v8048 = vadd.f32 %v7920, %v8016
        %v8049 = vadd.f32 %v7921, %v8017
        %v8050 = vadd.f32 %v7922, %v8018
        %v8051 = vadd.f32 %v7923, %v8019
        %v8052 = vadd.f32 %v7924, %v8020
        %v8053 = vadd.f32 %v7925, %v8021
        %v8054 = vadd.f32 %v7926, %v8022
        %v8055 = vadd.f32 %v7927, %v8023
        %v8056 = vadd.f32 %v7928, %v8024
        %v8057 = vadd.f32 %v7929, %v8025
        %v8058 = vlaneseq
        %v8059 = vshrl.u32 %v8058, 7
        %v8060 = vsub.s32 7, %v8059
        %v8061 = vrot.slane %v5481, %v8060
        %v8062 = vlaneseq
        %v8063 = vshrl.u32 %v8062, 7
        %v8064 = vsub.s32 7, %v8063
        %v8065 = vrot.slane %v5483, %v8064
        %v8066 = vlaneseq
        %v8067 = vshrl.u32 %v8066, 7
        %v8068 = vsub.s32 7, %v8067
        %v8069 = vrot.slane %v5485, %v8068
        %v8070 = vlaneseq
        %v8071 = vshrl.u32 %v8070, 7
        %v8072 = vsub.s32 7, %v8071
        %v8073 = vrot.slane %v5487, %v8072
        %v8074 = vlaneseq
        %v8075 = vshrl.u32 %v8074, 7
        %v8076 = vsub.s32 7, %v8075
        %v8077 = vrot.slane %v5489, %v8076
        %v8078 = vlaneseq
        %v8079 = vshrl.u32 %v8078, 7
        %v8080 = vsub.s32 7, %v8079
        %v8081 = vrot.slane %v5491, %v8080
        %v8082 = vlaneseq
        %v8083 = vshrl.u32 %v8082, 7
        %v8084 = vsub.s32 7, %v8083
        %v8085 = vrot.slane %v5493, %v8084
        %v8086 = vlaneseq
        %v8087 = vshrl.u32 %v8086, 7
        %v8088 = vsub.s32 7, %v8087
        %v8089 = vrot.slane %v5495, %v8088
        %v8090 = vlaneseq
        %v8091 = vshrl.u32 %v8090, 7
        %v8092 = vsub.s32 7, %v8091
        %v8093 = vrot.slane %v5497, %v8092
        %v8094 = vlaneseq
        %v8095 = vshrl.u32 %v8094, 7
        %v8096 = vsub.s32 7, %v8095
        %v8097 = vrot.slane %v5499, %v8096
        %v8098 = vlaneseq
        %v8099 = vshrl.u32 %v8098, 7
        %v8100 = vsub.s32 7, %v8099
        %v8101 = vrot.slane %v5501, %v8100
        %v8102 = vlaneseq
        %v8103 = vshrl.u32 %v8102, 7
        %v8104 = vsub.s32 7, %v8103
        %v8105 = vrot.slane %v5503, %v8104
        %v8106 = vlaneseq
        %v8107 = vshrl.u32 %v8106, 7
        %v8108 = vsub.s32 7, %v8107
        %v8109 = vrot.slane %v5505, %v8108
        %v8110 = vlaneseq
        %v8111 = vshrl.u32 %v8110, 7
        %v8112 = vsub.s32 7, %v8111
        %v8113 = vrot.slane %v5507, %v8112
        %v8114 = vlaneseq
        %v8115 = vshrl.u32 %v8114, 7
        %v8116 = vsub.s32 7, %v8115
        %v8117 = vrot.slane %v5509, %v8116
        %v8118 = vlaneseq
        %v8119 = vshrl.u32 %v8118, 7
        %v8120 = vsub.s32 7, %v8119
        %v8121 = vrot.slane %v5511, %v8120
        %v8122 = vmul.f32 %v8061, %v6136
        %v8123 = vmul.f32 %v8061, %v6137
        %v8124 = vmul.f32 %v8065, %v6136
        %v8125 = vmul.f32 %v8065, %v6137
        %v8126 = vmul.f32 %v8069, %v6136
        %v8127 = vmul.f32 %v8069, %v6137
        %v8128 = vmul.f32 %v8073, %v6136
        %v8129 = vmul.f32 %v8073, %v6137
        %v8130 = vmul.f32 %v8077, %v6136
        %v8131 = vmul.f32 %v8077, %v6137
        %v8132 = vmul.f32 %v8081, %v6136
        %v8133 = vmul.f32 %v8081, %v6137
        %v8134 = vmul.f32 %v8085, %v6136
        %v8135 = vmul.f32 %v8085, %v6137
        %v8136 = vmul.f32 %v8089, %v6136
        %v8137 = vmul.f32 %v8089, %v6137
        %v8138 = vmul.f32 %v8093, %v6136
        %v8139 = vmul.f32 %v8093, %v6137
        %v8140 = vmul.f32 %v8097, %v6136
        %v8141 = vmul.f32 %v8097, %v6137
        %v8142 = vmul.f32 %v8101, %v6136
        %v8143 = vmul.f32 %v8101, %v6137
        %v8144 = vmul.f32 %v8105, %v6136
        %v8145 = vmul.f32 %v8105, %v6137
        %v8146 = vmul.f32 %v8109, %v6136
        %v8147 = vmul.f32 %v8109, %v6137
        %v8148 = vmul.f32 %v8113, %v6136
        %v8149 = vmul.f32 %v8113, %v6137
        %v8150 = vmul.f32 %v8117, %v6136
        %v8151 = vmul.f32 %v8117, %v6137
        %v8152 = vmul.f32 %v8121, %v6136
        %v8153 = vmul.f32 %v8121, %v6137
        %v8154 = vadd.f32 %v8026, %v8122
        %v8155 = vadd.f32 %v8027, %v8123
        %v8156 = vadd.f32 %v8028, %v8124
        %v8157 = vadd.f32 %v8029, %v8125
        %v8158 = vadd.f32 %v8030, %v8126
        %v8159 = vadd.f32 %v8031, %v8127
        %v8160 = vadd.f32 %v8032, %v8128
        %v8161 = vadd.f32 %v8033, %v8129
        %v8162 = vadd.f32 %v8034, %v8130
        %v8163 = vadd.f32 %v8035, %v8131
        %v8164 = vadd.f32 %v8036, %v8132
        %v8165 = vadd.f32 %v8037, %v8133
        %v8166 = vadd.f32 %v8038, %v8134
        %v8167 = vadd.f32 %v8039, %v8135
        %v8168 = vadd.f32 %v8040, %v8136
        %v8169 = vadd.f32 %v8041, %v8137
        %v8170 = vadd.f32 %v8042, %v8138
        %v8171 = vadd.f32 %v8043, %v8139
        %v8172 = vadd.f32 %v8044, %v8140
        %v8173 = vadd.f32 %v8045, %v8141
        %v8174 = vadd.f32 %v8046, %v8142
        %v8175 = vadd.f32 %v8047, %v8143
        %v8176 = vadd.f32 %v8048, %v8144
        %v8177 = vadd.f32 %v8049, %v8145
        %v8178 = vadd.f32 %v8050, %v8146
        %v8179 = vadd.f32 %v8051, %v8147
        %v8180 = vadd.f32 %v8052, %v8148
        %v8181 = vadd.f32 %v8053, %v8149
        %v8182 = vadd.f32 %v8054, %v8150
        %v8183 = vadd.f32 %v8055, %v8151
        %v8184 = vadd.f32 %v8056, %v8152
        %v8185 = vadd.f32 %v8057, %v8153
        %v8186 = vld [vmem:[%s24] sm:$0xff]
        %v8187 = vld [vmem:[%s23] sm:$0xff]
        %v8189 = vsel %vm1169, %v8154, 0
        %v8192 = vsel %vm1169, %v8155, 0
        %v8195 = vsel %vm1169, %v8156, 0
        %v8198 = vsel %vm1169, %v8157, 0
        %v8201 = vsel %vm1169, %v8158, 0
        %v8204 = vsel %vm1169, %v8159, 0
        %v8207 = vsel %vm1169, %v8160, 0
        %v8210 = vsel %vm1169, %v8161, 0
        %v8213 = vsel %vm1169, %v8162, 0
        %v8216 = vsel %vm1169, %v8163, 0
        %v8219 = vsel %vm1169, %v8164, 0
        %v8222 = vsel %vm1169, %v8165, 0
        %v8225 = vsel %vm1169, %v8166, 0
        %v8228 = vsel %vm1169, %v8167, 0
        %v8231 = vsel %vm1169, %v8168, 0
        %v8234 = vsel %vm1169, %v8169, 0
        %v8237 = vsel %vm1169, %v8170, 0
        %v8240 = vsel %vm1169, %v8171, 0
        %v8243 = vsel %vm1169, %v8172, 0
        %v8246 = vsel %vm1169, %v8173, 0
        %v8249 = vsel %vm1169, %v8174, 0
        %v8252 = vsel %vm1169, %v8175, 0
        %v8255 = vsel %vm1169, %v8176, 0
        %v8258 = vsel %vm1169, %v8177, 0
        %v8261 = vsel %vm1169, %v8178, 0
        %v8264 = vsel %vm1169, %v8179, 0
        %v8267 = vsel %vm1169, %v8180, 0
        %v8270 = vsel %vm1169, %v8181, 0
        %v8273 = vsel %vm1169, %v8182, 0
        %v8276 = vsel %vm1169, %v8183, 0
        %v8279 = vsel %vm1169, %v8184, 0
        %v8282 = vsel %vm1169, %v8185, 0
        %8284 = vmatprep.subr.mxu0 0.0
        %8285 = vmatpush1.msra.mxu0 0.0
        %8286 = vmatprep.subr.mxu0 0.0
        %8287 = vmatpush1.msra.mxu0 0.0
        %8288 = vmatprep.subr.mxu0 0.0
        %8289 = vmatpush1.msra.mxu0 0.0
        %8290 = vmatprep.subr.mxu0 0.0
        %8291 = vmatpush1.msra.mxu0 0.0
        %8292 = vmatprep.subr.mxu0 0.0
        %8293 = vmatpush1.msra.mxu0 0.0
        %8294 = vmatprep.subr.mxu0 0.0
        %8295 = vmatpush1.msra.mxu0 0.0
        %8296 = vmatprep.subr.mxu0 0.0
        %8297 = vmatpush1.msra.mxu0 0.0
        %8298 = vmatprep.subr.mxu0 0.0
        %8299 = vmatpush1.msra.mxu0 0.0
        %8300 = vmatprep.subr.mxu0 0.0
        %8301 = vmatpush1.msra.mxu0 0.0
        %8302 = vmatprep.subr.mxu0 0.0
        %8303 = vmatpush1.msra.mxu0 0.0
        %8304 = vmatprep.subr.mxu0 0.0
        %8305 = vmatpush1.msra.mxu0 0.0
        %8306 = vmatprep.subr.mxu0 0.0
        %8307 = vmatpush1.msra.mxu0 0.0
        %8308 = vmatprep.subr.mxu0 0.0
        %8309 = vmatpush1.msra.mxu0 0.0
        %8310 = vmatprep.subr.mxu0 0.0
        %8311 = vmatpush1.msra.mxu0 0.0
        %8312 = vmatprep.subr.mxu0 0.0
        %8313 = vmatpush1.msra.mxu0 0.0
        %8314 = vmatprep.subr.mxu0 0.0
        %8315 = vmatpush1.msra.mxu0 %v8187
        %8316 = vmatprep.subr.mxu0 0.0
        %8317 = vmatpush2.msra.mxu0 0.0
        %8318 = vmatprep.subr.mxu0 0.0
        %8319 = vmatpush2.msra.mxu0 0.0
        %8320 = vmatprep.subr.mxu0 0.0
        %8321 = vmatpush2.msra.mxu0 0.0
        %8322 = vmatprep.subr.mxu0 0.0
        %8323 = vmatpush2.msra.mxu0 0.0
        %8324 = vmatprep.subr.mxu0 0.0
        %8325 = vmatpush2.msra.mxu0 0.0
        %8326 = vmatprep.subr.mxu0 0.0
        %8327 = vmatpush2.msra.mxu0 0.0
        %8328 = vmatprep.subr.mxu0 0.0
        %8329 = vmatpush2.msra.mxu0 0.0
        %8330 = vmatprep.subr.mxu0 0.0
        %8331 = vmatpush2.msra.mxu0 0.0
        %8332 = vmatprep.subr.mxu0 0.0
        %8333 = vmatpush2.msra.mxu0 0.0
        %8334 = vmatprep.subr.mxu0 0.0
        %8335 = vmatpush2.msra.mxu0 0.0
        %8336 = vmatprep.subr.mxu0 0.0
        %8337 = vmatpush2.msra.mxu0 0.0
        %8338 = vmatprep.subr.mxu0 0.0
        %8339 = vmatpush2.msra.mxu0 0.0
        %8340 = vmatprep.subr.mxu0 0.0
        %8341 = vmatpush2.msra.mxu0 0.0
        %8342 = vmatprep.subr.mxu0 0.0
        %8343 = vmatpush2.msra.mxu0 0.0
        %8344 = vmatprep.subr.mxu0 0.0
        %8345 = vmatpush2.msra.mxu0 0.0
        %8346 = vmatprep.subr.mxu0 0.0
        %8347 = vmatpush2.msra.mxu0 0.0
        %8348 = vmatprep.mubr.f32.mxu0 0.0
        %8349 = vmatmul.mubr.f32.gmra.mxu0 %v8189
        %v8350 = vpop.f32.mrf.mxu0
        %v8351 = vadd.f32 0.0, %v8350
        %v8352 = vpop.f32.mrf.mxu0
        %8353 = vmatprep.mubr.f32.mxu0 0.0
        %8354 = vmatmul.mubr.f32.gmra.mxu0 %v8192
        %v8355 = vpop.f32.mrf.mxu0
        %v8356 = vadd.f32 0.0, %v8355
        %v8357 = vpop.f32.mrf.mxu0
        %8358 = vmatprep.mubr.f32.mxu0 0.0
        %8359 = vmatmul.mubr.f32.gmra.mxu0 %v8195
        %v8360 = vpop.f32.mrf.mxu0
        %v8361 = vadd.f32 0.0, %v8360
        %v8362 = vpop.f32.mrf.mxu0
        %8363 = vmatprep.mubr.f32.mxu0 0.0
        %8364 = vmatmul.mubr.f32.gmra.mxu0 %v8198
        %v8365 = vpop.f32.mrf.mxu0
        %v8366 = vadd.f32 0.0, %v8365
        %v8367 = vpop.f32.mrf.mxu0
        %8368 = vmatprep.mubr.f32.mxu0 0.0
        %8369 = vmatmul.mubr.f32.gmra.mxu0 %v8201
        %v8370 = vpop.f32.mrf.mxu0
        %v8371 = vadd.f32 0.0, %v8370
        %v8372 = vpop.f32.mrf.mxu0
        %8373 = vmatprep.mubr.f32.mxu0 0.0
        %8374 = vmatmul.mubr.f32.gmra.mxu0 %v8204
        %v8375 = vpop.f32.mrf.mxu0
        %v8376 = vadd.f32 0.0, %v8375
        %v8377 = vpop.f32.mrf.mxu0
        %8378 = vmatprep.mubr.f32.mxu0 0.0
        %8379 = vmatmul.mubr.f32.gmra.mxu0 %v8207
        %v8380 = vpop.f32.mrf.mxu0
        %v8381 = vadd.f32 0.0, %v8380
        %v8382 = vpop.f32.mrf.mxu0
        %8383 = vmatprep.mubr.f32.mxu0 0.0
        %8384 = vmatmul.mubr.f32.gmra.mxu0 %v8210
        %v8385 = vpop.f32.mrf.mxu0
        %v8386 = vadd.f32 0.0, %v8385
        %v8387 = vpop.f32.mrf.mxu0
        %8388 = vmatprep.mubr.f32.mxu0 0.0
        %8389 = vmatmul.mubr.f32.gmra.mxu0 %v8213
        %v8390 = vpop.f32.mrf.mxu0
        %v8391 = vadd.f32 0.0, %v8390
        %v8392 = vpop.f32.mrf.mxu0
        %8393 = vmatprep.mubr.f32.mxu0 0.0
        %8394 = vmatmul.mubr.f32.gmra.mxu0 %v8216
        %v8395 = vpop.f32.mrf.mxu0
        %v8396 = vadd.f32 0.0, %v8395
        %v8397 = vpop.f32.mrf.mxu0
        %8398 = vmatprep.mubr.f32.mxu0 0.0
        %8399 = vmatmul.mubr.f32.gmra.mxu0 %v8219
        %v8400 = vpop.f32.mrf.mxu0
        %v8401 = vadd.f32 0.0, %v8400
        %v8402 = vpop.f32.mrf.mxu0
        %8403 = vmatprep.mubr.f32.mxu0 0.0
        %8404 = vmatmul.mubr.f32.gmra.mxu0 %v8222
        %v8405 = vpop.f32.mrf.mxu0
        %v8406 = vadd.f32 0.0, %v8405
        %v8407 = vpop.f32.mrf.mxu0
        %8408 = vmatprep.mubr.f32.mxu0 0.0
        %8409 = vmatmul.mubr.f32.gmra.mxu0 %v8225
        %v8410 = vpop.f32.mrf.mxu0
        %v8411 = vadd.f32 0.0, %v8410
        %v8412 = vpop.f32.mrf.mxu0
        %8413 = vmatprep.mubr.f32.mxu0 0.0
        %8414 = vmatmul.mubr.f32.gmra.mxu0 %v8228
        %v8415 = vpop.f32.mrf.mxu0
        %v8416 = vadd.f32 0.0, %v8415
        %v8417 = vpop.f32.mrf.mxu0
        %8418 = vmatprep.mubr.f32.mxu0 0.0
        %8419 = vmatmul.mubr.f32.gmra.mxu0 %v8231
        %v8420 = vpop.f32.mrf.mxu0
        %v8421 = vadd.f32 0.0, %v8420
        %v8422 = vpop.f32.mrf.mxu0
        %8423 = vmatprep.mubr.f32.mxu0 0.0
        %8424 = vmatmul.mubr.f32.gmra.mxu0 %v8234
        %v8425 = vpop.f32.mrf.mxu0
        %v8426 = vadd.f32 0.0, %v8425
        %v8427 = vpop.f32.mrf.mxu0
        %8428 = vmatprep.mubr.f32.mxu0 0.0
        %8429 = vmatmul.mubr.f32.gmra.mxu0 %v8237
        %v8430 = vpop.f32.mrf.mxu0
        %v8431 = vadd.f32 0.0, %v8430
        %v8432 = vpop.f32.mrf.mxu0
        %8433 = vmatprep.mubr.f32.mxu0 0.0
        %8434 = vmatmul.mubr.f32.gmra.mxu0 %v8240
        %v8435 = vpop.f32.mrf.mxu0
        %v8436 = vadd.f32 0.0, %v8435
        %v8437 = vpop.f32.mrf.mxu0
        %8438 = vmatprep.mubr.f32.mxu0 0.0
        %8439 = vmatmul.mubr.f32.gmra.mxu0 %v8243
        %v8440 = vpop.f32.mrf.mxu0
        %v8441 = vadd.f32 0.0, %v8440
        %v8442 = vpop.f32.mrf.mxu0
        %8443 = vmatprep.mubr.f32.mxu0 0.0
        %8444 = vmatmul.mubr.f32.gmra.mxu0 %v8246
        %v8445 = vpop.f32.mrf.mxu0
        %v8446 = vadd.f32 0.0, %v8445
        %v8447 = vpop.f32.mrf.mxu0
        %8448 = vmatprep.mubr.f32.mxu0 0.0
        %8449 = vmatmul.mubr.f32.gmra.mxu0 %v8249
        %v8450 = vpop.f32.mrf.mxu0
        %v8451 = vadd.f32 0.0, %v8450
        %v8452 = vpop.f32.mrf.mxu0
        %8453 = vmatprep.mubr.f32.mxu0 0.0
        %8454 = vmatmul.mubr.f32.gmra.mxu0 %v8252
        %v8455 = vpop.f32.mrf.mxu0
        %v8456 = vadd.f32 0.0, %v8455
        %v8457 = vpop.f32.mrf.mxu0
        %8458 = vmatprep.mubr.f32.mxu0 0.0
        %8459 = vmatmul.mubr.f32.gmra.mxu0 %v8255
        %v8460 = vpop.f32.mrf.mxu0
        %v8461 = vadd.f32 0.0, %v8460
        %v8462 = vpop.f32.mrf.mxu0
        %8463 = vmatprep.mubr.f32.mxu0 0.0
        %8464 = vmatmul.mubr.f32.gmra.mxu0 %v8258
        %v8465 = vpop.f32.mrf.mxu0
        %v8466 = vadd.f32 0.0, %v8465
        %v8467 = vpop.f32.mrf.mxu0
        %8468 = vmatprep.mubr.f32.mxu0 0.0
        %8469 = vmatmul.mubr.f32.gmra.mxu0 %v8261
        %v8470 = vpop.f32.mrf.mxu0
        %v8471 = vadd.f32 0.0, %v8470
        %v8472 = vpop.f32.mrf.mxu0
        %8473 = vmatprep.mubr.f32.mxu0 0.0
        %8474 = vmatmul.mubr.f32.gmra.mxu0 %v8264
        %v8475 = vpop.f32.mrf.mxu0
        %v8476 = vadd.f32 0.0, %v8475
        %v8477 = vpop.f32.mrf.mxu0
        %8478 = vmatprep.mubr.f32.mxu0 0.0
        %8479 = vmatmul.mubr.f32.gmra.mxu0 %v8267
        %v8480 = vpop.f32.mrf.mxu0
        %v8481 = vadd.f32 0.0, %v8480
        %v8482 = vpop.f32.mrf.mxu0
        %8483 = vmatprep.mubr.f32.mxu0 0.0
        %8484 = vmatmul.mubr.f32.gmra.mxu0 %v8270
        %v8485 = vpop.f32.mrf.mxu0
        %v8486 = vadd.f32 0.0, %v8485
        %v8487 = vpop.f32.mrf.mxu0
        %8488 = vmatprep.mubr.f32.mxu0 0.0
        %8489 = vmatmul.mubr.f32.gmra.mxu0 %v8273
        %v8490 = vpop.f32.mrf.mxu0
        %v8491 = vadd.f32 0.0, %v8490
        %v8492 = vpop.f32.mrf.mxu0
        %8493 = vmatprep.mubr.f32.mxu0 0.0
        %8494 = vmatmul.mubr.f32.gmra.mxu0 %v8276
        %v8495 = vpop.f32.mrf.mxu0
        %v8496 = vadd.f32 0.0, %v8495
        %v8497 = vpop.f32.mrf.mxu0
        %8498 = vmatprep.mubr.f32.mxu0 0.0
        %8499 = vmatmul.mubr.f32.gmra.mxu0 %v8279
        %v8500 = vpop.f32.mrf.mxu0
        %v8501 = vadd.f32 0.0, %v8500
        %v8502 = vpop.f32.mrf.mxu0
        %8503 = vmatprep.mubr.f32.mxu0 0.0
        %8504 = vmatmul.mubr.f32.gmra.mxu0 %v8282
        %v8505 = vpop.f32.mrf.mxu0
        %v8506 = vadd.f32 0.0, %v8505
        %v8507 = vpop.f32.mrf.mxu0
        %8508 = vdwg.mxu0
        %8509 = vmatprep.subr.mxu0 0.0
        %8510 = vmatpush1.msra.mxu0 0.0
        %8511 = vmatprep.subr.mxu0 0.0
        %8512 = vmatpush1.msra.mxu0 0.0
        %8513 = vmatprep.subr.mxu0 0.0
        %8514 = vmatpush1.msra.mxu0 0.0
        %8515 = vmatprep.subr.mxu0 0.0
        %8516 = vmatpush1.msra.mxu0 0.0
        %8517 = vmatprep.subr.mxu0 0.0
        %8518 = vmatpush1.msra.mxu0 0.0
        %8519 = vmatprep.subr.mxu0 0.0
        %8520 = vmatpush1.msra.mxu0 0.0
        %8521 = vmatprep.subr.mxu0 0.0
        %8522 = vmatpush1.msra.mxu0 0.0
        %8523 = vmatprep.subr.mxu0 0.0
        %8524 = vmatpush1.msra.mxu0 0.0
        %8525 = vmatprep.subr.mxu0 0.0
        %8526 = vmatpush1.msra.mxu0 0.0
        %8527 = vmatprep.subr.mxu0 0.0
        %8528 = vmatpush1.msra.mxu0 0.0
        %8529 = vmatprep.subr.mxu0 0.0
        %8530 = vmatpush1.msra.mxu0 0.0
        %8531 = vmatprep.subr.mxu0 0.0
        %8532 = vmatpush1.msra.mxu0 0.0
        %8533 = vmatprep.subr.mxu0 0.0
        %8534 = vmatpush1.msra.mxu0 0.0
        %8535 = vmatprep.subr.mxu0 0.0
        %8536 = vmatpush1.msra.mxu0 0.0
        %8537 = vmatprep.subr.mxu0 0.0
        %8538 = vmatpush1.msra.mxu0 0.0
        %8539 = vmatprep.subr.mxu0 0.0
        %8540 = vmatpush1.msra.mxu0 %v8186
        %8541 = vmatprep.subr.mxu0 0.0
        %8542 = vmatpush2.msra.mxu0 0.0
        %8543 = vmatprep.subr.mxu0 0.0
        %8544 = vmatpush2.msra.mxu0 0.0
        %8545 = vmatprep.subr.mxu0 0.0
        %8546 = vmatpush2.msra.mxu0 0.0
        %8547 = vmatprep.subr.mxu0 0.0
        %8548 = vmatpush2.msra.mxu0 0.0
        %8549 = vmatprep.subr.mxu0 0.0
        %8550 = vmatpush2.msra.mxu0 0.0
        %8551 = vmatprep.subr.mxu0 0.0
        %8552 = vmatpush2.msra.mxu0 0.0
        %8553 = vmatprep.subr.mxu0 0.0
        %8554 = vmatpush2.msra.mxu0 0.0
        %8555 = vmatprep.subr.mxu0 0.0
        %8556 = vmatpush2.msra.mxu0 0.0
        %8557 = vmatprep.subr.mxu0 0.0
        %8558 = vmatpush2.msra.mxu0 0.0
        %8559 = vmatprep.subr.mxu0 0.0
        %8560 = vmatpush2.msra.mxu0 0.0
        %8561 = vmatprep.subr.mxu0 0.0
        %8562 = vmatpush2.msra.mxu0 0.0
        %8563 = vmatprep.subr.mxu0 0.0
        %8564 = vmatpush2.msra.mxu0 0.0
        %8565 = vmatprep.subr.mxu0 0.0
        %8566 = vmatpush2.msra.mxu0 0.0
        %8567 = vmatprep.subr.mxu0 0.0
        %8568 = vmatpush2.msra.mxu0 0.0
        %8569 = vmatprep.subr.mxu0 0.0
        %8570 = vmatpush2.msra.mxu0 0.0
        %8571 = vmatprep.subr.mxu0 0.0
        %8572 = vmatpush2.msra.mxu0 0.0
        %8573 = vmatprep.mubr.f32.mxu0 0.0
        %8574 = vmatmul.mubr.f32.gmra.mxu0 %v4799
        %v8575 = vpop.f32.mrf.mxu0
        %v8576 = vadd.f32 %v8351, %v8575
        %v8577 = vpop.f32.mrf.mxu0
        %8578 = vmatprep.mubr.f32.mxu0 0.0
        %8579 = vmatmul.mubr.f32.gmra.mxu0 %v4802
        %v8580 = vpop.f32.mrf.mxu0
        %v8581 = vadd.f32 %v8356, %v8580
        %v8582 = vpop.f32.mrf.mxu0
        %8583 = vmatprep.mubr.f32.mxu0 0.0
        %8584 = vmatmul.mubr.f32.gmra.mxu0 %v4805
        %v8585 = vpop.f32.mrf.mxu0
        %v8586 = vadd.f32 %v8361, %v8585
        %v8587 = vpop.f32.mrf.mxu0
        %8588 = vmatprep.mubr.f32.mxu0 0.0
        %8589 = vmatmul.mubr.f32.gmra.mxu0 %v4808
        %v8590 = vpop.f32.mrf.mxu0
        %v8591 = vadd.f32 %v8366, %v8590
        %v8592 = vpop.f32.mrf.mxu0
        %8593 = vmatprep.mubr.f32.mxu0 0.0
        %8594 = vmatmul.mubr.f32.gmra.mxu0 %v4811
        %v8595 = vpop.f32.mrf.mxu0
        %v8596 = vadd.f32 %v8371, %v8595
        %v8597 = vpop.f32.mrf.mxu0
        %8598 = vmatprep.mubr.f32.mxu0 0.0
        %8599 = vmatmul.mubr.f32.gmra.mxu0 %v4814
        %v8600 = vpop.f32.mrf.mxu0
        %v8601 = vadd.f32 %v8376, %v8600
        %v8602 = vpop.f32.mrf.mxu0
        %8603 = vmatprep.mubr.f32.mxu0 0.0
        %8604 = vmatmul.mubr.f32.gmra.mxu0 %v4817
        %v8605 = vpop.f32.mrf.mxu0
        %v8606 = vadd.f32 %v8381, %v8605
        %v8607 = vpop.f32.mrf.mxu0
        %8608 = vmatprep.mubr.f32.mxu0 0.0
        %8609 = vmatmul.mubr.f32.gmra.mxu0 %v4820
        %v8610 = vpop.f32.mrf.mxu0
        %v8611 = vadd.f32 %v8386, %v8610
        %v8612 = vpop.f32.mrf.mxu0
        %8613 = vmatprep.mubr.f32.mxu0 0.0
        %8614 = vmatmul.mubr.f32.gmra.mxu0 %v4823
        %v8615 = vpop.f32.mrf.mxu0
        %v8616 = vadd.f32 %v8391, %v8615
        %v8617 = vpop.f32.mrf.mxu0
        %8618 = vmatprep.mubr.f32.mxu0 0.0
        %8619 = vmatmul.mubr.f32.gmra.mxu0 %v4826
        %v8620 = vpop.f32.mrf.mxu0
        %v8621 = vadd.f32 %v8396, %v8620
        %v8622 = vpop.f32.mrf.mxu0
        %8623 = vmatprep.mubr.f32.mxu0 0.0
        %8624 = vmatmul.mubr.f32.gmra.mxu0 %v4829
        %v8625 = vpop.f32.mrf.mxu0
        %v8626 = vadd.f32 %v8401, %v8625
        %v8627 = vpop.f32.mrf.mxu0
        %8628 = vmatprep.mubr.f32.mxu0 0.0
        %8629 = vmatmul.mubr.f32.gmra.mxu0 %v4832
        %v8630 = vpop.f32.mrf.mxu0
        %v8631 = vadd.f32 %v8406, %v8630
        %v8632 = vpop.f32.mrf.mxu0
        %8633 = vmatprep.mubr.f32.mxu0 0.0
        %8634 = vmatmul.mubr.f32.gmra.mxu0 %v4835
        %v8635 = vpop.f32.mrf.mxu0
        %v8636 = vadd.f32 %v8411, %v8635
        %v8637 = vpop.f32.mrf.mxu0
        %8638 = vmatprep.mubr.f32.mxu0 0.0
        %8639 = vmatmul.mubr.f32.gmra.mxu0 %v4838
        %v8640 = vpop.f32.mrf.mxu0
        %v8641 = vadd.f32 %v8416, %v8640
        %v8642 = vpop.f32.mrf.mxu0
        %8643 = vmatprep.mubr.f32.mxu0 0.0
        %8644 = vmatmul.mubr.f32.gmra.mxu0 %v4841
        %v8645 = vpop.f32.mrf.mxu0
        %v8646 = vadd.f32 %v8421, %v8645
        %v8647 = vpop.f32.mrf.mxu0
        %8648 = vmatprep.mubr.f32.mxu0 0.0
        %8649 = vmatmul.mubr.f32.gmra.mxu0 %v4844
        %v8650 = vpop.f32.mrf.mxu0
        %v8651 = vadd.f32 %v8426, %v8650
        %v8652 = vpop.f32.mrf.mxu0
        %8653 = vmatprep.mubr.f32.mxu0 0.0
        %8654 = vmatmul.mubr.f32.gmra.mxu0 %v4847
        %v8655 = vpop.f32.mrf.mxu0
        %v8656 = vadd.f32 %v8431, %v8655
        %v8657 = vpop.f32.mrf.mxu0
        %8658 = vmatprep.mubr.f32.mxu0 0.0
        %8659 = vmatmul.mubr.f32.gmra.mxu0 %v4850
        %v8660 = vpop.f32.mrf.mxu0
        %v8661 = vadd.f32 %v8436, %v8660
        %v8662 = vpop.f32.mrf.mxu0
        %8663 = vmatprep.mubr.f32.mxu0 0.0
        %8664 = vmatmul.mubr.f32.gmra.mxu0 %v4853
        %v8665 = vpop.f32.mrf.mxu0
        %v8666 = vadd.f32 %v8441, %v8665
        %v8667 = vpop.f32.mrf.mxu0
        %8668 = vmatprep.mubr.f32.mxu0 0.0
        %8669 = vmatmul.mubr.f32.gmra.mxu0 %v4856
        %v8670 = vpop.f32.mrf.mxu0
        %v8671 = vadd.f32 %v8446, %v8670
        %v8672 = vpop.f32.mrf.mxu0
        %8673 = vmatprep.mubr.f32.mxu0 0.0
        %8674 = vmatmul.mubr.f32.gmra.mxu0 %v4859
        %v8675 = vpop.f32.mrf.mxu0
        %v8676 = vadd.f32 %v8451, %v8675
        %v8677 = vpop.f32.mrf.mxu0
        %8678 = vmatprep.mubr.f32.mxu0 0.0
        %8679 = vmatmul.mubr.f32.gmra.mxu0 %v4862
        %v8680 = vpop.f32.mrf.mxu0
        %v8681 = vadd.f32 %v8456, %v8680
        %v8682 = vpop.f32.mrf.mxu0
        %8683 = vmatprep.mubr.f32.mxu0 0.0
        %8684 = vmatmul.mubr.f32.gmra.mxu0 %v4865
        %v8685 = vpop.f32.mrf.mxu0
        %v8686 = vadd.f32 %v8461, %v8685
        %v8687 = vpop.f32.mrf.mxu0
        %8688 = vmatprep.mubr.f32.mxu0 0.0
        %8689 = vmatmul.mubr.f32.gmra.mxu0 %v4868
        %v8690 = vpop.f32.mrf.mxu0
        %v8691 = vadd.f32 %v8466, %v8690
        %v8692 = vpop.f32.mrf.mxu0
        %8693 = vmatprep.mubr.f32.mxu0 0.0
        %8694 = vmatmul.mubr.f32.gmra.mxu0 %v4871
        %v8695 = vpop.f32.mrf.mxu0
        %v8696 = vadd.f32 %v8471, %v8695
        %v8697 = vpop.f32.mrf.mxu0
        %8698 = vmatprep.mubr.f32.mxu0 0.0
        %8699 = vmatmul.mubr.f32.gmra.mxu0 %v4874
        %v8700 = vpop.f32.mrf.mxu0
        %v8701 = vadd.f32 %v8476, %v8700
        %v8702 = vpop.f32.mrf.mxu0
        %8703 = vmatprep.mubr.f32.mxu0 0.0
        %8704 = vmatmul.mubr.f32.gmra.mxu0 %v4877
        %v8705 = vpop.f32.mrf.mxu0
        %v8706 = vadd.f32 %v8481, %v8705
        %v8707 = vpop.f32.mrf.mxu0
        %8708 = vmatprep.mubr.f32.mxu0 0.0
        %8709 = vmatmul.mubr.f32.gmra.mxu0 %v4880
        %v8710 = vpop.f32.mrf.mxu0
        %v8711 = vadd.f32 %v8486, %v8710
        %v8712 = vpop.f32.mrf.mxu0
        %8713 = vmatprep.mubr.f32.mxu0 0.0
        %8714 = vmatmul.mubr.f32.gmra.mxu0 %v4883
        %v8715 = vpop.f32.mrf.mxu0
        %v8716 = vadd.f32 %v8491, %v8715
        %v8717 = vpop.f32.mrf.mxu0
        %8718 = vmatprep.mubr.f32.mxu0 0.0
        %8719 = vmatmul.mubr.f32.gmra.mxu0 %v4886
        %v8720 = vpop.f32.mrf.mxu0
        %v8721 = vadd.f32 %v8496, %v8720
        %v8722 = vpop.f32.mrf.mxu0
        %8723 = vmatprep.mubr.f32.mxu0 0.0
        %8724 = vmatmul.mubr.f32.gmra.mxu0 %v4889
        %v8725 = vpop.f32.mrf.mxu0
        %v8726 = vadd.f32 %v8501, %v8725
        %v8727 = vpop.f32.mrf.mxu0
        %8728 = vmatprep.mubr.f32.mxu0 0.0
        %8729 = vmatmul.mubr.f32.gmra.mxu0 %v4892
        %v8730 = vpop.f32.mrf.mxu0
        %v8731 = vadd.f32 %v8506, %v8730
        %v8732 = vpop.f32.mrf.mxu0
        %8733 = vdwg.mxu0
        %v8734 = vld [vmem:[%s22] sm:$0x1]
        %v8736 = vlaneseq
        %v8737 = vshrl.u32 %v8736, 7
        %v8738 = vsub.s32 0, %v8737
        %v8739 = vrot.slane %v8734, %v8738
        %v8741 = vadd.f32 %v8576, %v8739
        %v8742 = vadd.f32 %v8581, %v8739
        %v8743 = vadd.f32 %v8586, %v8739
        %v8744 = vadd.f32 %v8591, %v8739
        %v8745 = vadd.f32 %v8596, %v8739
        %v8746 = vadd.f32 %v8601, %v8739
        %v8747 = vadd.f32 %v8606, %v8739
        %v8748 = vadd.f32 %v8611, %v8739
        %v8749 = vadd.f32 %v8616, %v8739
        %v8750 = vadd.f32 %v8621, %v8739
        %v8751 = vadd.f32 %v8626, %v8739
        %v8752 = vadd.f32 %v8631, %v8739
        %v8753 = vadd.f32 %v8636, %v8739
        %v8754 = vadd.f32 %v8641, %v8739
        %v8755 = vadd.f32 %v8646, %v8739
        %v8756 = vadd.f32 %v8651, %v8739
        %v8757 = vadd.f32 %v8656, %v8739
        %v8758 = vadd.f32 %v8661, %v8739
        %v8759 = vadd.f32 %v8666, %v8739
        %v8760 = vadd.f32 %v8671, %v8739
        %v8761 = vadd.f32 %v8676, %v8739
        %v8762 = vadd.f32 %v8681, %v8739
        %v8763 = vadd.f32 %v8686, %v8739
        %v8764 = vadd.f32 %v8691, %v8739
        %v8765 = vadd.f32 %v8696, %v8739
        %v8766 = vadd.f32 %v8701, %v8739
        %v8767 = vadd.f32 %v8706, %v8739
        %v8768 = vadd.f32 %v8711, %v8739
        %v8769 = vadd.f32 %v8716, %v8739
        %v8770 = vadd.f32 %v8721, %v8739
        %v8771 = vadd.f32 %v8726, %v8739
        %v8772 = vadd.f32 %v8731, %v8739
        %v8773 = vld [vmem:[%s2] sm:$0xff]
        %v8774 = vld [vmem:[%s1] sm:$0x1]
        %v8776 = vlaneseq
        %v8777 = vshrl.u32 %v8776, 7
        %v8778 = vsub.s32 0, %v8777
        %v8779 = vrot.slane %v8774, %v8778
        %v8782 = vsel %vm1169, %v8741, 0
        %v8785 = vsel %vm1169, %v8742, 0
        %v8788 = vsel %vm1169, %v8743, 0
        %v8791 = vsel %vm1169, %v8744, 0
        %v8794 = vsel %vm1169, %v8745, 0
        %v8797 = vsel %vm1169, %v8746, 0
        %v8800 = vsel %vm1169, %v8747, 0
        %v8803 = vsel %vm1169, %v8748, 0
        %v8806 = vsel %vm1169, %v8749, 0
        %v8809 = vsel %vm1169, %v8750, 0
        %v8812 = vsel %vm1169, %v8751, 0
        %v8815 = vsel %vm1169, %v8752, 0
        %v8818 = vsel %vm1169, %v8753, 0
        %v8821 = vsel %vm1169, %v8754, 0
        %v8824 = vsel %vm1169, %v8755, 0
        %v8827 = vsel %vm1169, %v8756, 0
        %v8830 = vsel %vm1169, %v8757, 0
        %v8833 = vsel %vm1169, %v8758, 0
        %v8836 = vsel %vm1169, %v8759, 0
        %v8839 = vsel %vm1169, %v8760, 0
        %v8842 = vsel %vm1169, %v8761, 0
        %v8845 = vsel %vm1169, %v8762, 0
        %v8848 = vsel %vm1169, %v8763, 0
        %v8851 = vsel %vm1169, %v8764, 0
        %v8854 = vsel %vm1169, %v8765, 0
        %v8857 = vsel %vm1169, %v8766, 0
        %v8860 = vsel %vm1169, %v8767, 0
        %v8863 = vsel %vm1169, %v8768, 0
        %v8866 = vsel %vm1169, %v8769, 0
        %v8869 = vsel %vm1169, %v8770, 0
        %v8872 = vsel %vm1169, %v8771, 0
        %v8875 = vsel %vm1169, %v8772, 0
        %8877 = vmatprep.subr.mxu0 0.0
        %8878 = vmatpush1.msra.mxu0 0.0
        %8879 = vmatprep.subr.mxu0 0.0
        %8880 = vmatpush1.msra.mxu0 0.0
        %8881 = vmatprep.subr.mxu0 0.0
        %8882 = vmatpush1.msra.mxu0 0.0
        %8883 = vmatprep.subr.mxu0 0.0
        %8884 = vmatpush1.msra.mxu0 0.0
        %8885 = vmatprep.subr.mxu0 0.0
        %8886 = vmatpush1.msra.mxu0 0.0
        %8887 = vmatprep.subr.mxu0 0.0
        %8888 = vmatpush1.msra.mxu0 0.0
        %8889 = vmatprep.subr.mxu0 0.0
        %8890 = vmatpush1.msra.mxu0 0.0
        %8891 = vmatprep.subr.mxu0 0.0
        %8892 = vmatpush1.msra.mxu0 0.0
        %8893 = vmatprep.subr.mxu0 0.0
        %8894 = vmatpush1.msra.mxu0 0.0
        %8895 = vmatprep.subr.mxu0 0.0
        %8896 = vmatpush1.msra.mxu0 0.0
        %8897 = vmatprep.subr.mxu0 0.0
        %8898 = vmatpush1.msra.mxu0 0.0
        %8899 = vmatprep.subr.mxu0 0.0
        %8900 = vmatpush1.msra.mxu0 0.0
        %8901 = vmatprep.subr.mxu0 0.0
        %8902 = vmatpush1.msra.mxu0 0.0
        %8903 = vmatprep.subr.mxu0 0.0
        %8904 = vmatpush1.msra.mxu0 0.0
        %8905 = vmatprep.subr.mxu0 0.0
        %8906 = vmatpush1.msra.mxu0 0.0
        %8907 = vmatprep.subr.mxu0 0.0
        %8908 = vmatpush1.msra.mxu0 %v8773
        %8909 = vmatprep.subr.mxu0 0.0
        %8910 = vmatpush2.msra.mxu0 0.0
        %8911 = vmatprep.subr.mxu0 0.0
        %8912 = vmatpush2.msra.mxu0 0.0
        %8913 = vmatprep.subr.mxu0 0.0
        %8914 = vmatpush2.msra.mxu0 0.0
        %8915 = vmatprep.subr.mxu0 0.0
        %8916 = vmatpush2.msra.mxu0 0.0
        %8917 = vmatprep.subr.mxu0 0.0
        %8918 = vmatpush2.msra.mxu0 0.0
        %8919 = vmatprep.subr.mxu0 0.0
        %8920 = vmatpush2.msra.mxu0 0.0
        %8921 = vmatprep.subr.mxu0 0.0
        %8922 = vmatpush2.msra.mxu0 0.0
        %8923 = vmatprep.subr.mxu0 0.0
        %8924 = vmatpush2.msra.mxu0 0.0
        %8925 = vmatprep.subr.mxu0 0.0
        %8926 = vmatpush2.msra.mxu0 0.0
        %8927 = vmatprep.subr.mxu0 0.0
        %8928 = vmatpush2.msra.mxu0 0.0
        %8929 = vmatprep.subr.mxu0 0.0
        %8930 = vmatpush2.msra.mxu0 0.0
        %8931 = vmatprep.subr.mxu0 0.0
        %8932 = vmatpush2.msra.mxu0 0.0
        %8933 = vmatprep.subr.mxu0 0.0
        %8934 = vmatpush2.msra.mxu0 0.0
        %8935 = vmatprep.subr.mxu0 0.0
        %8936 = vmatpush2.msra.mxu0 0.0
        %8937 = vmatprep.subr.mxu0 0.0
        %8938 = vmatpush2.msra.mxu0 0.0
        %8939 = vmatprep.subr.mxu0 0.0
        %8940 = vmatpush2.msra.mxu0 0.0
        %8941 = vmatprep.mubr.f32.mxu0 0.0
        %8942 = vmatmul.mubr.f32.gmra.mxu0 %v8782
        %v8943 = vpop.f32.mrf.mxu0
        %v8944 = vadd.f32 %v8779, %v8943
        %v8945 = vpop.f32.mrf.mxu0
        %8946 = vmatprep.mubr.f32.mxu0 0.0
        %8947 = vmatmul.mubr.f32.gmra.mxu0 %v8785
        %v8948 = vpop.f32.mrf.mxu0
        %v8949 = vadd.f32 %v8779, %v8948
        %v8950 = vpop.f32.mrf.mxu0
        %8951 = vmatprep.mubr.f32.mxu0 0.0
        %8952 = vmatmul.mubr.f32.gmra.mxu0 %v8788
        %v8953 = vpop.f32.mrf.mxu0
        %v8954 = vadd.f32 %v8779, %v8953
        %v8955 = vpop.f32.mrf.mxu0
        %8956 = vmatprep.mubr.f32.mxu0 0.0
        %8957 = vmatmul.mubr.f32.gmra.mxu0 %v8791
        %v8958 = vpop.f32.mrf.mxu0
        %v8959 = vadd.f32 %v8779, %v8958
        %v8960 = vpop.f32.mrf.mxu0
        %8961 = vmatprep.mubr.f32.mxu0 0.0
        %8962 = vmatmul.mubr.f32.gmra.mxu0 %v8794
        %v8963 = vpop.f32.mrf.mxu0
        %v8964 = vadd.f32 %v8779, %v8963
        %v8965 = vpop.f32.mrf.mxu0
        %8966 = vmatprep.mubr.f32.mxu0 0.0
        %8967 = vmatmul.mubr.f32.gmra.mxu0 %v8797
        %v8968 = vpop.f32.mrf.mxu0
        %v8969 = vadd.f32 %v8779, %v8968
        %v8970 = vpop.f32.mrf.mxu0
        %8971 = vmatprep.mubr.f32.mxu0 0.0
        %8972 = vmatmul.mubr.f32.gmra.mxu0 %v8800
        %v8973 = vpop.f32.mrf.mxu0
        %v8974 = vadd.f32 %v8779, %v8973
        %v8975 = vpop.f32.mrf.mxu0
        %8976 = vmatprep.mubr.f32.mxu0 0.0
        %8977 = vmatmul.mubr.f32.gmra.mxu0 %v8803
        %v8978 = vpop.f32.mrf.mxu0
        %v8979 = vadd.f32 %v8779, %v8978
        %v8980 = vpop.f32.mrf.mxu0
        %8981 = vmatprep.mubr.f32.mxu0 0.0
        %8982 = vmatmul.mubr.f32.gmra.mxu0 %v8806
        %v8983 = vpop.f32.mrf.mxu0
        %v8984 = vadd.f32 %v8779, %v8983
        %v8985 = vpop.f32.mrf.mxu0
        %8986 = vmatprep.mubr.f32.mxu0 0.0
        %8987 = vmatmul.mubr.f32.gmra.mxu0 %v8809
        %v8988 = vpop.f32.mrf.mxu0
        %v8989 = vadd.f32 %v8779, %v8988
        %v8990 = vpop.f32.mrf.mxu0
        %8991 = vmatprep.mubr.f32.mxu0 0.0
        %8992 = vmatmul.mubr.f32.gmra.mxu0 %v8812
        %v8993 = vpop.f32.mrf.mxu0
        %v8994 = vadd.f32 %v8779, %v8993
        %v8995 = vpop.f32.mrf.mxu0
        %8996 = vmatprep.mubr.f32.mxu0 0.0
        %8997 = vmatmul.mubr.f32.gmra.mxu0 %v8815
        %v8998 = vpop.f32.mrf.mxu0
        %v8999 = vadd.f32 %v8779, %v8998
        %v9000 = vpop.f32.mrf.mxu0
        %9001 = vmatprep.mubr.f32.mxu0 0.0
        %9002 = vmatmul.mubr.f32.gmra.mxu0 %v8818
        %v9003 = vpop.f32.mrf.mxu0
        %v9004 = vadd.f32 %v8779, %v9003
        %v9005 = vpop.f32.mrf.mxu0
        %9006 = vmatprep.mubr.f32.mxu0 0.0
        %9007 = vmatmul.mubr.f32.gmra.mxu0 %v8821
        %v9008 = vpop.f32.mrf.mxu0
        %v9009 = vadd.f32 %v8779, %v9008
        %v9010 = vpop.f32.mrf.mxu0
        %9011 = vmatprep.mubr.f32.mxu0 0.0
        %9012 = vmatmul.mubr.f32.gmra.mxu0 %v8824
        %v9013 = vpop.f32.mrf.mxu0
        %v9014 = vadd.f32 %v8779, %v9013
        %v9015 = vpop.f32.mrf.mxu0
        %9016 = vmatprep.mubr.f32.mxu0 0.0
        %9017 = vmatmul.mubr.f32.gmra.mxu0 %v8827
        %v9018 = vpop.f32.mrf.mxu0
        %v9019 = vadd.f32 %v8779, %v9018
        %v9020 = vpop.f32.mrf.mxu0
        %9021 = vmatprep.mubr.f32.mxu0 0.0
        %9022 = vmatmul.mubr.f32.gmra.mxu0 %v8830
        %v9023 = vpop.f32.mrf.mxu0
        %v9024 = vadd.f32 %v8779, %v9023
        %v9025 = vpop.f32.mrf.mxu0
        %9026 = vmatprep.mubr.f32.mxu0 0.0
        %9027 = vmatmul.mubr.f32.gmra.mxu0 %v8833
        %v9028 = vpop.f32.mrf.mxu0
        %v9029 = vadd.f32 %v8779, %v9028
        %v9030 = vpop.f32.mrf.mxu0
        %9031 = vmatprep.mubr.f32.mxu0 0.0
        %9032 = vmatmul.mubr.f32.gmra.mxu0 %v8836
        %v9033 = vpop.f32.mrf.mxu0
        %v9034 = vadd.f32 %v8779, %v9033
        %v9035 = vpop.f32.mrf.mxu0
        %9036 = vmatprep.mubr.f32.mxu0 0.0
        %9037 = vmatmul.mubr.f32.gmra.mxu0 %v8839
        %v9038 = vpop.f32.mrf.mxu0
        %v9039 = vadd.f32 %v8779, %v9038
        %v9040 = vpop.f32.mrf.mxu0
        %9041 = vmatprep.mubr.f32.mxu0 0.0
        %9042 = vmatmul.mubr.f32.gmra.mxu0 %v8842
        %v9043 = vpop.f32.mrf.mxu0
        %v9044 = vadd.f32 %v8779, %v9043
        %v9045 = vpop.f32.mrf.mxu0
        %9046 = vmatprep.mubr.f32.mxu0 0.0
        %9047 = vmatmul.mubr.f32.gmra.mxu0 %v8845
        %v9048 = vpop.f32.mrf.mxu0
        %v9049 = vadd.f32 %v8779, %v9048
        %v9050 = vpop.f32.mrf.mxu0
        %9051 = vmatprep.mubr.f32.mxu0 0.0
        %9052 = vmatmul.mubr.f32.gmra.mxu0 %v8848
        %v9053 = vpop.f32.mrf.mxu0
        %v9054 = vadd.f32 %v8779, %v9053
        %v9055 = vpop.f32.mrf.mxu0
        %9056 = vmatprep.mubr.f32.mxu0 0.0
        %9057 = vmatmul.mubr.f32.gmra.mxu0 %v8851
        %v9058 = vpop.f32.mrf.mxu0
        %v9059 = vadd.f32 %v8779, %v9058
        %v9060 = vpop.f32.mrf.mxu0
        %9061 = vmatprep.mubr.f32.mxu0 0.0
        %9062 = vmatmul.mubr.f32.gmra.mxu0 %v8854
        %v9063 = vpop.f32.mrf.mxu0
        %v9064 = vadd.f32 %v8779, %v9063
        %v9065 = vpop.f32.mrf.mxu0
        %9066 = vmatprep.mubr.f32.mxu0 0.0
        %9067 = vmatmul.mubr.f32.gmra.mxu0 %v8857
        %v9068 = vpop.f32.mrf.mxu0
        %v9069 = vadd.f32 %v8779, %v9068
        %v9070 = vpop.f32.mrf.mxu0
        %9071 = vmatprep.mubr.f32.mxu0 0.0
        %9072 = vmatmul.mubr.f32.gmra.mxu0 %v8860
        %v9073 = vpop.f32.mrf.mxu0
        %v9074 = vadd.f32 %v8779, %v9073
        %v9075 = vpop.f32.mrf.mxu0
        %9076 = vmatprep.mubr.f32.mxu0 0.0
        %9077 = vmatmul.mubr.f32.gmra.mxu0 %v8863
        %v9078 = vpop.f32.mrf.mxu0
        %v9079 = vadd.f32 %v8779, %v9078
        %v9080 = vpop.f32.mrf.mxu0
        %9081 = vmatprep.mubr.f32.mxu0 0.0
        %9082 = vmatmul.mubr.f32.gmra.mxu0 %v8866
        %v9083 = vpop.f32.mrf.mxu0
        %v9084 = vadd.f32 %v8779, %v9083
        %v9085 = vpop.f32.mrf.mxu0
        %9086 = vmatprep.mubr.f32.mxu0 0.0
        %9087 = vmatmul.mubr.f32.gmra.mxu0 %v8869
        %v9088 = vpop.f32.mrf.mxu0
        %v9089 = vadd.f32 %v8779, %v9088
        %v9090 = vpop.f32.mrf.mxu0
        %9091 = vmatprep.mubr.f32.mxu0 0.0
        %9092 = vmatmul.mubr.f32.gmra.mxu0 %v8872
        %v9093 = vpop.f32.mrf.mxu0
        %v9094 = vadd.f32 %v8779, %v9093
        %v9095 = vpop.f32.mrf.mxu0
        %9096 = vmatprep.mubr.f32.mxu0 0.0
        %9097 = vmatmul.mubr.f32.gmra.mxu0 %v8875
        %v9098 = vpop.f32.mrf.mxu0
        %v9099 = vadd.f32 %v8779, %v9098
        %v9100 = vpop.f32.mrf.mxu0
        %9101 = vdwg.mxu0
        %vm9102 = vcmask 130048
        %9103 = vst.msk [vmem:[%s757] sm:$0xff] %vm9102, %v8944
        %9104 = vst.msk [vmem:[%s757 + $0x8] sm:$0xff] %vm9102, %v8949
        %9105 = vst.msk [vmem:[%s757 + $0x10] sm:$0xff] %vm9102, %v8954
        %9106 = vst.msk [vmem:[%s757 + $0x18] sm:$0xff] %vm9102, %v8959
        %9107 = vst.msk [vmem:[%s757 + $0x20] sm:$0xff] %vm9102, %v8964
        %9108 = vst.msk [vmem:[%s757 + $0x28] sm:$0xff] %vm9102, %v8969
        %9109 = vst.msk [vmem:[%s757 + $0x30] sm:$0xff] %vm9102, %v8974
        %9110 = vst.msk [vmem:[%s757 + $0x38] sm:$0xff] %vm9102, %v8979
        %9111 = vst.msk [vmem:[%s757 + $0x40] sm:$0xff] %vm9102, %v8984
        %9112 = vst.msk [vmem:[%s757 + $0x48] sm:$0xff] %vm9102, %v8989
        %9113 = vst.msk [vmem:[%s757 + $0x50] sm:$0xff] %vm9102, %v8994
        %9114 = vst.msk [vmem:[%s757 + $0x58] sm:$0xff] %vm9102, %v8999
        %9115 = vst.msk [vmem:[%s757 + $0x60] sm:$0xff] %vm9102, %v9004
        %9116 = vst.msk [vmem:[%s757 + $0x68] sm:$0xff] %vm9102, %v9009
        %9117 = vst.msk [vmem:[%s757 + $0x70] sm:$0xff] %vm9102, %v9014
        %9118 = vst.msk [vmem:[%s757 + $0x78] sm:$0xff] %vm9102, %v9019
        %9119 = vst.msk [vmem:[%s757 + $0x80] sm:$0xff] %vm9102, %v9024
        %9120 = vst.msk [vmem:[%s757 + $0x88] sm:$0xff] %vm9102, %v9029
        %9121 = vst.msk [vmem:[%s757 + $0x90] sm:$0xff] %vm9102, %v9034
        %9122 = vst.msk [vmem:[%s757 + $0x98] sm:$0xff] %vm9102, %v9039
        %9123 = vst.msk [vmem:[%s757 + $0xa0] sm:$0xff] %vm9102, %v9044
        %9124 = vst.msk [vmem:[%s757 + $0xa8] sm:$0xff] %vm9102, %v9049
        %9125 = vst.msk [vmem:[%s757 + $0xb0] sm:$0xff] %vm9102, %v9054
        %9126 = vst.msk [vmem:[%s757 + $0xb8] sm:$0xff] %vm9102, %v9059
        %9127 = vst.msk [vmem:[%s757 + $0xc0] sm:$0xff] %vm9102, %v9064
        %9128 = vst.msk [vmem:[%s757 + $0xc8] sm:$0xff] %vm9102, %v9069
        %9129 = vst.msk [vmem:[%s757 + $0xd0] sm:$0xff] %vm9102, %v9074
        %9130 = vst.msk [vmem:[%s757 + $0xd8] sm:$0xff] %vm9102, %v9079
        %9131 = vst.msk [vmem:[%s757 + $0xe0] sm:$0xff] %vm9102, %v9084
        %9132 = vst.msk [vmem:[%s757 + $0xe8] sm:$0xff] %vm9102, %v9089
        %9133 = vst.msk [vmem:[%s757 + $0xf0] sm:$0xff] %vm9102, %v9094
        %9134 = vst.msk [vmem:[%s757 + $0xf8] sm:$0xff] %vm9102, %v9099
        %s9135 = sand.u32 %s577, 1
        %s9136 = scalar_lea.sflag [#allocation3], %s9135
        %s9137 = sand.u32 %s577, 1
        %s9138 = smul.addr %s9137, 256
        %s9139 = scalar_lea.vmem [#allocation2], %s9138
        // Predicated region
        $region121: #{simple_edge_embedding_forward.1} parent=119 // pred_check
          %p9140 = pneg %p587
        $region122: #{simple_edge_embedding_forward.1} parent=119 // pred_check_branch
          %9142 = sbr.rel (%p9140) target = $region124
        $region123: #{simple_edge_embedding_forward.1} parent=119 // pred_region
          %s9144 = ssub.s32 4096, 4096
          %9145 = vsyncadd %s9136, %s9144
          %s9146 = smul.addr %s39, 32
          %s9147 = smul.addr %s9146, 128
          %s9148 = scalar_lea.hbm %s25, %s9147
          %s9149 = sshll.u32 %s9139, 4
          %s9150 = int_to_ptr.vmem [resolvable:$true] %s9149
          %9155 = dma.vmem_to_hbm [thread:$0]  %s9150, 4096, %s9148, %s9136, 128, 128, 8
        $region124: #{simple_edge_embedding_forward.1} parent=119 // pred_fallthru
          _
      $region120: #{simple_edge_embedding_forward.1} parent=5 // pred_fallthru
        _
      %p9156 = scmp.le.s32.totalorder 2, %s34
      // Predicated region
      $region125: #{simple_edge_embedding_forward.1} parent=5 // pred_check
        %p9157 = pneg %p9156
      $region126: #{simple_edge_embedding_forward.1} parent=5 // pred_check_branch
        %9159 = sbr.rel (%p9157) target = $region128
      $region127: #{simple_edge_embedding_forward.1} parent=5 // pred_region
        %s9160 = ssub.s32 %s34, 2
        // Predicated region
        $region129: #{simple_edge_embedding_forward.1} parent=127 // pred_check
          %p9161 = pneg %p593
        $region130: #{simple_edge_embedding_forward.1} parent=127 // pred_check_branch
          %9163 = sbr.rel (%p9161) target = $region132
        $region131: #{simple_edge_embedding_forward.1} parent=127 // pred_region
          %s9164 = sand.u32 %s578, 1
          %s9165 = scalar_lea.sflag [#allocation3], %s9164
          %s9166 = sand.u32 %s578, 1
          %s9167 = smul.addr %s9166, 256
          %s9168 = scalar_lea.vmem [#allocation2], %s9167
          %9169 = dma.done %s9165, 4096
        $region132: #{simple_edge_embedding_forward.1} parent=127 // pred_fallthru
          _
      $region128: #{simple_edge_embedding_forward.1} parent=5 // pred_fallthru
        _
    $region6: #{simple_edge_embedding_forward.1} parent=1 // loop_footer
      %s38 = sadd.s32 1, %s34
    $region7: #{simple_edge_embedding_forward.1} parent=1 // loop_footer_branch
      %33 = sbr.rel target = $region3
    $region8: #{simple_edge_embedding_forward.1} parent=1 // loop_exit
      _
    %9170 = vsyncpa [#allocation3], 1
    %s9171 = scalar_lea.sflag [#allocation3], 1
    %9172 = vsyncpa %s9171, 1

</llo_original>
